<compile_context>
chip_gen: v7x
topology: tpu7x:2x2x1
jax: 0.10.0
libtpu: 0.0.40
codegen_flags: <defaults>
</compile_context>

<pallas_src>
import jax
import jax.numpy as jnp
from jax.experimental import pallas as pl
from jax.experimental.pallas import tpu as pltpu


# ---------------- fused conv3x3 + ReLU + 2x2 max-pool kernel ----------------

def _conv_relu_pool_kernel(p_ref, w_ref, b_ref, o_ref):
    """p_ref: (1, 4, M, K) pool-tap-major im2col patches for one image.
    w_ref: (K, Cout); b_ref: (1, Cout); o_ref: (1, M, Cout) pooled output.
    relu(max_t(x_t @ w) + b) == relu/pool of the conv since bias is shared."""
    w = w_ref[...]
    mx = None
    for t in range(4):                       # static unroll over 4 pool taps
        y = jnp.dot(p_ref[0, t], w, preferred_element_type=jnp.float32)
        mx = y if mx is None else jnp.maximum(mx, y)
    o_ref[0] = jnp.maximum(mx + b_ref[...], 0.0)


def _im2col_pool_taps(x):
    """x: (N,H,W,C) -> (N, 4, PH*PW, 9*C), taps grouped for 2x2/2 pooling.
    Plain-JAX glue on tiny arrays; fuses into the surrounding jit."""
    n, h, w, c = x.shape
    oh, ow = h - 2, w - 2
    ph, pw = oh // 2, ow // 2                # torch max_pool2d(2,2): drop odd tail
    cols = [x[:, dy:dy + oh, dx:dx + ow, :] for dy in range(3) for dx in range(3)]
    p = jnp.concatenate(cols, axis=-1)                    # (N, OH, OW, 9C)
    taps = [p[:, di:di + 2 * ph:2, dj:dj + 2 * pw:2, :]
            for di in range(2) for dj in range(2)]
    pt = jnp.stack(taps, axis=1)                          # (N, 4, PH, PW, 9C)
    return pt.reshape(n, 4, ph * pw, 9 * c), ph, pw


def conv3x3_relu_pool(x, w, b):
    """x: (N,H,W,Cin) NHWC; w: (3,3,Cin,Cout); b: (Cout,).
    VALID conv, stride 1, + ReLU + 2x2/2 max-pool in a single pallas_call."""
    n = x.shape[0]
    cout = w.shape[-1]
    pt, ph, pw = _im2col_pool_taps(x)
    m, k = pt.shape[2], pt.shape[3]
    out = pl.pallas_call(
        _conv_relu_pool_kernel,
        grid=(n,),
        out_shape=jax.ShapeDtypeStruct((n, m, cout), jnp.float32),
        in_specs=[pl.BlockSpec((1, 4, m, k), lambda i: (i, 0, 0, 0)),
                  pl.BlockSpec((k, cout), lambda i: (0, 0)),
                  pl.BlockSpec((1, cout), lambda i: (0, 0))],
        out_specs=pl.BlockSpec((1, m, cout), lambda i: (i, 0, 0)),
        compiler_params=pltpu.CompilerParams(
            dimension_semantics=("parallel",)),   # 2 TCs on v7x; no-op v5e/v6e
    )(pt, w.reshape(k, cout), b.reshape(1, cout))
    return out.reshape(n, ph, pw, cout)


# -------------------- fused FC head (fc1/fc2/fc3 + logsm) -------------------

def _fc_head_kernel(x_ref, w1_ref, b1_ref, w2_ref, b2_ref, w3_ref, b3_ref, o_ref):
    h = jnp.dot(x_ref[...], w1_ref[...], preferred_element_type=jnp.float32)
    h = jnp.maximum(h + b1_ref[...], 0.0)
    # TODO(synk): F.dropout(p=dropout_rate, training=True) is stochastic; this
    # deterministic inference kernel treats dropout as identity.
    z = jnp.dot(h, w2_ref[...], preferred_element_type=jnp.float32) + b2_ref[...]
    z = jnp.dot(z, w3_ref[...], preferred_element_type=jnp.float32) + b3_ref[...]
    m = jnp.max(z, axis=1, keepdims=True)
    s = jnp.sum(jnp.exp(z - m), axis=1, keepdims=True)
    o_ref[...] = z - m - jnp.log(s)


def fc_head(x, params):
    n = x.shape[0]
    nc = params["fc3_b"].shape[0]
    vmem = pl.BlockSpec(memory_space=pltpu.MemorySpace.VMEM)
    return pl.pallas_call(
        _fc_head_kernel,
        out_shape=jax.ShapeDtypeStruct((n, nc), jnp.float32),
        in_specs=[vmem] * 7,
        out_specs=vmem,
    )(x,
      params["fc1_w"], params["fc1_b"].reshape(1, -1),
      params["fc2_w"], params["fc2_b"].reshape(1, -1),
      params["fc3_w"], params["fc3_b"].reshape(1, -1))


# ------------------------------ params / forward ----------------------------

def init_params(key, num_channels, initial_filters, num_fc1, num_classes, flatten):
    ks = jax.random.split(key, 14)

    def u(k, shape, fan_in):
        bound = 1.0 / jnp.sqrt(jnp.float32(fan_in))
        return jax.random.uniform(k, shape, jnp.float32, -bound, bound)

    f = initial_filters
    return {
        "conv1_w": u(ks[0], (3, 3, num_channels, f), 9 * num_channels),
        "conv1_b": u(ks[1], (f,), 9 * num_channels),
        "conv2_w": u(ks[2], (3, 3, f, 2 * f), 9 * f),
        "conv2_b": u(ks[3], (2 * f,), 9 * f),
        "conv3_w": u(ks[4], (3, 3, 2 * f, 4 * f), 9 * 2 * f),
        "conv3_b": u(ks[5], (4 * f,), 9 * 2 * f),
        "conv4_w": u(ks[6], (3, 3, 4 * f, 8 * f), 9 * 4 * f),
        "conv4_b": u(ks[7], (8 * f,), 9 * 4 * f),
        "fc1_w": u(ks[8], (flatten, num_fc1), flatten),
        "fc1_b": u(ks[9], (num_fc1,), flatten),
        "fc2_w": u(ks[10], (num_fc1, num_classes), num_fc1),
        "fc2_b": u(ks[11], (num_classes,), num_fc1),
        # TODO(synk): `self.fc3` is used in forward() but never defined in
        # __init__ (the PyTorch module would raise AttributeError); a synthetic
        # Linear(num_classes, num_classes) is created so the forward runs.
        "fc3_w": u(ks[12], (num_classes, num_classes), num_classes),
        "fc3_b": u(ks[13], (num_classes,), num_classes),
    }


def tumor_detection_forward(params, x_nchw):
    # layout: accept NCHW (PyTorch convention), compute in NHWC.
    x = jnp.transpose(x_nchw, (0, 2, 3, 1)).astype(jnp.float32)
    x = conv3x3_relu_pool(x, params["conv1_w"], params["conv1_b"])
    x = conv3x3_relu_pool(x, params["conv2_w"], params["conv2_b"])
    x = conv3x3_relu_pool(x, params["conv3_w"], params["conv3_b"])
    x = conv3x3_relu_pool(x, params["conv4_w"], params["conv4_b"])
    n = x.shape[0]
    x = x.reshape(n, -1)          # flatten (NHWC order; fc1_w built for it)
    return fc_head(x, params)


if __name__ == "__main__":
    # params = {'shape_in': (3, 64, 64), 'initial_filters': 4,
    #           'num_fc1': 32, 'num_classes': 2, 'dropout_rate': 0.25}
    N, C, H, W = 2, 3, 64, 64
    f, num_fc1, num_classes = 4, 32, 2
    # spatial trace: 64 -conv-> 62 -pool-> 31 -conv-> 29 -pool-> 14
    #                  -conv-> 12 -pool-> 6 -conv-> 4 -pool-> 2
    flatten = 2 * 2 * 8 * f  # = 128, matches findConv2dparams-based flatten

    key = jax.random.PRNGKey(0)
    kx, kp = jax.random.split(key)
    x = jax.random.normal(kx, (N, C, H, W), jnp.float32)
    params = init_params(kp, C, f, num_fc1, num_classes, flatten)

    out = jax.jit(tumor_detection_forward)(params, x)
    jax.block_until_ready(out)
    assert out.shape == (N, num_classes)
    assert bool(jnp.all(jnp.isfinite(out)))
    print("KERNEL_OK")
</pallas_src>

<mosaic_0001>
module attributes {stable_mosaic.version = 11 : i64} {
  func.func @_conv_relu_pool_kernel(%arg0: i32, %arg1: memref<1x4x961x27xf32, #tpu.memory_space<vmem>>, %arg2: memref<27x4xf32, #tpu.memory_space<vmem>>, %arg3: memref<1x4xf32, #tpu.memory_space<vmem>>, %arg4: memref<1x961x4xf32, #tpu.memory_space<vmem>>) attributes {dimension_semantics = [#tpu.dimension_semantics<parallel>], iteration_bounds = array<i64: 2>, scalar_prefetch = 0 : i64, scratch_operands = 0 : i64, tpu.core_type = #tpu.core_type<tc>, window_params = [{transform_indices = @transform_0, window_bounds = array<i64: 1, 4, 961, 27>}, {pipeline_mode = #tpu.pipeline_mode<synchronous>, transform_indices = @transform_1, window_bounds = array<i64: 27, 4>}, {pipeline_mode = #tpu.pipeline_mode<synchronous>, transform_indices = @transform_2, window_bounds = array<i64: 1, 4>}, {transform_indices = @transform_3, window_bounds = array<i64: 1, 961, 4>}]} {
    %c0 = arith.constant 0 : index
    %c0_0 = arith.constant 0 : index
    %0 = vector.load %arg2[%c0, %c0_0] : memref<27x4xf32, #tpu.memory_space<vmem>>, vector<27x4xf32>
    %c0_1 = arith.constant 0 : index
    %c0_2 = arith.constant 0 : index
    %c0_3 = arith.constant 0 : index
    %c0_4 = arith.constant 0 : index
    %1 = vector.load %arg1[%c0_1, %c0_2, %c0_3, %c0_4] : memref<1x4x961x27xf32, #tpu.memory_space<vmem>>, vector<1x1x961x27xf32>
    %2 = vector.shape_cast %1 : vector<1x1x961x27xf32> to vector<961x27xf32>
    %cst = arith.constant dense<0.000000e+00> : vector<961x4xf32>
    %3 = tpu.matmul %2, %0, %cst {dimension_numbers = #tpu.dot_dimension_numbers<[1], [0], [0], [1], [0, 0, 1, 1], [], []>} : vector<961x27xf32>, vector<27x4xf32>, vector<961x4xf32> -> vector<961x4xf32>
    %c0_5 = arith.constant 0 : index
    %c1 = arith.constant 1 : index
    %c0_6 = arith.constant 0 : index
    %c0_7 = arith.constant 0 : index
    %4 = vector.load %arg1[%c0_5, %c1, %c0_6, %c0_7] : memref<1x4x961x27xf32, #tpu.memory_space<vmem>>, vector<1x1x961x27xf32>
    %5 = vector.shape_cast %4 : vector<1x1x961x27xf32> to vector<961x27xf32>
    %cst_8 = arith.constant dense<0.000000e+00> : vector<961x4xf32>
    %6 = tpu.matmul %5, %0, %cst_8 {dimension_numbers = #tpu.dot_dimension_numbers<[1], [0], [0], [1], [0, 0, 1, 1], [], []>} : vector<961x27xf32>, vector<27x4xf32>, vector<961x4xf32> -> vector<961x4xf32>
    %7 = arith.maximumf %3, %6 : vector<961x4xf32>
    %c0_9 = arith.constant 0 : index
    %c2 = arith.constant 2 : index
    %c0_10 = arith.constant 0 : index
    %c0_11 = arith.constant 0 : index
    %8 = vector.load %arg1[%c0_9, %c2, %c0_10, %c0_11] : memref<1x4x961x27xf32, #tpu.memory_space<vmem>>, vector<1x1x961x27xf32>
    %9 = vector.shape_cast %8 : vector<1x1x961x27xf32> to vector<961x27xf32>
    %cst_12 = arith.constant dense<0.000000e+00> : vector<961x4xf32>
    %10 = tpu.matmul %9, %0, %cst_12 {dimension_numbers = #tpu.dot_dimension_numbers<[1], [0], [0], [1], [0, 0, 1, 1], [], []>} : vector<961x27xf32>, vector<27x4xf32>, vector<961x4xf32> -> vector<961x4xf32>
    %11 = arith.maximumf %7, %10 : vector<961x4xf32>
    %c0_13 = arith.constant 0 : index
    %c3 = arith.constant 3 : index
    %c0_14 = arith.constant 0 : index
    %c0_15 = arith.constant 0 : index
    %12 = vector.load %arg1[%c0_13, %c3, %c0_14, %c0_15] : memref<1x4x961x27xf32, #tpu.memory_space<vmem>>, vector<1x1x961x27xf32>
    %13 = vector.shape_cast %12 : vector<1x1x961x27xf32> to vector<961x27xf32>
    %cst_16 = arith.constant dense<0.000000e+00> : vector<961x4xf32>
    %14 = tpu.matmul %13, %0, %cst_16 {dimension_numbers = #tpu.dot_dimension_numbers<[1], [0], [0], [1], [0, 0, 1, 1], [], []>} : vector<961x27xf32>, vector<27x4xf32>, vector<961x4xf32> -> vector<961x4xf32>
    %15 = arith.maximumf %11, %14 : vector<961x4xf32>
    %c0_17 = arith.constant 0 : index
    %c0_18 = arith.constant 0 : index
    %16 = vector.load %arg3[%c0_17, %c0_18] : memref<1x4xf32, #tpu.memory_space<vmem>>, vector<1x4xf32>
    %17 = vector.broadcast %16 : vector<1x4xf32> to vector<961x4xf32>
    %18 = arith.addf %15, %17 : vector<961x4xf32>
    %cst_19 = arith.constant 0.000000e+00 : f32
    %19 = vector.broadcast %cst_19 : f32 to vector<961x4xf32>
    %20 = arith.maximumf %18, %19 : vector<961x4xf32>
    %c0_20 = arith.constant 0 : index
    %c0_21 = arith.constant 0 : index
    %c0_22 = arith.constant 0 : index
    %21 = vector.load %arg4[%c0_20, %c0_21, %c0_22] : memref<1x961x4xf32, #tpu.memory_space<vmem>>, vector<1x961x4xf32>
    %22 = vector.shape_cast %21 : vector<1x961x4xf32> to vector<961x4xf32>
    %23 = vector.shape_cast %20 : vector<961x4xf32> to vector<1x961x4xf32>
    tpu.vector_store %arg4[%c0_20, %c0_21, %c0_22], %23 {strides = array<i32>} : memref<1x961x4xf32, #tpu.memory_space<vmem>>, vector<1x961x4xf32>,
    return
  }
  func.func @transform_0(%arg0: i32) -> (i32, i32, i32, i32) {
    %c0_i32 = arith.constant 0 : i32
    %c0_i32_0 = arith.constant 0 : i32
    %c0_i32_1 = arith.constant 0 : i32
    %c0_i32_2 = arith.constant 0 : i32
    return %arg0, %c0_i32, %c0_i32_0, %c0_i32_1 : i32, i32, i32, i32
  }
  func.func @transform_1(%arg0: i32) -> (i32, i32) {
    %c0_i32 = arith.constant 0 : i32
    %c0_i32_0 = arith.constant 0 : i32
    %c0_i32_1 = arith.constant 0 : i32
    return %c0_i32, %c0_i32_0 : i32, i32
  }
  func.func @transform_2(%arg0: i32) -> (i32, i32) {
    %c0_i32 = arith.constant 0 : i32
    %c0_i32_0 = arith.constant 0 : i32
    %c0_i32_1 = arith.constant 0 : i32
    return %c0_i32, %c0_i32_0 : i32, i32
  }
  func.func @transform_3(%arg0: i32) -> (i32, i32, i32) {
    %c0_i32 = arith.constant 0 : i32
    %c0_i32_0 = arith.constant 0 : i32
    %c0_i32_1 = arith.constant 0 : i32
    return %arg0, %c0_i32, %c0_i32_0 : i32, i32, i32
  }
}

module attributes {stable_mosaic.version = 11 : i64} {
  func.func @_conv_relu_pool_kernel(%arg0: i32, %arg1: memref<1x4x196x36xf32, #tpu.memory_space<vmem>>, %arg2: memref<36x8xf32, #tpu.memory_space<vmem>>, %arg3: memref<1x8xf32, #tpu.memory_space<vmem>>, %arg4: memref<1x196x8xf32, #tpu.memory_space<vmem>>) attributes {dimension_semantics = [#tpu.dimension_semantics<parallel>], iteration_bounds = array<i64: 2>, scalar_prefetch = 0 : i64, scratch_operands = 0 : i64, tpu.core_type = #tpu.core_type<tc>, window_params = [{transform_indices = @transform_0, window_bounds = array<i64: 1, 4, 196, 36>}, {pipeline_mode = #tpu.pipeline_mode<synchronous>, transform_indices = @transform_1, window_bounds = array<i64: 36, 8>}, {pipeline_mode = #tpu.pipeline_mode<synchronous>, transform_indices = @transform_2, window_bounds = array<i64: 1, 8>}, {transform_indices = @transform_3, window_bounds = array<i64: 1, 196, 8>}]} {
    %c0 = arith.constant 0 : index
    %c0_0 = arith.constant 0 : index
    %0 = vector.load %arg2[%c0, %c0_0] : memref<36x8xf32, #tpu.memory_space<vmem>>, vector<36x8xf32>
    %c0_1 = arith.constant 0 : index
    %c0_2 = arith.constant 0 : index
    %c0_3 = arith.constant 0 : index
    %c0_4 = arith.constant 0 : index
    %1 = vector.load %arg1[%c0_1, %c0_2, %c0_3, %c0_4] : memref<1x4x196x36xf32, #tpu.memory_space<vmem>>, vector<1x1x196x36xf32>
    %2 = vector.shape_cast %1 : vector<1x1x196x36xf32> to vector<196x36xf32>
    %cst = arith.constant dense<0.000000e+00> : vector<196x8xf32>
    %3 = tpu.matmul %2, %0, %cst {dimension_numbers = #tpu.dot_dimension_numbers<[1], [0], [0], [1], [0, 0, 1, 1], [], []>} : vector<196x36xf32>, vector<36x8xf32>, vector<196x8xf32> -> vector<196x8xf32>
    %c0_5 = arith.constant 0 : index
    %c1 = arith.constant 1 : index
    %c0_6 = arith.constant 0 : index
    %c0_7 = arith.constant 0 : index
    %4 = vector.load %arg1[%c0_5, %c1, %c0_6, %c0_7] : memref<1x4x196x36xf32, #tpu.memory_space<vmem>>, vector<1x1x196x36xf32>
    %5 = vector.shape_cast %4 : vector<1x1x196x36xf32> to vector<196x36xf32>
    %cst_8 = arith.constant dense<0.000000e+00> : vector<196x8xf32>
    %6 = tpu.matmul %5, %0, %cst_8 {dimension_numbers = #tpu.dot_dimension_numbers<[1], [0], [0], [1], [0, 0, 1, 1], [], []>} : vector<196x36xf32>, vector<36x8xf32>, vector<196x8xf32> -> vector<196x8xf32>
    %7 = arith.maximumf %3, %6 : vector<196x8xf32>
    %c0_9 = arith.constant 0 : index
    %c2 = arith.constant 2 : index
    %c0_10 = arith.constant 0 : index
    %c0_11 = arith.constant 0 : index
    %8 = vector.load %arg1[%c0_9, %c2, %c0_10, %c0_11] : memref<1x4x196x36xf32, #tpu.memory_space<vmem>>, vector<1x1x196x36xf32>
    %9 = vector.shape_cast %8 : vector<1x1x196x36xf32> to vector<196x36xf32>
    %cst_12 = arith.constant dense<0.000000e+00> : vector<196x8xf32>
    %10 = tpu.matmul %9, %0, %cst_12 {dimension_numbers = #tpu.dot_dimension_numbers<[1], [0], [0], [1], [0, 0, 1, 1], [], []>} : vector<196x36xf32>, vector<36x8xf32>, vector<196x8xf32> -> vector<196x8xf32>
    %11 = arith.maximumf %7, %10 : vector<196x8xf32>
    %c0_13 = arith.constant 0 : index
    %c3 = arith.constant 3 : index
    %c0_14 = arith.constant 0 : index
    %c0_15 = arith.constant 0 : index
    %12 = vector.load %arg1[%c0_13, %c3, %c0_14, %c0_15] : memref<1x4x196x36xf32, #tpu.memory_space<vmem>>, vector<1x1x196x36xf32>
    %13 = vector.shape_cast %12 : vector<1x1x196x36xf32> to vector<196x36xf32>
    %cst_16 = arith.constant dense<0.000000e+00> : vector<196x8xf32>
    %14 = tpu.matmul %13, %0, %cst_16 {dimension_numbers = #tpu.dot_dimension_numbers<[1], [0], [0], [1], [0, 0, 1, 1], [], []>} : vector<196x36xf32>, vector<36x8xf32>, vector<196x8xf32> -> vector<196x8xf32>
    %15 = arith.maximumf %11, %14 : vector<196x8xf32>
    %c0_17 = arith.constant 0 : index
    %c0_18 = arith.constant 0 : index
    %16 = vector.load %arg3[%c0_17, %c0_18] : memref<1x8xf32, #tpu.memory_space<vmem>>, vector<1x8xf32>
    %17 = vector.broadcast %16 : vector<1x8xf32> to vector<196x8xf32>
    %18 = arith.addf %15, %17 : vector<196x8xf32>
    %cst_19 = arith.constant 0.000000e+00 : f32
    %19 = vector.broadcast %cst_19 : f32 to vector<196x8xf32>
    %20 = arith.maximumf %18, %19 : vector<196x8xf32>
    %c0_20 = arith.constant 0 : index
    %c0_21 = arith.constant 0 : index
    %c0_22 = arith.constant 0 : index
    %21 = vector.load %arg4[%c0_20, %c0_21, %c0_22] : memref<1x196x8xf32, #tpu.memory_space<vmem>>, vector<1x196x8xf32>
    %22 = vector.shape_cast %21 : vector<1x196x8xf32> to vector<196x8xf32>
    %23 = vector.shape_cast %20 : vector<196x8xf32> to vector<1x196x8xf32>
    tpu.vector_store %arg4[%c0_20, %c0_21, %c0_22], %23 {strides = array<i32>} : memref<1x196x8xf32, #tpu.memory_space<vmem>>, vector<1x196x8xf32>,
    return
  }
  func.func @transform_0(%arg0: i32) -> (i32, i32, i32, i32) {
    %c0_i32 = arith.constant 0 : i32
    %c0_i32_0 = arith.constant 0 : i32
    %c0_i32_1 = arith.constant 0 : i32
    %c0_i32_2 = arith.constant 0 : i32
    return %arg0, %c0_i32, %c0_i32_0, %c0_i32_1 : i32, i32, i32, i32
  }
  func.func @transform_1(%arg0: i32) -> (i32, i32) {
    %c0_i32 = arith.constant 0 : i32
    %c0_i32_0 = arith.constant 0 : i32
    %c0_i32_1 = arith.constant 0 : i32
    return %c0_i32, %c0_i32_0 : i32, i32
  }
  func.func @transform_2(%arg0: i32) -> (i32, i32) {
    %c0_i32 = arith.constant 0 : i32
    %c0_i32_0 = arith.constant 0 : i32
    %c0_i32_1 = arith.constant 0 : i32
    return %c0_i32, %c0_i32_0 : i32, i32
  }
  func.func @transform_3(%arg0: i32) -> (i32, i32, i32) {
    %c0_i32 = arith.constant 0 : i32
    %c0_i32_0 = arith.constant 0 : i32
    %c0_i32_1 = arith.constant 0 : i32
    return %arg0, %c0_i32, %c0_i32_0 : i32, i32, i32
  }
}

module attributes {stable_mosaic.version = 11 : i64} {
  func.func @_conv_relu_pool_kernel(%arg0: i32, %arg1: memref<1x4x36x72xf32, #tpu.memory_space<vmem>>, %arg2: memref<72x16xf32, #tpu.memory_space<vmem>>, %arg3: memref<1x16xf32, #tpu.memory_space<vmem>>, %arg4: memref<1x36x16xf32, #tpu.memory_space<vmem>>) attributes {dimension_semantics = [#tpu.dimension_semantics<parallel>], iteration_bounds = array<i64: 2>, scalar_prefetch = 0 : i64, scratch_operands = 0 : i64, tpu.core_type = #tpu.core_type<tc>, window_params = [{transform_indices = @transform_0, window_bounds = array<i64: 1, 4, 36, 72>}, {pipeline_mode = #tpu.pipeline_mode<synchronous>, transform_indices = @transform_1, window_bounds = array<i64: 72, 16>}, {pipeline_mode = #tpu.pipeline_mode<synchronous>, transform_indices = @transform_2, window_bounds = array<i64: 1, 16>}, {transform_indices = @transform_3, window_bounds = array<i64: 1, 36, 16>}]} {
    %c0 = arith.constant 0 : index
    %c0_0 = arith.constant 0 : index
    %0 = vector.load %arg2[%c0, %c0_0] : memref<72x16xf32, #tpu.memory_space<vmem>>, vector<72x16xf32>
    %c0_1 = arith.constant 0 : index
    %c0_2 = arith.constant 0 : index
    %c0_3 = arith.constant 0 : index
    %c0_4 = arith.constant 0 : index
    %1 = vector.load %arg1[%c0_1, %c0_2, %c0_3, %c0_4] : memref<1x4x36x72xf32, #tpu.memory_space<vmem>>, vector<1x1x36x72xf32>
    %2 = vector.shape_cast %1 : vector<1x1x36x72xf32> to vector<36x72xf32>
    %cst = arith.constant dense<0.000000e+00> : vector<36x16xf32>
    %3 = tpu.matmul %2, %0, %cst {dimension_numbers = #tpu.dot_dimension_numbers<[1], [0], [0], [1], [0, 0, 1, 1], [], []>} : vector<36x72xf32>, vector<72x16xf32>, vector<36x16xf32> -> vector<36x16xf32>
    %c0_5 = arith.constant 0 : index
    %c1 = arith.constant 1 : index
    %c0_6 = arith.constant 0 : index
    %c0_7 = arith.constant 0 : index
    %4 = vector.load %arg1[%c0_5, %c1, %c0_6, %c0_7] : memref<1x4x36x72xf32, #tpu.memory_space<vmem>>, vector<1x1x36x72xf32>
    %5 = vector.shape_cast %4 : vector<1x1x36x72xf32> to vector<36x72xf32>
    %cst_8 = arith.constant dense<0.000000e+00> : vector<36x16xf32>
    %6 = tpu.matmul %5, %0, %cst_8 {dimension_numbers = #tpu.dot_dimension_numbers<[1], [0], [0], [1], [0, 0, 1, 1], [], []>} : vector<36x72xf32>, vector<72x16xf32>, vector<36x16xf32> -> vector<36x16xf32>
    %7 = arith.maximumf %3, %6 : vector<36x16xf32>
    %c0_9 = arith.constant 0 : index
    %c2 = arith.constant 2 : index
    %c0_10 = arith.constant 0 : index
    %c0_11 = arith.constant 0 : index
    %8 = vector.load %arg1[%c0_9, %c2, %c0_10, %c0_11] : memref<1x4x36x72xf32, #tpu.memory_space<vmem>>, vector<1x1x36x72xf32>
    %9 = vector.shape_cast %8 : vector<1x1x36x72xf32> to vector<36x72xf32>
    %cst_12 = arith.constant dense<0.000000e+00> : vector<36x16xf32>
    %10 = tpu.matmul %9, %0, %cst_12 {dimension_numbers = #tpu.dot_dimension_numbers<[1], [0], [0], [1], [0, 0, 1, 1], [], []>} : vector<36x72xf32>, vector<72x16xf32>, vector<36x16xf32> -> vector<36x16xf32>
    %11 = arith.maximumf %7, %10 : vector<36x16xf32>
    %c0_13 = arith.constant 0 : index
    %c3 = arith.constant 3 : index
    %c0_14 = arith.constant 0 : index
    %c0_15 = arith.constant 0 : index
    %12 = vector.load %arg1[%c0_13, %c3, %c0_14, %c0_15] : memref<1x4x36x72xf32, #tpu.memory_space<vmem>>, vector<1x1x36x72xf32>
    %13 = vector.shape_cast %12 : vector<1x1x36x72xf32> to vector<36x72xf32>
    %cst_16 = arith.constant dense<0.000000e+00> : vector<36x16xf32>
    %14 = tpu.matmul %13, %0, %cst_16 {dimension_numbers = #tpu.dot_dimension_numbers<[1], [0], [0], [1], [0, 0, 1, 1], [], []>} : vector<36x72xf32>, vector<72x16xf32>, vector<36x16xf32> -> vector<36x16xf32>
    %15 = arith.maximumf %11, %14 : vector<36x16xf32>
    %c0_17 = arith.constant 0 : index
    %c0_18 = arith.constant 0 : index
    %16 = vector.load %arg3[%c0_17, %c0_18] : memref<1x16xf32, #tpu.memory_space<vmem>>, vector<1x16xf32>
    %17 = vector.broadcast %16 : vector<1x16xf32> to vector<36x16xf32>
    %18 = arith.addf %15, %17 : vector<36x16xf32>
    %cst_19 = arith.constant 0.000000e+00 : f32
    %19 = vector.broadcast %cst_19 : f32 to vector<36x16xf32>
    %20 = arith.maximumf %18, %19 : vector<36x16xf32>
    %c0_20 = arith.constant 0 : index
    %c0_21 = arith.constant 0 : index
    %c0_22 = arith.constant 0 : index
    %21 = vector.load %arg4[%c0_20, %c0_21, %c0_22] : memref<1x36x16xf32, #tpu.memory_space<vmem>>, vector<1x36x16xf32>
    %22 = vector.shape_cast %21 : vector<1x36x16xf32> to vector<36x16xf32>
    %23 = vector.shape_cast %20 : vector<36x16xf32> to vector<1x36x16xf32>
    tpu.vector_store %arg4[%c0_20, %c0_21, %c0_22], %23 {strides = array<i32>} : memref<1x36x16xf32, #tpu.memory_space<vmem>>, vector<1x36x16xf32>,
    return
  }
  func.func @transform_0(%arg0: i32) -> (i32, i32, i32, i32) {
    %c0_i32 = arith.constant 0 : i32
    %c0_i32_0 = arith.constant 0 : i32
    %c0_i32_1 = arith.constant 0 : i32
    %c0_i32_2 = arith.constant 0 : i32
    return %arg0, %c0_i32, %c0_i32_0, %c0_i32_1 : i32, i32, i32, i32
  }
  func.func @transform_1(%arg0: i32) -> (i32, i32) {
    %c0_i32 = arith.constant 0 : i32
    %c0_i32_0 = arith.constant 0 : i32
    %c0_i32_1 = arith.constant 0 : i32
    return %c0_i32, %c0_i32_0 : i32, i32
  }
  func.func @transform_2(%arg0: i32) -> (i32, i32) {
    %c0_i32 = arith.constant 0 : i32
    %c0_i32_0 = arith.constant 0 : i32
    %c0_i32_1 = arith.constant 0 : i32
    return %c0_i32, %c0_i32_0 : i32, i32
  }
  func.func @transform_3(%arg0: i32) -> (i32, i32, i32) {
    %c0_i32 = arith.constant 0 : i32
    %c0_i32_0 = arith.constant 0 : i32
    %c0_i32_1 = arith.constant 0 : i32
    return %arg0, %c0_i32, %c0_i32_0 : i32, i32, i32
  }
}

module attributes {stable_mosaic.version = 11 : i64} {
  func.func @_conv_relu_pool_kernel(%arg0: i32, %arg1: memref<1x4x4x144xf32, #tpu.memory_space<vmem>>, %arg2: memref<144x32xf32, #tpu.memory_space<vmem>>, %arg3: memref<1x32xf32, #tpu.memory_space<vmem>>, %arg4: memref<1x4x32xf32, #tpu.memory_space<vmem>>) attributes {dimension_semantics = [#tpu.dimension_semantics<parallel>], iteration_bounds = array<i64: 2>, scalar_prefetch = 0 : i64, scratch_operands = 0 : i64, tpu.core_type = #tpu.core_type<tc>, window_params = [{transform_indices = @transform_0, window_bounds = array<i64: 1, 4, 4, 144>}, {pipeline_mode = #tpu.pipeline_mode<synchronous>, transform_indices = @transform_1, window_bounds = array<i64: 144, 32>}, {pipeline_mode = #tpu.pipeline_mode<synchronous>, transform_indices = @transform_2, window_bounds = array<i64: 1, 32>}, {transform_indices = @transform_3, window_bounds = array<i64: 1, 4, 32>}]} {
    %c0 = arith.constant 0 : index
    %c0_0 = arith.constant 0 : index
    %0 = vector.load %arg2[%c0, %c0_0] : memref<144x32xf32, #tpu.memory_space<vmem>>, vector<144x32xf32>
    %c0_1 = arith.constant 0 : index
    %c0_2 = arith.constant 0 : index
    %c0_3 = arith.constant 0 : index
    %c0_4 = arith.constant 0 : index
    %1 = vector.load %arg1[%c0_1, %c0_2, %c0_3, %c0_4] : memref<1x4x4x144xf32, #tpu.memory_space<vmem>>, vector<1x1x4x144xf32>
    %2 = vector.shape_cast %1 : vector<1x1x4x144xf32> to vector<4x144xf32>
    %cst = arith.constant dense<0.000000e+00> : vector<4x32xf32>
    %3 = tpu.matmul %2, %0, %cst {dimension_numbers = #tpu.dot_dimension_numbers<[1], [0], [0], [1], [0, 0, 1, 1], [], []>} : vector<4x144xf32>, vector<144x32xf32>, vector<4x32xf32> -> vector<4x32xf32>
    %c0_5 = arith.constant 0 : index
    %c1 = arith.constant 1 : index
    %c0_6 = arith.constant 0 : index
    %c0_7 = arith.constant 0 : index
    %4 = vector.load %arg1[%c0_5, %c1, %c0_6, %c0_7] : memref<1x4x4x144xf32, #tpu.memory_space<vmem>>, vector<1x1x4x144xf32>
    %5 = vector.shape_cast %4 : vector<1x1x4x144xf32> to vector<4x144xf32>
    %cst_8 = arith.constant dense<0.000000e+00> : vector<4x32xf32>
    %6 = tpu.matmul %5, %0, %cst_8 {dimension_numbers = #tpu.dot_dimension_numbers<[1], [0], [0], [1], [0, 0, 1, 1], [], []>} : vector<4x144xf32>, vector<144x32xf32>, vector<4x32xf32> -> vector<4x32xf32>
    %7 = arith.maximumf %3, %6 : vector<4x32xf32>
    %c0_9 = arith.constant 0 : index
    %c2 = arith.constant 2 : index
    %c0_10 = arith.constant 0 : index
    %c0_11 = arith.constant 0 : index
    %8 = vector.load %arg1[%c0_9, %c2, %c0_10, %c0_11] : memref<1x4x4x144xf32, #tpu.memory_space<vmem>>, vector<1x1x4x144xf32>
    %9 = vector.shape_cast %8 : vector<1x1x4x144xf32> to vector<4x144xf32>
    %cst_12 = arith.constant dense<0.000000e+00> : vector<4x32xf32>
    %10 = tpu.matmul %9, %0, %cst_12 {dimension_numbers = #tpu.dot_dimension_numbers<[1], [0], [0], [1], [0, 0, 1, 1], [], []>} : vector<4x144xf32>, vector<144x32xf32>, vector<4x32xf32> -> vector<4x32xf32>
    %11 = arith.maximumf %7, %10 : vector<4x32xf32>
    %c0_13 = arith.constant 0 : index
    %c3 = arith.constant 3 : index
    %c0_14 = arith.constant 0 : index
    %c0_15 = arith.constant 0 : index
    %12 = vector.load %arg1[%c0_13, %c3, %c0_14, %c0_15] : memref<1x4x4x144xf32, #tpu.memory_space<vmem>>, vector<1x1x4x144xf32>
    %13 = vector.shape_cast %12 : vector<1x1x4x144xf32> to vector<4x144xf32>
    %cst_16 = arith.constant dense<0.000000e+00> : vector<4x32xf32>
    %14 = tpu.matmul %13, %0, %cst_16 {dimension_numbers = #tpu.dot_dimension_numbers<[1], [0], [0], [1], [0, 0, 1, 1], [], []>} : vector<4x144xf32>, vector<144x32xf32>, vector<4x32xf32> -> vector<4x32xf32>
    %15 = arith.maximumf %11, %14 : vector<4x32xf32>
    %c0_17 = arith.constant 0 : index
    %c0_18 = arith.constant 0 : index
    %16 = vector.load %arg3[%c0_17, %c0_18] : memref<1x32xf32, #tpu.memory_space<vmem>>, vector<1x32xf32>
    %17 = vector.broadcast %16 : vector<1x32xf32> to vector<4x32xf32>
    %18 = arith.addf %15, %17 : vector<4x32xf32>
    %cst_19 = arith.constant 0.000000e+00 : f32
    %19 = vector.broadcast %cst_19 : f32 to vector<4x32xf32>
    %20 = arith.maximumf %18, %19 : vector<4x32xf32>
    %c0_20 = arith.constant 0 : index
    %c0_21 = arith.constant 0 : index
    %c0_22 = arith.constant 0 : index
    %21 = vector.load %arg4[%c0_20, %c0_21, %c0_22] : memref<1x4x32xf32, #tpu.memory_space<vmem>>, vector<1x4x32xf32>
    %22 = vector.shape_cast %21 : vector<1x4x32xf32> to vector<4x32xf32>
    %23 = vector.shape_cast %20 : vector<4x32xf32> to vector<1x4x32xf32>
    tpu.vector_store %arg4[%c0_20, %c0_21, %c0_22], %23 {strides = array<i32>} : memref<1x4x32xf32, #tpu.memory_space<vmem>>, vector<1x4x32xf32>,
    return
  }
  func.func @transform_0(%arg0: i32) -> (i32, i32, i32, i32) {
    %c0_i32 = arith.constant 0 : i32
    %c0_i32_0 = arith.constant 0 : i32
    %c0_i32_1 = arith.constant 0 : i32
    %c0_i32_2 = arith.constant 0 : i32
    return %arg0, %c0_i32, %c0_i32_0, %c0_i32_1 : i32, i32, i32, i32
  }
  func.func @transform_1(%arg0: i32) -> (i32, i32) {
    %c0_i32 = arith.constant 0 : i32
    %c0_i32_0 = arith.constant 0 : i32
    %c0_i32_1 = arith.constant 0 : i32
    return %c0_i32, %c0_i32_0 : i32, i32
  }
  func.func @transform_2(%arg0: i32) -> (i32, i32) {
    %c0_i32 = arith.constant 0 : i32
    %c0_i32_0 = arith.constant 0 : i32
    %c0_i32_1 = arith.constant 0 : i32
    return %c0_i32, %c0_i32_0 : i32, i32
  }
  func.func @transform_3(%arg0: i32) -> (i32, i32, i32) {
    %c0_i32 = arith.constant 0 : i32
    %c0_i32_0 = arith.constant 0 : i32
    %c0_i32_1 = arith.constant 0 : i32
    return %arg0, %c0_i32, %c0_i32_0 : i32, i32, i32
  }
}

module attributes {stable_mosaic.version = 11 : i64} {
  func.func @_fc_head_kernel(%arg0: memref<2x128xf32, #tpu.memory_space<vmem>>, %arg1: memref<128x32xf32, #tpu.memory_space<vmem>>, %arg2: memref<1x32xf32, #tpu.memory_space<vmem>>, %arg3: memref<32x2xf32, #tpu.memory_space<vmem>>, %arg4: memref<1x2xf32, #tpu.memory_space<vmem>>, %arg5: memref<2x2xf32, #tpu.memory_space<vmem>>, %arg6: memref<1x2xf32, #tpu.memory_space<vmem>>, %arg7: memref<2x2xf32, #tpu.memory_space<vmem>>) attributes {dimension_semantics = [], scalar_prefetch = 0 : i64, scratch_operands = 0 : i64, tpu.core_type = #tpu.core_type<tc>} {
    %c0 = arith.constant 0 : index
    %c0_0 = arith.constant 0 : index
    %0 = vector.load %arg0[%c0, %c0_0] : memref<2x128xf32, #tpu.memory_space<vmem>>, vector<2x128xf32>
    %c0_1 = arith.constant 0 : index
    %c0_2 = arith.constant 0 : index
    %1 = vector.load %arg1[%c0_1, %c0_2] : memref<128x32xf32, #tpu.memory_space<vmem>>, vector<128x32xf32>
    %cst = arith.constant dense<0.000000e+00> : vector<2x32xf32>
    %2 = tpu.matmul %0, %1, %cst {dimension_numbers = #tpu.dot_dimension_numbers<[1], [0], [0], [1], [0, 0, 1, 1], [], []>} : vector<2x128xf32>, vector<128x32xf32>, vector<2x32xf32> -> vector<2x32xf32>
    %c0_3 = arith.constant 0 : index
    %c0_4 = arith.constant 0 : index
    %3 = vector.load %arg2[%c0_3, %c0_4] : memref<1x32xf32, #tpu.memory_space<vmem>>, vector<1x32xf32>
    %4 = vector.broadcast %3 : vector<1x32xf32> to vector<2x32xf32>
    %5 = arith.addf %2, %4 : vector<2x32xf32>
    %cst_5 = arith.constant 0.000000e+00 : f32
    %6 = vector.broadcast %cst_5 : f32 to vector<2x32xf32>
    %7 = arith.maximumf %5, %6 : vector<2x32xf32>
    %c0_6 = arith.constant 0 : index
    %c0_7 = arith.constant 0 : index
    %8 = vector.load %arg3[%c0_6, %c0_7] : memref<32x2xf32, #tpu.memory_space<vmem>>, vector<32x2xf32>
    %cst_8 = arith.constant dense<0.000000e+00> : vector<2x2xf32>
    %9 = tpu.matmul %7, %8, %cst_8 {dimension_numbers = #tpu.dot_dimension_numbers<[1], [0], [0], [1], [0, 0, 1, 1], [], []>} : vector<2x32xf32>, vector<32x2xf32>, vector<2x2xf32> -> vector<2x2xf32>
    %c0_9 = arith.constant 0 : index
    %c0_10 = arith.constant 0 : index
    %10 = vector.load %arg4[%c0_9, %c0_10] : memref<1x2xf32, #tpu.memory_space<vmem>>, vector<1x2xf32>
    %11 = vector.broadcast %10 : vector<1x2xf32> to vector<2x2xf32>
    %12 = arith.addf %9, %11 : vector<2x2xf32>
    %c0_11 = arith.constant 0 : index
    %c0_12 = arith.constant 0 : index
    %13 = vector.load %arg5[%c0_11, %c0_12] : memref<2x2xf32, #tpu.memory_space<vmem>>, vector<2x2xf32>
    %cst_13 = arith.constant dense<0.000000e+00> : vector<2x2xf32>
    %14 = tpu.matmul %12, %13, %cst_13 {dimension_numbers = #tpu.dot_dimension_numbers<[1], [0], [0], [1], [0, 0, 1, 1], [], []>} : vector<2x2xf32>, vector<2x2xf32>, vector<2x2xf32> -> vector<2x2xf32>
    %c0_14 = arith.constant 0 : index
    %c0_15 = arith.constant 0 : index
    %15 = vector.load %arg6[%c0_14, %c0_15] : memref<1x2xf32, #tpu.memory_space<vmem>>, vector<1x2xf32>
    %16 = vector.broadcast %15 : vector<1x2xf32> to vector<2x2xf32>
    %17 = arith.addf %14, %16 : vector<2x2xf32>
    %cst_16 = arith.constant dense<0xFF800000> : vector<2xf32>
    %18 = vector.multi_reduction <maximumf>, %17, %cst_16 [1] : vector<2x2xf32> to vector<2xf32>
    %19 = vector.shape_cast %18 : vector<2xf32> to vector<2x1xf32>
    %20 = vector.broadcast %19 : vector<2x1xf32> to vector<2x2xf32>
    %21 = arith.subf %17, %20 : vector<2x2xf32>
    %22 = math.exp %21 : vector<2x2xf32>
    %cst_17 = arith.constant dense<0.000000e+00> : vector<2xf32>
    %23 = vector.multi_reduction <add>, %22, %cst_17 [1] : vector<2x2xf32> to vector<2xf32>
    %24 = vector.shape_cast %23 : vector<2xf32> to vector<2x1xf32>
    %25 = vector.broadcast %19 : vector<2x1xf32> to vector<2x2xf32>
    %26 = arith.subf %17, %25 : vector<2x2xf32>
    %27 = math.log %24 : vector<2x1xf32>
    %28 = vector.broadcast %27 : vector<2x1xf32> to vector<2x2xf32>
    %29 = arith.subf %26, %28 : vector<2x2xf32>
    %c0_18 = arith.constant 0 : index
    %c0_19 = arith.constant 0 : index
    %30 = vector.load %arg7[%c0_18, %c0_19] : memref<2x2xf32, #tpu.memory_space<vmem>>, vector<2x2xf32>
    tpu.vector_store %arg7[%c0_18, %c0_19], %29 {strides = array<i32>} : memref<2x2xf32, #tpu.memory_space<vmem>>, vector<2x2xf32>,
    return
  }
}

</mosaic_0001>

<llo_original>
// kernel: tumor_detection_forward.5
$region0: #{tumor_detection_forward.5}
  #allocation0 [shape = 'u32[]', space=smem, size = 0x4, offset = 0x4, fixed_abs, tag = 'smem constant byte address 0x4 - core index']
  #allocation1 [shape = 'u32[144,128]{1,0:T(1,128)}', space=vmem, size = 0x12000, scoped, tag = 'internal scratch']
  %s0 = inlined_call_operand.vmem [shape: f32[2,4,961,27], index: 0, kind: input, shape index: {}]
  %s1 = inlined_call_operand.vmem [shape: f32[27,4], index: 1, kind: input, shape index: {}]
  %s2 = inlined_call_operand.vmem [shape: f32[1,4], index: 2, kind: input, shape index: {}]
  %s3 = inlined_call_operand.vmem [shape: f32[2,961,4], index: 3, kind: output, shape index: {}]
  %s4 = sld [smem:[#allocation0]]
  $region45: #{tumor_detection_forward.5} parent=0
    _
  %s6 = ssub.s32 1, %s4
  %s7 = scalar_select 0, %s6, %s4
  loop: start=0, step=1, limit=4
  $region2: #{tumor_detection_forward.5} parent=0 // loop_pre_header
    _
  $region3: #{tumor_detection_forward.5} parent=0 // loop_header
    %s9 = sphi 0, %s13
    %p10 = scmp.ge.s32.totalorder %s9, 4
    %s19 = sphi 0, %s21
    %s22 = sphi 0, %s19
    %s23 = sphi 0, %s22
    %s39 = sphi 0, %s23
    %s43 = sphi 0, %s43
    %s45 = sphi 0, %s43
    %s46 = sphi 0, %s45
    %s60 = sphi 0, %s46
    %s64 = sphi 0, %s64
    %s66 = sphi 0, %s64
    %s67 = sphi 0, %s66
    %s81 = sphi 0, %s67
    %s87 = sphi 0, %s89
    %s90 = sphi 0, %s87
    %s91 = sphi 0, %s90
    %s107 = sphi 0, %s91
  $region4: #{tumor_detection_forward.5} parent=0 // loop_header_branch
    %12 = sbr.rel (%p10) target = $region8
  $region5: #{tumor_detection_forward.5} parent=0 // loop_body
    %s14 = ssub.s32 %s9, 1
    %s15 = ssub.s32 %s9, 2
    %s16 = sadd.s32 %s9, 1
    %s17 = ssub.s32 %s9, %s16
    %p18 = scmp.eq.s32.totalorder %s17, 0
    %s20 = sadd.s32 %s19, 1
    %s21 = scalar_select %p18, %s19, %s20
    %p24 = pneg %p18
    %p25 = scmp.eq.s32.totalorder %s9, 1
    %p26 = por %p24, %p25
    %p27 = scmp.ne.s32.totalorder %s19, %s22
    %p28 = scmp.eq.s32.totalorder %s9, 0
    %p29 = por %p27, %p28
    %p30 = scmp.ne.s32.totalorder %s19, %s22
    %p31 = scmp.eq.s32.totalorder %s14, 1
    %p32 = por %p30, %p31
    %p33 = scmp.ne.s32.totalorder %s22, %s23
    %p34 = scmp.eq.s32.totalorder %s14, 0
    %p35 = por %p33, %p34
    %p36 = scmp.ne.s32.totalorder %s22, %s23
    %p37 = scmp.eq.s32.totalorder %s15, 1
    %p38 = por %p36, %p37
    %p40 = scmp.ne.s32.totalorder %s23, %s39
    %p41 = scmp.eq.s32.totalorder %s15, 0
    %p42 = por %p40, %p41
    %s44 = sadd.s32 %s43, 1
    %p47 = scmp.eq.s32.totalorder %s9, 1
    %p48 = scmp.ne.s32.totalorder %s43, %s45
    %p49 = scmp.eq.s32.totalorder %s9, 0
    %p50 = por %p48, %p49
    %p51 = scmp.ne.s32.totalorder %s43, %s45
    %p52 = scmp.eq.s32.totalorder %s14, 1
    %p53 = por %p51, %p52
    %p54 = scmp.ne.s32.totalorder %s45, %s46
    %p55 = scmp.eq.s32.totalorder %s14, 0
    %p56 = por %p54, %p55
    %p57 = scmp.ne.s32.totalorder %s45, %s46
    %p58 = scmp.eq.s32.totalorder %s15, 1
    %p59 = por %p57, %p58
    %p61 = scmp.ne.s32.totalorder %s46, %s60
    %p62 = scmp.eq.s32.totalorder %s15, 0
    %p63 = por %p61, %p62
    %s65 = sadd.s32 %s64, 1
    %p68 = scmp.eq.s32.totalorder %s9, 1
    %p69 = scmp.ne.s32.totalorder %s64, %s66
    %p70 = scmp.eq.s32.totalorder %s9, 0
    %p71 = por %p69, %p70
    %p72 = scmp.ne.s32.totalorder %s64, %s66
    %p73 = scmp.eq.s32.totalorder %s14, 1
    %p74 = por %p72, %p73
    %p75 = scmp.ne.s32.totalorder %s66, %s67
    %p76 = scmp.eq.s32.totalorder %s14, 0
    %p77 = por %p75, %p76
    %p78 = scmp.ne.s32.totalorder %s66, %s67
    %p79 = scmp.eq.s32.totalorder %s15, 1
    %p80 = por %p78, %p79
    %p82 = scmp.ne.s32.totalorder %s67, %s81
    %p83 = scmp.eq.s32.totalorder %s15, 0
    %p84 = por %p82, %p83
    %s85 = ssub.s32 %s9, %s16
    %p86 = scmp.eq.s32.totalorder %s85, 0
    %s88 = sadd.s32 %s87, 1
    %s89 = scalar_select %p86, %s87, %s88
    %p92 = pneg %p86
    %p93 = scmp.eq.s32.totalorder %s9, 1
    %p94 = por %p92, %p93
    %p95 = scmp.ne.s32.totalorder %s87, %s90
    %p96 = scmp.eq.s32.totalorder %s9, 0
    %p97 = por %p95, %p96
    %p98 = scmp.ne.s32.totalorder %s87, %s90
    %p99 = scmp.eq.s32.totalorder %s14, 1
    %p100 = por %p98, %p99
    %p101 = scmp.ne.s32.totalorder %s90, %s91
    %p102 = scmp.eq.s32.totalorder %s14, 0
    %p103 = por %p101, %p102
    %p104 = scmp.ne.s32.totalorder %s90, %s91
    %p105 = scmp.eq.s32.totalorder %s15, 1
    %p106 = por %p104, %p105
    %p108 = scmp.ne.s32.totalorder %s91, %s107
    %p109 = scmp.eq.s32.totalorder %s15, 0
    %p110 = por %p108, %p109
    %p111 = scmp.le.s32.totalorder 1, %s9
    %p112 = scmp.lt.s32.totalorder %s9, 3
    %p113 = pnand %p111, %p112
    %p114 = pneg %p113
    // Predicated region
    $region9: #{tumor_detection_forward.5} parent=5 // pred_check
      _
    $region10: #{tumor_detection_forward.5} parent=5 // pred_check_branch
      %116 = sbr.rel (%p113) target = $region12
    $region11: #{tumor_detection_forward.5} parent=5 // pred_region
      %s117 = ssub.s32 %s9, 1
      // Predicated region
      $region13: #{tumor_detection_forward.5} parent=11 // pred_check
        %p118 = pneg %p56
      $region14: #{tumor_detection_forward.5} parent=11 // pred_check_branch
        %120 = sbr.rel (%p118) target = $region16
      $region15: #{tumor_detection_forward.5} parent=11 // pred_region
        _
      $region16: #{tumor_detection_forward.5} parent=11 // pred_fallthru
        _
      // Predicated region
      $region17: #{tumor_detection_forward.5} parent=11 // pred_check
        %p121 = pneg %p77
      $region18: #{tumor_detection_forward.5} parent=11 // pred_check_branch
        %123 = sbr.rel (%p121) target = $region20
      $region19: #{tumor_detection_forward.5} parent=11 // pred_region
        _
      $region20: #{tumor_detection_forward.5} parent=11 // pred_fallthru
        _
    $region12: #{tumor_detection_forward.5} parent=5 // pred_fallthru
      _
    %p124 = scmp.lt.s32.totalorder %s9, 2
    // Predicated region
    $region21: #{tumor_detection_forward.5} parent=5 // pred_check
      %p125 = pneg %p124
    $region22: #{tumor_detection_forward.5} parent=5 // pred_check_branch
      %127 = sbr.rel (%p125) target = $region24
    $region23: #{tumor_detection_forward.5} parent=5 // pred_region
      // Predicated region
      $region25: #{tumor_detection_forward.5} parent=23 // pred_check
        %p128 = pneg %p29
      $region26: #{tumor_detection_forward.5} parent=23 // pred_check_branch
        %130 = sbr.rel (%p128) target = $region28
      $region27: #{tumor_detection_forward.5} parent=23 // pred_region
        %p131 = scmp.lt.s32.totalorder %s9, 1
        %s132 = scalar_select %p131, %s9, 1
        %s133 = smul.addr %s132, 484
        %s134 = smul.addr %s133, 8
        %s135 = scalar_lea.vmem %s0, %s134
      $region28: #{tumor_detection_forward.5} parent=23 // pred_fallthru
        _
    $region24: #{tumor_detection_forward.5} parent=5 // pred_fallthru
      _
    %p136 = scmp.le.s32.totalorder 1, %s9
    %p137 = scmp.lt.s32.totalorder %s9, 3
    %p138 = pnand %p136, %p137
    %p139 = pneg %p138
    // Predicated region
    $region29: #{tumor_detection_forward.5} parent=5 // pred_check
      _
    $region30: #{tumor_detection_forward.5} parent=5 // pred_check_branch
      %141 = sbr.rel (%p138) target = $region32
    $region31: #{tumor_detection_forward.5} parent=5 // pred_region
      %s142 = ssub.s32 %s9, 1
      %p143 = scmp.lt.s32.totalorder %s14, 1
      %s144 = scalar_select %p143, %s14, 1
      %s145 = smul.addr %s144, 484
      %s146 = smul.addr %s145, 8
      %s147 = scalar_lea.vmem %s0, %s146
      %p148 = pneg %p35
      %p149 = pneg %p32
      %p150 = pneg %p56
      %p151 = pneg %p53
      %p152 = pneg %p77
      %p153 = pneg %p74
      %p154 = pneg %p103
      %p155 = pneg %p100
      %p156 = scmp.lt.s32.totalorder %s14, 1
      %s157 = scalar_select %p156, %s14, 1
      %s158 = smul.addr %s157, 121
      %s159 = smul.addr %s158, 8
      %s160 = scalar_lea.vmem %s3, %s159
      %p161 = scmp.lt.s32.totalorder %s14, 1
      %s162 = scalar_select %p161, %s14, 1
      %s163 = smul.addr %s162, 484
      %s164 = smul.addr %s163, 8
      %s165 = scalar_lea.vmem %s0, %s164
      %p166 = scmp.lt.s32.totalorder %s14, 1
      %s167 = scalar_select %p166, %s14, 1
      %s168 = smul.addr %s167, 121
      %s169 = smul.addr %s168, 8
      %s170 = scalar_lea.vmem %s3, %s169
      %v171 = vld [vmem:[%s1] sm:$0xff]
      %v172 = vld [vmem:[%s1 + $0x8] sm:$0xff]
      %v173 = vld [vmem:[%s1 + $0x10] sm:$0xff]
      %v174 = vld [vmem:[%s1 + $0x18] sm:$0x7]
      %v175 = vld [vmem:[%s165] sm:$0xff]
      %v176 = vld [vmem:[%s165 + $0x8] sm:$0xff]
      %v177 = vld [vmem:[%s165 + $0x10] sm:$0xff]
      %v178 = vld [vmem:[%s165 + $0x18] sm:$0xff]
      %v179 = vld [vmem:[%s165 + $0x20] sm:$0xff]
      %v180 = vld [vmem:[%s165 + $0x28] sm:$0xff]
      %v181 = vld [vmem:[%s165 + $0x30] sm:$0xff]
      %v182 = vld [vmem:[%s165 + $0x38] sm:$0xff]
      %v183 = vld [vmem:[%s165 + $0x40] sm:$0xff]
      %v184 = vld [vmem:[%s165 + $0x48] sm:$0xff]
      %v185 = vld [vmem:[%s165 + $0x50] sm:$0xff]
      %v186 = vld [vmem:[%s165 + $0x58] sm:$0xff]
      %v187 = vld [vmem:[%s165 + $0x60] sm:$0xff]
      %v188 = vld [vmem:[%s165 + $0x68] sm:$0xff]
      %v189 = vld [vmem:[%s165 + $0x70] sm:$0xff]
      %v190 = vld [vmem:[%s165 + $0x78] sm:$0xff]
      %v191 = vld [vmem:[%s165 + $0x80] sm:$0xff]
      %v192 = vld [vmem:[%s165 + $0x88] sm:$0xff]
      %v193 = vld [vmem:[%s165 + $0x90] sm:$0xff]
      %v194 = vld [vmem:[%s165 + $0x98] sm:$0xff]
      %v195 = vld [vmem:[%s165 + $0xa0] sm:$0xff]
      %v196 = vld [vmem:[%s165 + $0xa8] sm:$0xff]
      %v197 = vld [vmem:[%s165 + $0xb0] sm:$0xff]
      %v198 = vld [vmem:[%s165 + $0xb8] sm:$0xff]
      %v199 = vld [vmem:[%s165 + $0xc0] sm:$0xff]
      %v200 = vld [vmem:[%s165 + $0xc8] sm:$0xff]
      %v201 = vld [vmem:[%s165 + $0xd0] sm:$0xff]
      %v202 = vld [vmem:[%s165 + $0xd8] sm:$0xff]
      %v203 = vld [vmem:[%s165 + $0xe0] sm:$0xff]
      %v204 = vld [vmem:[%s165 + $0xe8] sm:$0xff]
      %v205 = vld [vmem:[%s165 + $0xf0] sm:$0xff]
      %v206 = vld [vmem:[%s165 + $0xf8] sm:$0xff]
      %v207 = vld [vmem:[%s165 + $0x100] sm:$0xff]
      %v208 = vld [vmem:[%s165 + $0x108] sm:$0xff]
      %v209 = vld [vmem:[%s165 + $0x110] sm:$0xff]
      %v210 = vld [vmem:[%s165 + $0x118] sm:$0xff]
      %v211 = vld [vmem:[%s165 + $0x120] sm:$0xff]
      %v212 = vld [vmem:[%s165 + $0x128] sm:$0xff]
      %v213 = vld [vmem:[%s165 + $0x130] sm:$0xff]
      %v214 = vld [vmem:[%s165 + $0x138] sm:$0xff]
      %v215 = vld [vmem:[%s165 + $0x140] sm:$0xff]
      %v216 = vld [vmem:[%s165 + $0x148] sm:$0xff]
      %v217 = vld [vmem:[%s165 + $0x150] sm:$0xff]
      %v218 = vld [vmem:[%s165 + $0x158] sm:$0xff]
      %v219 = vld [vmem:[%s165 + $0x160] sm:$0xff]
      %v220 = vld [vmem:[%s165 + $0x168] sm:$0xff]
      %v221 = vld [vmem:[%s165 + $0x170] sm:$0xff]
      %v222 = vld [vmem:[%s165 + $0x178] sm:$0xff]
      %v223 = vld [vmem:[%s165 + $0x180] sm:$0xff]
      %v224 = vld [vmem:[%s165 + $0x188] sm:$0xff]
      %v225 = vld [vmem:[%s165 + $0x190] sm:$0xff]
      %v226 = vld [vmem:[%s165 + $0x198] sm:$0xff]
      %v227 = vld [vmem:[%s165 + $0x1a0] sm:$0xff]
      %v228 = vld [vmem:[%s165 + $0x1a8] sm:$0xff]
      %v229 = vld [vmem:[%s165 + $0x1b0] sm:$0xff]
      %v230 = vld [vmem:[%s165 + $0x1b8] sm:$0xff]
      %v231 = vld [vmem:[%s165 + $0x1c0] sm:$0xff]
      %v232 = vld [vmem:[%s165 + $0x1c8] sm:$0xff]
      %v233 = vld [vmem:[%s165 + $0x1d0] sm:$0xff]
      %v234 = vld [vmem:[%s165 + $0x1d8] sm:$0xff]
      %v235 = vld [vmem:[%s165 + $0x1e0] sm:$0xff]
      %v236 = vld [vmem:[%s165 + $0x1e8] sm:$0xff]
      %v237 = vld [vmem:[%s165 + $0x1f0] sm:$0xff]
      %v238 = vld [vmem:[%s165 + $0x1f8] sm:$0xff]
      %v239 = vld [vmem:[%s165 + $0x200] sm:$0xff]
      %v240 = vld [vmem:[%s165 + $0x208] sm:$0xff]
      %v241 = vld [vmem:[%s165 + $0x210] sm:$0xff]
      %v242 = vld [vmem:[%s165 + $0x218] sm:$0xff]
      %v243 = vld [vmem:[%s165 + $0x220] sm:$0xff]
      %v244 = vld [vmem:[%s165 + $0x228] sm:$0xff]
      %v245 = vld [vmem:[%s165 + $0x230] sm:$0xff]
      %v246 = vld [vmem:[%s165 + $0x238] sm:$0xff]
      %v247 = vld [vmem:[%s165 + $0x240] sm:$0xff]
      %v248 = vld [vmem:[%s165 + $0x248] sm:$0xff]
      %v249 = vld [vmem:[%s165 + $0x250] sm:$0xff]
      %v250 = vld [vmem:[%s165 + $0x258] sm:$0xff]
      %v251 = vld [vmem:[%s165 + $0x260] sm:$0xff]
      %v252 = vld [vmem:[%s165 + $0x268] sm:$0xff]
      %v253 = vld [vmem:[%s165 + $0x270] sm:$0xff]
      %v254 = vld [vmem:[%s165 + $0x278] sm:$0xff]
      %v255 = vld [vmem:[%s165 + $0x280] sm:$0xff]
      %v256 = vld [vmem:[%s165 + $0x288] sm:$0xff]
      %v257 = vld [vmem:[%s165 + $0x290] sm:$0xff]
      %v258 = vld [vmem:[%s165 + $0x298] sm:$0xff]
      %v259 = vld [vmem:[%s165 + $0x2a0] sm:$0xff]
      %v260 = vld [vmem:[%s165 + $0x2a8] sm:$0xff]
      %v261 = vld [vmem:[%s165 + $0x2b0] sm:$0xff]
      %v262 = vld [vmem:[%s165 + $0x2b8] sm:$0xff]
      %v263 = vld [vmem:[%s165 + $0x2c0] sm:$0xff]
      %v264 = vld [vmem:[%s165 + $0x2c8] sm:$0xff]
      %v265 = vld [vmem:[%s165 + $0x2d0] sm:$0xff]
      %v266 = vld [vmem:[%s165 + $0x2d8] sm:$0xff]
      %v267 = vld [vmem:[%s165 + $0x2e0] sm:$0xff]
      %v268 = vld [vmem:[%s165 + $0x2e8] sm:$0xff]
      %v269 = vld [vmem:[%s165 + $0x2f0] sm:$0xff]
      %v270 = vld [vmem:[%s165 + $0x2f8] sm:$0xff]
      %v271 = vld [vmem:[%s165 + $0x300] sm:$0xff]
      %v272 = vld [vmem:[%s165 + $0x308] sm:$0xff]
      %v273 = vld [vmem:[%s165 + $0x310] sm:$0xff]
      %v274 = vld [vmem:[%s165 + $0x318] sm:$0xff]
      %v275 = vld [vmem:[%s165 + $0x320] sm:$0xff]
      %v276 = vld [vmem:[%s165 + $0x328] sm:$0xff]
      %v277 = vld [vmem:[%s165 + $0x330] sm:$0xff]
      %v278 = vld [vmem:[%s165 + $0x338] sm:$0xff]
      %v279 = vld [vmem:[%s165 + $0x340] sm:$0xff]
      %v280 = vld [vmem:[%s165 + $0x348] sm:$0xff]
      %v281 = vld [vmem:[%s165 + $0x350] sm:$0xff]
      %v282 = vld [vmem:[%s165 + $0x358] sm:$0xff]
      %v283 = vld [vmem:[%s165 + $0x360] sm:$0xff]
      %v284 = vld [vmem:[%s165 + $0x368] sm:$0xff]
      %v285 = vld [vmem:[%s165 + $0x370] sm:$0xff]
      %v286 = vld [vmem:[%s165 + $0x378] sm:$0xff]
      %v287 = vld [vmem:[%s165 + $0x380] sm:$0xff]
      %v288 = vld [vmem:[%s165 + $0x388] sm:$0xff]
      %v289 = vld [vmem:[%s165 + $0x390] sm:$0xff]
      %v290 = vld [vmem:[%s165 + $0x398] sm:$0xff]
      %v291 = vld [vmem:[%s165 + $0x3a0] sm:$0xff]
      %v292 = vld [vmem:[%s165 + $0x3a8] sm:$0xff]
      %v293 = vld [vmem:[%s165 + $0x3b0] sm:$0xff]
      %v294 = vld [vmem:[%s165 + $0x3b8] sm:$0xff]
      %v295 = vld [vmem:[%s165 + $0x3c0] sm:$0x1]
      %vm296 = vcmask 220160
      %v298 = vsel %vm296, %v175, 0
      %v301 = vsel %vm296, %v176, 0
      %v304 = vsel %vm296, %v177, 0
      %v307 = vsel %vm296, %v178, 0
      %v310 = vsel %vm296, %v179, 0
      %v313 = vsel %vm296, %v180, 0
      %v316 = vsel %vm296, %v181, 0
      %v319 = vsel %vm296, %v182, 0
      %v322 = vsel %vm296, %v183, 0
      %v325 = vsel %vm296, %v184, 0
      %v328 = vsel %vm296, %v185, 0
      %v331 = vsel %vm296, %v186, 0
      %v334 = vsel %vm296, %v187, 0
      %v337 = vsel %vm296, %v188, 0
      %v340 = vsel %vm296, %v189, 0
      %v343 = vsel %vm296, %v190, 0
      %v346 = vsel %vm296, %v191, 0
      %v349 = vsel %vm296, %v192, 0
      %v352 = vsel %vm296, %v193, 0
      %v355 = vsel %vm296, %v194, 0
      %v358 = vsel %vm296, %v195, 0
      %v361 = vsel %vm296, %v196, 0
      %v364 = vsel %vm296, %v197, 0
      %v367 = vsel %vm296, %v198, 0
      %v370 = vsel %vm296, %v199, 0
      %v373 = vsel %vm296, %v200, 0
      %v376 = vsel %vm296, %v201, 0
      %v379 = vsel %vm296, %v202, 0
      %v382 = vsel %vm296, %v203, 0
      %v385 = vsel %vm296, %v204, 0
      %v388 = vsel %vm296, %v205, 0
      %v391 = vsel %vm296, %v206, 0
      %v394 = vsel %vm296, %v207, 0
      %v397 = vsel %vm296, %v208, 0
      %v400 = vsel %vm296, %v209, 0
      %v403 = vsel %vm296, %v210, 0
      %v406 = vsel %vm296, %v211, 0
      %v409 = vsel %vm296, %v212, 0
      %v412 = vsel %vm296, %v213, 0
      %v415 = vsel %vm296, %v214, 0
      %v418 = vsel %vm296, %v215, 0
      %v421 = vsel %vm296, %v216, 0
      %v424 = vsel %vm296, %v217, 0
      %v427 = vsel %vm296, %v218, 0
      %v430 = vsel %vm296, %v219, 0
      %v433 = vsel %vm296, %v220, 0
      %v436 = vsel %vm296, %v221, 0
      %v439 = vsel %vm296, %v222, 0
      %v442 = vsel %vm296, %v223, 0
      %v445 = vsel %vm296, %v224, 0
      %v448 = vsel %vm296, %v225, 0
      %v451 = vsel %vm296, %v226, 0
      %v454 = vsel %vm296, %v227, 0
      %v457 = vsel %vm296, %v228, 0
      %v460 = vsel %vm296, %v229, 0
      %v463 = vsel %vm296, %v230, 0
      %v466 = vsel %vm296, %v231, 0
      %v469 = vsel %vm296, %v232, 0
      %v472 = vsel %vm296, %v233, 0
      %v475 = vsel %vm296, %v234, 0
      %v478 = vsel %vm296, %v235, 0
      %v481 = vsel %vm296, %v236, 0
      %v484 = vsel %vm296, %v237, 0
      %v487 = vsel %vm296, %v238, 0
      %v490 = vsel %vm296, %v239, 0
      %v493 = vsel %vm296, %v240, 0
      %v496 = vsel %vm296, %v241, 0
      %v499 = vsel %vm296, %v242, 0
      %v502 = vsel %vm296, %v243, 0
      %v505 = vsel %vm296, %v244, 0
      %v508 = vsel %vm296, %v245, 0
      %v511 = vsel %vm296, %v246, 0
      %v514 = vsel %vm296, %v247, 0
      %v517 = vsel %vm296, %v248, 0
      %v520 = vsel %vm296, %v249, 0
      %v523 = vsel %vm296, %v250, 0
      %v526 = vsel %vm296, %v251, 0
      %v529 = vsel %vm296, %v252, 0
      %v532 = vsel %vm296, %v253, 0
      %v535 = vsel %vm296, %v254, 0
      %v538 = vsel %vm296, %v255, 0
      %v541 = vsel %vm296, %v256, 0
      %v544 = vsel %vm296, %v257, 0
      %v547 = vsel %vm296, %v258, 0
      %v550 = vsel %vm296, %v259, 0
      %v553 = vsel %vm296, %v260, 0
      %v556 = vsel %vm296, %v261, 0
      %v559 = vsel %vm296, %v262, 0
      %v562 = vsel %vm296, %v263, 0
      %v565 = vsel %vm296, %v264, 0
      %v568 = vsel %vm296, %v265, 0
      %v571 = vsel %vm296, %v266, 0
      %v574 = vsel %vm296, %v267, 0
      %v577 = vsel %vm296, %v268, 0
      %v580 = vsel %vm296, %v269, 0
      %v583 = vsel %vm296, %v270, 0
      %v586 = vsel %vm296, %v271, 0
      %v589 = vsel %vm296, %v272, 0
      %v592 = vsel %vm296, %v273, 0
      %v595 = vsel %vm296, %v274, 0
      %v598 = vsel %vm296, %v275, 0
      %v601 = vsel %vm296, %v276, 0
      %v604 = vsel %vm296, %v277, 0
      %v607 = vsel %vm296, %v278, 0
      %v610 = vsel %vm296, %v279, 0
      %v613 = vsel %vm296, %v280, 0
      %v616 = vsel %vm296, %v281, 0
      %v619 = vsel %vm296, %v282, 0
      %v622 = vsel %vm296, %v283, 0
      %v625 = vsel %vm296, %v284, 0
      %v628 = vsel %vm296, %v285, 0
      %v631 = vsel %vm296, %v286, 0
      %v634 = vsel %vm296, %v287, 0
      %v637 = vsel %vm296, %v288, 0
      %v640 = vsel %vm296, %v289, 0
      %v643 = vsel %vm296, %v290, 0
      %v646 = vsel %vm296, %v291, 0
      %v649 = vsel %vm296, %v292, 0
      %v652 = vsel %vm296, %v293, 0
      %v655 = vsel %vm296, %v294, 0
      %v658 = vsel %vm296, %v295, 0
      %vm660 = vcmask 1042432
      %v662 = vsel %vm660, %v174, 0
      %664 = vmatprep.subr.mxu0 0.0
      %665 = vmatpush1.msra.mxu0 %v171
      %666 = vmatprep.subr.mxu0 0.0
      %667 = vmatpush1.msra.mxu0 %v172
      %668 = vmatprep.subr.mxu0 0.0
      %669 = vmatpush1.msra.mxu0 %v173
      %670 = vmatprep.subr.mxu0 0.0
      %671 = vmatpush1.msra.mxu0 %v662
      %672 = vmatprep.subr.mxu0 0.0
      %673 = vmatpush1.msra.mxu0 0.0
      %674 = vmatprep.subr.mxu0 0.0
      %675 = vmatpush1.msra.mxu0 0.0
      %676 = vmatprep.subr.mxu0 0.0
      %677 = vmatpush1.msra.mxu0 0.0
      %678 = vmatprep.subr.mxu0 0.0
      %679 = vmatpush1.msra.mxu0 0.0
      %680 = vmatprep.subr.mxu0 0.0
      %681 = vmatpush1.msra.mxu0 0.0
      %682 = vmatprep.subr.mxu0 0.0
      %683 = vmatpush1.msra.mxu0 0.0
      %684 = vmatprep.subr.mxu0 0.0
      %685 = vmatpush1.msra.mxu0 0.0
      %686 = vmatprep.subr.mxu0 0.0
      %687 = vmatpush1.msra.mxu0 0.0
      %688 = vmatprep.subr.mxu0 0.0
      %689 = vmatpush1.msra.mxu0 0.0
      %690 = vmatprep.subr.mxu0 0.0
      %691 = vmatpush1.msra.mxu0 0.0
      %692 = vmatprep.subr.mxu0 0.0
      %693 = vmatpush1.msra.mxu0 0.0
      %694 = vmatprep.subr.mxu0 0.0
      %695 = vmatpush1.msra.mxu0 0.0
      %696 = vmatprep.subr.mxu0 0.0
      %697 = vmatpush1.msra.mxu0 0.0
      %698 = vmatprep.subr.mxu0 0.0
      %699 = vmatpush1.msra.mxu0 0.0
      %700 = vmatprep.subr.mxu0 0.0
      %701 = vmatpush1.msra.mxu0 0.0
      %702 = vmatprep.subr.mxu0 0.0
      %703 = vmatpush1.msra.mxu0 0.0
      %704 = vmatprep.subr.mxu0 0.0
      %705 = vmatpush1.msra.mxu0 0.0
      %706 = vmatprep.subr.mxu0 0.0
      %707 = vmatpush1.msra.mxu0 0.0
      %708 = vmatprep.subr.mxu0 0.0
      %709 = vmatpush1.msra.mxu0 0.0
      %710 = vmatprep.subr.mxu0 0.0
      %711 = vmatpush1.msra.mxu0 0.0
      %712 = vmatprep.subr.mxu0 0.0
      %713 = vmatpush1.msra.mxu0 0.0
      %714 = vmatprep.subr.mxu0 0.0
      %715 = vmatpush1.msra.mxu0 0.0
      %716 = vmatprep.subr.mxu0 0.0
      %717 = vmatpush1.msra.mxu0 0.0
      %718 = vmatprep.subr.mxu0 0.0
      %719 = vmatpush1.msra.mxu0 0.0
      %720 = vmatprep.subr.mxu0 0.0
      %721 = vmatpush1.msra.mxu0 0.0
      %722 = vmatprep.subr.mxu0 0.0
      %723 = vmatpush1.msra.mxu0 0.0
      %724 = vmatprep.subr.mxu0 0.0
      %725 = vmatpush1.msra.mxu0 0.0
      %726 = vmatprep.subr.mxu0 0.0
      %727 = vmatpush1.msra.mxu0 0.0
      %728 = vmatprep.mubr.f32.mxu0 0.0
      %729 = vmatmul.mubr.f32.gmra.mrb[0].mxu0 %v298
      %v730 = vpop.f32.mrb[0].mxu0
      %v731 = vadd.f32 0.0, %v730
      %v732 = vpop.f32.mrb[0].mxu0
      %733 = vmatprep.mubr.f32.mxu0 0.0
      %734 = vmatmul.mubr.f32.gmra.mrb[0].mxu0 %v301
      %v735 = vpop.f32.mrb[0].mxu0
      %v736 = vadd.f32 0.0, %v735
      %v737 = vpop.f32.mrb[0].mxu0
      %738 = vmatprep.mubr.f32.mxu0 0.0
      %739 = vmatmul.mubr.f32.gmra.mrb[0].mxu0 %v304
      %v740 = vpop.f32.mrb[0].mxu0
      %v741 = vadd.f32 0.0, %v740
      %v742 = vpop.f32.mrb[0].mxu0
      %743 = vmatprep.mubr.f32.mxu0 0.0
      %744 = vmatmul.mubr.f32.gmra.mrb[0].mxu0 %v307
      %v745 = vpop.f32.mrb[0].mxu0
      %v746 = vadd.f32 0.0, %v745
      %v747 = vpop.f32.mrb[0].mxu0
      %748 = vmatprep.mubr.f32.mxu0 0.0
      %749 = vmatmul.mubr.f32.gmra.mrb[0].mxu0 %v310
      %v750 = vpop.f32.mrb[0].mxu0
      %v751 = vadd.f32 0.0, %v750
      %v752 = vpop.f32.mrb[0].mxu0
      %753 = vmatprep.mubr.f32.mxu0 0.0
      %754 = vmatmul.mubr.f32.gmra.mrb[0].mxu0 %v313
      %v755 = vpop.f32.mrb[0].mxu0
      %v756 = vadd.f32 0.0, %v755
      %v757 = vpop.f32.mrb[0].mxu0
      %758 = vmatprep.mubr.f32.mxu0 0.0
      %759 = vmatmul.mubr.f32.gmra.mrb[0].mxu0 %v316
      %v760 = vpop.f32.mrb[0].mxu0
      %v761 = vadd.f32 0.0, %v760
      %v762 = vpop.f32.mrb[0].mxu0
      %763 = vmatprep.mubr.f32.mxu0 0.0
      %764 = vmatmul.mubr.f32.gmra.mrb[0].mxu0 %v319
      %v765 = vpop.f32.mrb[0].mxu0
      %v766 = vadd.f32 0.0, %v765
      %v767 = vpop.f32.mrb[0].mxu0
      %768 = vmatprep.mubr.f32.mxu0 0.0
      %769 = vmatmul.mubr.f32.gmra.mrb[0].mxu0 %v322
      %v770 = vpop.f32.mrb[0].mxu0
      %v771 = vadd.f32 0.0, %v770
      %v772 = vpop.f32.mrb[0].mxu0
      %773 = vmatprep.mubr.f32.mxu0 0.0
      %774 = vmatmul.mubr.f32.gmra.mrb[0].mxu0 %v325
      %v775 = vpop.f32.mrb[0].mxu0
      %v776 = vadd.f32 0.0, %v775
      %v777 = vpop.f32.mrb[0].mxu0
      %778 = vmatprep.mubr.f32.mxu0 0.0
      %779 = vmatmul.mubr.f32.gmra.mrb[0].mxu0 %v328
      %v780 = vpop.f32.mrb[0].mxu0
      %v781 = vadd.f32 0.0, %v780
      %v782 = vpop.f32.mrb[0].mxu0
      %783 = vmatprep.mubr.f32.mxu0 0.0
      %784 = vmatmul.mubr.f32.gmra.mrb[0].mxu0 %v331
      %v785 = vpop.f32.mrb[0].mxu0
      %v786 = vadd.f32 0.0, %v785
      %v787 = vpop.f32.mrb[0].mxu0
      %788 = vmatprep.mubr.f32.mxu0 0.0
      %789 = vmatmul.mubr.f32.gmra.mrb[0].mxu0 %v334
      %v790 = vpop.f32.mrb[0].mxu0
      %v791 = vadd.f32 0.0, %v790
      %v792 = vpop.f32.mrb[0].mxu0
      %793 = vmatprep.mubr.f32.mxu0 0.0
      %794 = vmatmul.mubr.f32.gmra.mrb[0].mxu0 %v337
      %v795 = vpop.f32.mrb[0].mxu0
      %v796 = vadd.f32 0.0, %v795
      %v797 = vpop.f32.mrb[0].mxu0
      %798 = vmatprep.mubr.f32.mxu0 0.0
      %799 = vmatmul.mubr.f32.gmra.mrb[0].mxu0 %v340
      %v800 = vpop.f32.mrb[0].mxu0
      %v801 = vadd.f32 0.0, %v800
      %v802 = vpop.f32.mrb[0].mxu0
      %803 = vmatprep.mubr.f32.mxu0 0.0
      %804 = vmatmul.mubr.f32.gmra.mrb[0].mxu0 %v343
      %v805 = vpop.f32.mrb[0].mxu0
      %v806 = vadd.f32 0.0, %v805
      %v807 = vpop.f32.mrb[0].mxu0
      %808 = vmatprep.mubr.f32.mxu0 0.0
      %809 = vmatmul.mubr.f32.gmra.mrb[0].mxu0 %v346
      %v810 = vpop.f32.mrb[0].mxu0
      %v811 = vadd.f32 0.0, %v810
      %v812 = vpop.f32.mrb[0].mxu0
      %813 = vmatprep.mubr.f32.mxu0 0.0
      %814 = vmatmul.mubr.f32.gmra.mrb[0].mxu0 %v349
      %v815 = vpop.f32.mrb[0].mxu0
      %v816 = vadd.f32 0.0, %v815
      %v817 = vpop.f32.mrb[0].mxu0
      %818 = vmatprep.mubr.f32.mxu0 0.0
      %819 = vmatmul.mubr.f32.gmra.mrb[0].mxu0 %v352
      %v820 = vpop.f32.mrb[0].mxu0
      %v821 = vadd.f32 0.0, %v820
      %v822 = vpop.f32.mrb[0].mxu0
      %823 = vmatprep.mubr.f32.mxu0 0.0
      %824 = vmatmul.mubr.f32.gmra.mrb[0].mxu0 %v355
      %v825 = vpop.f32.mrb[0].mxu0
      %v826 = vadd.f32 0.0, %v825
      %v827 = vpop.f32.mrb[0].mxu0
      %828 = vmatprep.mubr.f32.mxu0 0.0
      %829 = vmatmul.mubr.f32.gmra.mrb[0].mxu0 %v358
      %v830 = vpop.f32.mrb[0].mxu0
      %v831 = vadd.f32 0.0, %v830
      %v832 = vpop.f32.mrb[0].mxu0
      %833 = vmatprep.mubr.f32.mxu0 0.0
      %834 = vmatmul.mubr.f32.gmra.mrb[0].mxu0 %v361
      %v835 = vpop.f32.mrb[0].mxu0
      %v836 = vadd.f32 0.0, %v835
      %v837 = vpop.f32.mrb[0].mxu0
      %838 = vmatprep.mubr.f32.mxu0 0.0
      %839 = vmatmul.mubr.f32.gmra.mrb[0].mxu0 %v364
      %v840 = vpop.f32.mrb[0].mxu0
      %v841 = vadd.f32 0.0, %v840
      %v842 = vpop.f32.mrb[0].mxu0
      %843 = vmatprep.mubr.f32.mxu0 0.0
      %844 = vmatmul.mubr.f32.gmra.mrb[0].mxu0 %v367
      %v845 = vpop.f32.mrb[0].mxu0
      %v846 = vadd.f32 0.0, %v845
      %v847 = vpop.f32.mrb[0].mxu0
      %848 = vmatprep.mubr.f32.mxu0 0.0
      %849 = vmatmul.mubr.f32.gmra.mrb[0].mxu0 %v370
      %v850 = vpop.f32.mrb[0].mxu0
      %v851 = vadd.f32 0.0, %v850
      %v852 = vpop.f32.mrb[0].mxu0
      %853 = vmatprep.mubr.f32.mxu0 0.0
      %854 = vmatmul.mubr.f32.gmra.mrb[0].mxu0 %v373
      %v855 = vpop.f32.mrb[0].mxu0
      %v856 = vadd.f32 0.0, %v855
      %v857 = vpop.f32.mrb[0].mxu0
      %858 = vmatprep.mubr.f32.mxu0 0.0
      %859 = vmatmul.mubr.f32.gmra.mrb[0].mxu0 %v376
      %v860 = vpop.f32.mrb[0].mxu0
      %v861 = vadd.f32 0.0, %v860
      %v862 = vpop.f32.mrb[0].mxu0
      %863 = vmatprep.mubr.f32.mxu0 0.0
      %864 = vmatmul.mubr.f32.gmra.mrb[0].mxu0 %v379
      %v865 = vpop.f32.mrb[0].mxu0
      %v866 = vadd.f32 0.0, %v865
      %v867 = vpop.f32.mrb[0].mxu0
      %868 = vmatprep.mubr.f32.mxu0 0.0
      %869 = vmatmul.mubr.f32.gmra.mrb[0].mxu0 %v382
      %v870 = vpop.f32.mrb[0].mxu0
      %v871 = vadd.f32 0.0, %v870
      %v872 = vpop.f32.mrb[0].mxu0
      %873 = vmatprep.mubr.f32.mxu0 0.0
      %874 = vmatmul.mubr.f32.gmra.mrb[0].mxu0 %v385
      %v875 = vpop.f32.mrb[0].mxu0
      %v876 = vadd.f32 0.0, %v875
      %v877 = vpop.f32.mrb[0].mxu0
      %878 = vmatprep.mubr.f32.mxu0 0.0
      %879 = vmatmul.mubr.f32.gmra.mrb[0].mxu0 %v388
      %v880 = vpop.f32.mrb[0].mxu0
      %v881 = vadd.f32 0.0, %v880
      %v882 = vpop.f32.mrb[0].mxu0
      %883 = vmatprep.mubr.f32.mxu0 0.0
      %884 = vmatmul.mubr.f32.gmra.mrb[0].mxu0 %v391
      %v885 = vpop.f32.mrb[0].mxu0
      %v886 = vadd.f32 0.0, %v885
      %v887 = vpop.f32.mrb[0].mxu0
      %888 = vmatprep.mubr.f32.mxu0 0.0
      %889 = vmatmul.mubr.f32.gmra.mrb[0].mxu0 %v394
      %v890 = vpop.f32.mrb[0].mxu0
      %v891 = vadd.f32 0.0, %v890
      %v892 = vpop.f32.mrb[0].mxu0
      %893 = vmatprep.mubr.f32.mxu0 0.0
      %894 = vmatmul.mubr.f32.gmra.mrb[0].mxu0 %v397
      %v895 = vpop.f32.mrb[0].mxu0
      %v896 = vadd.f32 0.0, %v895
      %v897 = vpop.f32.mrb[0].mxu0
      %898 = vmatprep.mubr.f32.mxu0 0.0
      %899 = vmatmul.mubr.f32.gmra.mrb[0].mxu0 %v400
      %v900 = vpop.f32.mrb[0].mxu0
      %v901 = vadd.f32 0.0, %v900
      %v902 = vpop.f32.mrb[0].mxu0
      %903 = vmatprep.mubr.f32.mxu0 0.0
      %904 = vmatmul.mubr.f32.gmra.mrb[0].mxu0 %v403
      %v905 = vpop.f32.mrb[0].mxu0
      %v906 = vadd.f32 0.0, %v905
      %v907 = vpop.f32.mrb[0].mxu0
      %908 = vmatprep.mubr.f32.mxu0 0.0
      %909 = vmatmul.mubr.f32.gmra.mrb[0].mxu0 %v406
      %v910 = vpop.f32.mrb[0].mxu0
      %v911 = vadd.f32 0.0, %v910
      %v912 = vpop.f32.mrb[0].mxu0
      %913 = vmatprep.mubr.f32.mxu0 0.0
      %914 = vmatmul.mubr.f32.gmra.mrb[0].mxu0 %v409
      %v915 = vpop.f32.mrb[0].mxu0
      %v916 = vadd.f32 0.0, %v915
      %v917 = vpop.f32.mrb[0].mxu0
      %918 = vmatprep.mubr.f32.mxu0 0.0
      %919 = vmatmul.mubr.f32.gmra.mrb[0].mxu0 %v412
      %v920 = vpop.f32.mrb[0].mxu0
      %v921 = vadd.f32 0.0, %v920
      %v922 = vpop.f32.mrb[0].mxu0
      %923 = vmatprep.mubr.f32.mxu0 0.0
      %924 = vmatmul.mubr.f32.gmra.mrb[0].mxu0 %v415
      %v925 = vpop.f32.mrb[0].mxu0
      %v926 = vadd.f32 0.0, %v925
      %v927 = vpop.f32.mrb[0].mxu0
      %928 = vmatprep.mubr.f32.mxu0 0.0
      %929 = vmatmul.mubr.f32.gmra.mrb[0].mxu0 %v418
      %v930 = vpop.f32.mrb[0].mxu0
      %v931 = vadd.f32 0.0, %v930
      %v932 = vpop.f32.mrb[0].mxu0
      %933 = vmatprep.mubr.f32.mxu0 0.0
      %934 = vmatmul.mubr.f32.gmra.mrb[0].mxu0 %v421
      %v935 = vpop.f32.mrb[0].mxu0
      %v936 = vadd.f32 0.0, %v935
      %v937 = vpop.f32.mrb[0].mxu0
      %938 = vmatprep.mubr.f32.mxu0 0.0
      %939 = vmatmul.mubr.f32.gmra.mrb[0].mxu0 %v424
      %v940 = vpop.f32.mrb[0].mxu0
      %v941 = vadd.f32 0.0, %v940
      %v942 = vpop.f32.mrb[0].mxu0
      %943 = vmatprep.mubr.f32.mxu0 0.0
      %944 = vmatmul.mubr.f32.gmra.mrb[0].mxu0 %v427
      %v945 = vpop.f32.mrb[0].mxu0
      %v946 = vadd.f32 0.0, %v945
      %v947 = vpop.f32.mrb[0].mxu0
      %948 = vmatprep.mubr.f32.mxu0 0.0
      %949 = vmatmul.mubr.f32.gmra.mrb[0].mxu0 %v430
      %v950 = vpop.f32.mrb[0].mxu0
      %v951 = vadd.f32 0.0, %v950
      %v952 = vpop.f32.mrb[0].mxu0
      %953 = vmatprep.mubr.f32.mxu0 0.0
      %954 = vmatmul.mubr.f32.gmra.mrb[0].mxu0 %v433
      %v955 = vpop.f32.mrb[0].mxu0
      %v956 = vadd.f32 0.0, %v955
      %v957 = vpop.f32.mrb[0].mxu0
      %958 = vmatprep.mubr.f32.mxu0 0.0
      %959 = vmatmul.mubr.f32.gmra.mrb[0].mxu0 %v436
      %v960 = vpop.f32.mrb[0].mxu0
      %v961 = vadd.f32 0.0, %v960
      %v962 = vpop.f32.mrb[0].mxu0
      %963 = vmatprep.mubr.f32.mxu0 0.0
      %964 = vmatmul.mubr.f32.gmra.mrb[0].mxu0 %v439
      %v965 = vpop.f32.mrb[0].mxu0
      %v966 = vadd.f32 0.0, %v965
      %v967 = vpop.f32.mrb[0].mxu0
      %968 = vmatprep.mubr.f32.mxu0 0.0
      %969 = vmatmul.mubr.f32.gmra.mrb[0].mxu0 %v442
      %v970 = vpop.f32.mrb[0].mxu0
      %v971 = vadd.f32 0.0, %v970
      %v972 = vpop.f32.mrb[0].mxu0
      %973 = vmatprep.mubr.f32.mxu0 0.0
      %974 = vmatmul.mubr.f32.gmra.mrb[0].mxu0 %v445
      %v975 = vpop.f32.mrb[0].mxu0
      %v976 = vadd.f32 0.0, %v975
      %v977 = vpop.f32.mrb[0].mxu0
      %978 = vmatprep.mubr.f32.mxu0 0.0
      %979 = vmatmul.mubr.f32.gmra.mrb[0].mxu0 %v448
      %v980 = vpop.f32.mrb[0].mxu0
      %v981 = vadd.f32 0.0, %v980
      %v982 = vpop.f32.mrb[0].mxu0
      %983 = vmatprep.mubr.f32.mxu0 0.0
      %984 = vmatmul.mubr.f32.gmra.mrb[0].mxu0 %v451
      %v985 = vpop.f32.mrb[0].mxu0
      %v986 = vadd.f32 0.0, %v985
      %v987 = vpop.f32.mrb[0].mxu0
      %988 = vmatprep.mubr.f32.mxu0 0.0
      %989 = vmatmul.mubr.f32.gmra.mrb[0].mxu0 %v454
      %v990 = vpop.f32.mrb[0].mxu0
      %v991 = vadd.f32 0.0, %v990
      %v992 = vpop.f32.mrb[0].mxu0
      %993 = vmatprep.mubr.f32.mxu0 0.0
      %994 = vmatmul.mubr.f32.gmra.mrb[0].mxu0 %v457
      %v995 = vpop.f32.mrb[0].mxu0
      %v996 = vadd.f32 0.0, %v995
      %v997 = vpop.f32.mrb[0].mxu0
      %998 = vmatprep.mubr.f32.mxu0 0.0
      %999 = vmatmul.mubr.f32.gmra.mrb[0].mxu0 %v460
      %v1000 = vpop.f32.mrb[0].mxu0
      %v1001 = vadd.f32 0.0, %v1000
      %v1002 = vpop.f32.mrb[0].mxu0
      %1003 = vmatprep.mubr.f32.mxu0 0.0
      %1004 = vmatmul.mubr.f32.gmra.mrb[0].mxu0 %v463
      %v1005 = vpop.f32.mrb[0].mxu0
      %v1006 = vadd.f32 0.0, %v1005
      %v1007 = vpop.f32.mrb[0].mxu0
      %1008 = vmatprep.mubr.f32.mxu0 0.0
      %1009 = vmatmul.mubr.f32.gmra.mrb[0].mxu0 %v466
      %v1010 = vpop.f32.mrb[0].mxu0
      %v1011 = vadd.f32 0.0, %v1010
      %v1012 = vpop.f32.mrb[0].mxu0
      %1013 = vmatprep.mubr.f32.mxu0 0.0
      %1014 = vmatmul.mubr.f32.gmra.mrb[0].mxu0 %v469
      %v1015 = vpop.f32.mrb[0].mxu0
      %v1016 = vadd.f32 0.0, %v1015
      %v1017 = vpop.f32.mrb[0].mxu0
      %1018 = vmatprep.mubr.f32.mxu0 0.0
      %1019 = vmatmul.mubr.f32.gmra.mrb[0].mxu0 %v472
      %v1020 = vpop.f32.mrb[0].mxu0
      %v1021 = vadd.f32 0.0, %v1020
      %v1022 = vpop.f32.mrb[0].mxu0
      %1023 = vmatprep.mubr.f32.mxu0 0.0
      %1024 = vmatmul.mubr.f32.gmra.mrb[0].mxu0 %v475
      %v1025 = vpop.f32.mrb[0].mxu0
      %v1026 = vadd.f32 0.0, %v1025
      %v1027 = vpop.f32.mrb[0].mxu0
      %1028 = vmatprep.mubr.f32.mxu0 0.0
      %1029 = vmatmul.mubr.f32.gmra.mrb[0].mxu0 %v478
      %v1030 = vpop.f32.mrb[0].mxu0
      %v1031 = vadd.f32 0.0, %v1030
      %v1032 = vpop.f32.mrb[0].mxu0
      %1033 = vmatprep.mubr.f32.mxu0 0.0
      %1034 = vmatmul.mubr.f32.gmra.mrb[0].mxu0 %v481
      %v1035 = vpop.f32.mrb[0].mxu0
      %v1036 = vadd.f32 0.0, %v1035
      %v1037 = vpop.f32.mrb[0].mxu0
      %1038 = vmatprep.mubr.f32.mxu0 0.0
      %1039 = vmatmul.mubr.f32.gmra.mrb[0].mxu0 %v484
      %v1040 = vpop.f32.mrb[0].mxu0
      %v1041 = vadd.f32 0.0, %v1040
      %v1042 = vpop.f32.mrb[0].mxu0
      %1043 = vmatprep.mubr.f32.mxu0 0.0
      %1044 = vmatmul.mubr.f32.gmra.mrb[0].mxu0 %v487
      %v1045 = vpop.f32.mrb[0].mxu0
      %v1046 = vadd.f32 0.0, %v1045
      %v1047 = vpop.f32.mrb[0].mxu0
      %1048 = vmatprep.mubr.f32.mxu0 0.0
      %1049 = vmatmul.mubr.f32.gmra.mrb[0].mxu0 %v490
      %v1050 = vpop.f32.mrb[0].mxu0
      %v1051 = vadd.f32 0.0, %v1050
      %v1052 = vpop.f32.mrb[0].mxu0
      %1053 = vmatprep.mubr.f32.mxu0 0.0
      %1054 = vmatmul.mubr.f32.gmra.mrb[0].mxu0 %v493
      %v1055 = vpop.f32.mrb[0].mxu0
      %v1056 = vadd.f32 0.0, %v1055
      %v1057 = vpop.f32.mrb[0].mxu0
      %1058 = vmatprep.mubr.f32.mxu0 0.0
      %1059 = vmatmul.mubr.f32.gmra.mrb[0].mxu0 %v496
      %v1060 = vpop.f32.mrb[0].mxu0
      %v1061 = vadd.f32 0.0, %v1060
      %v1062 = vpop.f32.mrb[0].mxu0
      %1063 = vmatprep.mubr.f32.mxu0 0.0
      %1064 = vmatmul.mubr.f32.gmra.mrb[0].mxu0 %v499
      %v1065 = vpop.f32.mrb[0].mxu0
      %v1066 = vadd.f32 0.0, %v1065
      %v1067 = vpop.f32.mrb[0].mxu0
      %1068 = vmatprep.mubr.f32.mxu0 0.0
      %1069 = vmatmul.mubr.f32.gmra.mrb[0].mxu0 %v502
      %v1070 = vpop.f32.mrb[0].mxu0
      %v1071 = vadd.f32 0.0, %v1070
      %v1072 = vpop.f32.mrb[0].mxu0
      %1073 = vmatprep.mubr.f32.mxu0 0.0
      %1074 = vmatmul.mubr.f32.gmra.mrb[0].mxu0 %v505
      %v1075 = vpop.f32.mrb[0].mxu0
      %v1076 = vadd.f32 0.0, %v1075
      %v1077 = vpop.f32.mrb[0].mxu0
      %1078 = vmatprep.mubr.f32.mxu0 0.0
      %1079 = vmatmul.mubr.f32.gmra.mrb[0].mxu0 %v508
      %v1080 = vpop.f32.mrb[0].mxu0
      %v1081 = vadd.f32 0.0, %v1080
      %v1082 = vpop.f32.mrb[0].mxu0
      %1083 = vmatprep.mubr.f32.mxu0 0.0
      %1084 = vmatmul.mubr.f32.gmra.mrb[0].mxu0 %v511
      %v1085 = vpop.f32.mrb[0].mxu0
      %v1086 = vadd.f32 0.0, %v1085
      %v1087 = vpop.f32.mrb[0].mxu0
      %1088 = vmatprep.mubr.f32.mxu0 0.0
      %1089 = vmatmul.mubr.f32.gmra.mrb[0].mxu0 %v514
      %v1090 = vpop.f32.mrb[0].mxu0
      %v1091 = vadd.f32 0.0, %v1090
      %v1092 = vpop.f32.mrb[0].mxu0
      %1093 = vmatprep.mubr.f32.mxu0 0.0
      %1094 = vmatmul.mubr.f32.gmra.mrb[0].mxu0 %v517
      %v1095 = vpop.f32.mrb[0].mxu0
      %v1096 = vadd.f32 0.0, %v1095
      %v1097 = vpop.f32.mrb[0].mxu0
      %1098 = vmatprep.mubr.f32.mxu0 0.0
      %1099 = vmatmul.mubr.f32.gmra.mrb[0].mxu0 %v520
      %v1100 = vpop.f32.mrb[0].mxu0
      %v1101 = vadd.f32 0.0, %v1100
      %v1102 = vpop.f32.mrb[0].mxu0
      %1103 = vmatprep.mubr.f32.mxu0 0.0
      %1104 = vmatmul.mubr.f32.gmra.mrb[0].mxu0 %v523
      %v1105 = vpop.f32.mrb[0].mxu0
      %v1106 = vadd.f32 0.0, %v1105
      %v1107 = vpop.f32.mrb[0].mxu0
      %1108 = vmatprep.mubr.f32.mxu0 0.0
      %1109 = vmatmul.mubr.f32.gmra.mrb[0].mxu0 %v526
      %v1110 = vpop.f32.mrb[0].mxu0
      %v1111 = vadd.f32 0.0, %v1110
      %v1112 = vpop.f32.mrb[0].mxu0
      %1113 = vmatprep.mubr.f32.mxu0 0.0
      %1114 = vmatmul.mubr.f32.gmra.mrb[0].mxu0 %v529
      %v1115 = vpop.f32.mrb[0].mxu0
      %v1116 = vadd.f32 0.0, %v1115
      %v1117 = vpop.f32.mrb[0].mxu0
      %1118 = vmatprep.mubr.f32.mxu0 0.0
      %1119 = vmatmul.mubr.f32.gmra.mrb[0].mxu0 %v532
      %v1120 = vpop.f32.mrb[0].mxu0
      %v1121 = vadd.f32 0.0, %v1120
      %v1122 = vpop.f32.mrb[0].mxu0
      %1123 = vmatprep.mubr.f32.mxu0 0.0
      %1124 = vmatmul.mubr.f32.gmra.mrb[0].mxu0 %v535
      %v1125 = vpop.f32.mrb[0].mxu0
      %v1126 = vadd.f32 0.0, %v1125
      %v1127 = vpop.f32.mrb[0].mxu0
      %1128 = vmatprep.mubr.f32.mxu0 0.0
      %1129 = vmatmul.mubr.f32.gmra.mrb[0].mxu0 %v538
      %v1130 = vpop.f32.mrb[0].mxu0
      %v1131 = vadd.f32 0.0, %v1130
      %v1132 = vpop.f32.mrb[0].mxu0
      %1133 = vmatprep.mubr.f32.mxu0 0.0
      %1134 = vmatmul.mubr.f32.gmra.mrb[0].mxu0 %v541
      %v1135 = vpop.f32.mrb[0].mxu0
      %v1136 = vadd.f32 0.0, %v1135
      %v1137 = vpop.f32.mrb[0].mxu0
      %1138 = vmatprep.mubr.f32.mxu0 0.0
      %1139 = vmatmul.mubr.f32.gmra.mrb[0].mxu0 %v544
      %v1140 = vpop.f32.mrb[0].mxu0
      %v1141 = vadd.f32 0.0, %v1140
      %v1142 = vpop.f32.mrb[0].mxu0
      %1143 = vmatprep.mubr.f32.mxu0 0.0
      %1144 = vmatmul.mubr.f32.gmra.mrb[0].mxu0 %v547
      %v1145 = vpop.f32.mrb[0].mxu0
      %v1146 = vadd.f32 0.0, %v1145
      %v1147 = vpop.f32.mrb[0].mxu0
      %1148 = vmatprep.mubr.f32.mxu0 0.0
      %1149 = vmatmul.mubr.f32.gmra.mrb[0].mxu0 %v550
      %v1150 = vpop.f32.mrb[0].mxu0
      %v1151 = vadd.f32 0.0, %v1150
      %v1152 = vpop.f32.mrb[0].mxu0
      %1153 = vmatprep.mubr.f32.mxu0 0.0
      %1154 = vmatmul.mubr.f32.gmra.mrb[0].mxu0 %v553
      %v1155 = vpop.f32.mrb[0].mxu0
      %v1156 = vadd.f32 0.0, %v1155
      %v1157 = vpop.f32.mrb[0].mxu0
      %1158 = vmatprep.mubr.f32.mxu0 0.0
      %1159 = vmatmul.mubr.f32.gmra.mrb[0].mxu0 %v556
      %v1160 = vpop.f32.mrb[0].mxu0
      %v1161 = vadd.f32 0.0, %v1160
      %v1162 = vpop.f32.mrb[0].mxu0
      %1163 = vmatprep.mubr.f32.mxu0 0.0
      %1164 = vmatmul.mubr.f32.gmra.mrb[0].mxu0 %v559
      %v1165 = vpop.f32.mrb[0].mxu0
      %v1166 = vadd.f32 0.0, %v1165
      %v1167 = vpop.f32.mrb[0].mxu0
      %1168 = vmatprep.mubr.f32.mxu0 0.0
      %1169 = vmatmul.mubr.f32.gmra.mrb[0].mxu0 %v562
      %v1170 = vpop.f32.mrb[0].mxu0
      %v1171 = vadd.f32 0.0, %v1170
      %v1172 = vpop.f32.mrb[0].mxu0
      %1173 = vmatprep.mubr.f32.mxu0 0.0
      %1174 = vmatmul.mubr.f32.gmra.mrb[0].mxu0 %v565
      %v1175 = vpop.f32.mrb[0].mxu0
      %v1176 = vadd.f32 0.0, %v1175
      %v1177 = vpop.f32.mrb[0].mxu0
      %1178 = vmatprep.mubr.f32.mxu0 0.0
      %1179 = vmatmul.mubr.f32.gmra.mrb[0].mxu0 %v568
      %v1180 = vpop.f32.mrb[0].mxu0
      %v1181 = vadd.f32 0.0, %v1180
      %v1182 = vpop.f32.mrb[0].mxu0
      %1183 = vmatprep.mubr.f32.mxu0 0.0
      %1184 = vmatmul.mubr.f32.gmra.mrb[0].mxu0 %v571
      %v1185 = vpop.f32.mrb[0].mxu0
      %v1186 = vadd.f32 0.0, %v1185
      %v1187 = vpop.f32.mrb[0].mxu0
      %1188 = vmatprep.mubr.f32.mxu0 0.0
      %1189 = vmatmul.mubr.f32.gmra.mrb[0].mxu0 %v574
      %v1190 = vpop.f32.mrb[0].mxu0
      %v1191 = vadd.f32 0.0, %v1190
      %v1192 = vpop.f32.mrb[0].mxu0
      %1193 = vmatprep.mubr.f32.mxu0 0.0
      %1194 = vmatmul.mubr.f32.gmra.mrb[0].mxu0 %v577
      %v1195 = vpop.f32.mrb[0].mxu0
      %v1196 = vadd.f32 0.0, %v1195
      %v1197 = vpop.f32.mrb[0].mxu0
      %1198 = vmatprep.mubr.f32.mxu0 0.0
      %1199 = vmatmul.mubr.f32.gmra.mrb[0].mxu0 %v580
      %v1200 = vpop.f32.mrb[0].mxu0
      %v1201 = vadd.f32 0.0, %v1200
      %v1202 = vpop.f32.mrb[0].mxu0
      %1203 = vmatprep.mubr.f32.mxu0 0.0
      %1204 = vmatmul.mubr.f32.gmra.mrb[0].mxu0 %v583
      %v1205 = vpop.f32.mrb[0].mxu0
      %v1206 = vadd.f32 0.0, %v1205
      %v1207 = vpop.f32.mrb[0].mxu0
      %1208 = vmatprep.mubr.f32.mxu0 0.0
      %1209 = vmatmul.mubr.f32.gmra.mrb[0].mxu0 %v586
      %v1210 = vpop.f32.mrb[0].mxu0
      %v1211 = vadd.f32 0.0, %v1210
      %v1212 = vpop.f32.mrb[0].mxu0
      %1213 = vmatprep.mubr.f32.mxu0 0.0
      %1214 = vmatmul.mubr.f32.gmra.mrb[0].mxu0 %v589
      %v1215 = vpop.f32.mrb[0].mxu0
      %v1216 = vadd.f32 0.0, %v1215
      %v1217 = vpop.f32.mrb[0].mxu0
      %1218 = vmatprep.mubr.f32.mxu0 0.0
      %1219 = vmatmul.mubr.f32.gmra.mrb[0].mxu0 %v592
      %v1220 = vpop.f32.mrb[0].mxu0
      %v1221 = vadd.f32 0.0, %v1220
      %v1222 = vpop.f32.mrb[0].mxu0
      %1223 = vmatprep.mubr.f32.mxu0 0.0
      %1224 = vmatmul.mubr.f32.gmra.mrb[0].mxu0 %v595
      %v1225 = vpop.f32.mrb[0].mxu0
      %v1226 = vadd.f32 0.0, %v1225
      %v1227 = vpop.f32.mrb[0].mxu0
      %1228 = vmatprep.mubr.f32.mxu0 0.0
      %1229 = vmatmul.mubr.f32.gmra.mrb[0].mxu0 %v598
      %v1230 = vpop.f32.mrb[0].mxu0
      %v1231 = vadd.f32 0.0, %v1230
      %v1232 = vpop.f32.mrb[0].mxu0
      %1233 = vmatprep.mubr.f32.mxu0 0.0
      %1234 = vmatmul.mubr.f32.gmra.mrb[0].mxu0 %v601
      %v1235 = vpop.f32.mrb[0].mxu0
      %v1236 = vadd.f32 0.0, %v1235
      %v1237 = vpop.f32.mrb[0].mxu0
      %1238 = vmatprep.mubr.f32.mxu0 0.0
      %1239 = vmatmul.mubr.f32.gmra.mrb[0].mxu0 %v604
      %v1240 = vpop.f32.mrb[0].mxu0
      %v1241 = vadd.f32 0.0, %v1240
      %v1242 = vpop.f32.mrb[0].mxu0
      %1243 = vmatprep.mubr.f32.mxu0 0.0
      %1244 = vmatmul.mubr.f32.gmra.mrb[0].mxu0 %v607
      %v1245 = vpop.f32.mrb[0].mxu0
      %v1246 = vadd.f32 0.0, %v1245
      %v1247 = vpop.f32.mrb[0].mxu0
      %1248 = vmatprep.mubr.f32.mxu0 0.0
      %1249 = vmatmul.mubr.f32.gmra.mrb[0].mxu0 %v610
      %v1250 = vpop.f32.mrb[0].mxu0
      %v1251 = vadd.f32 0.0, %v1250
      %v1252 = vpop.f32.mrb[0].mxu0
      %1253 = vmatprep.mubr.f32.mxu0 0.0
      %1254 = vmatmul.mubr.f32.gmra.mrb[0].mxu0 %v613
      %v1255 = vpop.f32.mrb[0].mxu0
      %v1256 = vadd.f32 0.0, %v1255
      %v1257 = vpop.f32.mrb[0].mxu0
      %1258 = vmatprep.mubr.f32.mxu0 0.0
      %1259 = vmatmul.mubr.f32.gmra.mrb[0].mxu0 %v616
      %v1260 = vpop.f32.mrb[0].mxu0
      %v1261 = vadd.f32 0.0, %v1260
      %v1262 = vpop.f32.mrb[0].mxu0
      %1263 = vmatprep.mubr.f32.mxu0 0.0
      %1264 = vmatmul.mubr.f32.gmra.mrb[0].mxu0 %v619
      %v1265 = vpop.f32.mrb[0].mxu0
      %v1266 = vadd.f32 0.0, %v1265
      %v1267 = vpop.f32.mrb[0].mxu0
      %1268 = vmatprep.mubr.f32.mxu0 0.0
      %1269 = vmatmul.mubr.f32.gmra.mrb[0].mxu0 %v622
      %v1270 = vpop.f32.mrb[0].mxu0
      %v1271 = vadd.f32 0.0, %v1270
      %v1272 = vpop.f32.mrb[0].mxu0
      %1273 = vmatprep.mubr.f32.mxu0 0.0
      %1274 = vmatmul.mubr.f32.gmra.mrb[0].mxu0 %v625
      %v1275 = vpop.f32.mrb[0].mxu0
      %v1276 = vadd.f32 0.0, %v1275
      %v1277 = vpop.f32.mrb[0].mxu0
      %1278 = vmatprep.mubr.f32.mxu0 0.0
      %1279 = vmatmul.mubr.f32.gmra.mrb[0].mxu0 %v628
      %v1280 = vpop.f32.mrb[0].mxu0
      %v1281 = vadd.f32 0.0, %v1280
      %v1282 = vpop.f32.mrb[0].mxu0
      %1283 = vmatprep.mubr.f32.mxu0 0.0
      %1284 = vmatmul.mubr.f32.gmra.mrb[0].mxu0 %v631
      %v1285 = vpop.f32.mrb[0].mxu0
      %v1286 = vadd.f32 0.0, %v1285
      %v1287 = vpop.f32.mrb[0].mxu0
      %1288 = vmatprep.mubr.f32.mxu0 0.0
      %1289 = vmatmul.mubr.f32.gmra.mrb[0].mxu0 %v634
      %v1290 = vpop.f32.mrb[0].mxu0
      %v1291 = vadd.f32 0.0, %v1290
      %v1292 = vpop.f32.mrb[0].mxu0
      %1293 = vmatprep.mubr.f32.mxu0 0.0
      %1294 = vmatmul.mubr.f32.gmra.mrb[0].mxu0 %v637
      %v1295 = vpop.f32.mrb[0].mxu0
      %v1296 = vadd.f32 0.0, %v1295
      %v1297 = vpop.f32.mrb[0].mxu0
      %1298 = vmatprep.mubr.f32.mxu0 0.0
      %1299 = vmatmul.mubr.f32.gmra.mrb[0].mxu0 %v640
      %v1300 = vpop.f32.mrb[0].mxu0
      %v1301 = vadd.f32 0.0, %v1300
      %v1302 = vpop.f32.mrb[0].mxu0
      %1303 = vmatprep.mubr.f32.mxu0 0.0
      %1304 = vmatmul.mubr.f32.gmra.mrb[0].mxu0 %v643
      %v1305 = vpop.f32.mrb[0].mxu0
      %v1306 = vadd.f32 0.0, %v1305
      %v1307 = vpop.f32.mrb[0].mxu0
      %1308 = vmatprep.mubr.f32.mxu0 0.0
      %1309 = vmatmul.mubr.f32.gmra.mrb[0].mxu0 %v646
      %v1310 = vpop.f32.mrb[0].mxu0
      %v1311 = vadd.f32 0.0, %v1310
      %v1312 = vpop.f32.mrb[0].mxu0
      %1313 = vmatprep.mubr.f32.mxu0 0.0
      %1314 = vmatmul.mubr.f32.gmra.mrb[0].mxu0 %v649
      %v1315 = vpop.f32.mrb[0].mxu0
      %v1316 = vadd.f32 0.0, %v1315
      %v1317 = vpop.f32.mrb[0].mxu0
      %1318 = vmatprep.mubr.f32.mxu0 0.0
      %1319 = vmatmul.mubr.f32.gmra.mrb[0].mxu0 %v652
      %v1320 = vpop.f32.mrb[0].mxu0
      %v1321 = vadd.f32 0.0, %v1320
      %v1322 = vpop.f32.mrb[0].mxu0
      %1323 = vmatprep.mubr.f32.mxu0 0.0
      %1324 = vmatmul.mubr.f32.gmra.mrb[0].mxu0 %v655
      %v1325 = vpop.f32.mrb[0].mxu0
      %v1326 = vadd.f32 0.0, %v1325
      %v1327 = vpop.f32.mrb[0].mxu0
      %1328 = vmatprep.mubr.f32.mxu0 0.0
      %1329 = vmatmul.mubr.f32.gmra.mrb[0].mxu0 %v658
      %v1330 = vpop.f32.mrb[0].mxu0
      %v1331 = vadd.f32 0.0, %v1330
      %v1332 = vpop.f32.mrb[0].mxu0
      %1333 = vdwg.mxu0
      %s1334 = scalar_lea.vmem %s165, 968
      %v1335 = vld [vmem:[%s1334] sm:$0xff]
      %v1336 = vld [vmem:[%s1334 + $0x8] sm:$0xff]
      %v1337 = vld [vmem:[%s1334 + $0x10] sm:$0xff]
      %v1338 = vld [vmem:[%s1334 + $0x18] sm:$0xff]
      %v1339 = vld [vmem:[%s1334 + $0x20] sm:$0xff]
      %v1340 = vld [vmem:[%s1334 + $0x28] sm:$0xff]
      %v1341 = vld [vmem:[%s1334 + $0x30] sm:$0xff]
      %v1342 = vld [vmem:[%s1334 + $0x38] sm:$0xff]
      %v1343 = vld [vmem:[%s1334 + $0x40] sm:$0xff]
      %v1344 = vld [vmem:[%s1334 + $0x48] sm:$0xff]
      %v1345 = vld [vmem:[%s1334 + $0x50] sm:$0xff]
      %v1346 = vld [vmem:[%s1334 + $0x58] sm:$0xff]
      %v1347 = vld [vmem:[%s1334 + $0x60] sm:$0xff]
      %v1348 = vld [vmem:[%s1334 + $0x68] sm:$0xff]
      %v1349 = vld [vmem:[%s1334 + $0x70] sm:$0xff]
      %v1350 = vld [vmem:[%s1334 + $0x78] sm:$0xff]
      %v1351 = vld [vmem:[%s1334 + $0x80] sm:$0xff]
      %v1352 = vld [vmem:[%s1334 + $0x88] sm:$0xff]
      %v1353 = vld [vmem:[%s1334 + $0x90] sm:$0xff]
      %v1354 = vld [vmem:[%s1334 + $0x98] sm:$0xff]
      %v1355 = vld [vmem:[%s1334 + $0xa0] sm:$0xff]
      %v1356 = vld [vmem:[%s1334 + $0xa8] sm:$0xff]
      %v1357 = vld [vmem:[%s1334 + $0xb0] sm:$0xff]
      %v1358 = vld [vmem:[%s1334 + $0xb8] sm:$0xff]
      %v1359 = vld [vmem:[%s1334 + $0xc0] sm:$0xff]
      %v1360 = vld [vmem:[%s1334 + $0xc8] sm:$0xff]
      %v1361 = vld [vmem:[%s1334 + $0xd0] sm:$0xff]
      %v1362 = vld [vmem:[%s1334 + $0xd8] sm:$0xff]
      %v1363 = vld [vmem:[%s1334 + $0xe0] sm:$0xff]
      %v1364 = vld [vmem:[%s1334 + $0xe8] sm:$0xff]
      %v1365 = vld [vmem:[%s1334 + $0xf0] sm:$0xff]
      %v1366 = vld [vmem:[%s1334 + $0xf8] sm:$0xff]
      %v1367 = vld [vmem:[%s1334 + $0x100] sm:$0xff]
      %v1368 = vld [vmem:[%s1334 + $0x108] sm:$0xff]
      %v1369 = vld [vmem:[%s1334 + $0x110] sm:$0xff]
      %v1370 = vld [vmem:[%s1334 + $0x118] sm:$0xff]
      %v1371 = vld [vmem:[%s1334 + $0x120] sm:$0xff]
      %v1372 = vld [vmem:[%s1334 + $0x128] sm:$0xff]
      %v1373 = vld [vmem:[%s1334 + $0x130] sm:$0xff]
      %v1374 = vld [vmem:[%s1334 + $0x138] sm:$0xff]
      %v1375 = vld [vmem:[%s1334 + $0x140] sm:$0xff]
      %v1376 = vld [vmem:[%s1334 + $0x148] sm:$0xff]
      %v1377 = vld [vmem:[%s1334 + $0x150] sm:$0xff]
      %v1378 = vld [vmem:[%s1334 + $0x158] sm:$0xff]
      %v1379 = vld [vmem:[%s1334 + $0x160] sm:$0xff]
      %v1380 = vld [vmem:[%s1334 + $0x168] sm:$0xff]
      %v1381 = vld [vmem:[%s1334 + $0x170] sm:$0xff]
      %v1382 = vld [vmem:[%s1334 + $0x178] sm:$0xff]
      %v1383 = vld [vmem:[%s1334 + $0x180] sm:$0xff]
      %v1384 = vld [vmem:[%s1334 + $0x188] sm:$0xff]
      %v1385 = vld [vmem:[%s1334 + $0x190] sm:$0xff]
      %v1386 = vld [vmem:[%s1334 + $0x198] sm:$0xff]
      %v1387 = vld [vmem:[%s1334 + $0x1a0] sm:$0xff]
      %v1388 = vld [vmem:[%s1334 + $0x1a8] sm:$0xff]
      %v1389 = vld [vmem:[%s1334 + $0x1b0] sm:$0xff]
      %v1390 = vld [vmem:[%s1334 + $0x1b8] sm:$0xff]
      %v1391 = vld [vmem:[%s1334 + $0x1c0] sm:$0xff]
      %v1392 = vld [vmem:[%s1334 + $0x1c8] sm:$0xff]
      %v1393 = vld [vmem:[%s1334 + $0x1d0] sm:$0xff]
      %v1394 = vld [vmem:[%s1334 + $0x1d8] sm:$0xff]
      %v1395 = vld [vmem:[%s1334 + $0x1e0] sm:$0xff]
      %v1396 = vld [vmem:[%s1334 + $0x1e8] sm:$0xff]
      %v1397 = vld [vmem:[%s1334 + $0x1f0] sm:$0xff]
      %v1398 = vld [vmem:[%s1334 + $0x1f8] sm:$0xff]
      %v1399 = vld [vmem:[%s1334 + $0x200] sm:$0xff]
      %v1400 = vld [vmem:[%s1334 + $0x208] sm:$0xff]
      %v1401 = vld [vmem:[%s1334 + $0x210] sm:$0xff]
      %v1402 = vld [vmem:[%s1334 + $0x218] sm:$0xff]
      %v1403 = vld [vmem:[%s1334 + $0x220] sm:$0xff]
      %v1404 = vld [vmem:[%s1334 + $0x228] sm:$0xff]
      %v1405 = vld [vmem:[%s1334 + $0x230] sm:$0xff]
      %v1406 = vld [vmem:[%s1334 + $0x238] sm:$0xff]
      %v1407 = vld [vmem:[%s1334 + $0x240] sm:$0xff]
      %v1408 = vld [vmem:[%s1334 + $0x248] sm:$0xff]
      %v1409 = vld [vmem:[%s1334 + $0x250] sm:$0xff]
      %v1410 = vld [vmem:[%s1334 + $0x258] sm:$0xff]
      %v1411 = vld [vmem:[%s1334 + $0x260] sm:$0xff]
      %v1412 = vld [vmem:[%s1334 + $0x268] sm:$0xff]
      %v1413 = vld [vmem:[%s1334 + $0x270] sm:$0xff]
      %v1414 = vld [vmem:[%s1334 + $0x278] sm:$0xff]
      %v1415 = vld [vmem:[%s1334 + $0x280] sm:$0xff]
      %v1416 = vld [vmem:[%s1334 + $0x288] sm:$0xff]
      %v1417 = vld [vmem:[%s1334 + $0x290] sm:$0xff]
      %v1418 = vld [vmem:[%s1334 + $0x298] sm:$0xff]
      %v1419 = vld [vmem:[%s1334 + $0x2a0] sm:$0xff]
      %v1420 = vld [vmem:[%s1334 + $0x2a8] sm:$0xff]
      %v1421 = vld [vmem:[%s1334 + $0x2b0] sm:$0xff]
      %v1422 = vld [vmem:[%s1334 + $0x2b8] sm:$0xff]
      %v1423 = vld [vmem:[%s1334 + $0x2c0] sm:$0xff]
      %v1424 = vld [vmem:[%s1334 + $0x2c8] sm:$0xff]
      %v1425 = vld [vmem:[%s1334 + $0x2d0] sm:$0xff]
      %v1426 = vld [vmem:[%s1334 + $0x2d8] sm:$0xff]
      %v1427 = vld [vmem:[%s1334 + $0x2e0] sm:$0xff]
      %v1428 = vld [vmem:[%s1334 + $0x2e8] sm:$0xff]
      %v1429 = vld [vmem:[%s1334 + $0x2f0] sm:$0xff]
      %v1430 = vld [vmem:[%s1334 + $0x2f8] sm:$0xff]
      %v1431 = vld [vmem:[%s1334 + $0x300] sm:$0xff]
      %v1432 = vld [vmem:[%s1334 + $0x308] sm:$0xff]
      %v1433 = vld [vmem:[%s1334 + $0x310] sm:$0xff]
      %v1434 = vld [vmem:[%s1334 + $0x318] sm:$0xff]
      %v1435 = vld [vmem:[%s1334 + $0x320] sm:$0xff]
      %v1436 = vld [vmem:[%s1334 + $0x328] sm:$0xff]
      %v1437 = vld [vmem:[%s1334 + $0x330] sm:$0xff]
      %v1438 = vld [vmem:[%s1334 + $0x338] sm:$0xff]
      %v1439 = vld [vmem:[%s1334 + $0x340] sm:$0xff]
      %v1440 = vld [vmem:[%s1334 + $0x348] sm:$0xff]
      %v1441 = vld [vmem:[%s1334 + $0x350] sm:$0xff]
      %v1442 = vld [vmem:[%s1334 + $0x358] sm:$0xff]
      %v1443 = vld [vmem:[%s1334 + $0x360] sm:$0xff]
      %v1444 = vld [vmem:[%s1334 + $0x368] sm:$0xff]
      %v1445 = vld [vmem:[%s1334 + $0x370] sm:$0xff]
      %v1446 = vld [vmem:[%s1334 + $0x378] sm:$0xff]
      %v1447 = vld [vmem:[%s1334 + $0x380] sm:$0xff]
      %v1448 = vld [vmem:[%s1334 + $0x388] sm:$0xff]
      %v1449 = vld [vmem:[%s1334 + $0x390] sm:$0xff]
      %v1450 = vld [vmem:[%s1334 + $0x398] sm:$0xff]
      %v1451 = vld [vmem:[%s1334 + $0x3a0] sm:$0xff]
      %v1452 = vld [vmem:[%s1334 + $0x3a8] sm:$0xff]
      %v1453 = vld [vmem:[%s1334 + $0x3b0] sm:$0xff]
      %v1454 = vld [vmem:[%s1334 + $0x3b8] sm:$0xff]
      %v1455 = vld [vmem:[%s1334 + $0x3c0] sm:$0x1]
      %v1457 = vsel %vm296, %v1335, 0
      %v1460 = vsel %vm296, %v1336, 0
      %v1463 = vsel %vm296, %v1337, 0
      %v1466 = vsel %vm296, %v1338, 0
      %v1469 = vsel %vm296, %v1339, 0
      %v1472 = vsel %vm296, %v1340, 0
      %v1475 = vsel %vm296, %v1341, 0
      %v1478 = vsel %vm296, %v1342, 0
      %v1481 = vsel %vm296, %v1343, 0
      %v1484 = vsel %vm296, %v1344, 0
      %v1487 = vsel %vm296, %v1345, 0
      %v1490 = vsel %vm296, %v1346, 0
      %v1493 = vsel %vm296, %v1347, 0
      %v1496 = vsel %vm296, %v1348, 0
      %v1499 = vsel %vm296, %v1349, 0
      %v1502 = vsel %vm296, %v1350, 0
      %v1505 = vsel %vm296, %v1351, 0
      %v1508 = vsel %vm296, %v1352, 0
      %v1511 = vsel %vm296, %v1353, 0
      %v1514 = vsel %vm296, %v1354, 0
      %v1517 = vsel %vm296, %v1355, 0
      %v1520 = vsel %vm296, %v1356, 0
      %v1523 = vsel %vm296, %v1357, 0
      %v1526 = vsel %vm296, %v1358, 0
      %v1529 = vsel %vm296, %v1359, 0
      %v1532 = vsel %vm296, %v1360, 0
      %v1535 = vsel %vm296, %v1361, 0
      %v1538 = vsel %vm296, %v1362, 0
      %v1541 = vsel %vm296, %v1363, 0
      %v1544 = vsel %vm296, %v1364, 0
      %v1547 = vsel %vm296, %v1365, 0
      %v1550 = vsel %vm296, %v1366, 0
      %v1553 = vsel %vm296, %v1367, 0
      %v1556 = vsel %vm296, %v1368, 0
      %v1559 = vsel %vm296, %v1369, 0
      %v1562 = vsel %vm296, %v1370, 0
      %v1565 = vsel %vm296, %v1371, 0
      %v1568 = vsel %vm296, %v1372, 0
      %v1571 = vsel %vm296, %v1373, 0
      %v1574 = vsel %vm296, %v1374, 0
      %v1577 = vsel %vm296, %v1375, 0
      %v1580 = vsel %vm296, %v1376, 0
      %v1583 = vsel %vm296, %v1377, 0
      %v1586 = vsel %vm296, %v1378, 0
      %v1589 = vsel %vm296, %v1379, 0
      %v1592 = vsel %vm296, %v1380, 0
      %v1595 = vsel %vm296, %v1381, 0
      %v1598 = vsel %vm296, %v1382, 0
      %v1601 = vsel %vm296, %v1383, 0
      %v1604 = vsel %vm296, %v1384, 0
      %v1607 = vsel %vm296, %v1385, 0
      %v1610 = vsel %vm296, %v1386, 0
      %v1613 = vsel %vm296, %v1387, 0
      %v1616 = vsel %vm296, %v1388, 0
      %v1619 = vsel %vm296, %v1389, 0
      %v1622 = vsel %vm296, %v1390, 0
      %v1625 = vsel %vm296, %v1391, 0
      %v1628 = vsel %vm296, %v1392, 0
      %v1631 = vsel %vm296, %v1393, 0
      %v1634 = vsel %vm296, %v1394, 0
      %v1637 = vsel %vm296, %v1395, 0
      %v1640 = vsel %vm296, %v1396, 0
      %v1643 = vsel %vm296, %v1397, 0
      %v1646 = vsel %vm296, %v1398, 0
      %v1649 = vsel %vm296, %v1399, 0
      %v1652 = vsel %vm296, %v1400, 0
      %v1655 = vsel %vm296, %v1401, 0
      %v1658 = vsel %vm296, %v1402, 0
      %v1661 = vsel %vm296, %v1403, 0
      %v1664 = vsel %vm296, %v1404, 0
      %v1667 = vsel %vm296, %v1405, 0
      %v1670 = vsel %vm296, %v1406, 0
      %v1673 = vsel %vm296, %v1407, 0
      %v1676 = vsel %vm296, %v1408, 0
      %v1679 = vsel %vm296, %v1409, 0
      %v1682 = vsel %vm296, %v1410, 0
      %v1685 = vsel %vm296, %v1411, 0
      %v1688 = vsel %vm296, %v1412, 0
      %v1691 = vsel %vm296, %v1413, 0
      %v1694 = vsel %vm296, %v1414, 0
      %v1697 = vsel %vm296, %v1415, 0
      %v1700 = vsel %vm296, %v1416, 0
      %v1703 = vsel %vm296, %v1417, 0
      %v1706 = vsel %vm296, %v1418, 0
      %v1709 = vsel %vm296, %v1419, 0
      %v1712 = vsel %vm296, %v1420, 0
      %v1715 = vsel %vm296, %v1421, 0
      %v1718 = vsel %vm296, %v1422, 0
      %v1721 = vsel %vm296, %v1423, 0
      %v1724 = vsel %vm296, %v1424, 0
      %v1727 = vsel %vm296, %v1425, 0
      %v1730 = vsel %vm296, %v1426, 0
      %v1733 = vsel %vm296, %v1427, 0
      %v1736 = vsel %vm296, %v1428, 0
      %v1739 = vsel %vm296, %v1429, 0
      %v1742 = vsel %vm296, %v1430, 0
      %v1745 = vsel %vm296, %v1431, 0
      %v1748 = vsel %vm296, %v1432, 0
      %v1751 = vsel %vm296, %v1433, 0
      %v1754 = vsel %vm296, %v1434, 0
      %v1757 = vsel %vm296, %v1435, 0
      %v1760 = vsel %vm296, %v1436, 0
      %v1763 = vsel %vm296, %v1437, 0
      %v1766 = vsel %vm296, %v1438, 0
      %v1769 = vsel %vm296, %v1439, 0
      %v1772 = vsel %vm296, %v1440, 0
      %v1775 = vsel %vm296, %v1441, 0
      %v1778 = vsel %vm296, %v1442, 0
      %v1781 = vsel %vm296, %v1443, 0
      %v1784 = vsel %vm296, %v1444, 0
      %v1787 = vsel %vm296, %v1445, 0
      %v1790 = vsel %vm296, %v1446, 0
      %v1793 = vsel %vm296, %v1447, 0
      %v1796 = vsel %vm296, %v1448, 0
      %v1799 = vsel %vm296, %v1449, 0
      %v1802 = vsel %vm296, %v1450, 0
      %v1805 = vsel %vm296, %v1451, 0
      %v1808 = vsel %vm296, %v1452, 0
      %v1811 = vsel %vm296, %v1453, 0
      %v1814 = vsel %vm296, %v1454, 0
      %v1817 = vsel %vm296, %v1455, 0
      %1819 = vmatprep.subr.mxu0 0.0
      %1820 = vmatpush1.msra.mxu0 %v171
      %1821 = vmatprep.subr.mxu0 0.0
      %1822 = vmatpush1.msra.mxu0 %v172
      %1823 = vmatprep.subr.mxu0 0.0
      %1824 = vmatpush1.msra.mxu0 %v173
      %1825 = vmatprep.subr.mxu0 0.0
      %1826 = vmatpush1.msra.mxu0 %v662
      %1827 = vmatprep.subr.mxu0 0.0
      %1828 = vmatpush1.msra.mxu0 0.0
      %1829 = vmatprep.subr.mxu0 0.0
      %1830 = vmatpush1.msra.mxu0 0.0
      %1831 = vmatprep.subr.mxu0 0.0
      %1832 = vmatpush1.msra.mxu0 0.0
      %1833 = vmatprep.subr.mxu0 0.0
      %1834 = vmatpush1.msra.mxu0 0.0
      %1835 = vmatprep.subr.mxu0 0.0
      %1836 = vmatpush1.msra.mxu0 0.0
      %1837 = vmatprep.subr.mxu0 0.0
      %1838 = vmatpush1.msra.mxu0 0.0
      %1839 = vmatprep.subr.mxu0 0.0
      %1840 = vmatpush1.msra.mxu0 0.0
      %1841 = vmatprep.subr.mxu0 0.0
      %1842 = vmatpush1.msra.mxu0 0.0
      %1843 = vmatprep.subr.mxu0 0.0
      %1844 = vmatpush1.msra.mxu0 0.0
      %1845 = vmatprep.subr.mxu0 0.0
      %1846 = vmatpush1.msra.mxu0 0.0
      %1847 = vmatprep.subr.mxu0 0.0
      %1848 = vmatpush1.msra.mxu0 0.0
      %1849 = vmatprep.subr.mxu0 0.0
      %1850 = vmatpush1.msra.mxu0 0.0
      %1851 = vmatprep.subr.mxu0 0.0
      %1852 = vmatpush1.msra.mxu0 0.0
      %1853 = vmatprep.subr.mxu0 0.0
      %1854 = vmatpush1.msra.mxu0 0.0
      %1855 = vmatprep.subr.mxu0 0.0
      %1856 = vmatpush1.msra.mxu0 0.0
      %1857 = vmatprep.subr.mxu0 0.0
      %1858 = vmatpush1.msra.mxu0 0.0
      %1859 = vmatprep.subr.mxu0 0.0
      %1860 = vmatpush1.msra.mxu0 0.0
      %1861 = vmatprep.subr.mxu0 0.0
      %1862 = vmatpush1.msra.mxu0 0.0
      %1863 = vmatprep.subr.mxu0 0.0
      %1864 = vmatpush1.msra.mxu0 0.0
      %1865 = vmatprep.subr.mxu0 0.0
      %1866 = vmatpush1.msra.mxu0 0.0
      %1867 = vmatprep.subr.mxu0 0.0
      %1868 = vmatpush1.msra.mxu0 0.0
      %1869 = vmatprep.subr.mxu0 0.0
      %1870 = vmatpush1.msra.mxu0 0.0
      %1871 = vmatprep.subr.mxu0 0.0
      %1872 = vmatpush1.msra.mxu0 0.0
      %1873 = vmatprep.subr.mxu0 0.0
      %1874 = vmatpush1.msra.mxu0 0.0
      %1875 = vmatprep.subr.mxu0 0.0
      %1876 = vmatpush1.msra.mxu0 0.0
      %1877 = vmatprep.subr.mxu0 0.0
      %1878 = vmatpush1.msra.mxu0 0.0
      %1879 = vmatprep.subr.mxu0 0.0
      %1880 = vmatpush1.msra.mxu0 0.0
      %1881 = vmatprep.subr.mxu0 0.0
      %1882 = vmatpush1.msra.mxu0 0.0
      %1883 = vmatprep.mubr.f32.mxu0 0.0
      %1884 = vmatmul.mubr.f32.gmra.mrb[0].mxu0 %v1457
      %v1885 = vpop.f32.mrb[0].mxu0
      %v1886 = vadd.f32 0.0, %v1885
      %v1887 = vpop.f32.mrb[0].mxu0
      %1888 = vmatprep.mubr.f32.mxu0 0.0
      %1889 = vmatmul.mubr.f32.gmra.mrb[0].mxu0 %v1460
      %v1890 = vpop.f32.mrb[0].mxu0
      %v1891 = vadd.f32 0.0, %v1890
      %v1892 = vpop.f32.mrb[0].mxu0
      %1893 = vmatprep.mubr.f32.mxu0 0.0
      %1894 = vmatmul.mubr.f32.gmra.mrb[0].mxu0 %v1463
      %v1895 = vpop.f32.mrb[0].mxu0
      %v1896 = vadd.f32 0.0, %v1895
      %v1897 = vpop.f32.mrb[0].mxu0
      %1898 = vmatprep.mubr.f32.mxu0 0.0
      %1899 = vmatmul.mubr.f32.gmra.mrb[0].mxu0 %v1466
      %v1900 = vpop.f32.mrb[0].mxu0
      %v1901 = vadd.f32 0.0, %v1900
      %v1902 = vpop.f32.mrb[0].mxu0
      %1903 = vmatprep.mubr.f32.mxu0 0.0
      %1904 = vmatmul.mubr.f32.gmra.mrb[0].mxu0 %v1469
      %v1905 = vpop.f32.mrb[0].mxu0
      %v1906 = vadd.f32 0.0, %v1905
      %v1907 = vpop.f32.mrb[0].mxu0
      %1908 = vmatprep.mubr.f32.mxu0 0.0
      %1909 = vmatmul.mubr.f32.gmra.mrb[0].mxu0 %v1472
      %v1910 = vpop.f32.mrb[0].mxu0
      %v1911 = vadd.f32 0.0, %v1910
      %v1912 = vpop.f32.mrb[0].mxu0
      %1913 = vmatprep.mubr.f32.mxu0 0.0
      %1914 = vmatmul.mubr.f32.gmra.mrb[0].mxu0 %v1475
      %v1915 = vpop.f32.mrb[0].mxu0
      %v1916 = vadd.f32 0.0, %v1915
      %v1917 = vpop.f32.mrb[0].mxu0
      %1918 = vmatprep.mubr.f32.mxu0 0.0
      %1919 = vmatmul.mubr.f32.gmra.mrb[0].mxu0 %v1478
      %v1920 = vpop.f32.mrb[0].mxu0
      %v1921 = vadd.f32 0.0, %v1920
      %v1922 = vpop.f32.mrb[0].mxu0
      %1923 = vmatprep.mubr.f32.mxu0 0.0
      %1924 = vmatmul.mubr.f32.gmra.mrb[0].mxu0 %v1481
      %v1925 = vpop.f32.mrb[0].mxu0
      %v1926 = vadd.f32 0.0, %v1925
      %v1927 = vpop.f32.mrb[0].mxu0
      %1928 = vmatprep.mubr.f32.mxu0 0.0
      %1929 = vmatmul.mubr.f32.gmra.mrb[0].mxu0 %v1484
      %v1930 = vpop.f32.mrb[0].mxu0
      %v1931 = vadd.f32 0.0, %v1930
      %v1932 = vpop.f32.mrb[0].mxu0
      %1933 = vmatprep.mubr.f32.mxu0 0.0
      %1934 = vmatmul.mubr.f32.gmra.mrb[0].mxu0 %v1487
      %v1935 = vpop.f32.mrb[0].mxu0
      %v1936 = vadd.f32 0.0, %v1935
      %v1937 = vpop.f32.mrb[0].mxu0
      %1938 = vmatprep.mubr.f32.mxu0 0.0
      %1939 = vmatmul.mubr.f32.gmra.mrb[0].mxu0 %v1490
      %v1940 = vpop.f32.mrb[0].mxu0
      %v1941 = vadd.f32 0.0, %v1940
      %v1942 = vpop.f32.mrb[0].mxu0
      %1943 = vmatprep.mubr.f32.mxu0 0.0
      %1944 = vmatmul.mubr.f32.gmra.mrb[0].mxu0 %v1493
      %v1945 = vpop.f32.mrb[0].mxu0
      %v1946 = vadd.f32 0.0, %v1945
      %v1947 = vpop.f32.mrb[0].mxu0
      %1948 = vmatprep.mubr.f32.mxu0 0.0
      %1949 = vmatmul.mubr.f32.gmra.mrb[0].mxu0 %v1496
      %v1950 = vpop.f32.mrb[0].mxu0
      %v1951 = vadd.f32 0.0, %v1950
      %v1952 = vpop.f32.mrb[0].mxu0
      %1953 = vmatprep.mubr.f32.mxu0 0.0
      %1954 = vmatmul.mubr.f32.gmra.mrb[0].mxu0 %v1499
      %v1955 = vpop.f32.mrb[0].mxu0
      %v1956 = vadd.f32 0.0, %v1955
      %v1957 = vpop.f32.mrb[0].mxu0
      %1958 = vmatprep.mubr.f32.mxu0 0.0
      %1959 = vmatmul.mubr.f32.gmra.mrb[0].mxu0 %v1502
      %v1960 = vpop.f32.mrb[0].mxu0
      %v1961 = vadd.f32 0.0, %v1960
      %v1962 = vpop.f32.mrb[0].mxu0
      %1963 = vmatprep.mubr.f32.mxu0 0.0
      %1964 = vmatmul.mubr.f32.gmra.mrb[0].mxu0 %v1505
      %v1965 = vpop.f32.mrb[0].mxu0
      %v1966 = vadd.f32 0.0, %v1965
      %v1967 = vpop.f32.mrb[0].mxu0
      %1968 = vmatprep.mubr.f32.mxu0 0.0
      %1969 = vmatmul.mubr.f32.gmra.mrb[0].mxu0 %v1508
      %v1970 = vpop.f32.mrb[0].mxu0
      %v1971 = vadd.f32 0.0, %v1970
      %v1972 = vpop.f32.mrb[0].mxu0
      %1973 = vmatprep.mubr.f32.mxu0 0.0
      %1974 = vmatmul.mubr.f32.gmra.mrb[0].mxu0 %v1511
      %v1975 = vpop.f32.mrb[0].mxu0
      %v1976 = vadd.f32 0.0, %v1975
      %v1977 = vpop.f32.mrb[0].mxu0
      %1978 = vmatprep.mubr.f32.mxu0 0.0
      %1979 = vmatmul.mubr.f32.gmra.mrb[0].mxu0 %v1514
      %v1980 = vpop.f32.mrb[0].mxu0
      %v1981 = vadd.f32 0.0, %v1980
      %v1982 = vpop.f32.mrb[0].mxu0
      %1983 = vmatprep.mubr.f32.mxu0 0.0
      %1984 = vmatmul.mubr.f32.gmra.mrb[0].mxu0 %v1517
      %v1985 = vpop.f32.mrb[0].mxu0
      %v1986 = vadd.f32 0.0, %v1985
      %v1987 = vpop.f32.mrb[0].mxu0
      %1988 = vmatprep.mubr.f32.mxu0 0.0
      %1989 = vmatmul.mubr.f32.gmra.mrb[0].mxu0 %v1520
      %v1990 = vpop.f32.mrb[0].mxu0
      %v1991 = vadd.f32 0.0, %v1990
      %v1992 = vpop.f32.mrb[0].mxu0
      %1993 = vmatprep.mubr.f32.mxu0 0.0
      %1994 = vmatmul.mubr.f32.gmra.mrb[0].mxu0 %v1523
      %v1995 = vpop.f32.mrb[0].mxu0
      %v1996 = vadd.f32 0.0, %v1995
      %v1997 = vpop.f32.mrb[0].mxu0
      %1998 = vmatprep.mubr.f32.mxu0 0.0
      %1999 = vmatmul.mubr.f32.gmra.mrb[0].mxu0 %v1526
      %v2000 = vpop.f32.mrb[0].mxu0
      %v2001 = vadd.f32 0.0, %v2000
      %v2002 = vpop.f32.mrb[0].mxu0
      %2003 = vmatprep.mubr.f32.mxu0 0.0
      %2004 = vmatmul.mubr.f32.gmra.mrb[0].mxu0 %v1529
      %v2005 = vpop.f32.mrb[0].mxu0
      %v2006 = vadd.f32 0.0, %v2005
      %v2007 = vpop.f32.mrb[0].mxu0
      %2008 = vmatprep.mubr.f32.mxu0 0.0
      %2009 = vmatmul.mubr.f32.gmra.mrb[0].mxu0 %v1532
      %v2010 = vpop.f32.mrb[0].mxu0
      %v2011 = vadd.f32 0.0, %v2010
      %v2012 = vpop.f32.mrb[0].mxu0
      %2013 = vmatprep.mubr.f32.mxu0 0.0
      %2014 = vmatmul.mubr.f32.gmra.mrb[0].mxu0 %v1535
      %v2015 = vpop.f32.mrb[0].mxu0
      %v2016 = vadd.f32 0.0, %v2015
      %v2017 = vpop.f32.mrb[0].mxu0
      %2018 = vmatprep.mubr.f32.mxu0 0.0
      %2019 = vmatmul.mubr.f32.gmra.mrb[0].mxu0 %v1538
      %v2020 = vpop.f32.mrb[0].mxu0
      %v2021 = vadd.f32 0.0, %v2020
      %v2022 = vpop.f32.mrb[0].mxu0
      %2023 = vmatprep.mubr.f32.mxu0 0.0
      %2024 = vmatmul.mubr.f32.gmra.mrb[0].mxu0 %v1541
      %v2025 = vpop.f32.mrb[0].mxu0
      %v2026 = vadd.f32 0.0, %v2025
      %v2027 = vpop.f32.mrb[0].mxu0
      %2028 = vmatprep.mubr.f32.mxu0 0.0
      %2029 = vmatmul.mubr.f32.gmra.mrb[0].mxu0 %v1544
      %v2030 = vpop.f32.mrb[0].mxu0
      %v2031 = vadd.f32 0.0, %v2030
      %v2032 = vpop.f32.mrb[0].mxu0
      %2033 = vmatprep.mubr.f32.mxu0 0.0
      %2034 = vmatmul.mubr.f32.gmra.mrb[0].mxu0 %v1547
      %v2035 = vpop.f32.mrb[0].mxu0
      %v2036 = vadd.f32 0.0, %v2035
      %v2037 = vpop.f32.mrb[0].mxu0
      %2038 = vmatprep.mubr.f32.mxu0 0.0
      %2039 = vmatmul.mubr.f32.gmra.mrb[0].mxu0 %v1550
      %v2040 = vpop.f32.mrb[0].mxu0
      %v2041 = vadd.f32 0.0, %v2040
      %v2042 = vpop.f32.mrb[0].mxu0
      %2043 = vmatprep.mubr.f32.mxu0 0.0
      %2044 = vmatmul.mubr.f32.gmra.mrb[0].mxu0 %v1553
      %v2045 = vpop.f32.mrb[0].mxu0
      %v2046 = vadd.f32 0.0, %v2045
      %v2047 = vpop.f32.mrb[0].mxu0
      %2048 = vmatprep.mubr.f32.mxu0 0.0
      %2049 = vmatmul.mubr.f32.gmra.mrb[0].mxu0 %v1556
      %v2050 = vpop.f32.mrb[0].mxu0
      %v2051 = vadd.f32 0.0, %v2050
      %v2052 = vpop.f32.mrb[0].mxu0
      %2053 = vmatprep.mubr.f32.mxu0 0.0
      %2054 = vmatmul.mubr.f32.gmra.mrb[0].mxu0 %v1559
      %v2055 = vpop.f32.mrb[0].mxu0
      %v2056 = vadd.f32 0.0, %v2055
      %v2057 = vpop.f32.mrb[0].mxu0
      %2058 = vmatprep.mubr.f32.mxu0 0.0
      %2059 = vmatmul.mubr.f32.gmra.mrb[0].mxu0 %v1562
      %v2060 = vpop.f32.mrb[0].mxu0
      %v2061 = vadd.f32 0.0, %v2060
      %v2062 = vpop.f32.mrb[0].mxu0
      %2063 = vmatprep.mubr.f32.mxu0 0.0
      %2064 = vmatmul.mubr.f32.gmra.mrb[0].mxu0 %v1565
      %v2065 = vpop.f32.mrb[0].mxu0
      %v2066 = vadd.f32 0.0, %v2065
      %v2067 = vpop.f32.mrb[0].mxu0
      %2068 = vmatprep.mubr.f32.mxu0 0.0
      %2069 = vmatmul.mubr.f32.gmra.mrb[0].mxu0 %v1568
      %v2070 = vpop.f32.mrb[0].mxu0
      %v2071 = vadd.f32 0.0, %v2070
      %v2072 = vpop.f32.mrb[0].mxu0
      %2073 = vmatprep.mubr.f32.mxu0 0.0
      %2074 = vmatmul.mubr.f32.gmra.mrb[0].mxu0 %v1571
      %v2075 = vpop.f32.mrb[0].mxu0
      %v2076 = vadd.f32 0.0, %v2075
      %v2077 = vpop.f32.mrb[0].mxu0
      %2078 = vmatprep.mubr.f32.mxu0 0.0
      %2079 = vmatmul.mubr.f32.gmra.mrb[0].mxu0 %v1574
      %v2080 = vpop.f32.mrb[0].mxu0
      %v2081 = vadd.f32 0.0, %v2080
      %v2082 = vpop.f32.mrb[0].mxu0
      %2083 = vmatprep.mubr.f32.mxu0 0.0
      %2084 = vmatmul.mubr.f32.gmra.mrb[0].mxu0 %v1577
      %v2085 = vpop.f32.mrb[0].mxu0
      %v2086 = vadd.f32 0.0, %v2085
      %v2087 = vpop.f32.mrb[0].mxu0
      %2088 = vmatprep.mubr.f32.mxu0 0.0
      %2089 = vmatmul.mubr.f32.gmra.mrb[0].mxu0 %v1580
      %v2090 = vpop.f32.mrb[0].mxu0
      %v2091 = vadd.f32 0.0, %v2090
      %v2092 = vpop.f32.mrb[0].mxu0
      %2093 = vmatprep.mubr.f32.mxu0 0.0
      %2094 = vmatmul.mubr.f32.gmra.mrb[0].mxu0 %v1583
      %v2095 = vpop.f32.mrb[0].mxu0
      %v2096 = vadd.f32 0.0, %v2095
      %v2097 = vpop.f32.mrb[0].mxu0
      %2098 = vmatprep.mubr.f32.mxu0 0.0
      %2099 = vmatmul.mubr.f32.gmra.mrb[0].mxu0 %v1586
      %v2100 = vpop.f32.mrb[0].mxu0
      %v2101 = vadd.f32 0.0, %v2100
      %v2102 = vpop.f32.mrb[0].mxu0
      %2103 = vmatprep.mubr.f32.mxu0 0.0
      %2104 = vmatmul.mubr.f32.gmra.mrb[0].mxu0 %v1589
      %v2105 = vpop.f32.mrb[0].mxu0
      %v2106 = vadd.f32 0.0, %v2105
      %v2107 = vpop.f32.mrb[0].mxu0
      %2108 = vmatprep.mubr.f32.mxu0 0.0
      %2109 = vmatmul.mubr.f32.gmra.mrb[0].mxu0 %v1592
      %v2110 = vpop.f32.mrb[0].mxu0
      %v2111 = vadd.f32 0.0, %v2110
      %v2112 = vpop.f32.mrb[0].mxu0
      %2113 = vmatprep.mubr.f32.mxu0 0.0
      %2114 = vmatmul.mubr.f32.gmra.mrb[0].mxu0 %v1595
      %v2115 = vpop.f32.mrb[0].mxu0
      %v2116 = vadd.f32 0.0, %v2115
      %v2117 = vpop.f32.mrb[0].mxu0
      %2118 = vmatprep.mubr.f32.mxu0 0.0
      %2119 = vmatmul.mubr.f32.gmra.mrb[0].mxu0 %v1598
      %v2120 = vpop.f32.mrb[0].mxu0
      %v2121 = vadd.f32 0.0, %v2120
      %v2122 = vpop.f32.mrb[0].mxu0
      %2123 = vmatprep.mubr.f32.mxu0 0.0
      %2124 = vmatmul.mubr.f32.gmra.mrb[0].mxu0 %v1601
      %v2125 = vpop.f32.mrb[0].mxu0
      %v2126 = vadd.f32 0.0, %v2125
      %v2127 = vpop.f32.mrb[0].mxu0
      %2128 = vmatprep.mubr.f32.mxu0 0.0
      %2129 = vmatmul.mubr.f32.gmra.mrb[0].mxu0 %v1604
      %v2130 = vpop.f32.mrb[0].mxu0
      %v2131 = vadd.f32 0.0, %v2130
      %v2132 = vpop.f32.mrb[0].mxu0
      %2133 = vmatprep.mubr.f32.mxu0 0.0
      %2134 = vmatmul.mubr.f32.gmra.mrb[0].mxu0 %v1607
      %v2135 = vpop.f32.mrb[0].mxu0
      %v2136 = vadd.f32 0.0, %v2135
      %v2137 = vpop.f32.mrb[0].mxu0
      %2138 = vmatprep.mubr.f32.mxu0 0.0
      %2139 = vmatmul.mubr.f32.gmra.mrb[0].mxu0 %v1610
      %v2140 = vpop.f32.mrb[0].mxu0
      %v2141 = vadd.f32 0.0, %v2140
      %v2142 = vpop.f32.mrb[0].mxu0
      %2143 = vmatprep.mubr.f32.mxu0 0.0
      %2144 = vmatmul.mubr.f32.gmra.mrb[0].mxu0 %v1613
      %v2145 = vpop.f32.mrb[0].mxu0
      %v2146 = vadd.f32 0.0, %v2145
      %v2147 = vpop.f32.mrb[0].mxu0
      %2148 = vmatprep.mubr.f32.mxu0 0.0
      %2149 = vmatmul.mubr.f32.gmra.mrb[0].mxu0 %v1616
      %v2150 = vpop.f32.mrb[0].mxu0
      %v2151 = vadd.f32 0.0, %v2150
      %v2152 = vpop.f32.mrb[0].mxu0
      %2153 = vmatprep.mubr.f32.mxu0 0.0
      %2154 = vmatmul.mubr.f32.gmra.mrb[0].mxu0 %v1619
      %v2155 = vpop.f32.mrb[0].mxu0
      %v2156 = vadd.f32 0.0, %v2155
      %v2157 = vpop.f32.mrb[0].mxu0
      %2158 = vmatprep.mubr.f32.mxu0 0.0
      %2159 = vmatmul.mubr.f32.gmra.mrb[0].mxu0 %v1622
      %v2160 = vpop.f32.mrb[0].mxu0
      %v2161 = vadd.f32 0.0, %v2160
      %v2162 = vpop.f32.mrb[0].mxu0
      %2163 = vmatprep.mubr.f32.mxu0 0.0
      %2164 = vmatmul.mubr.f32.gmra.mrb[0].mxu0 %v1625
      %v2165 = vpop.f32.mrb[0].mxu0
      %v2166 = vadd.f32 0.0, %v2165
      %v2167 = vpop.f32.mrb[0].mxu0
      %2168 = vmatprep.mubr.f32.mxu0 0.0
      %2169 = vmatmul.mubr.f32.gmra.mrb[0].mxu0 %v1628
      %v2170 = vpop.f32.mrb[0].mxu0
      %v2171 = vadd.f32 0.0, %v2170
      %v2172 = vpop.f32.mrb[0].mxu0
      %2173 = vmatprep.mubr.f32.mxu0 0.0
      %2174 = vmatmul.mubr.f32.gmra.mrb[0].mxu0 %v1631
      %v2175 = vpop.f32.mrb[0].mxu0
      %v2176 = vadd.f32 0.0, %v2175
      %v2177 = vpop.f32.mrb[0].mxu0
      %2178 = vmatprep.mubr.f32.mxu0 0.0
      %2179 = vmatmul.mubr.f32.gmra.mrb[0].mxu0 %v1634
      %v2180 = vpop.f32.mrb[0].mxu0
      %v2181 = vadd.f32 0.0, %v2180
      %v2182 = vpop.f32.mrb[0].mxu0
      %2183 = vmatprep.mubr.f32.mxu0 0.0
      %2184 = vmatmul.mubr.f32.gmra.mrb[0].mxu0 %v1637
      %v2185 = vpop.f32.mrb[0].mxu0
      %v2186 = vadd.f32 0.0, %v2185
      %v2187 = vpop.f32.mrb[0].mxu0
      %2188 = vmatprep.mubr.f32.mxu0 0.0
      %2189 = vmatmul.mubr.f32.gmra.mrb[0].mxu0 %v1640
      %v2190 = vpop.f32.mrb[0].mxu0
      %v2191 = vadd.f32 0.0, %v2190
      %v2192 = vpop.f32.mrb[0].mxu0
      %2193 = vmatprep.mubr.f32.mxu0 0.0
      %2194 = vmatmul.mubr.f32.gmra.mrb[0].mxu0 %v1643
      %v2195 = vpop.f32.mrb[0].mxu0
      %v2196 = vadd.f32 0.0, %v2195
      %v2197 = vpop.f32.mrb[0].mxu0
      %2198 = vmatprep.mubr.f32.mxu0 0.0
      %2199 = vmatmul.mubr.f32.gmra.mrb[0].mxu0 %v1646
      %v2200 = vpop.f32.mrb[0].mxu0
      %v2201 = vadd.f32 0.0, %v2200
      %v2202 = vpop.f32.mrb[0].mxu0
      %2203 = vmatprep.mubr.f32.mxu0 0.0
      %2204 = vmatmul.mubr.f32.gmra.mrb[0].mxu0 %v1649
      %v2205 = vpop.f32.mrb[0].mxu0
      %v2206 = vadd.f32 0.0, %v2205
      %v2207 = vpop.f32.mrb[0].mxu0
      %2208 = vmatprep.mubr.f32.mxu0 0.0
      %2209 = vmatmul.mubr.f32.gmra.mrb[0].mxu0 %v1652
      %v2210 = vpop.f32.mrb[0].mxu0
      %v2211 = vadd.f32 0.0, %v2210
      %v2212 = vpop.f32.mrb[0].mxu0
      %2213 = vmatprep.mubr.f32.mxu0 0.0
      %2214 = vmatmul.mubr.f32.gmra.mrb[0].mxu0 %v1655
      %v2215 = vpop.f32.mrb[0].mxu0
      %v2216 = vadd.f32 0.0, %v2215
      %v2217 = vpop.f32.mrb[0].mxu0
      %2218 = vmatprep.mubr.f32.mxu0 0.0
      %2219 = vmatmul.mubr.f32.gmra.mrb[0].mxu0 %v1658
      %v2220 = vpop.f32.mrb[0].mxu0
      %v2221 = vadd.f32 0.0, %v2220
      %v2222 = vpop.f32.mrb[0].mxu0
      %2223 = vmatprep.mubr.f32.mxu0 0.0
      %2224 = vmatmul.mubr.f32.gmra.mrb[0].mxu0 %v1661
      %v2225 = vpop.f32.mrb[0].mxu0
      %v2226 = vadd.f32 0.0, %v2225
      %v2227 = vpop.f32.mrb[0].mxu0
      %2228 = vmatprep.mubr.f32.mxu0 0.0
      %2229 = vmatmul.mubr.f32.gmra.mrb[0].mxu0 %v1664
      %v2230 = vpop.f32.mrb[0].mxu0
      %v2231 = vadd.f32 0.0, %v2230
      %v2232 = vpop.f32.mrb[0].mxu0
      %2233 = vmatprep.mubr.f32.mxu0 0.0
      %2234 = vmatmul.mubr.f32.gmra.mrb[0].mxu0 %v1667
      %v2235 = vpop.f32.mrb[0].mxu0
      %v2236 = vadd.f32 0.0, %v2235
      %v2237 = vpop.f32.mrb[0].mxu0
      %2238 = vmatprep.mubr.f32.mxu0 0.0
      %2239 = vmatmul.mubr.f32.gmra.mrb[0].mxu0 %v1670
      %v2240 = vpop.f32.mrb[0].mxu0
      %v2241 = vadd.f32 0.0, %v2240
      %v2242 = vpop.f32.mrb[0].mxu0
      %2243 = vmatprep.mubr.f32.mxu0 0.0
      %2244 = vmatmul.mubr.f32.gmra.mrb[0].mxu0 %v1673
      %v2245 = vpop.f32.mrb[0].mxu0
      %v2246 = vadd.f32 0.0, %v2245
      %v2247 = vpop.f32.mrb[0].mxu0
      %2248 = vmatprep.mubr.f32.mxu0 0.0
      %2249 = vmatmul.mubr.f32.gmra.mrb[0].mxu0 %v1676
      %v2250 = vpop.f32.mrb[0].mxu0
      %v2251 = vadd.f32 0.0, %v2250
      %v2252 = vpop.f32.mrb[0].mxu0
      %2253 = vmatprep.mubr.f32.mxu0 0.0
      %2254 = vmatmul.mubr.f32.gmra.mrb[0].mxu0 %v1679
      %v2255 = vpop.f32.mrb[0].mxu0
      %v2256 = vadd.f32 0.0, %v2255
      %v2257 = vpop.f32.mrb[0].mxu0
      %2258 = vmatprep.mubr.f32.mxu0 0.0
      %2259 = vmatmul.mubr.f32.gmra.mrb[0].mxu0 %v1682
      %v2260 = vpop.f32.mrb[0].mxu0
      %v2261 = vadd.f32 0.0, %v2260
      %v2262 = vpop.f32.mrb[0].mxu0
      %2263 = vmatprep.mubr.f32.mxu0 0.0
      %2264 = vmatmul.mubr.f32.gmra.mrb[0].mxu0 %v1685
      %v2265 = vpop.f32.mrb[0].mxu0
      %v2266 = vadd.f32 0.0, %v2265
      %v2267 = vpop.f32.mrb[0].mxu0
      %2268 = vmatprep.mubr.f32.mxu0 0.0
      %2269 = vmatmul.mubr.f32.gmra.mrb[0].mxu0 %v1688
      %v2270 = vpop.f32.mrb[0].mxu0
      %v2271 = vadd.f32 0.0, %v2270
      %v2272 = vpop.f32.mrb[0].mxu0
      %2273 = vmatprep.mubr.f32.mxu0 0.0
      %2274 = vmatmul.mubr.f32.gmra.mrb[0].mxu0 %v1691
      %v2275 = vpop.f32.mrb[0].mxu0
      %v2276 = vadd.f32 0.0, %v2275
      %v2277 = vpop.f32.mrb[0].mxu0
      %2278 = vmatprep.mubr.f32.mxu0 0.0
      %2279 = vmatmul.mubr.f32.gmra.mrb[0].mxu0 %v1694
      %v2280 = vpop.f32.mrb[0].mxu0
      %v2281 = vadd.f32 0.0, %v2280
      %v2282 = vpop.f32.mrb[0].mxu0
      %2283 = vmatprep.mubr.f32.mxu0 0.0
      %2284 = vmatmul.mubr.f32.gmra.mrb[0].mxu0 %v1697
      %v2285 = vpop.f32.mrb[0].mxu0
      %v2286 = vadd.f32 0.0, %v2285
      %v2287 = vpop.f32.mrb[0].mxu0
      %2288 = vmatprep.mubr.f32.mxu0 0.0
      %2289 = vmatmul.mubr.f32.gmra.mrb[0].mxu0 %v1700
      %v2290 = vpop.f32.mrb[0].mxu0
      %v2291 = vadd.f32 0.0, %v2290
      %v2292 = vpop.f32.mrb[0].mxu0
      %2293 = vmatprep.mubr.f32.mxu0 0.0
      %2294 = vmatmul.mubr.f32.gmra.mrb[0].mxu0 %v1703
      %v2295 = vpop.f32.mrb[0].mxu0
      %v2296 = vadd.f32 0.0, %v2295
      %v2297 = vpop.f32.mrb[0].mxu0
      %2298 = vmatprep.mubr.f32.mxu0 0.0
      %2299 = vmatmul.mubr.f32.gmra.mrb[0].mxu0 %v1706
      %v2300 = vpop.f32.mrb[0].mxu0
      %v2301 = vadd.f32 0.0, %v2300
      %v2302 = vpop.f32.mrb[0].mxu0
      %2303 = vmatprep.mubr.f32.mxu0 0.0
      %2304 = vmatmul.mubr.f32.gmra.mrb[0].mxu0 %v1709
      %v2305 = vpop.f32.mrb[0].mxu0
      %v2306 = vadd.f32 0.0, %v2305
      %v2307 = vpop.f32.mrb[0].mxu0
      %2308 = vmatprep.mubr.f32.mxu0 0.0
      %2309 = vmatmul.mubr.f32.gmra.mrb[0].mxu0 %v1712
      %v2310 = vpop.f32.mrb[0].mxu0
      %v2311 = vadd.f32 0.0, %v2310
      %v2312 = vpop.f32.mrb[0].mxu0
      %2313 = vmatprep.mubr.f32.mxu0 0.0
      %2314 = vmatmul.mubr.f32.gmra.mrb[0].mxu0 %v1715
      %v2315 = vpop.f32.mrb[0].mxu0
      %v2316 = vadd.f32 0.0, %v2315
      %v2317 = vpop.f32.mrb[0].mxu0
      %2318 = vmatprep.mubr.f32.mxu0 0.0
      %2319 = vmatmul.mubr.f32.gmra.mrb[0].mxu0 %v1718
      %v2320 = vpop.f32.mrb[0].mxu0
      %v2321 = vadd.f32 0.0, %v2320
      %v2322 = vpop.f32.mrb[0].mxu0
      %2323 = vmatprep.mubr.f32.mxu0 0.0
      %2324 = vmatmul.mubr.f32.gmra.mrb[0].mxu0 %v1721
      %v2325 = vpop.f32.mrb[0].mxu0
      %v2326 = vadd.f32 0.0, %v2325
      %v2327 = vpop.f32.mrb[0].mxu0
      %2328 = vmatprep.mubr.f32.mxu0 0.0
      %2329 = vmatmul.mubr.f32.gmra.mrb[0].mxu0 %v1724
      %v2330 = vpop.f32.mrb[0].mxu0
      %v2331 = vadd.f32 0.0, %v2330
      %v2332 = vpop.f32.mrb[0].mxu0
      %2333 = vmatprep.mubr.f32.mxu0 0.0
      %2334 = vmatmul.mubr.f32.gmra.mrb[0].mxu0 %v1727
      %v2335 = vpop.f32.mrb[0].mxu0
      %v2336 = vadd.f32 0.0, %v2335
      %v2337 = vpop.f32.mrb[0].mxu0
      %2338 = vmatprep.mubr.f32.mxu0 0.0
      %2339 = vmatmul.mubr.f32.gmra.mrb[0].mxu0 %v1730
      %v2340 = vpop.f32.mrb[0].mxu0
      %v2341 = vadd.f32 0.0, %v2340
      %v2342 = vpop.f32.mrb[0].mxu0
      %2343 = vmatprep.mubr.f32.mxu0 0.0
      %2344 = vmatmul.mubr.f32.gmra.mrb[0].mxu0 %v1733
      %v2345 = vpop.f32.mrb[0].mxu0
      %v2346 = vadd.f32 0.0, %v2345
      %v2347 = vpop.f32.mrb[0].mxu0
      %2348 = vmatprep.mubr.f32.mxu0 0.0
      %2349 = vmatmul.mubr.f32.gmra.mrb[0].mxu0 %v1736
      %v2350 = vpop.f32.mrb[0].mxu0
      %v2351 = vadd.f32 0.0, %v2350
      %v2352 = vpop.f32.mrb[0].mxu0
      %2353 = vmatprep.mubr.f32.mxu0 0.0
      %2354 = vmatmul.mubr.f32.gmra.mrb[0].mxu0 %v1739
      %v2355 = vpop.f32.mrb[0].mxu0
      %v2356 = vadd.f32 0.0, %v2355
      %v2357 = vpop.f32.mrb[0].mxu0
      %2358 = vmatprep.mubr.f32.mxu0 0.0
      %2359 = vmatmul.mubr.f32.gmra.mrb[0].mxu0 %v1742
      %v2360 = vpop.f32.mrb[0].mxu0
      %v2361 = vadd.f32 0.0, %v2360
      %v2362 = vpop.f32.mrb[0].mxu0
      %2363 = vmatprep.mubr.f32.mxu0 0.0
      %2364 = vmatmul.mubr.f32.gmra.mrb[0].mxu0 %v1745
      %v2365 = vpop.f32.mrb[0].mxu0
      %v2366 = vadd.f32 0.0, %v2365
      %v2367 = vpop.f32.mrb[0].mxu0
      %2368 = vmatprep.mubr.f32.mxu0 0.0
      %2369 = vmatmul.mubr.f32.gmra.mrb[0].mxu0 %v1748
      %v2370 = vpop.f32.mrb[0].mxu0
      %v2371 = vadd.f32 0.0, %v2370
      %v2372 = vpop.f32.mrb[0].mxu0
      %2373 = vmatprep.mubr.f32.mxu0 0.0
      %2374 = vmatmul.mubr.f32.gmra.mrb[0].mxu0 %v1751
      %v2375 = vpop.f32.mrb[0].mxu0
      %v2376 = vadd.f32 0.0, %v2375
      %v2377 = vpop.f32.mrb[0].mxu0
      %2378 = vmatprep.mubr.f32.mxu0 0.0
      %2379 = vmatmul.mubr.f32.gmra.mrb[0].mxu0 %v1754
      %v2380 = vpop.f32.mrb[0].mxu0
      %v2381 = vadd.f32 0.0, %v2380
      %v2382 = vpop.f32.mrb[0].mxu0
      %2383 = vmatprep.mubr.f32.mxu0 0.0
      %2384 = vmatmul.mubr.f32.gmra.mrb[0].mxu0 %v1757
      %v2385 = vpop.f32.mrb[0].mxu0
      %v2386 = vadd.f32 0.0, %v2385
      %v2387 = vpop.f32.mrb[0].mxu0
      %2388 = vmatprep.mubr.f32.mxu0 0.0
      %2389 = vmatmul.mubr.f32.gmra.mrb[0].mxu0 %v1760
      %v2390 = vpop.f32.mrb[0].mxu0
      %v2391 = vadd.f32 0.0, %v2390
      %v2392 = vpop.f32.mrb[0].mxu0
      %2393 = vmatprep.mubr.f32.mxu0 0.0
      %2394 = vmatmul.mubr.f32.gmra.mrb[0].mxu0 %v1763
      %v2395 = vpop.f32.mrb[0].mxu0
      %v2396 = vadd.f32 0.0, %v2395
      %v2397 = vpop.f32.mrb[0].mxu0
      %2398 = vmatprep.mubr.f32.mxu0 0.0
      %2399 = vmatmul.mubr.f32.gmra.mrb[0].mxu0 %v1766
      %v2400 = vpop.f32.mrb[0].mxu0
      %v2401 = vadd.f32 0.0, %v2400
      %v2402 = vpop.f32.mrb[0].mxu0
      %2403 = vmatprep.mubr.f32.mxu0 0.0
      %2404 = vmatmul.mubr.f32.gmra.mrb[0].mxu0 %v1769
      %v2405 = vpop.f32.mrb[0].mxu0
      %v2406 = vadd.f32 0.0, %v2405
      %v2407 = vpop.f32.mrb[0].mxu0
      %2408 = vmatprep.mubr.f32.mxu0 0.0
      %2409 = vmatmul.mubr.f32.gmra.mrb[0].mxu0 %v1772
      %v2410 = vpop.f32.mrb[0].mxu0
      %v2411 = vadd.f32 0.0, %v2410
      %v2412 = vpop.f32.mrb[0].mxu0
      %2413 = vmatprep.mubr.f32.mxu0 0.0
      %2414 = vmatmul.mubr.f32.gmra.mrb[0].mxu0 %v1775
      %v2415 = vpop.f32.mrb[0].mxu0
      %v2416 = vadd.f32 0.0, %v2415
      %v2417 = vpop.f32.mrb[0].mxu0
      %2418 = vmatprep.mubr.f32.mxu0 0.0
      %2419 = vmatmul.mubr.f32.gmra.mrb[0].mxu0 %v1778
      %v2420 = vpop.f32.mrb[0].mxu0
      %v2421 = vadd.f32 0.0, %v2420
      %v2422 = vpop.f32.mrb[0].mxu0
      %2423 = vmatprep.mubr.f32.mxu0 0.0
      %2424 = vmatmul.mubr.f32.gmra.mrb[0].mxu0 %v1781
      %v2425 = vpop.f32.mrb[0].mxu0
      %v2426 = vadd.f32 0.0, %v2425
      %v2427 = vpop.f32.mrb[0].mxu0
      %2428 = vmatprep.mubr.f32.mxu0 0.0
      %2429 = vmatmul.mubr.f32.gmra.mrb[0].mxu0 %v1784
      %v2430 = vpop.f32.mrb[0].mxu0
      %v2431 = vadd.f32 0.0, %v2430
      %v2432 = vpop.f32.mrb[0].mxu0
      %2433 = vmatprep.mubr.f32.mxu0 0.0
      %2434 = vmatmul.mubr.f32.gmra.mrb[0].mxu0 %v1787
      %v2435 = vpop.f32.mrb[0].mxu0
      %v2436 = vadd.f32 0.0, %v2435
      %v2437 = vpop.f32.mrb[0].mxu0
      %2438 = vmatprep.mubr.f32.mxu0 0.0
      %2439 = vmatmul.mubr.f32.gmra.mrb[0].mxu0 %v1790
      %v2440 = vpop.f32.mrb[0].mxu0
      %v2441 = vadd.f32 0.0, %v2440
      %v2442 = vpop.f32.mrb[0].mxu0
      %2443 = vmatprep.mubr.f32.mxu0 0.0
      %2444 = vmatmul.mubr.f32.gmra.mrb[0].mxu0 %v1793
      %v2445 = vpop.f32.mrb[0].mxu0
      %v2446 = vadd.f32 0.0, %v2445
      %v2447 = vpop.f32.mrb[0].mxu0
      %2448 = vmatprep.mubr.f32.mxu0 0.0
      %2449 = vmatmul.mubr.f32.gmra.mrb[0].mxu0 %v1796
      %v2450 = vpop.f32.mrb[0].mxu0
      %v2451 = vadd.f32 0.0, %v2450
      %v2452 = vpop.f32.mrb[0].mxu0
      %2453 = vmatprep.mubr.f32.mxu0 0.0
      %2454 = vmatmul.mubr.f32.gmra.mrb[0].mxu0 %v1799
      %v2455 = vpop.f32.mrb[0].mxu0
      %v2456 = vadd.f32 0.0, %v2455
      %v2457 = vpop.f32.mrb[0].mxu0
      %2458 = vmatprep.mubr.f32.mxu0 0.0
      %2459 = vmatmul.mubr.f32.gmra.mrb[0].mxu0 %v1802
      %v2460 = vpop.f32.mrb[0].mxu0
      %v2461 = vadd.f32 0.0, %v2460
      %v2462 = vpop.f32.mrb[0].mxu0
      %2463 = vmatprep.mubr.f32.mxu0 0.0
      %2464 = vmatmul.mubr.f32.gmra.mrb[0].mxu0 %v1805
      %v2465 = vpop.f32.mrb[0].mxu0
      %v2466 = vadd.f32 0.0, %v2465
      %v2467 = vpop.f32.mrb[0].mxu0
      %2468 = vmatprep.mubr.f32.mxu0 0.0
      %2469 = vmatmul.mubr.f32.gmra.mrb[0].mxu0 %v1808
      %v2470 = vpop.f32.mrb[0].mxu0
      %v2471 = vadd.f32 0.0, %v2470
      %v2472 = vpop.f32.mrb[0].mxu0
      %2473 = vmatprep.mubr.f32.mxu0 0.0
      %2474 = vmatmul.mubr.f32.gmra.mrb[0].mxu0 %v1811
      %v2475 = vpop.f32.mrb[0].mxu0
      %v2476 = vadd.f32 0.0, %v2475
      %v2477 = vpop.f32.mrb[0].mxu0
      %2478 = vmatprep.mubr.f32.mxu0 0.0
      %2479 = vmatmul.mubr.f32.gmra.mrb[0].mxu0 %v1814
      %v2480 = vpop.f32.mrb[0].mxu0
      %v2481 = vadd.f32 0.0, %v2480
      %v2482 = vpop.f32.mrb[0].mxu0
      %2483 = vmatprep.mubr.f32.mxu0 0.0
      %2484 = vmatmul.mubr.f32.gmra.mrb[0].mxu0 %v1817
      %v2485 = vpop.f32.mrb[0].mxu0
      %v2486 = vadd.f32 0.0, %v2485
      %v2487 = vpop.f32.mrb[0].mxu0
      %2488 = vdwg.mxu0
      %v2489 = vmax.f32 %v731, %v1886
      %v2490 = vmax.f32 %v736, %v1891
      %v2491 = vmax.f32 %v741, %v1896
      %v2492 = vmax.f32 %v746, %v1901
      %v2493 = vmax.f32 %v751, %v1906
      %v2494 = vmax.f32 %v756, %v1911
      %v2495 = vmax.f32 %v761, %v1916
      %v2496 = vmax.f32 %v766, %v1921
      %v2497 = vmax.f32 %v771, %v1926
      %v2498 = vmax.f32 %v776, %v1931
      %v2499 = vmax.f32 %v781, %v1936
      %v2500 = vmax.f32 %v786, %v1941
      %v2501 = vmax.f32 %v791, %v1946
      %v2502 = vmax.f32 %v796, %v1951
      %v2503 = vmax.f32 %v801, %v1956
      %v2504 = vmax.f32 %v806, %v1961
      %v2505 = vmax.f32 %v811, %v1966
      %v2506 = vmax.f32 %v816, %v1971
      %v2507 = vmax.f32 %v821, %v1976
      %v2508 = vmax.f32 %v826, %v1981
      %v2509 = vmax.f32 %v831, %v1986
      %v2510 = vmax.f32 %v836, %v1991
      %v2511 = vmax.f32 %v841, %v1996
      %v2512 = vmax.f32 %v846, %v2001
      %v2513 = vmax.f32 %v851, %v2006
      %v2514 = vmax.f32 %v856, %v2011
      %v2515 = vmax.f32 %v861, %v2016
      %v2516 = vmax.f32 %v866, %v2021
      %v2517 = vmax.f32 %v871, %v2026
      %v2518 = vmax.f32 %v876, %v2031
      %v2519 = vmax.f32 %v881, %v2036
      %v2520 = vmax.f32 %v886, %v2041
      %v2521 = vmax.f32 %v891, %v2046
      %v2522 = vmax.f32 %v896, %v2051
      %v2523 = vmax.f32 %v901, %v2056
      %v2524 = vmax.f32 %v906, %v2061
      %v2525 = vmax.f32 %v911, %v2066
      %v2526 = vmax.f32 %v916, %v2071
      %v2527 = vmax.f32 %v921, %v2076
      %v2528 = vmax.f32 %v926, %v2081
      %v2529 = vmax.f32 %v931, %v2086
      %v2530 = vmax.f32 %v936, %v2091
      %v2531 = vmax.f32 %v941, %v2096
      %v2532 = vmax.f32 %v946, %v2101
      %v2533 = vmax.f32 %v951, %v2106
      %v2534 = vmax.f32 %v956, %v2111
      %v2535 = vmax.f32 %v961, %v2116
      %v2536 = vmax.f32 %v966, %v2121
      %v2537 = vmax.f32 %v971, %v2126
      %v2538 = vmax.f32 %v976, %v2131
      %v2539 = vmax.f32 %v981, %v2136
      %v2540 = vmax.f32 %v986, %v2141
      %v2541 = vmax.f32 %v991, %v2146
      %v2542 = vmax.f32 %v996, %v2151
      %v2543 = vmax.f32 %v1001, %v2156
      %v2544 = vmax.f32 %v1006, %v2161
      %v2545 = vmax.f32 %v1011, %v2166
      %v2546 = vmax.f32 %v1016, %v2171
      %v2547 = vmax.f32 %v1021, %v2176
      %v2548 = vmax.f32 %v1026, %v2181
      %v2549 = vmax.f32 %v1031, %v2186
      %v2550 = vmax.f32 %v1036, %v2191
      %v2551 = vmax.f32 %v1041, %v2196
      %v2552 = vmax.f32 %v1046, %v2201
      %v2553 = vmax.f32 %v1051, %v2206
      %v2554 = vmax.f32 %v1056, %v2211
      %v2555 = vmax.f32 %v1061, %v2216
      %v2556 = vmax.f32 %v1066, %v2221
      %v2557 = vmax.f32 %v1071, %v2226
      %v2558 = vmax.f32 %v1076, %v2231
      %v2559 = vmax.f32 %v1081, %v2236
      %v2560 = vmax.f32 %v1086, %v2241
      %v2561 = vmax.f32 %v1091, %v2246
      %v2562 = vmax.f32 %v1096, %v2251
      %v2563 = vmax.f32 %v1101, %v2256
      %v2564 = vmax.f32 %v1106, %v2261
      %v2565 = vmax.f32 %v1111, %v2266
      %v2566 = vmax.f32 %v1116, %v2271
      %v2567 = vmax.f32 %v1121, %v2276
      %v2568 = vmax.f32 %v1126, %v2281
      %v2569 = vmax.f32 %v1131, %v2286
      %v2570 = vmax.f32 %v1136, %v2291
      %v2571 = vmax.f32 %v1141, %v2296
      %v2572 = vmax.f32 %v1146, %v2301
      %v2573 = vmax.f32 %v1151, %v2306
      %v2574 = vmax.f32 %v1156, %v2311
      %v2575 = vmax.f32 %v1161, %v2316
      %v2576 = vmax.f32 %v1166, %v2321
      %v2577 = vmax.f32 %v1171, %v2326
      %v2578 = vmax.f32 %v1176, %v2331
      %v2579 = vmax.f32 %v1181, %v2336
      %v2580 = vmax.f32 %v1186, %v2341
      %v2581 = vmax.f32 %v1191, %v2346
      %v2582 = vmax.f32 %v1196, %v2351
      %v2583 = vmax.f32 %v1201, %v2356
      %v2584 = vmax.f32 %v1206, %v2361
      %v2585 = vmax.f32 %v1211, %v2366
      %v2586 = vmax.f32 %v1216, %v2371
      %v2587 = vmax.f32 %v1221, %v2376
      %v2588 = vmax.f32 %v1226, %v2381
      %v2589 = vmax.f32 %v1231, %v2386
      %v2590 = vmax.f32 %v1236, %v2391
      %v2591 = vmax.f32 %v1241, %v2396
      %v2592 = vmax.f32 %v1246, %v2401
      %v2593 = vmax.f32 %v1251, %v2406
      %v2594 = vmax.f32 %v1256, %v2411
      %v2595 = vmax.f32 %v1261, %v2416
      %v2596 = vmax.f32 %v1266, %v2421
      %v2597 = vmax.f32 %v1271, %v2426
      %v2598 = vmax.f32 %v1276, %v2431
      %v2599 = vmax.f32 %v1281, %v2436
      %v2600 = vmax.f32 %v1286, %v2441
      %v2601 = vmax.f32 %v1291, %v2446
      %v2602 = vmax.f32 %v1296, %v2451
      %v2603 = vmax.f32 %v1301, %v2456
      %v2604 = vmax.f32 %v1306, %v2461
      %v2605 = vmax.f32 %v1311, %v2466
      %v2606 = vmax.f32 %v1316, %v2471
      %v2607 = vmax.f32 %v1321, %v2476
      %v2608 = vmax.f32 %v1326, %v2481
      %v2609 = vmax.f32 %v1331, %v2486
      %s2610 = scalar_lea.vmem %s165, 1936
      %v2611 = vld [vmem:[%s2610] sm:$0xff]
      %v2612 = vld [vmem:[%s2610 + $0x8] sm:$0xff]
      %v2613 = vld [vmem:[%s2610 + $0x10] sm:$0xff]
      %v2614 = vld [vmem:[%s2610 + $0x18] sm:$0xff]
      %v2615 = vld [vmem:[%s2610 + $0x20] sm:$0xff]
      %v2616 = vld [vmem:[%s2610 + $0x28] sm:$0xff]
      %v2617 = vld [vmem:[%s2610 + $0x30] sm:$0xff]
      %v2618 = vld [vmem:[%s2610 + $0x38] sm:$0xff]
      %v2619 = vld [vmem:[%s2610 + $0x40] sm:$0xff]
      %v2620 = vld [vmem:[%s2610 + $0x48] sm:$0xff]
      %v2621 = vld [vmem:[%s2610 + $0x50] sm:$0xff]
      %v2622 = vld [vmem:[%s2610 + $0x58] sm:$0xff]
      %v2623 = vld [vmem:[%s2610 + $0x60] sm:$0xff]
      %v2624 = vld [vmem:[%s2610 + $0x68] sm:$0xff]
      %v2625 = vld [vmem:[%s2610 + $0x70] sm:$0xff]
      %v2626 = vld [vmem:[%s2610 + $0x78] sm:$0xff]
      %v2627 = vld [vmem:[%s2610 + $0x80] sm:$0xff]
      %v2628 = vld [vmem:[%s2610 + $0x88] sm:$0xff]
      %v2629 = vld [vmem:[%s2610 + $0x90] sm:$0xff]
      %v2630 = vld [vmem:[%s2610 + $0x98] sm:$0xff]
      %v2631 = vld [vmem:[%s2610 + $0xa0] sm:$0xff]
      %v2632 = vld [vmem:[%s2610 + $0xa8] sm:$0xff]
      %v2633 = vld [vmem:[%s2610 + $0xb0] sm:$0xff]
      %v2634 = vld [vmem:[%s2610 + $0xb8] sm:$0xff]
      %v2635 = vld [vmem:[%s2610 + $0xc0] sm:$0xff]
      %v2636 = vld [vmem:[%s2610 + $0xc8] sm:$0xff]
      %v2637 = vld [vmem:[%s2610 + $0xd0] sm:$0xff]
      %v2638 = vld [vmem:[%s2610 + $0xd8] sm:$0xff]
      %v2639 = vld [vmem:[%s2610 + $0xe0] sm:$0xff]
      %v2640 = vld [vmem:[%s2610 + $0xe8] sm:$0xff]
      %v2641 = vld [vmem:[%s2610 + $0xf0] sm:$0xff]
      %v2642 = vld [vmem:[%s2610 + $0xf8] sm:$0xff]
      %v2643 = vld [vmem:[%s2610 + $0x100] sm:$0xff]
      %v2644 = vld [vmem:[%s2610 + $0x108] sm:$0xff]
      %v2645 = vld [vmem:[%s2610 + $0x110] sm:$0xff]
      %v2646 = vld [vmem:[%s2610 + $0x118] sm:$0xff]
      %v2647 = vld [vmem:[%s2610 + $0x120] sm:$0xff]
      %v2648 = vld [vmem:[%s2610 + $0x128] sm:$0xff]
      %v2649 = vld [vmem:[%s2610 + $0x130] sm:$0xff]
      %v2650 = vld [vmem:[%s2610 + $0x138] sm:$0xff]
      %v2651 = vld [vmem:[%s2610 + $0x140] sm:$0xff]
      %v2652 = vld [vmem:[%s2610 + $0x148] sm:$0xff]
      %v2653 = vld [vmem:[%s2610 + $0x150] sm:$0xff]
      %v2654 = vld [vmem:[%s2610 + $0x158] sm:$0xff]
      %v2655 = vld [vmem:[%s2610 + $0x160] sm:$0xff]
      %v2656 = vld [vmem:[%s2610 + $0x168] sm:$0xff]
      %v2657 = vld [vmem:[%s2610 + $0x170] sm:$0xff]
      %v2658 = vld [vmem:[%s2610 + $0x178] sm:$0xff]
      %v2659 = vld [vmem:[%s2610 + $0x180] sm:$0xff]
      %v2660 = vld [vmem:[%s2610 + $0x188] sm:$0xff]
      %v2661 = vld [vmem:[%s2610 + $0x190] sm:$0xff]
      %v2662 = vld [vmem:[%s2610 + $0x198] sm:$0xff]
      %v2663 = vld [vmem:[%s2610 + $0x1a0] sm:$0xff]
      %v2664 = vld [vmem:[%s2610 + $0x1a8] sm:$0xff]
      %v2665 = vld [vmem:[%s2610 + $0x1b0] sm:$0xff]
      %v2666 = vld [vmem:[%s2610 + $0x1b8] sm:$0xff]
      %v2667 = vld [vmem:[%s2610 + $0x1c0] sm:$0xff]
      %v2668 = vld [vmem:[%s2610 + $0x1c8] sm:$0xff]
      %v2669 = vld [vmem:[%s2610 + $0x1d0] sm:$0xff]
      %v2670 = vld [vmem:[%s2610 + $0x1d8] sm:$0xff]
      %v2671 = vld [vmem:[%s2610 + $0x1e0] sm:$0xff]
      %v2672 = vld [vmem:[%s2610 + $0x1e8] sm:$0xff]
      %v2673 = vld [vmem:[%s2610 + $0x1f0] sm:$0xff]
      %v2674 = vld [vmem:[%s2610 + $0x1f8] sm:$0xff]
      %v2675 = vld [vmem:[%s2610 + $0x200] sm:$0xff]
      %v2676 = vld [vmem:[%s2610 + $0x208] sm:$0xff]
      %v2677 = vld [vmem:[%s2610 + $0x210] sm:$0xff]
      %v2678 = vld [vmem:[%s2610 + $0x218] sm:$0xff]
      %v2679 = vld [vmem:[%s2610 + $0x220] sm:$0xff]
      %v2680 = vld [vmem:[%s2610 + $0x228] sm:$0xff]
      %v2681 = vld [vmem:[%s2610 + $0x230] sm:$0xff]
      %v2682 = vld [vmem:[%s2610 + $0x238] sm:$0xff]
      %v2683 = vld [vmem:[%s2610 + $0x240] sm:$0xff]
      %v2684 = vld [vmem:[%s2610 + $0x248] sm:$0xff]
      %v2685 = vld [vmem:[%s2610 + $0x250] sm:$0xff]
      %v2686 = vld [vmem:[%s2610 + $0x258] sm:$0xff]
      %v2687 = vld [vmem:[%s2610 + $0x260] sm:$0xff]
      %v2688 = vld [vmem:[%s2610 + $0x268] sm:$0xff]
      %v2689 = vld [vmem:[%s2610 + $0x270] sm:$0xff]
      %v2690 = vld [vmem:[%s2610 + $0x278] sm:$0xff]
      %v2691 = vld [vmem:[%s2610 + $0x280] sm:$0xff]
      %v2692 = vld [vmem:[%s2610 + $0x288] sm:$0xff]
      %v2693 = vld [vmem:[%s2610 + $0x290] sm:$0xff]
      %v2694 = vld [vmem:[%s2610 + $0x298] sm:$0xff]
      %v2695 = vld [vmem:[%s2610 + $0x2a0] sm:$0xff]
      %v2696 = vld [vmem:[%s2610 + $0x2a8] sm:$0xff]
      %v2697 = vld [vmem:[%s2610 + $0x2b0] sm:$0xff]
      %v2698 = vld [vmem:[%s2610 + $0x2b8] sm:$0xff]
      %v2699 = vld [vmem:[%s2610 + $0x2c0] sm:$0xff]
      %v2700 = vld [vmem:[%s2610 + $0x2c8] sm:$0xff]
      %v2701 = vld [vmem:[%s2610 + $0x2d0] sm:$0xff]
      %v2702 = vld [vmem:[%s2610 + $0x2d8] sm:$0xff]
      %v2703 = vld [vmem:[%s2610 + $0x2e0] sm:$0xff]
      %v2704 = vld [vmem:[%s2610 + $0x2e8] sm:$0xff]
      %v2705 = vld [vmem:[%s2610 + $0x2f0] sm:$0xff]
      %v2706 = vld [vmem:[%s2610 + $0x2f8] sm:$0xff]
      %v2707 = vld [vmem:[%s2610 + $0x300] sm:$0xff]
      %v2708 = vld [vmem:[%s2610 + $0x308] sm:$0xff]
      %v2709 = vld [vmem:[%s2610 + $0x310] sm:$0xff]
      %v2710 = vld [vmem:[%s2610 + $0x318] sm:$0xff]
      %v2711 = vld [vmem:[%s2610 + $0x320] sm:$0xff]
      %v2712 = vld [vmem:[%s2610 + $0x328] sm:$0xff]
      %v2713 = vld [vmem:[%s2610 + $0x330] sm:$0xff]
      %v2714 = vld [vmem:[%s2610 + $0x338] sm:$0xff]
      %v2715 = vld [vmem:[%s2610 + $0x340] sm:$0xff]
      %v2716 = vld [vmem:[%s2610 + $0x348] sm:$0xff]
      %v2717 = vld [vmem:[%s2610 + $0x350] sm:$0xff]
      %v2718 = vld [vmem:[%s2610 + $0x358] sm:$0xff]
      %v2719 = vld [vmem:[%s2610 + $0x360] sm:$0xff]
      %v2720 = vld [vmem:[%s2610 + $0x368] sm:$0xff]
      %v2721 = vld [vmem:[%s2610 + $0x370] sm:$0xff]
      %v2722 = vld [vmem:[%s2610 + $0x378] sm:$0xff]
      %v2723 = vld [vmem:[%s2610 + $0x380] sm:$0xff]
      %v2724 = vld [vmem:[%s2610 + $0x388] sm:$0xff]
      %v2725 = vld [vmem:[%s2610 + $0x390] sm:$0xff]
      %v2726 = vld [vmem:[%s2610 + $0x398] sm:$0xff]
      %v2727 = vld [vmem:[%s2610 + $0x3a0] sm:$0xff]
      %v2728 = vld [vmem:[%s2610 + $0x3a8] sm:$0xff]
      %v2729 = vld [vmem:[%s2610 + $0x3b0] sm:$0xff]
      %v2730 = vld [vmem:[%s2610 + $0x3b8] sm:$0xff]
      %v2731 = vld [vmem:[%s2610 + $0x3c0] sm:$0x1]
      %v2733 = vsel %vm296, %v2611, 0
      %v2736 = vsel %vm296, %v2612, 0
      %v2739 = vsel %vm296, %v2613, 0
      %v2742 = vsel %vm296, %v2614, 0
      %v2745 = vsel %vm296, %v2615, 0
      %v2748 = vsel %vm296, %v2616, 0
      %v2751 = vsel %vm296, %v2617, 0
      %v2754 = vsel %vm296, %v2618, 0
      %v2757 = vsel %vm296, %v2619, 0
      %v2760 = vsel %vm296, %v2620, 0
      %v2763 = vsel %vm296, %v2621, 0
      %v2766 = vsel %vm296, %v2622, 0
      %v2769 = vsel %vm296, %v2623, 0
      %v2772 = vsel %vm296, %v2624, 0
      %v2775 = vsel %vm296, %v2625, 0
      %v2778 = vsel %vm296, %v2626, 0
      %v2781 = vsel %vm296, %v2627, 0
      %v2784 = vsel %vm296, %v2628, 0
      %v2787 = vsel %vm296, %v2629, 0
      %v2790 = vsel %vm296, %v2630, 0
      %v2793 = vsel %vm296, %v2631, 0
      %v2796 = vsel %vm296, %v2632, 0
      %v2799 = vsel %vm296, %v2633, 0
      %v2802 = vsel %vm296, %v2634, 0
      %v2805 = vsel %vm296, %v2635, 0
      %v2808 = vsel %vm296, %v2636, 0
      %v2811 = vsel %vm296, %v2637, 0
      %v2814 = vsel %vm296, %v2638, 0
      %v2817 = vsel %vm296, %v2639, 0
      %v2820 = vsel %vm296, %v2640, 0
      %v2823 = vsel %vm296, %v2641, 0
      %v2826 = vsel %vm296, %v2642, 0
      %v2829 = vsel %vm296, %v2643, 0
      %v2832 = vsel %vm296, %v2644, 0
      %v2835 = vsel %vm296, %v2645, 0
      %v2838 = vsel %vm296, %v2646, 0
      %v2841 = vsel %vm296, %v2647, 0
      %v2844 = vsel %vm296, %v2648, 0
      %v2847 = vsel %vm296, %v2649, 0
      %v2850 = vsel %vm296, %v2650, 0
      %v2853 = vsel %vm296, %v2651, 0
      %v2856 = vsel %vm296, %v2652, 0
      %v2859 = vsel %vm296, %v2653, 0
      %v2862 = vsel %vm296, %v2654, 0
      %v2865 = vsel %vm296, %v2655, 0
      %v2868 = vsel %vm296, %v2656, 0
      %v2871 = vsel %vm296, %v2657, 0
      %v2874 = vsel %vm296, %v2658, 0
      %v2877 = vsel %vm296, %v2659, 0
      %v2880 = vsel %vm296, %v2660, 0
      %v2883 = vsel %vm296, %v2661, 0
      %v2886 = vsel %vm296, %v2662, 0
      %v2889 = vsel %vm296, %v2663, 0
      %v2892 = vsel %vm296, %v2664, 0
      %v2895 = vsel %vm296, %v2665, 0
      %v2898 = vsel %vm296, %v2666, 0
      %v2901 = vsel %vm296, %v2667, 0
      %v2904 = vsel %vm296, %v2668, 0
      %v2907 = vsel %vm296, %v2669, 0
      %v2910 = vsel %vm296, %v2670, 0
      %v2913 = vsel %vm296, %v2671, 0
      %v2916 = vsel %vm296, %v2672, 0
      %v2919 = vsel %vm296, %v2673, 0
      %v2922 = vsel %vm296, %v2674, 0
      %v2925 = vsel %vm296, %v2675, 0
      %v2928 = vsel %vm296, %v2676, 0
      %v2931 = vsel %vm296, %v2677, 0
      %v2934 = vsel %vm296, %v2678, 0
      %v2937 = vsel %vm296, %v2679, 0
      %v2940 = vsel %vm296, %v2680, 0
      %v2943 = vsel %vm296, %v2681, 0
      %v2946 = vsel %vm296, %v2682, 0
      %v2949 = vsel %vm296, %v2683, 0
      %v2952 = vsel %vm296, %v2684, 0
      %v2955 = vsel %vm296, %v2685, 0
      %v2958 = vsel %vm296, %v2686, 0
      %v2961 = vsel %vm296, %v2687, 0
      %v2964 = vsel %vm296, %v2688, 0
      %v2967 = vsel %vm296, %v2689, 0
      %v2970 = vsel %vm296, %v2690, 0
      %v2973 = vsel %vm296, %v2691, 0
      %v2976 = vsel %vm296, %v2692, 0
      %v2979 = vsel %vm296, %v2693, 0
      %v2982 = vsel %vm296, %v2694, 0
      %v2985 = vsel %vm296, %v2695, 0
      %v2988 = vsel %vm296, %v2696, 0
      %v2991 = vsel %vm296, %v2697, 0
      %v2994 = vsel %vm296, %v2698, 0
      %v2997 = vsel %vm296, %v2699, 0
      %v3000 = vsel %vm296, %v2700, 0
      %v3003 = vsel %vm296, %v2701, 0
      %v3006 = vsel %vm296, %v2702, 0
      %v3009 = vsel %vm296, %v2703, 0
      %v3012 = vsel %vm296, %v2704, 0
      %v3015 = vsel %vm296, %v2705, 0
      %v3018 = vsel %vm296, %v2706, 0
      %v3021 = vsel %vm296, %v2707, 0
      %v3024 = vsel %vm296, %v2708, 0
      %v3027 = vsel %vm296, %v2709, 0
      %v3030 = vsel %vm296, %v2710, 0
      %v3033 = vsel %vm296, %v2711, 0
      %v3036 = vsel %vm296, %v2712, 0
      %v3039 = vsel %vm296, %v2713, 0
      %v3042 = vsel %vm296, %v2714, 0
      %v3045 = vsel %vm296, %v2715, 0
      %v3048 = vsel %vm296, %v2716, 0
      %v3051 = vsel %vm296, %v2717, 0
      %v3054 = vsel %vm296, %v2718, 0
      %v3057 = vsel %vm296, %v2719, 0
      %v3060 = vsel %vm296, %v2720, 0
      %v3063 = vsel %vm296, %v2721, 0
      %v3066 = vsel %vm296, %v2722, 0
      %v3069 = vsel %vm296, %v2723, 0
      %v3072 = vsel %vm296, %v2724, 0
      %v3075 = vsel %vm296, %v2725, 0
      %v3078 = vsel %vm296, %v2726, 0
      %v3081 = vsel %vm296, %v2727, 0
      %v3084 = vsel %vm296, %v2728, 0
      %v3087 = vsel %vm296, %v2729, 0
      %v3090 = vsel %vm296, %v2730, 0
      %v3093 = vsel %vm296, %v2731, 0
      %3095 = vmatprep.subr.mxu0 0.0
      %3096 = vmatpush1.msra.mxu0 %v171
      %3097 = vmatprep.subr.mxu0 0.0
      %3098 = vmatpush1.msra.mxu0 %v172
      %3099 = vmatprep.subr.mxu0 0.0
      %3100 = vmatpush1.msra.mxu0 %v173
      %3101 = vmatprep.subr.mxu0 0.0
      %3102 = vmatpush1.msra.mxu0 %v662
      %3103 = vmatprep.subr.mxu0 0.0
      %3104 = vmatpush1.msra.mxu0 0.0
      %3105 = vmatprep.subr.mxu0 0.0
      %3106 = vmatpush1.msra.mxu0 0.0
      %3107 = vmatprep.subr.mxu0 0.0
      %3108 = vmatpush1.msra.mxu0 0.0
      %3109 = vmatprep.subr.mxu0 0.0
      %3110 = vmatpush1.msra.mxu0 0.0
      %3111 = vmatprep.subr.mxu0 0.0
      %3112 = vmatpush1.msra.mxu0 0.0
      %3113 = vmatprep.subr.mxu0 0.0
      %3114 = vmatpush1.msra.mxu0 0.0
      %3115 = vmatprep.subr.mxu0 0.0
      %3116 = vmatpush1.msra.mxu0 0.0
      %3117 = vmatprep.subr.mxu0 0.0
      %3118 = vmatpush1.msra.mxu0 0.0
      %3119 = vmatprep.subr.mxu0 0.0
      %3120 = vmatpush1.msra.mxu0 0.0
      %3121 = vmatprep.subr.mxu0 0.0
      %3122 = vmatpush1.msra.mxu0 0.0
      %3123 = vmatprep.subr.mxu0 0.0
      %3124 = vmatpush1.msra.mxu0 0.0
      %3125 = vmatprep.subr.mxu0 0.0
      %3126 = vmatpush1.msra.mxu0 0.0
      %3127 = vmatprep.subr.mxu0 0.0
      %3128 = vmatpush1.msra.mxu0 0.0
      %3129 = vmatprep.subr.mxu0 0.0
      %3130 = vmatpush1.msra.mxu0 0.0
      %3131 = vmatprep.subr.mxu0 0.0
      %3132 = vmatpush1.msra.mxu0 0.0
      %3133 = vmatprep.subr.mxu0 0.0
      %3134 = vmatpush1.msra.mxu0 0.0
      %3135 = vmatprep.subr.mxu0 0.0
      %3136 = vmatpush1.msra.mxu0 0.0
      %3137 = vmatprep.subr.mxu0 0.0
      %3138 = vmatpush1.msra.mxu0 0.0
      %3139 = vmatprep.subr.mxu0 0.0
      %3140 = vmatpush1.msra.mxu0 0.0
      %3141 = vmatprep.subr.mxu0 0.0
      %3142 = vmatpush1.msra.mxu0 0.0
      %3143 = vmatprep.subr.mxu0 0.0
      %3144 = vmatpush1.msra.mxu0 0.0
      %3145 = vmatprep.subr.mxu0 0.0
      %3146 = vmatpush1.msra.mxu0 0.0
      %3147 = vmatprep.subr.mxu0 0.0
      %3148 = vmatpush1.msra.mxu0 0.0
      %3149 = vmatprep.subr.mxu0 0.0
      %3150 = vmatpush1.msra.mxu0 0.0
      %3151 = vmatprep.subr.mxu0 0.0
      %3152 = vmatpush1.msra.mxu0 0.0
      %3153 = vmatprep.subr.mxu0 0.0
      %3154 = vmatpush1.msra.mxu0 0.0
      %3155 = vmatprep.subr.mxu0 0.0
      %3156 = vmatpush1.msra.mxu0 0.0
      %3157 = vmatprep.subr.mxu0 0.0
      %3158 = vmatpush1.msra.mxu0 0.0
      %3159 = vmatprep.mubr.f32.mxu0 0.0
      %3160 = vmatmul.mubr.f32.gmra.mrb[0].mxu0 %v2733
      %v3161 = vpop.f32.mrb[0].mxu0
      %v3162 = vadd.f32 0.0, %v3161
      %v3163 = vpop.f32.mrb[0].mxu0
      %3164 = vmatprep.mubr.f32.mxu0 0.0
      %3165 = vmatmul.mubr.f32.gmra.mrb[0].mxu0 %v2736
      %v3166 = vpop.f32.mrb[0].mxu0
      %v3167 = vadd.f32 0.0, %v3166
      %v3168 = vpop.f32.mrb[0].mxu0
      %3169 = vmatprep.mubr.f32.mxu0 0.0
      %3170 = vmatmul.mubr.f32.gmra.mrb[0].mxu0 %v2739
      %v3171 = vpop.f32.mrb[0].mxu0
      %v3172 = vadd.f32 0.0, %v3171
      %v3173 = vpop.f32.mrb[0].mxu0
      %3174 = vmatprep.mubr.f32.mxu0 0.0
      %3175 = vmatmul.mubr.f32.gmra.mrb[0].mxu0 %v2742
      %v3176 = vpop.f32.mrb[0].mxu0
      %v3177 = vadd.f32 0.0, %v3176
      %v3178 = vpop.f32.mrb[0].mxu0
      %3179 = vmatprep.mubr.f32.mxu0 0.0
      %3180 = vmatmul.mubr.f32.gmra.mrb[0].mxu0 %v2745
      %v3181 = vpop.f32.mrb[0].mxu0
      %v3182 = vadd.f32 0.0, %v3181
      %v3183 = vpop.f32.mrb[0].mxu0
      %3184 = vmatprep.mubr.f32.mxu0 0.0
      %3185 = vmatmul.mubr.f32.gmra.mrb[0].mxu0 %v2748
      %v3186 = vpop.f32.mrb[0].mxu0
      %v3187 = vadd.f32 0.0, %v3186
      %v3188 = vpop.f32.mrb[0].mxu0
      %3189 = vmatprep.mubr.f32.mxu0 0.0
      %3190 = vmatmul.mubr.f32.gmra.mrb[0].mxu0 %v2751
      %v3191 = vpop.f32.mrb[0].mxu0
      %v3192 = vadd.f32 0.0, %v3191
      %v3193 = vpop.f32.mrb[0].mxu0
      %3194 = vmatprep.mubr.f32.mxu0 0.0
      %3195 = vmatmul.mubr.f32.gmra.mrb[0].mxu0 %v2754
      %v3196 = vpop.f32.mrb[0].mxu0
      %v3197 = vadd.f32 0.0, %v3196
      %v3198 = vpop.f32.mrb[0].mxu0
      %3199 = vmatprep.mubr.f32.mxu0 0.0
      %3200 = vmatmul.mubr.f32.gmra.mrb[0].mxu0 %v2757
      %v3201 = vpop.f32.mrb[0].mxu0
      %v3202 = vadd.f32 0.0, %v3201
      %v3203 = vpop.f32.mrb[0].mxu0
      %3204 = vmatprep.mubr.f32.mxu0 0.0
      %3205 = vmatmul.mubr.f32.gmra.mrb[0].mxu0 %v2760
      %v3206 = vpop.f32.mrb[0].mxu0
      %v3207 = vadd.f32 0.0, %v3206
      %v3208 = vpop.f32.mrb[0].mxu0
      %3209 = vmatprep.mubr.f32.mxu0 0.0
      %3210 = vmatmul.mubr.f32.gmra.mrb[0].mxu0 %v2763
      %v3211 = vpop.f32.mrb[0].mxu0
      %v3212 = vadd.f32 0.0, %v3211
      %v3213 = vpop.f32.mrb[0].mxu0
      %3214 = vmatprep.mubr.f32.mxu0 0.0
      %3215 = vmatmul.mubr.f32.gmra.mrb[0].mxu0 %v2766
      %v3216 = vpop.f32.mrb[0].mxu0
      %v3217 = vadd.f32 0.0, %v3216
      %v3218 = vpop.f32.mrb[0].mxu0
      %3219 = vmatprep.mubr.f32.mxu0 0.0
      %3220 = vmatmul.mubr.f32.gmra.mrb[0].mxu0 %v2769
      %v3221 = vpop.f32.mrb[0].mxu0
      %v3222 = vadd.f32 0.0, %v3221
      %v3223 = vpop.f32.mrb[0].mxu0
      %3224 = vmatprep.mubr.f32.mxu0 0.0
      %3225 = vmatmul.mubr.f32.gmra.mrb[0].mxu0 %v2772
      %v3226 = vpop.f32.mrb[0].mxu0
      %v3227 = vadd.f32 0.0, %v3226
      %v3228 = vpop.f32.mrb[0].mxu0
      %3229 = vmatprep.mubr.f32.mxu0 0.0
      %3230 = vmatmul.mubr.f32.gmra.mrb[0].mxu0 %v2775
      %v3231 = vpop.f32.mrb[0].mxu0
      %v3232 = vadd.f32 0.0, %v3231
      %v3233 = vpop.f32.mrb[0].mxu0
      %3234 = vmatprep.mubr.f32.mxu0 0.0
      %3235 = vmatmul.mubr.f32.gmra.mrb[0].mxu0 %v2778
      %v3236 = vpop.f32.mrb[0].mxu0
      %v3237 = vadd.f32 0.0, %v3236
      %v3238 = vpop.f32.mrb[0].mxu0
      %3239 = vmatprep.mubr.f32.mxu0 0.0
      %3240 = vmatmul.mubr.f32.gmra.mrb[0].mxu0 %v2781
      %v3241 = vpop.f32.mrb[0].mxu0
      %v3242 = vadd.f32 0.0, %v3241
      %v3243 = vpop.f32.mrb[0].mxu0
      %3244 = vmatprep.mubr.f32.mxu0 0.0
      %3245 = vmatmul.mubr.f32.gmra.mrb[0].mxu0 %v2784
      %v3246 = vpop.f32.mrb[0].mxu0
      %v3247 = vadd.f32 0.0, %v3246
      %v3248 = vpop.f32.mrb[0].mxu0
      %3249 = vmatprep.mubr.f32.mxu0 0.0
      %3250 = vmatmul.mubr.f32.gmra.mrb[0].mxu0 %v2787
      %v3251 = vpop.f32.mrb[0].mxu0
      %v3252 = vadd.f32 0.0, %v3251
      %v3253 = vpop.f32.mrb[0].mxu0
      %3254 = vmatprep.mubr.f32.mxu0 0.0
      %3255 = vmatmul.mubr.f32.gmra.mrb[0].mxu0 %v2790
      %v3256 = vpop.f32.mrb[0].mxu0
      %v3257 = vadd.f32 0.0, %v3256
      %v3258 = vpop.f32.mrb[0].mxu0
      %3259 = vmatprep.mubr.f32.mxu0 0.0
      %3260 = vmatmul.mubr.f32.gmra.mrb[0].mxu0 %v2793
      %v3261 = vpop.f32.mrb[0].mxu0
      %v3262 = vadd.f32 0.0, %v3261
      %v3263 = vpop.f32.mrb[0].mxu0
      %3264 = vmatprep.mubr.f32.mxu0 0.0
      %3265 = vmatmul.mubr.f32.gmra.mrb[0].mxu0 %v2796
      %v3266 = vpop.f32.mrb[0].mxu0
      %v3267 = vadd.f32 0.0, %v3266
      %v3268 = vpop.f32.mrb[0].mxu0
      %3269 = vmatprep.mubr.f32.mxu0 0.0
      %3270 = vmatmul.mubr.f32.gmra.mrb[0].mxu0 %v2799
      %v3271 = vpop.f32.mrb[0].mxu0
      %v3272 = vadd.f32 0.0, %v3271
      %v3273 = vpop.f32.mrb[0].mxu0
      %3274 = vmatprep.mubr.f32.mxu0 0.0
      %3275 = vmatmul.mubr.f32.gmra.mrb[0].mxu0 %v2802
      %v3276 = vpop.f32.mrb[0].mxu0
      %v3277 = vadd.f32 0.0, %v3276
      %v3278 = vpop.f32.mrb[0].mxu0
      %3279 = vmatprep.mubr.f32.mxu0 0.0
      %3280 = vmatmul.mubr.f32.gmra.mrb[0].mxu0 %v2805
      %v3281 = vpop.f32.mrb[0].mxu0
      %v3282 = vadd.f32 0.0, %v3281
      %v3283 = vpop.f32.mrb[0].mxu0
      %3284 = vmatprep.mubr.f32.mxu0 0.0
      %3285 = vmatmul.mubr.f32.gmra.mrb[0].mxu0 %v2808
      %v3286 = vpop.f32.mrb[0].mxu0
      %v3287 = vadd.f32 0.0, %v3286
      %v3288 = vpop.f32.mrb[0].mxu0
      %3289 = vmatprep.mubr.f32.mxu0 0.0
      %3290 = vmatmul.mubr.f32.gmra.mrb[0].mxu0 %v2811
      %v3291 = vpop.f32.mrb[0].mxu0
      %v3292 = vadd.f32 0.0, %v3291
      %v3293 = vpop.f32.mrb[0].mxu0
      %3294 = vmatprep.mubr.f32.mxu0 0.0
      %3295 = vmatmul.mubr.f32.gmra.mrb[0].mxu0 %v2814
      %v3296 = vpop.f32.mrb[0].mxu0
      %v3297 = vadd.f32 0.0, %v3296
      %v3298 = vpop.f32.mrb[0].mxu0
      %3299 = vmatprep.mubr.f32.mxu0 0.0
      %3300 = vmatmul.mubr.f32.gmra.mrb[0].mxu0 %v2817
      %v3301 = vpop.f32.mrb[0].mxu0
      %v3302 = vadd.f32 0.0, %v3301
      %v3303 = vpop.f32.mrb[0].mxu0
      %3304 = vmatprep.mubr.f32.mxu0 0.0
      %3305 = vmatmul.mubr.f32.gmra.mrb[0].mxu0 %v2820
      %v3306 = vpop.f32.mrb[0].mxu0
      %v3307 = vadd.f32 0.0, %v3306
      %v3308 = vpop.f32.mrb[0].mxu0
      %3309 = vmatprep.mubr.f32.mxu0 0.0
      %3310 = vmatmul.mubr.f32.gmra.mrb[0].mxu0 %v2823
      %v3311 = vpop.f32.mrb[0].mxu0
      %v3312 = vadd.f32 0.0, %v3311
      %v3313 = vpop.f32.mrb[0].mxu0
      %3314 = vmatprep.mubr.f32.mxu0 0.0
      %3315 = vmatmul.mubr.f32.gmra.mrb[0].mxu0 %v2826
      %v3316 = vpop.f32.mrb[0].mxu0
      %v3317 = vadd.f32 0.0, %v3316
      %v3318 = vpop.f32.mrb[0].mxu0
      %3319 = vmatprep.mubr.f32.mxu0 0.0
      %3320 = vmatmul.mubr.f32.gmra.mrb[0].mxu0 %v2829
      %v3321 = vpop.f32.mrb[0].mxu0
      %v3322 = vadd.f32 0.0, %v3321
      %v3323 = vpop.f32.mrb[0].mxu0
      %3324 = vmatprep.mubr.f32.mxu0 0.0
      %3325 = vmatmul.mubr.f32.gmra.mrb[0].mxu0 %v2832
      %v3326 = vpop.f32.mrb[0].mxu0
      %v3327 = vadd.f32 0.0, %v3326
      %v3328 = vpop.f32.mrb[0].mxu0
      %3329 = vmatprep.mubr.f32.mxu0 0.0
      %3330 = vmatmul.mubr.f32.gmra.mrb[0].mxu0 %v2835
      %v3331 = vpop.f32.mrb[0].mxu0
      %v3332 = vadd.f32 0.0, %v3331
      %v3333 = vpop.f32.mrb[0].mxu0
      %3334 = vmatprep.mubr.f32.mxu0 0.0
      %3335 = vmatmul.mubr.f32.gmra.mrb[0].mxu0 %v2838
      %v3336 = vpop.f32.mrb[0].mxu0
      %v3337 = vadd.f32 0.0, %v3336
      %v3338 = vpop.f32.mrb[0].mxu0
      %3339 = vmatprep.mubr.f32.mxu0 0.0
      %3340 = vmatmul.mubr.f32.gmra.mrb[0].mxu0 %v2841
      %v3341 = vpop.f32.mrb[0].mxu0
      %v3342 = vadd.f32 0.0, %v3341
      %v3343 = vpop.f32.mrb[0].mxu0
      %3344 = vmatprep.mubr.f32.mxu0 0.0
      %3345 = vmatmul.mubr.f32.gmra.mrb[0].mxu0 %v2844
      %v3346 = vpop.f32.mrb[0].mxu0
      %v3347 = vadd.f32 0.0, %v3346
      %v3348 = vpop.f32.mrb[0].mxu0
      %3349 = vmatprep.mubr.f32.mxu0 0.0
      %3350 = vmatmul.mubr.f32.gmra.mrb[0].mxu0 %v2847
      %v3351 = vpop.f32.mrb[0].mxu0
      %v3352 = vadd.f32 0.0, %v3351
      %v3353 = vpop.f32.mrb[0].mxu0
      %3354 = vmatprep.mubr.f32.mxu0 0.0
      %3355 = vmatmul.mubr.f32.gmra.mrb[0].mxu0 %v2850
      %v3356 = vpop.f32.mrb[0].mxu0
      %v3357 = vadd.f32 0.0, %v3356
      %v3358 = vpop.f32.mrb[0].mxu0
      %3359 = vmatprep.mubr.f32.mxu0 0.0
      %3360 = vmatmul.mubr.f32.gmra.mrb[0].mxu0 %v2853
      %v3361 = vpop.f32.mrb[0].mxu0
      %v3362 = vadd.f32 0.0, %v3361
      %v3363 = vpop.f32.mrb[0].mxu0
      %3364 = vmatprep.mubr.f32.mxu0 0.0
      %3365 = vmatmul.mubr.f32.gmra.mrb[0].mxu0 %v2856
      %v3366 = vpop.f32.mrb[0].mxu0
      %v3367 = vadd.f32 0.0, %v3366
      %v3368 = vpop.f32.mrb[0].mxu0
      %3369 = vmatprep.mubr.f32.mxu0 0.0
      %3370 = vmatmul.mubr.f32.gmra.mrb[0].mxu0 %v2859
      %v3371 = vpop.f32.mrb[0].mxu0
      %v3372 = vadd.f32 0.0, %v3371
      %v3373 = vpop.f32.mrb[0].mxu0
      %3374 = vmatprep.mubr.f32.mxu0 0.0
      %3375 = vmatmul.mubr.f32.gmra.mrb[0].mxu0 %v2862
      %v3376 = vpop.f32.mrb[0].mxu0
      %v3377 = vadd.f32 0.0, %v3376
      %v3378 = vpop.f32.mrb[0].mxu0
      %3379 = vmatprep.mubr.f32.mxu0 0.0
      %3380 = vmatmul.mubr.f32.gmra.mrb[0].mxu0 %v2865
      %v3381 = vpop.f32.mrb[0].mxu0
      %v3382 = vadd.f32 0.0, %v3381
      %v3383 = vpop.f32.mrb[0].mxu0
      %3384 = vmatprep.mubr.f32.mxu0 0.0
      %3385 = vmatmul.mubr.f32.gmra.mrb[0].mxu0 %v2868
      %v3386 = vpop.f32.mrb[0].mxu0
      %v3387 = vadd.f32 0.0, %v3386
      %v3388 = vpop.f32.mrb[0].mxu0
      %3389 = vmatprep.mubr.f32.mxu0 0.0
      %3390 = vmatmul.mubr.f32.gmra.mrb[0].mxu0 %v2871
      %v3391 = vpop.f32.mrb[0].mxu0
      %v3392 = vadd.f32 0.0, %v3391
      %v3393 = vpop.f32.mrb[0].mxu0
      %3394 = vmatprep.mubr.f32.mxu0 0.0
      %3395 = vmatmul.mubr.f32.gmra.mrb[0].mxu0 %v2874
      %v3396 = vpop.f32.mrb[0].mxu0
      %v3397 = vadd.f32 0.0, %v3396
      %v3398 = vpop.f32.mrb[0].mxu0
      %3399 = vmatprep.mubr.f32.mxu0 0.0
      %3400 = vmatmul.mubr.f32.gmra.mrb[0].mxu0 %v2877
      %v3401 = vpop.f32.mrb[0].mxu0
      %v3402 = vadd.f32 0.0, %v3401
      %v3403 = vpop.f32.mrb[0].mxu0
      %3404 = vmatprep.mubr.f32.mxu0 0.0
      %3405 = vmatmul.mubr.f32.gmra.mrb[0].mxu0 %v2880
      %v3406 = vpop.f32.mrb[0].mxu0
      %v3407 = vadd.f32 0.0, %v3406
      %v3408 = vpop.f32.mrb[0].mxu0
      %3409 = vmatprep.mubr.f32.mxu0 0.0
      %3410 = vmatmul.mubr.f32.gmra.mrb[0].mxu0 %v2883
      %v3411 = vpop.f32.mrb[0].mxu0
      %v3412 = vadd.f32 0.0, %v3411
      %v3413 = vpop.f32.mrb[0].mxu0
      %3414 = vmatprep.mubr.f32.mxu0 0.0
      %3415 = vmatmul.mubr.f32.gmra.mrb[0].mxu0 %v2886
      %v3416 = vpop.f32.mrb[0].mxu0
      %v3417 = vadd.f32 0.0, %v3416
      %v3418 = vpop.f32.mrb[0].mxu0
      %3419 = vmatprep.mubr.f32.mxu0 0.0
      %3420 = vmatmul.mubr.f32.gmra.mrb[0].mxu0 %v2889
      %v3421 = vpop.f32.mrb[0].mxu0
      %v3422 = vadd.f32 0.0, %v3421
      %v3423 = vpop.f32.mrb[0].mxu0
      %3424 = vmatprep.mubr.f32.mxu0 0.0
      %3425 = vmatmul.mubr.f32.gmra.mrb[0].mxu0 %v2892
      %v3426 = vpop.f32.mrb[0].mxu0
      %v3427 = vadd.f32 0.0, %v3426
      %v3428 = vpop.f32.mrb[0].mxu0
      %3429 = vmatprep.mubr.f32.mxu0 0.0
      %3430 = vmatmul.mubr.f32.gmra.mrb[0].mxu0 %v2895
      %v3431 = vpop.f32.mrb[0].mxu0
      %v3432 = vadd.f32 0.0, %v3431
      %v3433 = vpop.f32.mrb[0].mxu0
      %3434 = vmatprep.mubr.f32.mxu0 0.0
      %3435 = vmatmul.mubr.f32.gmra.mrb[0].mxu0 %v2898
      %v3436 = vpop.f32.mrb[0].mxu0
      %v3437 = vadd.f32 0.0, %v3436
      %v3438 = vpop.f32.mrb[0].mxu0
      %3439 = vmatprep.mubr.f32.mxu0 0.0
      %3440 = vmatmul.mubr.f32.gmra.mrb[0].mxu0 %v2901
      %v3441 = vpop.f32.mrb[0].mxu0
      %v3442 = vadd.f32 0.0, %v3441
      %v3443 = vpop.f32.mrb[0].mxu0
      %3444 = vmatprep.mubr.f32.mxu0 0.0
      %3445 = vmatmul.mubr.f32.gmra.mrb[0].mxu0 %v2904
      %v3446 = vpop.f32.mrb[0].mxu0
      %v3447 = vadd.f32 0.0, %v3446
      %v3448 = vpop.f32.mrb[0].mxu0
      %3449 = vmatprep.mubr.f32.mxu0 0.0
      %3450 = vmatmul.mubr.f32.gmra.mrb[0].mxu0 %v2907
      %v3451 = vpop.f32.mrb[0].mxu0
      %v3452 = vadd.f32 0.0, %v3451
      %v3453 = vpop.f32.mrb[0].mxu0
      %3454 = vmatprep.mubr.f32.mxu0 0.0
      %3455 = vmatmul.mubr.f32.gmra.mrb[0].mxu0 %v2910
      %v3456 = vpop.f32.mrb[0].mxu0
      %v3457 = vadd.f32 0.0, %v3456
      %v3458 = vpop.f32.mrb[0].mxu0
      %3459 = vmatprep.mubr.f32.mxu0 0.0
      %3460 = vmatmul.mubr.f32.gmra.mrb[0].mxu0 %v2913
      %v3461 = vpop.f32.mrb[0].mxu0
      %v3462 = vadd.f32 0.0, %v3461
      %v3463 = vpop.f32.mrb[0].mxu0
      %3464 = vmatprep.mubr.f32.mxu0 0.0
      %3465 = vmatmul.mubr.f32.gmra.mrb[0].mxu0 %v2916
      %v3466 = vpop.f32.mrb[0].mxu0
      %v3467 = vadd.f32 0.0, %v3466
      %v3468 = vpop.f32.mrb[0].mxu0
      %3469 = vmatprep.mubr.f32.mxu0 0.0
      %3470 = vmatmul.mubr.f32.gmra.mrb[0].mxu0 %v2919
      %v3471 = vpop.f32.mrb[0].mxu0
      %v3472 = vadd.f32 0.0, %v3471
      %v3473 = vpop.f32.mrb[0].mxu0
      %3474 = vmatprep.mubr.f32.mxu0 0.0
      %3475 = vmatmul.mubr.f32.gmra.mrb[0].mxu0 %v2922
      %v3476 = vpop.f32.mrb[0].mxu0
      %v3477 = vadd.f32 0.0, %v3476
      %v3478 = vpop.f32.mrb[0].mxu0
      %3479 = vmatprep.mubr.f32.mxu0 0.0
      %3480 = vmatmul.mubr.f32.gmra.mrb[0].mxu0 %v2925
      %v3481 = vpop.f32.mrb[0].mxu0
      %v3482 = vadd.f32 0.0, %v3481
      %v3483 = vpop.f32.mrb[0].mxu0
      %3484 = vmatprep.mubr.f32.mxu0 0.0
      %3485 = vmatmul.mubr.f32.gmra.mrb[0].mxu0 %v2928
      %v3486 = vpop.f32.mrb[0].mxu0
      %v3487 = vadd.f32 0.0, %v3486
      %v3488 = vpop.f32.mrb[0].mxu0
      %3489 = vmatprep.mubr.f32.mxu0 0.0
      %3490 = vmatmul.mubr.f32.gmra.mrb[0].mxu0 %v2931
      %v3491 = vpop.f32.mrb[0].mxu0
      %v3492 = vadd.f32 0.0, %v3491
      %v3493 = vpop.f32.mrb[0].mxu0
      %3494 = vmatprep.mubr.f32.mxu0 0.0
      %3495 = vmatmul.mubr.f32.gmra.mrb[0].mxu0 %v2934
      %v3496 = vpop.f32.mrb[0].mxu0
      %v3497 = vadd.f32 0.0, %v3496
      %v3498 = vpop.f32.mrb[0].mxu0
      %3499 = vmatprep.mubr.f32.mxu0 0.0
      %3500 = vmatmul.mubr.f32.gmra.mrb[0].mxu0 %v2937
      %v3501 = vpop.f32.mrb[0].mxu0
      %v3502 = vadd.f32 0.0, %v3501
      %v3503 = vpop.f32.mrb[0].mxu0
      %3504 = vmatprep.mubr.f32.mxu0 0.0
      %3505 = vmatmul.mubr.f32.gmra.mrb[0].mxu0 %v2940
      %v3506 = vpop.f32.mrb[0].mxu0
      %v3507 = vadd.f32 0.0, %v3506
      %v3508 = vpop.f32.mrb[0].mxu0
      %3509 = vmatprep.mubr.f32.mxu0 0.0
      %3510 = vmatmul.mubr.f32.gmra.mrb[0].mxu0 %v2943
      %v3511 = vpop.f32.mrb[0].mxu0
      %v3512 = vadd.f32 0.0, %v3511
      %v3513 = vpop.f32.mrb[0].mxu0
      %3514 = vmatprep.mubr.f32.mxu0 0.0
      %3515 = vmatmul.mubr.f32.gmra.mrb[0].mxu0 %v2946
      %v3516 = vpop.f32.mrb[0].mxu0
      %v3517 = vadd.f32 0.0, %v3516
      %v3518 = vpop.f32.mrb[0].mxu0
      %3519 = vmatprep.mubr.f32.mxu0 0.0
      %3520 = vmatmul.mubr.f32.gmra.mrb[0].mxu0 %v2949
      %v3521 = vpop.f32.mrb[0].mxu0
      %v3522 = vadd.f32 0.0, %v3521
      %v3523 = vpop.f32.mrb[0].mxu0
      %3524 = vmatprep.mubr.f32.mxu0 0.0
      %3525 = vmatmul.mubr.f32.gmra.mrb[0].mxu0 %v2952
      %v3526 = vpop.f32.mrb[0].mxu0
      %v3527 = vadd.f32 0.0, %v3526
      %v3528 = vpop.f32.mrb[0].mxu0
      %3529 = vmatprep.mubr.f32.mxu0 0.0
      %3530 = vmatmul.mubr.f32.gmra.mrb[0].mxu0 %v2955
      %v3531 = vpop.f32.mrb[0].mxu0
      %v3532 = vadd.f32 0.0, %v3531
      %v3533 = vpop.f32.mrb[0].mxu0
      %3534 = vmatprep.mubr.f32.mxu0 0.0
      %3535 = vmatmul.mubr.f32.gmra.mrb[0].mxu0 %v2958
      %v3536 = vpop.f32.mrb[0].mxu0
      %v3537 = vadd.f32 0.0, %v3536
      %v3538 = vpop.f32.mrb[0].mxu0
      %3539 = vmatprep.mubr.f32.mxu0 0.0
      %3540 = vmatmul.mubr.f32.gmra.mrb[0].mxu0 %v2961
      %v3541 = vpop.f32.mrb[0].mxu0
      %v3542 = vadd.f32 0.0, %v3541
      %v3543 = vpop.f32.mrb[0].mxu0
      %3544 = vmatprep.mubr.f32.mxu0 0.0
      %3545 = vmatmul.mubr.f32.gmra.mrb[0].mxu0 %v2964
      %v3546 = vpop.f32.mrb[0].mxu0
      %v3547 = vadd.f32 0.0, %v3546
      %v3548 = vpop.f32.mrb[0].mxu0
      %3549 = vmatprep.mubr.f32.mxu0 0.0
      %3550 = vmatmul.mubr.f32.gmra.mrb[0].mxu0 %v2967
      %v3551 = vpop.f32.mrb[0].mxu0
      %v3552 = vadd.f32 0.0, %v3551
      %v3553 = vpop.f32.mrb[0].mxu0
      %3554 = vmatprep.mubr.f32.mxu0 0.0
      %3555 = vmatmul.mubr.f32.gmra.mrb[0].mxu0 %v2970
      %v3556 = vpop.f32.mrb[0].mxu0
      %v3557 = vadd.f32 0.0, %v3556
      %v3558 = vpop.f32.mrb[0].mxu0
      %3559 = vmatprep.mubr.f32.mxu0 0.0
      %3560 = vmatmul.mubr.f32.gmra.mrb[0].mxu0 %v2973
      %v3561 = vpop.f32.mrb[0].mxu0
      %v3562 = vadd.f32 0.0, %v3561
      %v3563 = vpop.f32.mrb[0].mxu0
      %3564 = vmatprep.mubr.f32.mxu0 0.0
      %3565 = vmatmul.mubr.f32.gmra.mrb[0].mxu0 %v2976
      %v3566 = vpop.f32.mrb[0].mxu0
      %v3567 = vadd.f32 0.0, %v3566
      %v3568 = vpop.f32.mrb[0].mxu0
      %3569 = vmatprep.mubr.f32.mxu0 0.0
      %3570 = vmatmul.mubr.f32.gmra.mrb[0].mxu0 %v2979
      %v3571 = vpop.f32.mrb[0].mxu0
      %v3572 = vadd.f32 0.0, %v3571
      %v3573 = vpop.f32.mrb[0].mxu0
      %3574 = vmatprep.mubr.f32.mxu0 0.0
      %3575 = vmatmul.mubr.f32.gmra.mrb[0].mxu0 %v2982
      %v3576 = vpop.f32.mrb[0].mxu0
      %v3577 = vadd.f32 0.0, %v3576
      %v3578 = vpop.f32.mrb[0].mxu0
      %3579 = vmatprep.mubr.f32.mxu0 0.0
      %3580 = vmatmul.mubr.f32.gmra.mrb[0].mxu0 %v2985
      %v3581 = vpop.f32.mrb[0].mxu0
      %v3582 = vadd.f32 0.0, %v3581
      %v3583 = vpop.f32.mrb[0].mxu0
      %3584 = vmatprep.mubr.f32.mxu0 0.0
      %3585 = vmatmul.mubr.f32.gmra.mrb[0].mxu0 %v2988
      %v3586 = vpop.f32.mrb[0].mxu0
      %v3587 = vadd.f32 0.0, %v3586
      %v3588 = vpop.f32.mrb[0].mxu0
      %3589 = vmatprep.mubr.f32.mxu0 0.0
      %3590 = vmatmul.mubr.f32.gmra.mrb[0].mxu0 %v2991
      %v3591 = vpop.f32.mrb[0].mxu0
      %v3592 = vadd.f32 0.0, %v3591
      %v3593 = vpop.f32.mrb[0].mxu0
      %3594 = vmatprep.mubr.f32.mxu0 0.0
      %3595 = vmatmul.mubr.f32.gmra.mrb[0].mxu0 %v2994
      %v3596 = vpop.f32.mrb[0].mxu0
      %v3597 = vadd.f32 0.0, %v3596
      %v3598 = vpop.f32.mrb[0].mxu0
      %3599 = vmatprep.mubr.f32.mxu0 0.0
      %3600 = vmatmul.mubr.f32.gmra.mrb[0].mxu0 %v2997
      %v3601 = vpop.f32.mrb[0].mxu0
      %v3602 = vadd.f32 0.0, %v3601
      %v3603 = vpop.f32.mrb[0].mxu0
      %3604 = vmatprep.mubr.f32.mxu0 0.0
      %3605 = vmatmul.mubr.f32.gmra.mrb[0].mxu0 %v3000
      %v3606 = vpop.f32.mrb[0].mxu0
      %v3607 = vadd.f32 0.0, %v3606
      %v3608 = vpop.f32.mrb[0].mxu0
      %3609 = vmatprep.mubr.f32.mxu0 0.0
      %3610 = vmatmul.mubr.f32.gmra.mrb[0].mxu0 %v3003
      %v3611 = vpop.f32.mrb[0].mxu0
      %v3612 = vadd.f32 0.0, %v3611
      %v3613 = vpop.f32.mrb[0].mxu0
      %3614 = vmatprep.mubr.f32.mxu0 0.0
      %3615 = vmatmul.mubr.f32.gmra.mrb[0].mxu0 %v3006
      %v3616 = vpop.f32.mrb[0].mxu0
      %v3617 = vadd.f32 0.0, %v3616
      %v3618 = vpop.f32.mrb[0].mxu0
      %3619 = vmatprep.mubr.f32.mxu0 0.0
      %3620 = vmatmul.mubr.f32.gmra.mrb[0].mxu0 %v3009
      %v3621 = vpop.f32.mrb[0].mxu0
      %v3622 = vadd.f32 0.0, %v3621
      %v3623 = vpop.f32.mrb[0].mxu0
      %3624 = vmatprep.mubr.f32.mxu0 0.0
      %3625 = vmatmul.mubr.f32.gmra.mrb[0].mxu0 %v3012
      %v3626 = vpop.f32.mrb[0].mxu0
      %v3627 = vadd.f32 0.0, %v3626
      %v3628 = vpop.f32.mrb[0].mxu0
      %3629 = vmatprep.mubr.f32.mxu0 0.0
      %3630 = vmatmul.mubr.f32.gmra.mrb[0].mxu0 %v3015
      %v3631 = vpop.f32.mrb[0].mxu0
      %v3632 = vadd.f32 0.0, %v3631
      %v3633 = vpop.f32.mrb[0].mxu0
      %3634 = vmatprep.mubr.f32.mxu0 0.0
      %3635 = vmatmul.mubr.f32.gmra.mrb[0].mxu0 %v3018
      %v3636 = vpop.f32.mrb[0].mxu0
      %v3637 = vadd.f32 0.0, %v3636
      %v3638 = vpop.f32.mrb[0].mxu0
      %3639 = vmatprep.mubr.f32.mxu0 0.0
      %3640 = vmatmul.mubr.f32.gmra.mrb[0].mxu0 %v3021
      %v3641 = vpop.f32.mrb[0].mxu0
      %v3642 = vadd.f32 0.0, %v3641
      %v3643 = vpop.f32.mrb[0].mxu0
      %3644 = vmatprep.mubr.f32.mxu0 0.0
      %3645 = vmatmul.mubr.f32.gmra.mrb[0].mxu0 %v3024
      %v3646 = vpop.f32.mrb[0].mxu0
      %v3647 = vadd.f32 0.0, %v3646
      %v3648 = vpop.f32.mrb[0].mxu0
      %3649 = vmatprep.mubr.f32.mxu0 0.0
      %3650 = vmatmul.mubr.f32.gmra.mrb[0].mxu0 %v3027
      %v3651 = vpop.f32.mrb[0].mxu0
      %v3652 = vadd.f32 0.0, %v3651
      %v3653 = vpop.f32.mrb[0].mxu0
      %3654 = vmatprep.mubr.f32.mxu0 0.0
      %3655 = vmatmul.mubr.f32.gmra.mrb[0].mxu0 %v3030
      %v3656 = vpop.f32.mrb[0].mxu0
      %v3657 = vadd.f32 0.0, %v3656
      %v3658 = vpop.f32.mrb[0].mxu0
      %3659 = vmatprep.mubr.f32.mxu0 0.0
      %3660 = vmatmul.mubr.f32.gmra.mrb[0].mxu0 %v3033
      %v3661 = vpop.f32.mrb[0].mxu0
      %v3662 = vadd.f32 0.0, %v3661
      %v3663 = vpop.f32.mrb[0].mxu0
      %3664 = vmatprep.mubr.f32.mxu0 0.0
      %3665 = vmatmul.mubr.f32.gmra.mrb[0].mxu0 %v3036
      %v3666 = vpop.f32.mrb[0].mxu0
      %v3667 = vadd.f32 0.0, %v3666
      %v3668 = vpop.f32.mrb[0].mxu0
      %3669 = vmatprep.mubr.f32.mxu0 0.0
      %3670 = vmatmul.mubr.f32.gmra.mrb[0].mxu0 %v3039
      %v3671 = vpop.f32.mrb[0].mxu0
      %v3672 = vadd.f32 0.0, %v3671
      %v3673 = vpop.f32.mrb[0].mxu0
      %3674 = vmatprep.mubr.f32.mxu0 0.0
      %3675 = vmatmul.mubr.f32.gmra.mrb[0].mxu0 %v3042
      %v3676 = vpop.f32.mrb[0].mxu0
      %v3677 = vadd.f32 0.0, %v3676
      %v3678 = vpop.f32.mrb[0].mxu0
      %3679 = vmatprep.mubr.f32.mxu0 0.0
      %3680 = vmatmul.mubr.f32.gmra.mrb[0].mxu0 %v3045
      %v3681 = vpop.f32.mrb[0].mxu0
      %v3682 = vadd.f32 0.0, %v3681
      %v3683 = vpop.f32.mrb[0].mxu0
      %3684 = vmatprep.mubr.f32.mxu0 0.0
      %3685 = vmatmul.mubr.f32.gmra.mrb[0].mxu0 %v3048
      %v3686 = vpop.f32.mrb[0].mxu0
      %v3687 = vadd.f32 0.0, %v3686
      %v3688 = vpop.f32.mrb[0].mxu0
      %3689 = vmatprep.mubr.f32.mxu0 0.0
      %3690 = vmatmul.mubr.f32.gmra.mrb[0].mxu0 %v3051
      %v3691 = vpop.f32.mrb[0].mxu0
      %v3692 = vadd.f32 0.0, %v3691
      %v3693 = vpop.f32.mrb[0].mxu0
      %3694 = vmatprep.mubr.f32.mxu0 0.0
      %3695 = vmatmul.mubr.f32.gmra.mrb[0].mxu0 %v3054
      %v3696 = vpop.f32.mrb[0].mxu0
      %v3697 = vadd.f32 0.0, %v3696
      %v3698 = vpop.f32.mrb[0].mxu0
      %3699 = vmatprep.mubr.f32.mxu0 0.0
      %3700 = vmatmul.mubr.f32.gmra.mrb[0].mxu0 %v3057
      %v3701 = vpop.f32.mrb[0].mxu0
      %v3702 = vadd.f32 0.0, %v3701
      %v3703 = vpop.f32.mrb[0].mxu0
      %3704 = vmatprep.mubr.f32.mxu0 0.0
      %3705 = vmatmul.mubr.f32.gmra.mrb[0].mxu0 %v3060
      %v3706 = vpop.f32.mrb[0].mxu0
      %v3707 = vadd.f32 0.0, %v3706
      %v3708 = vpop.f32.mrb[0].mxu0
      %3709 = vmatprep.mubr.f32.mxu0 0.0
      %3710 = vmatmul.mubr.f32.gmra.mrb[0].mxu0 %v3063
      %v3711 = vpop.f32.mrb[0].mxu0
      %v3712 = vadd.f32 0.0, %v3711
      %v3713 = vpop.f32.mrb[0].mxu0
      %3714 = vmatprep.mubr.f32.mxu0 0.0
      %3715 = vmatmul.mubr.f32.gmra.mrb[0].mxu0 %v3066
      %v3716 = vpop.f32.mrb[0].mxu0
      %v3717 = vadd.f32 0.0, %v3716
      %v3718 = vpop.f32.mrb[0].mxu0
      %3719 = vmatprep.mubr.f32.mxu0 0.0
      %3720 = vmatmul.mubr.f32.gmra.mrb[0].mxu0 %v3069
      %v3721 = vpop.f32.mrb[0].mxu0
      %v3722 = vadd.f32 0.0, %v3721
      %v3723 = vpop.f32.mrb[0].mxu0
      %3724 = vmatprep.mubr.f32.mxu0 0.0
      %3725 = vmatmul.mubr.f32.gmra.mrb[0].mxu0 %v3072
      %v3726 = vpop.f32.mrb[0].mxu0
      %v3727 = vadd.f32 0.0, %v3726
      %v3728 = vpop.f32.mrb[0].mxu0
      %3729 = vmatprep.mubr.f32.mxu0 0.0
      %3730 = vmatmul.mubr.f32.gmra.mrb[0].mxu0 %v3075
      %v3731 = vpop.f32.mrb[0].mxu0
      %v3732 = vadd.f32 0.0, %v3731
      %v3733 = vpop.f32.mrb[0].mxu0
      %3734 = vmatprep.mubr.f32.mxu0 0.0
      %3735 = vmatmul.mubr.f32.gmra.mrb[0].mxu0 %v3078
      %v3736 = vpop.f32.mrb[0].mxu0
      %v3737 = vadd.f32 0.0, %v3736
      %v3738 = vpop.f32.mrb[0].mxu0
      %3739 = vmatprep.mubr.f32.mxu0 0.0
      %3740 = vmatmul.mubr.f32.gmra.mrb[0].mxu0 %v3081
      %v3741 = vpop.f32.mrb[0].mxu0
      %v3742 = vadd.f32 0.0, %v3741
      %v3743 = vpop.f32.mrb[0].mxu0
      %3744 = vmatprep.mubr.f32.mxu0 0.0
      %3745 = vmatmul.mubr.f32.gmra.mrb[0].mxu0 %v3084
      %v3746 = vpop.f32.mrb[0].mxu0
      %v3747 = vadd.f32 0.0, %v3746
      %v3748 = vpop.f32.mrb[0].mxu0
      %3749 = vmatprep.mubr.f32.mxu0 0.0
      %3750 = vmatmul.mubr.f32.gmra.mrb[0].mxu0 %v3087
      %v3751 = vpop.f32.mrb[0].mxu0
      %v3752 = vadd.f32 0.0, %v3751
      %v3753 = vpop.f32.mrb[0].mxu0
      %3754 = vmatprep.mubr.f32.mxu0 0.0
      %3755 = vmatmul.mubr.f32.gmra.mrb[0].mxu0 %v3090
      %v3756 = vpop.f32.mrb[0].mxu0
      %v3757 = vadd.f32 0.0, %v3756
      %v3758 = vpop.f32.mrb[0].mxu0
      %3759 = vmatprep.mubr.f32.mxu0 0.0
      %3760 = vmatmul.mubr.f32.gmra.mrb[0].mxu0 %v3093
      %v3761 = vpop.f32.mrb[0].mxu0
      %v3762 = vadd.f32 0.0, %v3761
      %v3763 = vpop.f32.mrb[0].mxu0
      %3764 = vdwg.mxu0
      %v3765 = vmax.f32 %v2489, %v3162
      %v3766 = vmax.f32 %v2490, %v3167
      %v3767 = vmax.f32 %v2491, %v3172
      %v3768 = vmax.f32 %v2492, %v3177
      %v3769 = vmax.f32 %v2493, %v3182
      %v3770 = vmax.f32 %v2494, %v3187
      %v3771 = vmax.f32 %v2495, %v3192
      %v3772 = vmax.f32 %v2496, %v3197
      %v3773 = vmax.f32 %v2497, %v3202
      %v3774 = vmax.f32 %v2498, %v3207
      %v3775 = vmax.f32 %v2499, %v3212
      %v3776 = vmax.f32 %v2500, %v3217
      %v3777 = vmax.f32 %v2501, %v3222
      %v3778 = vmax.f32 %v2502, %v3227
      %v3779 = vmax.f32 %v2503, %v3232
      %v3780 = vmax.f32 %v2504, %v3237
      %v3781 = vmax.f32 %v2505, %v3242
      %v3782 = vmax.f32 %v2506, %v3247
      %v3783 = vmax.f32 %v2507, %v3252
      %v3784 = vmax.f32 %v2508, %v3257
      %v3785 = vmax.f32 %v2509, %v3262
      %v3786 = vmax.f32 %v2510, %v3267
      %v3787 = vmax.f32 %v2511, %v3272
      %v3788 = vmax.f32 %v2512, %v3277
      %v3789 = vmax.f32 %v2513, %v3282
      %v3790 = vmax.f32 %v2514, %v3287
      %v3791 = vmax.f32 %v2515, %v3292
      %v3792 = vmax.f32 %v2516, %v3297
      %v3793 = vmax.f32 %v2517, %v3302
      %v3794 = vmax.f32 %v2518, %v3307
      %v3795 = vmax.f32 %v2519, %v3312
      %v3796 = vmax.f32 %v2520, %v3317
      %v3797 = vmax.f32 %v2521, %v3322
      %v3798 = vmax.f32 %v2522, %v3327
      %v3799 = vmax.f32 %v2523, %v3332
      %v3800 = vmax.f32 %v2524, %v3337
      %v3801 = vmax.f32 %v2525, %v3342
      %v3802 = vmax.f32 %v2526, %v3347
      %v3803 = vmax.f32 %v2527, %v3352
      %v3804 = vmax.f32 %v2528, %v3357
      %v3805 = vmax.f32 %v2529, %v3362
      %v3806 = vmax.f32 %v2530, %v3367
      %v3807 = vmax.f32 %v2531, %v3372
      %v3808 = vmax.f32 %v2532, %v3377
      %v3809 = vmax.f32 %v2533, %v3382
      %v3810 = vmax.f32 %v2534, %v3387
      %v3811 = vmax.f32 %v2535, %v3392
      %v3812 = vmax.f32 %v2536, %v3397
      %v3813 = vmax.f32 %v2537, %v3402
      %v3814 = vmax.f32 %v2538, %v3407
      %v3815 = vmax.f32 %v2539, %v3412
      %v3816 = vmax.f32 %v2540, %v3417
      %v3817 = vmax.f32 %v2541, %v3422
      %v3818 = vmax.f32 %v2542, %v3427
      %v3819 = vmax.f32 %v2543, %v3432
      %v3820 = vmax.f32 %v2544, %v3437
      %v3821 = vmax.f32 %v2545, %v3442
      %v3822 = vmax.f32 %v2546, %v3447
      %v3823 = vmax.f32 %v2547, %v3452
      %v3824 = vmax.f32 %v2548, %v3457
      %v3825 = vmax.f32 %v2549, %v3462
      %v3826 = vmax.f32 %v2550, %v3467
      %v3827 = vmax.f32 %v2551, %v3472
      %v3828 = vmax.f32 %v2552, %v3477
      %v3829 = vmax.f32 %v2553, %v3482
      %v3830 = vmax.f32 %v2554, %v3487
      %v3831 = vmax.f32 %v2555, %v3492
      %v3832 = vmax.f32 %v2556, %v3497
      %v3833 = vmax.f32 %v2557, %v3502
      %v3834 = vmax.f32 %v2558, %v3507
      %v3835 = vmax.f32 %v2559, %v3512
      %v3836 = vmax.f32 %v2560, %v3517
      %v3837 = vmax.f32 %v2561, %v3522
      %v3838 = vmax.f32 %v2562, %v3527
      %v3839 = vmax.f32 %v2563, %v3532
      %v3840 = vmax.f32 %v2564, %v3537
      %v3841 = vmax.f32 %v2565, %v3542
      %v3842 = vmax.f32 %v2566, %v3547
      %v3843 = vmax.f32 %v2567, %v3552
      %v3844 = vmax.f32 %v2568, %v3557
      %v3845 = vmax.f32 %v2569, %v3562
      %v3846 = vmax.f32 %v2570, %v3567
      %v3847 = vmax.f32 %v2571, %v3572
      %v3848 = vmax.f32 %v2572, %v3577
      %v3849 = vmax.f32 %v2573, %v3582
      %v3850 = vmax.f32 %v2574, %v3587
      %v3851 = vmax.f32 %v2575, %v3592
      %v3852 = vmax.f32 %v2576, %v3597
      %v3853 = vmax.f32 %v2577, %v3602
      %v3854 = vmax.f32 %v2578, %v3607
      %v3855 = vmax.f32 %v2579, %v3612
      %v3856 = vmax.f32 %v2580, %v3617
      %v3857 = vmax.f32 %v2581, %v3622
      %v3858 = vmax.f32 %v2582, %v3627
      %v3859 = vmax.f32 %v2583, %v3632
      %v3860 = vmax.f32 %v2584, %v3637
      %v3861 = vmax.f32 %v2585, %v3642
      %v3862 = vmax.f32 %v2586, %v3647
      %v3863 = vmax.f32 %v2587, %v3652
      %v3864 = vmax.f32 %v2588, %v3657
      %v3865 = vmax.f32 %v2589, %v3662
      %v3866 = vmax.f32 %v2590, %v3667
      %v3867 = vmax.f32 %v2591, %v3672
      %v3868 = vmax.f32 %v2592, %v3677
      %v3869 = vmax.f32 %v2593, %v3682
      %v3870 = vmax.f32 %v2594, %v3687
      %v3871 = vmax.f32 %v2595, %v3692
      %v3872 = vmax.f32 %v2596, %v3697
      %v3873 = vmax.f32 %v2597, %v3702
      %v3874 = vmax.f32 %v2598, %v3707
      %v3875 = vmax.f32 %v2599, %v3712
      %v3876 = vmax.f32 %v2600, %v3717
      %v3877 = vmax.f32 %v2601, %v3722
      %v3878 = vmax.f32 %v2602, %v3727
      %v3879 = vmax.f32 %v2603, %v3732
      %v3880 = vmax.f32 %v2604, %v3737
      %v3881 = vmax.f32 %v2605, %v3742
      %v3882 = vmax.f32 %v2606, %v3747
      %v3883 = vmax.f32 %v2607, %v3752
      %v3884 = vmax.f32 %v2608, %v3757
      %v3885 = vmax.f32 %v2609, %v3762
      %s3886 = scalar_lea.vmem %s165, 2904
      %v3887 = vld [vmem:[%s3886] sm:$0xff]
      %v3888 = vld [vmem:[%s3886 + $0x8] sm:$0xff]
      %v3889 = vld [vmem:[%s3886 + $0x10] sm:$0xff]
      %v3890 = vld [vmem:[%s3886 + $0x18] sm:$0xff]
      %v3891 = vld [vmem:[%s3886 + $0x20] sm:$0xff]
      %v3892 = vld [vmem:[%s3886 + $0x28] sm:$0xff]
      %v3893 = vld [vmem:[%s3886 + $0x30] sm:$0xff]
      %v3894 = vld [vmem:[%s3886 + $0x38] sm:$0xff]
      %v3895 = vld [vmem:[%s3886 + $0x40] sm:$0xff]
      %v3896 = vld [vmem:[%s3886 + $0x48] sm:$0xff]
      %v3897 = vld [vmem:[%s3886 + $0x50] sm:$0xff]
      %v3898 = vld [vmem:[%s3886 + $0x58] sm:$0xff]
      %v3899 = vld [vmem:[%s3886 + $0x60] sm:$0xff]
      %v3900 = vld [vmem:[%s3886 + $0x68] sm:$0xff]
      %v3901 = vld [vmem:[%s3886 + $0x70] sm:$0xff]
      %v3902 = vld [vmem:[%s3886 + $0x78] sm:$0xff]
      %v3903 = vld [vmem:[%s3886 + $0x80] sm:$0xff]
      %v3904 = vld [vmem:[%s3886 + $0x88] sm:$0xff]
      %v3905 = vld [vmem:[%s3886 + $0x90] sm:$0xff]
      %v3906 = vld [vmem:[%s3886 + $0x98] sm:$0xff]
      %v3907 = vld [vmem:[%s3886 + $0xa0] sm:$0xff]
      %v3908 = vld [vmem:[%s3886 + $0xa8] sm:$0xff]
      %v3909 = vld [vmem:[%s3886 + $0xb0] sm:$0xff]
      %v3910 = vld [vmem:[%s3886 + $0xb8] sm:$0xff]
      %v3911 = vld [vmem:[%s3886 + $0xc0] sm:$0xff]
      %v3912 = vld [vmem:[%s3886 + $0xc8] sm:$0xff]
      %v3913 = vld [vmem:[%s3886 + $0xd0] sm:$0xff]
      %v3914 = vld [vmem:[%s3886 + $0xd8] sm:$0xff]
      %v3915 = vld [vmem:[%s3886 + $0xe0] sm:$0xff]
      %v3916 = vld [vmem:[%s3886 + $0xe8] sm:$0xff]
      %v3917 = vld [vmem:[%s3886 + $0xf0] sm:$0xff]
      %v3918 = vld [vmem:[%s3886 + $0xf8] sm:$0xff]
      %v3919 = vld [vmem:[%s3886 + $0x100] sm:$0xff]
      %v3920 = vld [vmem:[%s3886 + $0x108] sm:$0xff]
      %v3921 = vld [vmem:[%s3886 + $0x110] sm:$0xff]
      %v3922 = vld [vmem:[%s3886 + $0x118] sm:$0xff]
      %v3923 = vld [vmem:[%s3886 + $0x120] sm:$0xff]
      %v3924 = vld [vmem:[%s3886 + $0x128] sm:$0xff]
      %v3925 = vld [vmem:[%s3886 + $0x130] sm:$0xff]
      %v3926 = vld [vmem:[%s3886 + $0x138] sm:$0xff]
      %v3927 = vld [vmem:[%s3886 + $0x140] sm:$0xff]
      %v3928 = vld [vmem:[%s3886 + $0x148] sm:$0xff]
      %v3929 = vld [vmem:[%s3886 + $0x150] sm:$0xff]
      %v3930 = vld [vmem:[%s3886 + $0x158] sm:$0xff]
      %v3931 = vld [vmem:[%s3886 + $0x160] sm:$0xff]
      %v3932 = vld [vmem:[%s3886 + $0x168] sm:$0xff]
      %v3933 = vld [vmem:[%s3886 + $0x170] sm:$0xff]
      %v3934 = vld [vmem:[%s3886 + $0x178] sm:$0xff]
      %v3935 = vld [vmem:[%s3886 + $0x180] sm:$0xff]
      %v3936 = vld [vmem:[%s3886 + $0x188] sm:$0xff]
      %v3937 = vld [vmem:[%s3886 + $0x190] sm:$0xff]
      %v3938 = vld [vmem:[%s3886 + $0x198] sm:$0xff]
      %v3939 = vld [vmem:[%s3886 + $0x1a0] sm:$0xff]
      %v3940 = vld [vmem:[%s3886 + $0x1a8] sm:$0xff]
      %v3941 = vld [vmem:[%s3886 + $0x1b0] sm:$0xff]
      %v3942 = vld [vmem:[%s3886 + $0x1b8] sm:$0xff]
      %v3943 = vld [vmem:[%s3886 + $0x1c0] sm:$0xff]
      %v3944 = vld [vmem:[%s3886 + $0x1c8] sm:$0xff]
      %v3945 = vld [vmem:[%s3886 + $0x1d0] sm:$0xff]
      %v3946 = vld [vmem:[%s3886 + $0x1d8] sm:$0xff]
      %v3947 = vld [vmem:[%s3886 + $0x1e0] sm:$0xff]
      %v3948 = vld [vmem:[%s3886 + $0x1e8] sm:$0xff]
      %v3949 = vld [vmem:[%s3886 + $0x1f0] sm:$0xff]
      %v3950 = vld [vmem:[%s3886 + $0x1f8] sm:$0xff]
      %v3951 = vld [vmem:[%s3886 + $0x200] sm:$0xff]
      %v3952 = vld [vmem:[%s3886 + $0x208] sm:$0xff]
      %v3953 = vld [vmem:[%s3886 + $0x210] sm:$0xff]
      %v3954 = vld [vmem:[%s3886 + $0x218] sm:$0xff]
      %v3955 = vld [vmem:[%s3886 + $0x220] sm:$0xff]
      %v3956 = vld [vmem:[%s3886 + $0x228] sm:$0xff]
      %v3957 = vld [vmem:[%s3886 + $0x230] sm:$0xff]
      %v3958 = vld [vmem:[%s3886 + $0x238] sm:$0xff]
      %v3959 = vld [vmem:[%s3886 + $0x240] sm:$0xff]
      %v3960 = vld [vmem:[%s3886 + $0x248] sm:$0xff]
      %v3961 = vld [vmem:[%s3886 + $0x250] sm:$0xff]
      %v3962 = vld [vmem:[%s3886 + $0x258] sm:$0xff]
      %v3963 = vld [vmem:[%s3886 + $0x260] sm:$0xff]
      %v3964 = vld [vmem:[%s3886 + $0x268] sm:$0xff]
      %v3965 = vld [vmem:[%s3886 + $0x270] sm:$0xff]
      %v3966 = vld [vmem:[%s3886 + $0x278] sm:$0xff]
      %v3967 = vld [vmem:[%s3886 + $0x280] sm:$0xff]
      %v3968 = vld [vmem:[%s3886 + $0x288] sm:$0xff]
      %v3969 = vld [vmem:[%s3886 + $0x290] sm:$0xff]
      %v3970 = vld [vmem:[%s3886 + $0x298] sm:$0xff]
      %v3971 = vld [vmem:[%s3886 + $0x2a0] sm:$0xff]
      %v3972 = vld [vmem:[%s3886 + $0x2a8] sm:$0xff]
      %v3973 = vld [vmem:[%s3886 + $0x2b0] sm:$0xff]
      %v3974 = vld [vmem:[%s3886 + $0x2b8] sm:$0xff]
      %v3975 = vld [vmem:[%s3886 + $0x2c0] sm:$0xff]
      %v3976 = vld [vmem:[%s3886 + $0x2c8] sm:$0xff]
      %v3977 = vld [vmem:[%s3886 + $0x2d0] sm:$0xff]
      %v3978 = vld [vmem:[%s3886 + $0x2d8] sm:$0xff]
      %v3979 = vld [vmem:[%s3886 + $0x2e0] sm:$0xff]
      %v3980 = vld [vmem:[%s3886 + $0x2e8] sm:$0xff]
      %v3981 = vld [vmem:[%s3886 + $0x2f0] sm:$0xff]
      %v3982 = vld [vmem:[%s3886 + $0x2f8] sm:$0xff]
      %v3983 = vld [vmem:[%s3886 + $0x300] sm:$0xff]
      %v3984 = vld [vmem:[%s3886 + $0x308] sm:$0xff]
      %v3985 = vld [vmem:[%s3886 + $0x310] sm:$0xff]
      %v3986 = vld [vmem:[%s3886 + $0x318] sm:$0xff]
      %v3987 = vld [vmem:[%s3886 + $0x320] sm:$0xff]
      %v3988 = vld [vmem:[%s3886 + $0x328] sm:$0xff]
      %v3989 = vld [vmem:[%s3886 + $0x330] sm:$0xff]
      %v3990 = vld [vmem:[%s3886 + $0x338] sm:$0xff]
      %v3991 = vld [vmem:[%s3886 + $0x340] sm:$0xff]
      %v3992 = vld [vmem:[%s3886 + $0x348] sm:$0xff]
      %v3993 = vld [vmem:[%s3886 + $0x350] sm:$0xff]
      %v3994 = vld [vmem:[%s3886 + $0x358] sm:$0xff]
      %v3995 = vld [vmem:[%s3886 + $0x360] sm:$0xff]
      %v3996 = vld [vmem:[%s3886 + $0x368] sm:$0xff]
      %v3997 = vld [vmem:[%s3886 + $0x370] sm:$0xff]
      %v3998 = vld [vmem:[%s3886 + $0x378] sm:$0xff]
      %v3999 = vld [vmem:[%s3886 + $0x380] sm:$0xff]
      %v4000 = vld [vmem:[%s3886 + $0x388] sm:$0xff]
      %v4001 = vld [vmem:[%s3886 + $0x390] sm:$0xff]
      %v4002 = vld [vmem:[%s3886 + $0x398] sm:$0xff]
      %v4003 = vld [vmem:[%s3886 + $0x3a0] sm:$0xff]
      %v4004 = vld [vmem:[%s3886 + $0x3a8] sm:$0xff]
      %v4005 = vld [vmem:[%s3886 + $0x3b0] sm:$0xff]
      %v4006 = vld [vmem:[%s3886 + $0x3b8] sm:$0xff]
      %v4007 = vld [vmem:[%s3886 + $0x3c0] sm:$0x1]
      %v4009 = vsel %vm296, %v3887, 0
      %v4012 = vsel %vm296, %v3888, 0
      %v4015 = vsel %vm296, %v3889, 0
      %v4018 = vsel %vm296, %v3890, 0
      %v4021 = vsel %vm296, %v3891, 0
      %v4024 = vsel %vm296, %v3892, 0
      %v4027 = vsel %vm296, %v3893, 0
      %v4030 = vsel %vm296, %v3894, 0
      %v4033 = vsel %vm296, %v3895, 0
      %v4036 = vsel %vm296, %v3896, 0
      %v4039 = vsel %vm296, %v3897, 0
      %v4042 = vsel %vm296, %v3898, 0
      %v4045 = vsel %vm296, %v3899, 0
      %v4048 = vsel %vm296, %v3900, 0
      %v4051 = vsel %vm296, %v3901, 0
      %v4054 = vsel %vm296, %v3902, 0
      %v4057 = vsel %vm296, %v3903, 0
      %v4060 = vsel %vm296, %v3904, 0
      %v4063 = vsel %vm296, %v3905, 0
      %v4066 = vsel %vm296, %v3906, 0
      %v4069 = vsel %vm296, %v3907, 0
      %v4072 = vsel %vm296, %v3908, 0
      %v4075 = vsel %vm296, %v3909, 0
      %v4078 = vsel %vm296, %v3910, 0
      %v4081 = vsel %vm296, %v3911, 0
      %v4084 = vsel %vm296, %v3912, 0
      %v4087 = vsel %vm296, %v3913, 0
      %v4090 = vsel %vm296, %v3914, 0
      %v4093 = vsel %vm296, %v3915, 0
      %v4096 = vsel %vm296, %v3916, 0
      %v4099 = vsel %vm296, %v3917, 0
      %v4102 = vsel %vm296, %v3918, 0
      %v4105 = vsel %vm296, %v3919, 0
      %v4108 = vsel %vm296, %v3920, 0
      %v4111 = vsel %vm296, %v3921, 0
      %v4114 = vsel %vm296, %v3922, 0
      %v4117 = vsel %vm296, %v3923, 0
      %v4120 = vsel %vm296, %v3924, 0
      %v4123 = vsel %vm296, %v3925, 0
      %v4126 = vsel %vm296, %v3926, 0
      %v4129 = vsel %vm296, %v3927, 0
      %v4132 = vsel %vm296, %v3928, 0
      %v4135 = vsel %vm296, %v3929, 0
      %v4138 = vsel %vm296, %v3930, 0
      %v4141 = vsel %vm296, %v3931, 0
      %v4144 = vsel %vm296, %v3932, 0
      %v4147 = vsel %vm296, %v3933, 0
      %v4150 = vsel %vm296, %v3934, 0
      %v4153 = vsel %vm296, %v3935, 0
      %v4156 = vsel %vm296, %v3936, 0
      %v4159 = vsel %vm296, %v3937, 0
      %v4162 = vsel %vm296, %v3938, 0
      %v4165 = vsel %vm296, %v3939, 0
      %v4168 = vsel %vm296, %v3940, 0
      %v4171 = vsel %vm296, %v3941, 0
      %v4174 = vsel %vm296, %v3942, 0
      %v4177 = vsel %vm296, %v3943, 0
      %v4180 = vsel %vm296, %v3944, 0
      %v4183 = vsel %vm296, %v3945, 0
      %v4186 = vsel %vm296, %v3946, 0
      %v4189 = vsel %vm296, %v3947, 0
      %v4192 = vsel %vm296, %v3948, 0
      %v4195 = vsel %vm296, %v3949, 0
      %v4198 = vsel %vm296, %v3950, 0
      %v4201 = vsel %vm296, %v3951, 0
      %v4204 = vsel %vm296, %v3952, 0
      %v4207 = vsel %vm296, %v3953, 0
      %v4210 = vsel %vm296, %v3954, 0
      %v4213 = vsel %vm296, %v3955, 0
      %v4216 = vsel %vm296, %v3956, 0
      %v4219 = vsel %vm296, %v3957, 0
      %v4222 = vsel %vm296, %v3958, 0
      %v4225 = vsel %vm296, %v3959, 0
      %v4228 = vsel %vm296, %v3960, 0
      %v4231 = vsel %vm296, %v3961, 0
      %v4234 = vsel %vm296, %v3962, 0
      %v4237 = vsel %vm296, %v3963, 0
      %v4240 = vsel %vm296, %v3964, 0
      %v4243 = vsel %vm296, %v3965, 0
      %v4246 = vsel %vm296, %v3966, 0
      %v4249 = vsel %vm296, %v3967, 0
      %v4252 = vsel %vm296, %v3968, 0
      %v4255 = vsel %vm296, %v3969, 0
      %v4258 = vsel %vm296, %v3970, 0
      %v4261 = vsel %vm296, %v3971, 0
      %v4264 = vsel %vm296, %v3972, 0
      %v4267 = vsel %vm296, %v3973, 0
      %v4270 = vsel %vm296, %v3974, 0
      %v4273 = vsel %vm296, %v3975, 0
      %v4276 = vsel %vm296, %v3976, 0
      %v4279 = vsel %vm296, %v3977, 0
      %v4282 = vsel %vm296, %v3978, 0
      %v4285 = vsel %vm296, %v3979, 0
      %v4288 = vsel %vm296, %v3980, 0
      %v4291 = vsel %vm296, %v3981, 0
      %v4294 = vsel %vm296, %v3982, 0
      %v4297 = vsel %vm296, %v3983, 0
      %v4300 = vsel %vm296, %v3984, 0
      %v4303 = vsel %vm296, %v3985, 0
      %v4306 = vsel %vm296, %v3986, 0
      %v4309 = vsel %vm296, %v3987, 0
      %v4312 = vsel %vm296, %v3988, 0
      %v4315 = vsel %vm296, %v3989, 0
      %v4318 = vsel %vm296, %v3990, 0
      %v4321 = vsel %vm296, %v3991, 0
      %v4324 = vsel %vm296, %v3992, 0
      %v4327 = vsel %vm296, %v3993, 0
      %v4330 = vsel %vm296, %v3994, 0
      %v4333 = vsel %vm296, %v3995, 0
      %v4336 = vsel %vm296, %v3996, 0
      %v4339 = vsel %vm296, %v3997, 0
      %v4342 = vsel %vm296, %v3998, 0
      %v4345 = vsel %vm296, %v3999, 0
      %v4348 = vsel %vm296, %v4000, 0
      %v4351 = vsel %vm296, %v4001, 0
      %v4354 = vsel %vm296, %v4002, 0
      %v4357 = vsel %vm296, %v4003, 0
      %v4360 = vsel %vm296, %v4004, 0
      %v4363 = vsel %vm296, %v4005, 0
      %v4366 = vsel %vm296, %v4006, 0
      %v4369 = vsel %vm296, %v4007, 0
      %4371 = vmatprep.subr.mxu0 0.0
      %4372 = vmatpush1.msra.mxu0 %v171
      %4373 = vmatprep.subr.mxu0 0.0
      %4374 = vmatpush1.msra.mxu0 %v172
      %4375 = vmatprep.subr.mxu0 0.0
      %4376 = vmatpush1.msra.mxu0 %v173
      %4377 = vmatprep.subr.mxu0 0.0
      %4378 = vmatpush1.msra.mxu0 %v662
      %4379 = vmatprep.subr.mxu0 0.0
      %4380 = vmatpush1.msra.mxu0 0.0
      %4381 = vmatprep.subr.mxu0 0.0
      %4382 = vmatpush1.msra.mxu0 0.0
      %4383 = vmatprep.subr.mxu0 0.0
      %4384 = vmatpush1.msra.mxu0 0.0
      %4385 = vmatprep.subr.mxu0 0.0
      %4386 = vmatpush1.msra.mxu0 0.0
      %4387 = vmatprep.subr.mxu0 0.0
      %4388 = vmatpush1.msra.mxu0 0.0
      %4389 = vmatprep.subr.mxu0 0.0
      %4390 = vmatpush1.msra.mxu0 0.0
      %4391 = vmatprep.subr.mxu0 0.0
      %4392 = vmatpush1.msra.mxu0 0.0
      %4393 = vmatprep.subr.mxu0 0.0
      %4394 = vmatpush1.msra.mxu0 0.0
      %4395 = vmatprep.subr.mxu0 0.0
      %4396 = vmatpush1.msra.mxu0 0.0
      %4397 = vmatprep.subr.mxu0 0.0
      %4398 = vmatpush1.msra.mxu0 0.0
      %4399 = vmatprep.subr.mxu0 0.0
      %4400 = vmatpush1.msra.mxu0 0.0
      %4401 = vmatprep.subr.mxu0 0.0
      %4402 = vmatpush1.msra.mxu0 0.0
      %4403 = vmatprep.subr.mxu0 0.0
      %4404 = vmatpush1.msra.mxu0 0.0
      %4405 = vmatprep.subr.mxu0 0.0
      %4406 = vmatpush1.msra.mxu0 0.0
      %4407 = vmatprep.subr.mxu0 0.0
      %4408 = vmatpush1.msra.mxu0 0.0
      %4409 = vmatprep.subr.mxu0 0.0
      %4410 = vmatpush1.msra.mxu0 0.0
      %4411 = vmatprep.subr.mxu0 0.0
      %4412 = vmatpush1.msra.mxu0 0.0
      %4413 = vmatprep.subr.mxu0 0.0
      %4414 = vmatpush1.msra.mxu0 0.0
      %4415 = vmatprep.subr.mxu0 0.0
      %4416 = vmatpush1.msra.mxu0 0.0
      %4417 = vmatprep.subr.mxu0 0.0
      %4418 = vmatpush1.msra.mxu0 0.0
      %4419 = vmatprep.subr.mxu0 0.0
      %4420 = vmatpush1.msra.mxu0 0.0
      %4421 = vmatprep.subr.mxu0 0.0
      %4422 = vmatpush1.msra.mxu0 0.0
      %4423 = vmatprep.subr.mxu0 0.0
      %4424 = vmatpush1.msra.mxu0 0.0
      %4425 = vmatprep.subr.mxu0 0.0
      %4426 = vmatpush1.msra.mxu0 0.0
      %4427 = vmatprep.subr.mxu0 0.0
      %4428 = vmatpush1.msra.mxu0 0.0
      %4429 = vmatprep.subr.mxu0 0.0
      %4430 = vmatpush1.msra.mxu0 0.0
      %4431 = vmatprep.subr.mxu0 0.0
      %4432 = vmatpush1.msra.mxu0 0.0
      %4433 = vmatprep.subr.mxu0 0.0
      %4434 = vmatpush1.msra.mxu0 0.0
      %4435 = vmatprep.mubr.f32.mxu0 0.0
      %4436 = vmatmul.mubr.f32.gmra.mrb[0].mxu0 %v4009
      %v4437 = vpop.f32.mrb[0].mxu0
      %v4438 = vadd.f32 0.0, %v4437
      %v4439 = vpop.f32.mrb[0].mxu0
      %4440 = vmatprep.mubr.f32.mxu0 0.0
      %4441 = vmatmul.mubr.f32.gmra.mrb[0].mxu0 %v4012
      %v4442 = vpop.f32.mrb[0].mxu0
      %v4443 = vadd.f32 0.0, %v4442
      %v4444 = vpop.f32.mrb[0].mxu0
      %4445 = vmatprep.mubr.f32.mxu0 0.0
      %4446 = vmatmul.mubr.f32.gmra.mrb[0].mxu0 %v4015
      %v4447 = vpop.f32.mrb[0].mxu0
      %v4448 = vadd.f32 0.0, %v4447
      %v4449 = vpop.f32.mrb[0].mxu0
      %4450 = vmatprep.mubr.f32.mxu0 0.0
      %4451 = vmatmul.mubr.f32.gmra.mrb[0].mxu0 %v4018
      %v4452 = vpop.f32.mrb[0].mxu0
      %v4453 = vadd.f32 0.0, %v4452
      %v4454 = vpop.f32.mrb[0].mxu0
      %4455 = vmatprep.mubr.f32.mxu0 0.0
      %4456 = vmatmul.mubr.f32.gmra.mrb[0].mxu0 %v4021
      %v4457 = vpop.f32.mrb[0].mxu0
      %v4458 = vadd.f32 0.0, %v4457
      %v4459 = vpop.f32.mrb[0].mxu0
      %4460 = vmatprep.mubr.f32.mxu0 0.0
      %4461 = vmatmul.mubr.f32.gmra.mrb[0].mxu0 %v4024
      %v4462 = vpop.f32.mrb[0].mxu0
      %v4463 = vadd.f32 0.0, %v4462
      %v4464 = vpop.f32.mrb[0].mxu0
      %4465 = vmatprep.mubr.f32.mxu0 0.0
      %4466 = vmatmul.mubr.f32.gmra.mrb[0].mxu0 %v4027
      %v4467 = vpop.f32.mrb[0].mxu0
      %v4468 = vadd.f32 0.0, %v4467
      %v4469 = vpop.f32.mrb[0].mxu0
      %4470 = vmatprep.mubr.f32.mxu0 0.0
      %4471 = vmatmul.mubr.f32.gmra.mrb[0].mxu0 %v4030
      %v4472 = vpop.f32.mrb[0].mxu0
      %v4473 = vadd.f32 0.0, %v4472
      %v4474 = vpop.f32.mrb[0].mxu0
      %4475 = vmatprep.mubr.f32.mxu0 0.0
      %4476 = vmatmul.mubr.f32.gmra.mrb[0].mxu0 %v4033
      %v4477 = vpop.f32.mrb[0].mxu0
      %v4478 = vadd.f32 0.0, %v4477
      %v4479 = vpop.f32.mrb[0].mxu0
      %4480 = vmatprep.mubr.f32.mxu0 0.0
      %4481 = vmatmul.mubr.f32.gmra.mrb[0].mxu0 %v4036
      %v4482 = vpop.f32.mrb[0].mxu0
      %v4483 = vadd.f32 0.0, %v4482
      %v4484 = vpop.f32.mrb[0].mxu0
      %4485 = vmatprep.mubr.f32.mxu0 0.0
      %4486 = vmatmul.mubr.f32.gmra.mrb[0].mxu0 %v4039
      %v4487 = vpop.f32.mrb[0].mxu0
      %v4488 = vadd.f32 0.0, %v4487
      %v4489 = vpop.f32.mrb[0].mxu0
      %4490 = vmatprep.mubr.f32.mxu0 0.0
      %4491 = vmatmul.mubr.f32.gmra.mrb[0].mxu0 %v4042
      %v4492 = vpop.f32.mrb[0].mxu0
      %v4493 = vadd.f32 0.0, %v4492
      %v4494 = vpop.f32.mrb[0].mxu0
      %4495 = vmatprep.mubr.f32.mxu0 0.0
      %4496 = vmatmul.mubr.f32.gmra.mrb[0].mxu0 %v4045
      %v4497 = vpop.f32.mrb[0].mxu0
      %v4498 = vadd.f32 0.0, %v4497
      %v4499 = vpop.f32.mrb[0].mxu0
      %4500 = vmatprep.mubr.f32.mxu0 0.0
      %4501 = vmatmul.mubr.f32.gmra.mrb[0].mxu0 %v4048
      %v4502 = vpop.f32.mrb[0].mxu0
      %v4503 = vadd.f32 0.0, %v4502
      %v4504 = vpop.f32.mrb[0].mxu0
      %4505 = vmatprep.mubr.f32.mxu0 0.0
      %4506 = vmatmul.mubr.f32.gmra.mrb[0].mxu0 %v4051
      %v4507 = vpop.f32.mrb[0].mxu0
      %v4508 = vadd.f32 0.0, %v4507
      %v4509 = vpop.f32.mrb[0].mxu0
      %4510 = vmatprep.mubr.f32.mxu0 0.0
      %4511 = vmatmul.mubr.f32.gmra.mrb[0].mxu0 %v4054
      %v4512 = vpop.f32.mrb[0].mxu0
      %v4513 = vadd.f32 0.0, %v4512
      %v4514 = vpop.f32.mrb[0].mxu0
      %4515 = vmatprep.mubr.f32.mxu0 0.0
      %4516 = vmatmul.mubr.f32.gmra.mrb[0].mxu0 %v4057
      %v4517 = vpop.f32.mrb[0].mxu0
      %v4518 = vadd.f32 0.0, %v4517
      %v4519 = vpop.f32.mrb[0].mxu0
      %4520 = vmatprep.mubr.f32.mxu0 0.0
      %4521 = vmatmul.mubr.f32.gmra.mrb[0].mxu0 %v4060
      %v4522 = vpop.f32.mrb[0].mxu0
      %v4523 = vadd.f32 0.0, %v4522
      %v4524 = vpop.f32.mrb[0].mxu0
      %4525 = vmatprep.mubr.f32.mxu0 0.0
      %4526 = vmatmul.mubr.f32.gmra.mrb[0].mxu0 %v4063
      %v4527 = vpop.f32.mrb[0].mxu0
      %v4528 = vadd.f32 0.0, %v4527
      %v4529 = vpop.f32.mrb[0].mxu0
      %4530 = vmatprep.mubr.f32.mxu0 0.0
      %4531 = vmatmul.mubr.f32.gmra.mrb[0].mxu0 %v4066
      %v4532 = vpop.f32.mrb[0].mxu0
      %v4533 = vadd.f32 0.0, %v4532
      %v4534 = vpop.f32.mrb[0].mxu0
      %4535 = vmatprep.mubr.f32.mxu0 0.0
      %4536 = vmatmul.mubr.f32.gmra.mrb[0].mxu0 %v4069
      %v4537 = vpop.f32.mrb[0].mxu0
      %v4538 = vadd.f32 0.0, %v4537
      %v4539 = vpop.f32.mrb[0].mxu0
      %4540 = vmatprep.mubr.f32.mxu0 0.0
      %4541 = vmatmul.mubr.f32.gmra.mrb[0].mxu0 %v4072
      %v4542 = vpop.f32.mrb[0].mxu0
      %v4543 = vadd.f32 0.0, %v4542
      %v4544 = vpop.f32.mrb[0].mxu0
      %4545 = vmatprep.mubr.f32.mxu0 0.0
      %4546 = vmatmul.mubr.f32.gmra.mrb[0].mxu0 %v4075
      %v4547 = vpop.f32.mrb[0].mxu0
      %v4548 = vadd.f32 0.0, %v4547
      %v4549 = vpop.f32.mrb[0].mxu0
      %4550 = vmatprep.mubr.f32.mxu0 0.0
      %4551 = vmatmul.mubr.f32.gmra.mrb[0].mxu0 %v4078
      %v4552 = vpop.f32.mrb[0].mxu0
      %v4553 = vadd.f32 0.0, %v4552
      %v4554 = vpop.f32.mrb[0].mxu0
      %4555 = vmatprep.mubr.f32.mxu0 0.0
      %4556 = vmatmul.mubr.f32.gmra.mrb[0].mxu0 %v4081
      %v4557 = vpop.f32.mrb[0].mxu0
      %v4558 = vadd.f32 0.0, %v4557
      %v4559 = vpop.f32.mrb[0].mxu0
      %4560 = vmatprep.mubr.f32.mxu0 0.0
      %4561 = vmatmul.mubr.f32.gmra.mrb[0].mxu0 %v4084
      %v4562 = vpop.f32.mrb[0].mxu0
      %v4563 = vadd.f32 0.0, %v4562
      %v4564 = vpop.f32.mrb[0].mxu0
      %4565 = vmatprep.mubr.f32.mxu0 0.0
      %4566 = vmatmul.mubr.f32.gmra.mrb[0].mxu0 %v4087
      %v4567 = vpop.f32.mrb[0].mxu0
      %v4568 = vadd.f32 0.0, %v4567
      %v4569 = vpop.f32.mrb[0].mxu0
      %4570 = vmatprep.mubr.f32.mxu0 0.0
      %4571 = vmatmul.mubr.f32.gmra.mrb[0].mxu0 %v4090
      %v4572 = vpop.f32.mrb[0].mxu0
      %v4573 = vadd.f32 0.0, %v4572
      %v4574 = vpop.f32.mrb[0].mxu0
      %4575 = vmatprep.mubr.f32.mxu0 0.0
      %4576 = vmatmul.mubr.f32.gmra.mrb[0].mxu0 %v4093
      %v4577 = vpop.f32.mrb[0].mxu0
      %v4578 = vadd.f32 0.0, %v4577
      %v4579 = vpop.f32.mrb[0].mxu0
      %4580 = vmatprep.mubr.f32.mxu0 0.0
      %4581 = vmatmul.mubr.f32.gmra.mrb[0].mxu0 %v4096
      %v4582 = vpop.f32.mrb[0].mxu0
      %v4583 = vadd.f32 0.0, %v4582
      %v4584 = vpop.f32.mrb[0].mxu0
      %4585 = vmatprep.mubr.f32.mxu0 0.0
      %4586 = vmatmul.mubr.f32.gmra.mrb[0].mxu0 %v4099
      %v4587 = vpop.f32.mrb[0].mxu0
      %v4588 = vadd.f32 0.0, %v4587
      %v4589 = vpop.f32.mrb[0].mxu0
      %4590 = vmatprep.mubr.f32.mxu0 0.0
      %4591 = vmatmul.mubr.f32.gmra.mrb[0].mxu0 %v4102
      %v4592 = vpop.f32.mrb[0].mxu0
      %v4593 = vadd.f32 0.0, %v4592
      %v4594 = vpop.f32.mrb[0].mxu0
      %4595 = vmatprep.mubr.f32.mxu0 0.0
      %4596 = vmatmul.mubr.f32.gmra.mrb[0].mxu0 %v4105
      %v4597 = vpop.f32.mrb[0].mxu0
      %v4598 = vadd.f32 0.0, %v4597
      %v4599 = vpop.f32.mrb[0].mxu0
      %4600 = vmatprep.mubr.f32.mxu0 0.0
      %4601 = vmatmul.mubr.f32.gmra.mrb[0].mxu0 %v4108
      %v4602 = vpop.f32.mrb[0].mxu0
      %v4603 = vadd.f32 0.0, %v4602
      %v4604 = vpop.f32.mrb[0].mxu0
      %4605 = vmatprep.mubr.f32.mxu0 0.0
      %4606 = vmatmul.mubr.f32.gmra.mrb[0].mxu0 %v4111
      %v4607 = vpop.f32.mrb[0].mxu0
      %v4608 = vadd.f32 0.0, %v4607
      %v4609 = vpop.f32.mrb[0].mxu0
      %4610 = vmatprep.mubr.f32.mxu0 0.0
      %4611 = vmatmul.mubr.f32.gmra.mrb[0].mxu0 %v4114
      %v4612 = vpop.f32.mrb[0].mxu0
      %v4613 = vadd.f32 0.0, %v4612
      %v4614 = vpop.f32.mrb[0].mxu0
      %4615 = vmatprep.mubr.f32.mxu0 0.0
      %4616 = vmatmul.mubr.f32.gmra.mrb[0].mxu0 %v4117
      %v4617 = vpop.f32.mrb[0].mxu0
      %v4618 = vadd.f32 0.0, %v4617
      %v4619 = vpop.f32.mrb[0].mxu0
      %4620 = vmatprep.mubr.f32.mxu0 0.0
      %4621 = vmatmul.mubr.f32.gmra.mrb[0].mxu0 %v4120
      %v4622 = vpop.f32.mrb[0].mxu0
      %v4623 = vadd.f32 0.0, %v4622
      %v4624 = vpop.f32.mrb[0].mxu0
      %4625 = vmatprep.mubr.f32.mxu0 0.0
      %4626 = vmatmul.mubr.f32.gmra.mrb[0].mxu0 %v4123
      %v4627 = vpop.f32.mrb[0].mxu0
      %v4628 = vadd.f32 0.0, %v4627
      %v4629 = vpop.f32.mrb[0].mxu0
      %4630 = vmatprep.mubr.f32.mxu0 0.0
      %4631 = vmatmul.mubr.f32.gmra.mrb[0].mxu0 %v4126
      %v4632 = vpop.f32.mrb[0].mxu0
      %v4633 = vadd.f32 0.0, %v4632
      %v4634 = vpop.f32.mrb[0].mxu0
      %4635 = vmatprep.mubr.f32.mxu0 0.0
      %4636 = vmatmul.mubr.f32.gmra.mrb[0].mxu0 %v4129
      %v4637 = vpop.f32.mrb[0].mxu0
      %v4638 = vadd.f32 0.0, %v4637
      %v4639 = vpop.f32.mrb[0].mxu0
      %4640 = vmatprep.mubr.f32.mxu0 0.0
      %4641 = vmatmul.mubr.f32.gmra.mrb[0].mxu0 %v4132
      %v4642 = vpop.f32.mrb[0].mxu0
      %v4643 = vadd.f32 0.0, %v4642
      %v4644 = vpop.f32.mrb[0].mxu0
      %4645 = vmatprep.mubr.f32.mxu0 0.0
      %4646 = vmatmul.mubr.f32.gmra.mrb[0].mxu0 %v4135
      %v4647 = vpop.f32.mrb[0].mxu0
      %v4648 = vadd.f32 0.0, %v4647
      %v4649 = vpop.f32.mrb[0].mxu0
      %4650 = vmatprep.mubr.f32.mxu0 0.0
      %4651 = vmatmul.mubr.f32.gmra.mrb[0].mxu0 %v4138
      %v4652 = vpop.f32.mrb[0].mxu0
      %v4653 = vadd.f32 0.0, %v4652
      %v4654 = vpop.f32.mrb[0].mxu0
      %4655 = vmatprep.mubr.f32.mxu0 0.0
      %4656 = vmatmul.mubr.f32.gmra.mrb[0].mxu0 %v4141
      %v4657 = vpop.f32.mrb[0].mxu0
      %v4658 = vadd.f32 0.0, %v4657
      %v4659 = vpop.f32.mrb[0].mxu0
      %4660 = vmatprep.mubr.f32.mxu0 0.0
      %4661 = vmatmul.mubr.f32.gmra.mrb[0].mxu0 %v4144
      %v4662 = vpop.f32.mrb[0].mxu0
      %v4663 = vadd.f32 0.0, %v4662
      %v4664 = vpop.f32.mrb[0].mxu0
      %4665 = vmatprep.mubr.f32.mxu0 0.0
      %4666 = vmatmul.mubr.f32.gmra.mrb[0].mxu0 %v4147
      %v4667 = vpop.f32.mrb[0].mxu0
      %v4668 = vadd.f32 0.0, %v4667
      %v4669 = vpop.f32.mrb[0].mxu0
      %4670 = vmatprep.mubr.f32.mxu0 0.0
      %4671 = vmatmul.mubr.f32.gmra.mrb[0].mxu0 %v4150
      %v4672 = vpop.f32.mrb[0].mxu0
      %v4673 = vadd.f32 0.0, %v4672
      %v4674 = vpop.f32.mrb[0].mxu0
      %4675 = vmatprep.mubr.f32.mxu0 0.0
      %4676 = vmatmul.mubr.f32.gmra.mrb[0].mxu0 %v4153
      %v4677 = vpop.f32.mrb[0].mxu0
      %v4678 = vadd.f32 0.0, %v4677
      %v4679 = vpop.f32.mrb[0].mxu0
      %4680 = vmatprep.mubr.f32.mxu0 0.0
      %4681 = vmatmul.mubr.f32.gmra.mrb[0].mxu0 %v4156
      %v4682 = vpop.f32.mrb[0].mxu0
      %v4683 = vadd.f32 0.0, %v4682
      %v4684 = vpop.f32.mrb[0].mxu0
      %4685 = vmatprep.mubr.f32.mxu0 0.0
      %4686 = vmatmul.mubr.f32.gmra.mrb[0].mxu0 %v4159
      %v4687 = vpop.f32.mrb[0].mxu0
      %v4688 = vadd.f32 0.0, %v4687
      %v4689 = vpop.f32.mrb[0].mxu0
      %4690 = vmatprep.mubr.f32.mxu0 0.0
      %4691 = vmatmul.mubr.f32.gmra.mrb[0].mxu0 %v4162
      %v4692 = vpop.f32.mrb[0].mxu0
      %v4693 = vadd.f32 0.0, %v4692
      %v4694 = vpop.f32.mrb[0].mxu0
      %4695 = vmatprep.mubr.f32.mxu0 0.0
      %4696 = vmatmul.mubr.f32.gmra.mrb[0].mxu0 %v4165
      %v4697 = vpop.f32.mrb[0].mxu0
      %v4698 = vadd.f32 0.0, %v4697
      %v4699 = vpop.f32.mrb[0].mxu0
      %4700 = vmatprep.mubr.f32.mxu0 0.0
      %4701 = vmatmul.mubr.f32.gmra.mrb[0].mxu0 %v4168
      %v4702 = vpop.f32.mrb[0].mxu0
      %v4703 = vadd.f32 0.0, %v4702
      %v4704 = vpop.f32.mrb[0].mxu0
      %4705 = vmatprep.mubr.f32.mxu0 0.0
      %4706 = vmatmul.mubr.f32.gmra.mrb[0].mxu0 %v4171
      %v4707 = vpop.f32.mrb[0].mxu0
      %v4708 = vadd.f32 0.0, %v4707
      %v4709 = vpop.f32.mrb[0].mxu0
      %4710 = vmatprep.mubr.f32.mxu0 0.0
      %4711 = vmatmul.mubr.f32.gmra.mrb[0].mxu0 %v4174
      %v4712 = vpop.f32.mrb[0].mxu0
      %v4713 = vadd.f32 0.0, %v4712
      %v4714 = vpop.f32.mrb[0].mxu0
      %4715 = vmatprep.mubr.f32.mxu0 0.0
      %4716 = vmatmul.mubr.f32.gmra.mrb[0].mxu0 %v4177
      %v4717 = vpop.f32.mrb[0].mxu0
      %v4718 = vadd.f32 0.0, %v4717
      %v4719 = vpop.f32.mrb[0].mxu0
      %4720 = vmatprep.mubr.f32.mxu0 0.0
      %4721 = vmatmul.mubr.f32.gmra.mrb[0].mxu0 %v4180
      %v4722 = vpop.f32.mrb[0].mxu0
      %v4723 = vadd.f32 0.0, %v4722
      %v4724 = vpop.f32.mrb[0].mxu0
      %4725 = vmatprep.mubr.f32.mxu0 0.0
      %4726 = vmatmul.mubr.f32.gmra.mrb[0].mxu0 %v4183
      %v4727 = vpop.f32.mrb[0].mxu0
      %v4728 = vadd.f32 0.0, %v4727
      %v4729 = vpop.f32.mrb[0].mxu0
      %4730 = vmatprep.mubr.f32.mxu0 0.0
      %4731 = vmatmul.mubr.f32.gmra.mrb[0].mxu0 %v4186
      %v4732 = vpop.f32.mrb[0].mxu0
      %v4733 = vadd.f32 0.0, %v4732
      %v4734 = vpop.f32.mrb[0].mxu0
      %4735 = vmatprep.mubr.f32.mxu0 0.0
      %4736 = vmatmul.mubr.f32.gmra.mrb[0].mxu0 %v4189
      %v4737 = vpop.f32.mrb[0].mxu0
      %v4738 = vadd.f32 0.0, %v4737
      %v4739 = vpop.f32.mrb[0].mxu0
      %4740 = vmatprep.mubr.f32.mxu0 0.0
      %4741 = vmatmul.mubr.f32.gmra.mrb[0].mxu0 %v4192
      %v4742 = vpop.f32.mrb[0].mxu0
      %v4743 = vadd.f32 0.0, %v4742
      %v4744 = vpop.f32.mrb[0].mxu0
      %4745 = vmatprep.mubr.f32.mxu0 0.0
      %4746 = vmatmul.mubr.f32.gmra.mrb[0].mxu0 %v4195
      %v4747 = vpop.f32.mrb[0].mxu0
      %v4748 = vadd.f32 0.0, %v4747
      %v4749 = vpop.f32.mrb[0].mxu0
      %4750 = vmatprep.mubr.f32.mxu0 0.0
      %4751 = vmatmul.mubr.f32.gmra.mrb[0].mxu0 %v4198
      %v4752 = vpop.f32.mrb[0].mxu0
      %v4753 = vadd.f32 0.0, %v4752
      %v4754 = vpop.f32.mrb[0].mxu0
      %4755 = vmatprep.mubr.f32.mxu0 0.0
      %4756 = vmatmul.mubr.f32.gmra.mrb[0].mxu0 %v4201
      %v4757 = vpop.f32.mrb[0].mxu0
      %v4758 = vadd.f32 0.0, %v4757
      %v4759 = vpop.f32.mrb[0].mxu0
      %4760 = vmatprep.mubr.f32.mxu0 0.0
      %4761 = vmatmul.mubr.f32.gmra.mrb[0].mxu0 %v4204
      %v4762 = vpop.f32.mrb[0].mxu0
      %v4763 = vadd.f32 0.0, %v4762
      %v4764 = vpop.f32.mrb[0].mxu0
      %4765 = vmatprep.mubr.f32.mxu0 0.0
      %4766 = vmatmul.mubr.f32.gmra.mrb[0].mxu0 %v4207
      %v4767 = vpop.f32.mrb[0].mxu0
      %v4768 = vadd.f32 0.0, %v4767
      %v4769 = vpop.f32.mrb[0].mxu0
      %4770 = vmatprep.mubr.f32.mxu0 0.0
      %4771 = vmatmul.mubr.f32.gmra.mrb[0].mxu0 %v4210
      %v4772 = vpop.f32.mrb[0].mxu0
      %v4773 = vadd.f32 0.0, %v4772
      %v4774 = vpop.f32.mrb[0].mxu0
      %4775 = vmatprep.mubr.f32.mxu0 0.0
      %4776 = vmatmul.mubr.f32.gmra.mrb[0].mxu0 %v4213
      %v4777 = vpop.f32.mrb[0].mxu0
      %v4778 = vadd.f32 0.0, %v4777
      %v4779 = vpop.f32.mrb[0].mxu0
      %4780 = vmatprep.mubr.f32.mxu0 0.0
      %4781 = vmatmul.mubr.f32.gmra.mrb[0].mxu0 %v4216
      %v4782 = vpop.f32.mrb[0].mxu0
      %v4783 = vadd.f32 0.0, %v4782
      %v4784 = vpop.f32.mrb[0].mxu0
      %4785 = vmatprep.mubr.f32.mxu0 0.0
      %4786 = vmatmul.mubr.f32.gmra.mrb[0].mxu0 %v4219
      %v4787 = vpop.f32.mrb[0].mxu0
      %v4788 = vadd.f32 0.0, %v4787
      %v4789 = vpop.f32.mrb[0].mxu0
      %4790 = vmatprep.mubr.f32.mxu0 0.0
      %4791 = vmatmul.mubr.f32.gmra.mrb[0].mxu0 %v4222
      %v4792 = vpop.f32.mrb[0].mxu0
      %v4793 = vadd.f32 0.0, %v4792
      %v4794 = vpop.f32.mrb[0].mxu0
      %4795 = vmatprep.mubr.f32.mxu0 0.0
      %4796 = vmatmul.mubr.f32.gmra.mrb[0].mxu0 %v4225
      %v4797 = vpop.f32.mrb[0].mxu0
      %v4798 = vadd.f32 0.0, %v4797
      %v4799 = vpop.f32.mrb[0].mxu0
      %4800 = vmatprep.mubr.f32.mxu0 0.0
      %4801 = vmatmul.mubr.f32.gmra.mrb[0].mxu0 %v4228
      %v4802 = vpop.f32.mrb[0].mxu0
      %v4803 = vadd.f32 0.0, %v4802
      %v4804 = vpop.f32.mrb[0].mxu0
      %4805 = vmatprep.mubr.f32.mxu0 0.0
      %4806 = vmatmul.mubr.f32.gmra.mrb[0].mxu0 %v4231
      %v4807 = vpop.f32.mrb[0].mxu0
      %v4808 = vadd.f32 0.0, %v4807
      %v4809 = vpop.f32.mrb[0].mxu0
      %4810 = vmatprep.mubr.f32.mxu0 0.0
      %4811 = vmatmul.mubr.f32.gmra.mrb[0].mxu0 %v4234
      %v4812 = vpop.f32.mrb[0].mxu0
      %v4813 = vadd.f32 0.0, %v4812
      %v4814 = vpop.f32.mrb[0].mxu0
      %4815 = vmatprep.mubr.f32.mxu0 0.0
      %4816 = vmatmul.mubr.f32.gmra.mrb[0].mxu0 %v4237
      %v4817 = vpop.f32.mrb[0].mxu0
      %v4818 = vadd.f32 0.0, %v4817
      %v4819 = vpop.f32.mrb[0].mxu0
      %4820 = vmatprep.mubr.f32.mxu0 0.0
      %4821 = vmatmul.mubr.f32.gmra.mrb[0].mxu0 %v4240
      %v4822 = vpop.f32.mrb[0].mxu0
      %v4823 = vadd.f32 0.0, %v4822
      %v4824 = vpop.f32.mrb[0].mxu0
      %4825 = vmatprep.mubr.f32.mxu0 0.0
      %4826 = vmatmul.mubr.f32.gmra.mrb[0].mxu0 %v4243
      %v4827 = vpop.f32.mrb[0].mxu0
      %v4828 = vadd.f32 0.0, %v4827
      %v4829 = vpop.f32.mrb[0].mxu0
      %4830 = vmatprep.mubr.f32.mxu0 0.0
      %4831 = vmatmul.mubr.f32.gmra.mrb[0].mxu0 %v4246
      %v4832 = vpop.f32.mrb[0].mxu0
      %v4833 = vadd.f32 0.0, %v4832
      %v4834 = vpop.f32.mrb[0].mxu0
      %4835 = vmatprep.mubr.f32.mxu0 0.0
      %4836 = vmatmul.mubr.f32.gmra.mrb[0].mxu0 %v4249
      %v4837 = vpop.f32.mrb[0].mxu0
      %v4838 = vadd.f32 0.0, %v4837
      %v4839 = vpop.f32.mrb[0].mxu0
      %4840 = vmatprep.mubr.f32.mxu0 0.0
      %4841 = vmatmul.mubr.f32.gmra.mrb[0].mxu0 %v4252
      %v4842 = vpop.f32.mrb[0].mxu0
      %v4843 = vadd.f32 0.0, %v4842
      %v4844 = vpop.f32.mrb[0].mxu0
      %4845 = vmatprep.mubr.f32.mxu0 0.0
      %4846 = vmatmul.mubr.f32.gmra.mrb[0].mxu0 %v4255
      %v4847 = vpop.f32.mrb[0].mxu0
      %v4848 = vadd.f32 0.0, %v4847
      %v4849 = vpop.f32.mrb[0].mxu0
      %4850 = vmatprep.mubr.f32.mxu0 0.0
      %4851 = vmatmul.mubr.f32.gmra.mrb[0].mxu0 %v4258
      %v4852 = vpop.f32.mrb[0].mxu0
      %v4853 = vadd.f32 0.0, %v4852
      %v4854 = vpop.f32.mrb[0].mxu0
      %4855 = vmatprep.mubr.f32.mxu0 0.0
      %4856 = vmatmul.mubr.f32.gmra.mrb[0].mxu0 %v4261
      %v4857 = vpop.f32.mrb[0].mxu0
      %v4858 = vadd.f32 0.0, %v4857
      %v4859 = vpop.f32.mrb[0].mxu0
      %4860 = vmatprep.mubr.f32.mxu0 0.0
      %4861 = vmatmul.mubr.f32.gmra.mrb[0].mxu0 %v4264
      %v4862 = vpop.f32.mrb[0].mxu0
      %v4863 = vadd.f32 0.0, %v4862
      %v4864 = vpop.f32.mrb[0].mxu0
      %4865 = vmatprep.mubr.f32.mxu0 0.0
      %4866 = vmatmul.mubr.f32.gmra.mrb[0].mxu0 %v4267
      %v4867 = vpop.f32.mrb[0].mxu0
      %v4868 = vadd.f32 0.0, %v4867
      %v4869 = vpop.f32.mrb[0].mxu0
      %4870 = vmatprep.mubr.f32.mxu0 0.0
      %4871 = vmatmul.mubr.f32.gmra.mrb[0].mxu0 %v4270
      %v4872 = vpop.f32.mrb[0].mxu0
      %v4873 = vadd.f32 0.0, %v4872
      %v4874 = vpop.f32.mrb[0].mxu0
      %4875 = vmatprep.mubr.f32.mxu0 0.0
      %4876 = vmatmul.mubr.f32.gmra.mrb[0].mxu0 %v4273
      %v4877 = vpop.f32.mrb[0].mxu0
      %v4878 = vadd.f32 0.0, %v4877
      %v4879 = vpop.f32.mrb[0].mxu0
      %4880 = vmatprep.mubr.f32.mxu0 0.0
      %4881 = vmatmul.mubr.f32.gmra.mrb[0].mxu0 %v4276
      %v4882 = vpop.f32.mrb[0].mxu0
      %v4883 = vadd.f32 0.0, %v4882
      %v4884 = vpop.f32.mrb[0].mxu0
      %4885 = vmatprep.mubr.f32.mxu0 0.0
      %4886 = vmatmul.mubr.f32.gmra.mrb[0].mxu0 %v4279
      %v4887 = vpop.f32.mrb[0].mxu0
      %v4888 = vadd.f32 0.0, %v4887
      %v4889 = vpop.f32.mrb[0].mxu0
      %4890 = vmatprep.mubr.f32.mxu0 0.0
      %4891 = vmatmul.mubr.f32.gmra.mrb[0].mxu0 %v4282
      %v4892 = vpop.f32.mrb[0].mxu0
      %v4893 = vadd.f32 0.0, %v4892
      %v4894 = vpop.f32.mrb[0].mxu0
      %4895 = vmatprep.mubr.f32.mxu0 0.0
      %4896 = vmatmul.mubr.f32.gmra.mrb[0].mxu0 %v4285
      %v4897 = vpop.f32.mrb[0].mxu0
      %v4898 = vadd.f32 0.0, %v4897
      %v4899 = vpop.f32.mrb[0].mxu0
      %4900 = vmatprep.mubr.f32.mxu0 0.0
      %4901 = vmatmul.mubr.f32.gmra.mrb[0].mxu0 %v4288
      %v4902 = vpop.f32.mrb[0].mxu0
      %v4903 = vadd.f32 0.0, %v4902
      %v4904 = vpop.f32.mrb[0].mxu0
      %4905 = vmatprep.mubr.f32.mxu0 0.0
      %4906 = vmatmul.mubr.f32.gmra.mrb[0].mxu0 %v4291
      %v4907 = vpop.f32.mrb[0].mxu0
      %v4908 = vadd.f32 0.0, %v4907
      %v4909 = vpop.f32.mrb[0].mxu0
      %4910 = vmatprep.mubr.f32.mxu0 0.0
      %4911 = vmatmul.mubr.f32.gmra.mrb[0].mxu0 %v4294
      %v4912 = vpop.f32.mrb[0].mxu0
      %v4913 = vadd.f32 0.0, %v4912
      %v4914 = vpop.f32.mrb[0].mxu0
      %4915 = vmatprep.mubr.f32.mxu0 0.0
      %4916 = vmatmul.mubr.f32.gmra.mrb[0].mxu0 %v4297
      %v4917 = vpop.f32.mrb[0].mxu0
      %v4918 = vadd.f32 0.0, %v4917
      %v4919 = vpop.f32.mrb[0].mxu0
      %4920 = vmatprep.mubr.f32.mxu0 0.0
      %4921 = vmatmul.mubr.f32.gmra.mrb[0].mxu0 %v4300
      %v4922 = vpop.f32.mrb[0].mxu0
      %v4923 = vadd.f32 0.0, %v4922
      %v4924 = vpop.f32.mrb[0].mxu0
      %4925 = vmatprep.mubr.f32.mxu0 0.0
      %4926 = vmatmul.mubr.f32.gmra.mrb[0].mxu0 %v4303
      %v4927 = vpop.f32.mrb[0].mxu0
      %v4928 = vadd.f32 0.0, %v4927
      %v4929 = vpop.f32.mrb[0].mxu0
      %4930 = vmatprep.mubr.f32.mxu0 0.0
      %4931 = vmatmul.mubr.f32.gmra.mrb[0].mxu0 %v4306
      %v4932 = vpop.f32.mrb[0].mxu0
      %v4933 = vadd.f32 0.0, %v4932
      %v4934 = vpop.f32.mrb[0].mxu0
      %4935 = vmatprep.mubr.f32.mxu0 0.0
      %4936 = vmatmul.mubr.f32.gmra.mrb[0].mxu0 %v4309
      %v4937 = vpop.f32.mrb[0].mxu0
      %v4938 = vadd.f32 0.0, %v4937
      %v4939 = vpop.f32.mrb[0].mxu0
      %4940 = vmatprep.mubr.f32.mxu0 0.0
      %4941 = vmatmul.mubr.f32.gmra.mrb[0].mxu0 %v4312
      %v4942 = vpop.f32.mrb[0].mxu0
      %v4943 = vadd.f32 0.0, %v4942
      %v4944 = vpop.f32.mrb[0].mxu0
      %4945 = vmatprep.mubr.f32.mxu0 0.0
      %4946 = vmatmul.mubr.f32.gmra.mrb[0].mxu0 %v4315
      %v4947 = vpop.f32.mrb[0].mxu0
      %v4948 = vadd.f32 0.0, %v4947
      %v4949 = vpop.f32.mrb[0].mxu0
      %4950 = vmatprep.mubr.f32.mxu0 0.0
      %4951 = vmatmul.mubr.f32.gmra.mrb[0].mxu0 %v4318
      %v4952 = vpop.f32.mrb[0].mxu0
      %v4953 = vadd.f32 0.0, %v4952
      %v4954 = vpop.f32.mrb[0].mxu0
      %4955 = vmatprep.mubr.f32.mxu0 0.0
      %4956 = vmatmul.mubr.f32.gmra.mrb[0].mxu0 %v4321
      %v4957 = vpop.f32.mrb[0].mxu0
      %v4958 = vadd.f32 0.0, %v4957
      %v4959 = vpop.f32.mrb[0].mxu0
      %4960 = vmatprep.mubr.f32.mxu0 0.0
      %4961 = vmatmul.mubr.f32.gmra.mrb[0].mxu0 %v4324
      %v4962 = vpop.f32.mrb[0].mxu0
      %v4963 = vadd.f32 0.0, %v4962
      %v4964 = vpop.f32.mrb[0].mxu0
      %4965 = vmatprep.mubr.f32.mxu0 0.0
      %4966 = vmatmul.mubr.f32.gmra.mrb[0].mxu0 %v4327
      %v4967 = vpop.f32.mrb[0].mxu0
      %v4968 = vadd.f32 0.0, %v4967
      %v4969 = vpop.f32.mrb[0].mxu0
      %4970 = vmatprep.mubr.f32.mxu0 0.0
      %4971 = vmatmul.mubr.f32.gmra.mrb[0].mxu0 %v4330
      %v4972 = vpop.f32.mrb[0].mxu0
      %v4973 = vadd.f32 0.0, %v4972
      %v4974 = vpop.f32.mrb[0].mxu0
      %4975 = vmatprep.mubr.f32.mxu0 0.0
      %4976 = vmatmul.mubr.f32.gmra.mrb[0].mxu0 %v4333
      %v4977 = vpop.f32.mrb[0].mxu0
      %v4978 = vadd.f32 0.0, %v4977
      %v4979 = vpop.f32.mrb[0].mxu0
      %4980 = vmatprep.mubr.f32.mxu0 0.0
      %4981 = vmatmul.mubr.f32.gmra.mrb[0].mxu0 %v4336
      %v4982 = vpop.f32.mrb[0].mxu0
      %v4983 = vadd.f32 0.0, %v4982
      %v4984 = vpop.f32.mrb[0].mxu0
      %4985 = vmatprep.mubr.f32.mxu0 0.0
      %4986 = vmatmul.mubr.f32.gmra.mrb[0].mxu0 %v4339
      %v4987 = vpop.f32.mrb[0].mxu0
      %v4988 = vadd.f32 0.0, %v4987
      %v4989 = vpop.f32.mrb[0].mxu0
      %4990 = vmatprep.mubr.f32.mxu0 0.0
      %4991 = vmatmul.mubr.f32.gmra.mrb[0].mxu0 %v4342
      %v4992 = vpop.f32.mrb[0].mxu0
      %v4993 = vadd.f32 0.0, %v4992
      %v4994 = vpop.f32.mrb[0].mxu0
      %4995 = vmatprep.mubr.f32.mxu0 0.0
      %4996 = vmatmul.mubr.f32.gmra.mrb[0].mxu0 %v4345
      %v4997 = vpop.f32.mrb[0].mxu0
      %v4998 = vadd.f32 0.0, %v4997
      %v4999 = vpop.f32.mrb[0].mxu0
      %5000 = vmatprep.mubr.f32.mxu0 0.0
      %5001 = vmatmul.mubr.f32.gmra.mrb[0].mxu0 %v4348
      %v5002 = vpop.f32.mrb[0].mxu0
      %v5003 = vadd.f32 0.0, %v5002
      %v5004 = vpop.f32.mrb[0].mxu0
      %5005 = vmatprep.mubr.f32.mxu0 0.0
      %5006 = vmatmul.mubr.f32.gmra.mrb[0].mxu0 %v4351
      %v5007 = vpop.f32.mrb[0].mxu0
      %v5008 = vadd.f32 0.0, %v5007
      %v5009 = vpop.f32.mrb[0].mxu0
      %5010 = vmatprep.mubr.f32.mxu0 0.0
      %5011 = vmatmul.mubr.f32.gmra.mrb[0].mxu0 %v4354
      %v5012 = vpop.f32.mrb[0].mxu0
      %v5013 = vadd.f32 0.0, %v5012
      %v5014 = vpop.f32.mrb[0].mxu0
      %5015 = vmatprep.mubr.f32.mxu0 0.0
      %5016 = vmatmul.mubr.f32.gmra.mrb[0].mxu0 %v4357
      %v5017 = vpop.f32.mrb[0].mxu0
      %v5018 = vadd.f32 0.0, %v5017
      %v5019 = vpop.f32.mrb[0].mxu0
      %5020 = vmatprep.mubr.f32.mxu0 0.0
      %5021 = vmatmul.mubr.f32.gmra.mrb[0].mxu0 %v4360
      %v5022 = vpop.f32.mrb[0].mxu0
      %v5023 = vadd.f32 0.0, %v5022
      %v5024 = vpop.f32.mrb[0].mxu0
      %5025 = vmatprep.mubr.f32.mxu0 0.0
      %5026 = vmatmul.mubr.f32.gmra.mrb[0].mxu0 %v4363
      %v5027 = vpop.f32.mrb[0].mxu0
      %v5028 = vadd.f32 0.0, %v5027
      %v5029 = vpop.f32.mrb[0].mxu0
      %5030 = vmatprep.mubr.f32.mxu0 0.0
      %5031 = vmatmul.mubr.f32.gmra.mrb[0].mxu0 %v4366
      %v5032 = vpop.f32.mrb[0].mxu0
      %v5033 = vadd.f32 0.0, %v5032
      %v5034 = vpop.f32.mrb[0].mxu0
      %5035 = vmatprep.mubr.f32.mxu0 0.0
      %5036 = vmatmul.mubr.f32.gmra.mrb[0].mxu0 %v4369
      %v5037 = vpop.f32.mrb[0].mxu0
      %v5038 = vadd.f32 0.0, %v5037
      %v5039 = vpop.f32.mrb[0].mxu0
      %5040 = vdwg.mxu0
      %v5041 = vmax.f32 %v3765, %v4438
      %v5042 = vmax.f32 %v3766, %v4443
      %v5043 = vmax.f32 %v3767, %v4448
      %v5044 = vmax.f32 %v3768, %v4453
      %v5045 = vmax.f32 %v3769, %v4458
      %v5046 = vmax.f32 %v3770, %v4463
      %v5047 = vmax.f32 %v3771, %v4468
      %v5048 = vmax.f32 %v3772, %v4473
      %v5049 = vmax.f32 %v3773, %v4478
      %v5050 = vmax.f32 %v3774, %v4483
      %v5051 = vmax.f32 %v3775, %v4488
      %v5052 = vmax.f32 %v3776, %v4493
      %v5053 = vmax.f32 %v3777, %v4498
      %v5054 = vmax.f32 %v3778, %v4503
      %v5055 = vmax.f32 %v3779, %v4508
      %v5056 = vmax.f32 %v3780, %v4513
      %v5057 = vmax.f32 %v3781, %v4518
      %v5058 = vmax.f32 %v3782, %v4523
      %v5059 = vmax.f32 %v3783, %v4528
      %v5060 = vmax.f32 %v3784, %v4533
      %v5061 = vmax.f32 %v3785, %v4538
      %v5062 = vmax.f32 %v3786, %v4543
      %v5063 = vmax.f32 %v3787, %v4548
      %v5064 = vmax.f32 %v3788, %v4553
      %v5065 = vmax.f32 %v3789, %v4558
      %v5066 = vmax.f32 %v3790, %v4563
      %v5067 = vmax.f32 %v3791, %v4568
      %v5068 = vmax.f32 %v3792, %v4573
      %v5069 = vmax.f32 %v3793, %v4578
      %v5070 = vmax.f32 %v3794, %v4583
      %v5071 = vmax.f32 %v3795, %v4588
      %v5072 = vmax.f32 %v3796, %v4593
      %v5073 = vmax.f32 %v3797, %v4598
      %v5074 = vmax.f32 %v3798, %v4603
      %v5075 = vmax.f32 %v3799, %v4608
      %v5076 = vmax.f32 %v3800, %v4613
      %v5077 = vmax.f32 %v3801, %v4618
      %v5078 = vmax.f32 %v3802, %v4623
      %v5079 = vmax.f32 %v3803, %v4628
      %v5080 = vmax.f32 %v3804, %v4633
      %v5081 = vmax.f32 %v3805, %v4638
      %v5082 = vmax.f32 %v3806, %v4643
      %v5083 = vmax.f32 %v3807, %v4648
      %v5084 = vmax.f32 %v3808, %v4653
      %v5085 = vmax.f32 %v3809, %v4658
      %v5086 = vmax.f32 %v3810, %v4663
      %v5087 = vmax.f32 %v3811, %v4668
      %v5088 = vmax.f32 %v3812, %v4673
      %v5089 = vmax.f32 %v3813, %v4678
      %v5090 = vmax.f32 %v3814, %v4683
      %v5091 = vmax.f32 %v3815, %v4688
      %v5092 = vmax.f32 %v3816, %v4693
      %v5093 = vmax.f32 %v3817, %v4698
      %v5094 = vmax.f32 %v3818, %v4703
      %v5095 = vmax.f32 %v3819, %v4708
      %v5096 = vmax.f32 %v3820, %v4713
      %v5097 = vmax.f32 %v3821, %v4718
      %v5098 = vmax.f32 %v3822, %v4723
      %v5099 = vmax.f32 %v3823, %v4728
      %v5100 = vmax.f32 %v3824, %v4733
      %v5101 = vmax.f32 %v3825, %v4738
      %v5102 = vmax.f32 %v3826, %v4743
      %v5103 = vmax.f32 %v3827, %v4748
      %v5104 = vmax.f32 %v3828, %v4753
      %v5105 = vmax.f32 %v3829, %v4758
      %v5106 = vmax.f32 %v3830, %v4763
      %v5107 = vmax.f32 %v3831, %v4768
      %v5108 = vmax.f32 %v3832, %v4773
      %v5109 = vmax.f32 %v3833, %v4778
      %v5110 = vmax.f32 %v3834, %v4783
      %v5111 = vmax.f32 %v3835, %v4788
      %v5112 = vmax.f32 %v3836, %v4793
      %v5113 = vmax.f32 %v3837, %v4798
      %v5114 = vmax.f32 %v3838, %v4803
      %v5115 = vmax.f32 %v3839, %v4808
      %v5116 = vmax.f32 %v3840, %v4813
      %v5117 = vmax.f32 %v3841, %v4818
      %v5118 = vmax.f32 %v3842, %v4823
      %v5119 = vmax.f32 %v3843, %v4828
      %v5120 = vmax.f32 %v3844, %v4833
      %v5121 = vmax.f32 %v3845, %v4838
      %v5122 = vmax.f32 %v3846, %v4843
      %v5123 = vmax.f32 %v3847, %v4848
      %v5124 = vmax.f32 %v3848, %v4853
      %v5125 = vmax.f32 %v3849, %v4858
      %v5126 = vmax.f32 %v3850, %v4863
      %v5127 = vmax.f32 %v3851, %v4868
      %v5128 = vmax.f32 %v3852, %v4873
      %v5129 = vmax.f32 %v3853, %v4878
      %v5130 = vmax.f32 %v3854, %v4883
      %v5131 = vmax.f32 %v3855, %v4888
      %v5132 = vmax.f32 %v3856, %v4893
      %v5133 = vmax.f32 %v3857, %v4898
      %v5134 = vmax.f32 %v3858, %v4903
      %v5135 = vmax.f32 %v3859, %v4908
      %v5136 = vmax.f32 %v3860, %v4913
      %v5137 = vmax.f32 %v3861, %v4918
      %v5138 = vmax.f32 %v3862, %v4923
      %v5139 = vmax.f32 %v3863, %v4928
      %v5140 = vmax.f32 %v3864, %v4933
      %v5141 = vmax.f32 %v3865, %v4938
      %v5142 = vmax.f32 %v3866, %v4943
      %v5143 = vmax.f32 %v3867, %v4948
      %v5144 = vmax.f32 %v3868, %v4953
      %v5145 = vmax.f32 %v3869, %v4958
      %v5146 = vmax.f32 %v3870, %v4963
      %v5147 = vmax.f32 %v3871, %v4968
      %v5148 = vmax.f32 %v3872, %v4973
      %v5149 = vmax.f32 %v3873, %v4978
      %v5150 = vmax.f32 %v3874, %v4983
      %v5151 = vmax.f32 %v3875, %v4988
      %v5152 = vmax.f32 %v3876, %v4993
      %v5153 = vmax.f32 %v3877, %v4998
      %v5154 = vmax.f32 %v3878, %v5003
      %v5155 = vmax.f32 %v3879, %v5008
      %v5156 = vmax.f32 %v3880, %v5013
      %v5157 = vmax.f32 %v3881, %v5018
      %v5158 = vmax.f32 %v3882, %v5023
      %v5159 = vmax.f32 %v3883, %v5028
      %v5160 = vmax.f32 %v3884, %v5033
      %v5161 = vmax.f32 %v3885, %v5038
      %v5162 = vld [vmem:[%s2] sm:$0x1]
      %v5164 = vlaneseq
      %v5165 = vshrl.u32 %v5164, 7
      %v5166 = vsub.s32 0, %v5165
      %v5167 = vrot.slane %v5162, %v5166
      %v5169 = vadd.f32 %v5041, %v5167
      %v5170 = vadd.f32 %v5042, %v5167
      %v5171 = vadd.f32 %v5043, %v5167
      %v5172 = vadd.f32 %v5044, %v5167
      %v5173 = vadd.f32 %v5045, %v5167
      %v5174 = vadd.f32 %v5046, %v5167
      %v5175 = vadd.f32 %v5047, %v5167
      %v5176 = vadd.f32 %v5048, %v5167
      %v5177 = vadd.f32 %v5049, %v5167
      %v5178 = vadd.f32 %v5050, %v5167
      %v5179 = vadd.f32 %v5051, %v5167
      %v5180 = vadd.f32 %v5052, %v5167
      %v5181 = vadd.f32 %v5053, %v5167
      %v5182 = vadd.f32 %v5054, %v5167
      %v5183 = vadd.f32 %v5055, %v5167
      %v5184 = vadd.f32 %v5056, %v5167
      %v5185 = vadd.f32 %v5057, %v5167
      %v5186 = vadd.f32 %v5058, %v5167
      %v5187 = vadd.f32 %v5059, %v5167
      %v5188 = vadd.f32 %v5060, %v5167
      %v5189 = vadd.f32 %v5061, %v5167
      %v5190 = vadd.f32 %v5062, %v5167
      %v5191 = vadd.f32 %v5063, %v5167
      %v5192 = vadd.f32 %v5064, %v5167
      %v5193 = vadd.f32 %v5065, %v5167
      %v5194 = vadd.f32 %v5066, %v5167
      %v5195 = vadd.f32 %v5067, %v5167
      %v5196 = vadd.f32 %v5068, %v5167
      %v5197 = vadd.f32 %v5069, %v5167
      %v5198 = vadd.f32 %v5070, %v5167
      %v5199 = vadd.f32 %v5071, %v5167
      %v5200 = vadd.f32 %v5072, %v5167
      %v5201 = vadd.f32 %v5073, %v5167
      %v5202 = vadd.f32 %v5074, %v5167
      %v5203 = vadd.f32 %v5075, %v5167
      %v5204 = vadd.f32 %v5076, %v5167
      %v5205 = vadd.f32 %v5077, %v5167
      %v5206 = vadd.f32 %v5078, %v5167
      %v5207 = vadd.f32 %v5079, %v5167
      %v5208 = vadd.f32 %v5080, %v5167
      %v5209 = vadd.f32 %v5081, %v5167
      %v5210 = vadd.f32 %v5082, %v5167
      %v5211 = vadd.f32 %v5083, %v5167
      %v5212 = vadd.f32 %v5084, %v5167
      %v5213 = vadd.f32 %v5085, %v5167
      %v5214 = vadd.f32 %v5086, %v5167
      %v5215 = vadd.f32 %v5087, %v5167
      %v5216 = vadd.f32 %v5088, %v5167
      %v5217 = vadd.f32 %v5089, %v5167
      %v5218 = vadd.f32 %v5090, %v5167
      %v5219 = vadd.f32 %v5091, %v5167
      %v5220 = vadd.f32 %v5092, %v5167
      %v5221 = vadd.f32 %v5093, %v5167
      %v5222 = vadd.f32 %v5094, %v5167
      %v5223 = vadd.f32 %v5095, %v5167
      %v5224 = vadd.f32 %v5096, %v5167
      %v5225 = vadd.f32 %v5097, %v5167
      %v5226 = vadd.f32 %v5098, %v5167
      %v5227 = vadd.f32 %v5099, %v5167
      %v5228 = vadd.f32 %v5100, %v5167
      %v5229 = vadd.f32 %v5101, %v5167
      %v5230 = vadd.f32 %v5102, %v5167
      %v5231 = vadd.f32 %v5103, %v5167
      %v5232 = vadd.f32 %v5104, %v5167
      %v5233 = vadd.f32 %v5105, %v5167
      %v5234 = vadd.f32 %v5106, %v5167
      %v5235 = vadd.f32 %v5107, %v5167
      %v5236 = vadd.f32 %v5108, %v5167
      %v5237 = vadd.f32 %v5109, %v5167
      %v5238 = vadd.f32 %v5110, %v5167
      %v5239 = vadd.f32 %v5111, %v5167
      %v5240 = vadd.f32 %v5112, %v5167
      %v5241 = vadd.f32 %v5113, %v5167
      %v5242 = vadd.f32 %v5114, %v5167
      %v5243 = vadd.f32 %v5115, %v5167
      %v5244 = vadd.f32 %v5116, %v5167
      %v5245 = vadd.f32 %v5117, %v5167
      %v5246 = vadd.f32 %v5118, %v5167
      %v5247 = vadd.f32 %v5119, %v5167
      %v5248 = vadd.f32 %v5120, %v5167
      %v5249 = vadd.f32 %v5121, %v5167
      %v5250 = vadd.f32 %v5122, %v5167
      %v5251 = vadd.f32 %v5123, %v5167
      %v5252 = vadd.f32 %v5124, %v5167
      %v5253 = vadd.f32 %v5125, %v5167
      %v5254 = vadd.f32 %v5126, %v5167
      %v5255 = vadd.f32 %v5127, %v5167
      %v5256 = vadd.f32 %v5128, %v5167
      %v5257 = vadd.f32 %v5129, %v5167
      %v5258 = vadd.f32 %v5130, %v5167
      %v5259 = vadd.f32 %v5131, %v5167
      %v5260 = vadd.f32 %v5132, %v5167
      %v5261 = vadd.f32 %v5133, %v5167
      %v5262 = vadd.f32 %v5134, %v5167
      %v5263 = vadd.f32 %v5135, %v5167
      %v5264 = vadd.f32 %v5136, %v5167
      %v5265 = vadd.f32 %v5137, %v5167
      %v5266 = vadd.f32 %v5138, %v5167
      %v5267 = vadd.f32 %v5139, %v5167
      %v5268 = vadd.f32 %v5140, %v5167
      %v5269 = vadd.f32 %v5141, %v5167
      %v5270 = vadd.f32 %v5142, %v5167
      %v5271 = vadd.f32 %v5143, %v5167
      %v5272 = vadd.f32 %v5144, %v5167
      %v5273 = vadd.f32 %v5145, %v5167
      %v5274 = vadd.f32 %v5146, %v5167
      %v5275 = vadd.f32 %v5147, %v5167
      %v5276 = vadd.f32 %v5148, %v5167
      %v5277 = vadd.f32 %v5149, %v5167
      %v5278 = vadd.f32 %v5150, %v5167
      %v5279 = vadd.f32 %v5151, %v5167
      %v5280 = vadd.f32 %v5152, %v5167
      %v5281 = vadd.f32 %v5153, %v5167
      %v5282 = vadd.f32 %v5154, %v5167
      %v5283 = vadd.f32 %v5155, %v5167
      %v5284 = vadd.f32 %v5156, %v5167
      %v5285 = vadd.f32 %v5157, %v5167
      %v5286 = vadd.f32 %v5158, %v5167
      %v5287 = vadd.f32 %v5159, %v5167
      %v5288 = vadd.f32 %v5160, %v5167
      %v5289 = vadd.f32 %v5161, %v5167
      %v5290 = vmax.f32 %v5169, 0.0
      %v5291 = vmax.f32 %v5170, 0.0
      %v5292 = vmax.f32 %v5171, 0.0
      %v5293 = vmax.f32 %v5172, 0.0
      %v5294 = vmax.f32 %v5173, 0.0
      %v5295 = vmax.f32 %v5174, 0.0
      %v5296 = vmax.f32 %v5175, 0.0
      %v5297 = vmax.f32 %v5176, 0.0
      %v5298 = vmax.f32 %v5177, 0.0
      %v5299 = vmax.f32 %v5178, 0.0
      %v5300 = vmax.f32 %v5179, 0.0
      %v5301 = vmax.f32 %v5180, 0.0
      %v5302 = vmax.f32 %v5181, 0.0
      %v5303 = vmax.f32 %v5182, 0.0
      %v5304 = vmax.f32 %v5183, 0.0
      %v5305 = vmax.f32 %v5184, 0.0
      %v5306 = vmax.f32 %v5185, 0.0
      %v5307 = vmax.f32 %v5186, 0.0
      %v5308 = vmax.f32 %v5187, 0.0
      %v5309 = vmax.f32 %v5188, 0.0
      %v5310 = vmax.f32 %v5189, 0.0
      %v5311 = vmax.f32 %v5190, 0.0
      %v5312 = vmax.f32 %v5191, 0.0
      %v5313 = vmax.f32 %v5192, 0.0
      %v5314 = vmax.f32 %v5193, 0.0
      %v5315 = vmax.f32 %v5194, 0.0
      %v5316 = vmax.f32 %v5195, 0.0
      %v5317 = vmax.f32 %v5196, 0.0
      %v5318 = vmax.f32 %v5197, 0.0
      %v5319 = vmax.f32 %v5198, 0.0
      %v5320 = vmax.f32 %v5199, 0.0
      %v5321 = vmax.f32 %v5200, 0.0
      %v5322 = vmax.f32 %v5201, 0.0
      %v5323 = vmax.f32 %v5202, 0.0
      %v5324 = vmax.f32 %v5203, 0.0
      %v5325 = vmax.f32 %v5204, 0.0
      %v5326 = vmax.f32 %v5205, 0.0
      %v5327 = vmax.f32 %v5206, 0.0
      %v5328 = vmax.f32 %v5207, 0.0
      %v5329 = vmax.f32 %v5208, 0.0
      %v5330 = vmax.f32 %v5209, 0.0
      %v5331 = vmax.f32 %v5210, 0.0
      %v5332 = vmax.f32 %v5211, 0.0
      %v5333 = vmax.f32 %v5212, 0.0
      %v5334 = vmax.f32 %v5213, 0.0
      %v5335 = vmax.f32 %v5214, 0.0
      %v5336 = vmax.f32 %v5215, 0.0
      %v5337 = vmax.f32 %v5216, 0.0
      %v5338 = vmax.f32 %v5217, 0.0
      %v5339 = vmax.f32 %v5218, 0.0
      %v5340 = vmax.f32 %v5219, 0.0
      %v5341 = vmax.f32 %v5220, 0.0
      %v5342 = vmax.f32 %v5221, 0.0
      %v5343 = vmax.f32 %v5222, 0.0
      %v5344 = vmax.f32 %v5223, 0.0
      %v5345 = vmax.f32 %v5224, 0.0
      %v5346 = vmax.f32 %v5225, 0.0
      %v5347 = vmax.f32 %v5226, 0.0
      %v5348 = vmax.f32 %v5227, 0.0
      %v5349 = vmax.f32 %v5228, 0.0
      %v5350 = vmax.f32 %v5229, 0.0
      %v5351 = vmax.f32 %v5230, 0.0
      %v5352 = vmax.f32 %v5231, 0.0
      %v5353 = vmax.f32 %v5232, 0.0
      %v5354 = vmax.f32 %v5233, 0.0
      %v5355 = vmax.f32 %v5234, 0.0
      %v5356 = vmax.f32 %v5235, 0.0
      %v5357 = vmax.f32 %v5236, 0.0
      %v5358 = vmax.f32 %v5237, 0.0
      %v5359 = vmax.f32 %v5238, 0.0
      %v5360 = vmax.f32 %v5239, 0.0
      %v5361 = vmax.f32 %v5240, 0.0
      %v5362 = vmax.f32 %v5241, 0.0
      %v5363 = vmax.f32 %v5242, 0.0
      %v5364 = vmax.f32 %v5243, 0.0
      %v5365 = vmax.f32 %v5244, 0.0
      %v5366 = vmax.f32 %v5245, 0.0
      %v5367 = vmax.f32 %v5246, 0.0
      %v5368 = vmax.f32 %v5247, 0.0
      %v5369 = vmax.f32 %v5248, 0.0
      %v5370 = vmax.f32 %v5249, 0.0
      %v5371 = vmax.f32 %v5250, 0.0
      %v5372 = vmax.f32 %v5251, 0.0
      %v5373 = vmax.f32 %v5252, 0.0
      %v5374 = vmax.f32 %v5253, 0.0
      %v5375 = vmax.f32 %v5254, 0.0
      %v5376 = vmax.f32 %v5255, 0.0
      %v5377 = vmax.f32 %v5256, 0.0
      %v5378 = vmax.f32 %v5257, 0.0
      %v5379 = vmax.f32 %v5258, 0.0
      %v5380 = vmax.f32 %v5259, 0.0
      %v5381 = vmax.f32 %v5260, 0.0
      %v5382 = vmax.f32 %v5261, 0.0
      %v5383 = vmax.f32 %v5262, 0.0
      %v5384 = vmax.f32 %v5263, 0.0
      %v5385 = vmax.f32 %v5264, 0.0
      %v5386 = vmax.f32 %v5265, 0.0
      %v5387 = vmax.f32 %v5266, 0.0
      %v5388 = vmax.f32 %v5267, 0.0
      %v5389 = vmax.f32 %v5268, 0.0
      %v5390 = vmax.f32 %v5269, 0.0
      %v5391 = vmax.f32 %v5270, 0.0
      %v5392 = vmax.f32 %v5271, 0.0
      %v5393 = vmax.f32 %v5272, 0.0
      %v5394 = vmax.f32 %v5273, 0.0
      %v5395 = vmax.f32 %v5274, 0.0
      %v5396 = vmax.f32 %v5275, 0.0
      %v5397 = vmax.f32 %v5276, 0.0
      %v5398 = vmax.f32 %v5277, 0.0
      %v5399 = vmax.f32 %v5278, 0.0
      %v5400 = vmax.f32 %v5279, 0.0
      %v5401 = vmax.f32 %v5280, 0.0
      %v5402 = vmax.f32 %v5281, 0.0
      %v5403 = vmax.f32 %v5282, 0.0
      %v5404 = vmax.f32 %v5283, 0.0
      %v5405 = vmax.f32 %v5284, 0.0
      %v5406 = vmax.f32 %v5285, 0.0
      %v5407 = vmax.f32 %v5286, 0.0
      %v5408 = vmax.f32 %v5287, 0.0
      %v5409 = vmax.f32 %v5288, 0.0
      %v5410 = vmax.f32 %v5289, 0.0
      %vm5411 = vcmask 31744
      %5412 = vst.msk [vmem:[%s170] sm:$0xff] %vm5411, %v5290
      %5413 = vst.msk [vmem:[%s170 + $0x8] sm:$0xff] %vm5411, %v5291
      %5414 = vst.msk [vmem:[%s170 + $0x10] sm:$0xff] %vm5411, %v5292
      %5415 = vst.msk [vmem:[%s170 + $0x18] sm:$0xff] %vm5411, %v5293
      %5416 = vst.msk [vmem:[%s170 + $0x20] sm:$0xff] %vm5411, %v5294
      %5417 = vst.msk [vmem:[%s170 + $0x28] sm:$0xff] %vm5411, %v5295
      %5418 = vst.msk [vmem:[%s170 + $0x30] sm:$0xff] %vm5411, %v5296
      %5419 = vst.msk [vmem:[%s170 + $0x38] sm:$0xff] %vm5411, %v5297
      %5420 = vst.msk [vmem:[%s170 + $0x40] sm:$0xff] %vm5411, %v5298
      %5421 = vst.msk [vmem:[%s170 + $0x48] sm:$0xff] %vm5411, %v5299
      %5422 = vst.msk [vmem:[%s170 + $0x50] sm:$0xff] %vm5411, %v5300
      %5423 = vst.msk [vmem:[%s170 + $0x58] sm:$0xff] %vm5411, %v5301
      %5424 = vst.msk [vmem:[%s170 + $0x60] sm:$0xff] %vm5411, %v5302
      %5425 = vst.msk [vmem:[%s170 + $0x68] sm:$0xff] %vm5411, %v5303
      %5426 = vst.msk [vmem:[%s170 + $0x70] sm:$0xff] %vm5411, %v5304
      %5427 = vst.msk [vmem:[%s170 + $0x78] sm:$0xff] %vm5411, %v5305
      %5428 = vst.msk [vmem:[%s170 + $0x80] sm:$0xff] %vm5411, %v5306
      %5429 = vst.msk [vmem:[%s170 + $0x88] sm:$0xff] %vm5411, %v5307
      %5430 = vst.msk [vmem:[%s170 + $0x90] sm:$0xff] %vm5411, %v5308
      %5431 = vst.msk [vmem:[%s170 + $0x98] sm:$0xff] %vm5411, %v5309
      %5432 = vst.msk [vmem:[%s170 + $0xa0] sm:$0xff] %vm5411, %v5310
      %5433 = vst.msk [vmem:[%s170 + $0xa8] sm:$0xff] %vm5411, %v5311
      %5434 = vst.msk [vmem:[%s170 + $0xb0] sm:$0xff] %vm5411, %v5312
      %5435 = vst.msk [vmem:[%s170 + $0xb8] sm:$0xff] %vm5411, %v5313
      %5436 = vst.msk [vmem:[%s170 + $0xc0] sm:$0xff] %vm5411, %v5314
      %5437 = vst.msk [vmem:[%s170 + $0xc8] sm:$0xff] %vm5411, %v5315
      %5438 = vst.msk [vmem:[%s170 + $0xd0] sm:$0xff] %vm5411, %v5316
      %5439 = vst.msk [vmem:[%s170 + $0xd8] sm:$0xff] %vm5411, %v5317
      %5440 = vst.msk [vmem:[%s170 + $0xe0] sm:$0xff] %vm5411, %v5318
      %5441 = vst.msk [vmem:[%s170 + $0xe8] sm:$0xff] %vm5411, %v5319
      %5442 = vst.msk [vmem:[%s170 + $0xf0] sm:$0xff] %vm5411, %v5320
      %5443 = vst.msk [vmem:[%s170 + $0xf8] sm:$0xff] %vm5411, %v5321
      %5444 = vst.msk [vmem:[%s170 + $0x100] sm:$0xff] %vm5411, %v5322
      %5445 = vst.msk [vmem:[%s170 + $0x108] sm:$0xff] %vm5411, %v5323
      %5446 = vst.msk [vmem:[%s170 + $0x110] sm:$0xff] %vm5411, %v5324
      %5447 = vst.msk [vmem:[%s170 + $0x118] sm:$0xff] %vm5411, %v5325
      %5448 = vst.msk [vmem:[%s170 + $0x120] sm:$0xff] %vm5411, %v5326
      %5449 = vst.msk [vmem:[%s170 + $0x128] sm:$0xff] %vm5411, %v5327
      %5450 = vst.msk [vmem:[%s170 + $0x130] sm:$0xff] %vm5411, %v5328
      %5451 = vst.msk [vmem:[%s170 + $0x138] sm:$0xff] %vm5411, %v5329
      %5452 = vst.msk [vmem:[%s170 + $0x140] sm:$0xff] %vm5411, %v5330
      %5453 = vst.msk [vmem:[%s170 + $0x148] sm:$0xff] %vm5411, %v5331
      %5454 = vst.msk [vmem:[%s170 + $0x150] sm:$0xff] %vm5411, %v5332
      %5455 = vst.msk [vmem:[%s170 + $0x158] sm:$0xff] %vm5411, %v5333
      %5456 = vst.msk [vmem:[%s170 + $0x160] sm:$0xff] %vm5411, %v5334
      %5457 = vst.msk [vmem:[%s170 + $0x168] sm:$0xff] %vm5411, %v5335
      %5458 = vst.msk [vmem:[%s170 + $0x170] sm:$0xff] %vm5411, %v5336
      %5459 = vst.msk [vmem:[%s170 + $0x178] sm:$0xff] %vm5411, %v5337
      %5460 = vst.msk [vmem:[%s170 + $0x180] sm:$0xff] %vm5411, %v5338
      %5461 = vst.msk [vmem:[%s170 + $0x188] sm:$0xff] %vm5411, %v5339
      %5462 = vst.msk [vmem:[%s170 + $0x190] sm:$0xff] %vm5411, %v5340
      %5463 = vst.msk [vmem:[%s170 + $0x198] sm:$0xff] %vm5411, %v5341
      %5464 = vst.msk [vmem:[%s170 + $0x1a0] sm:$0xff] %vm5411, %v5342
      %5465 = vst.msk [vmem:[%s170 + $0x1a8] sm:$0xff] %vm5411, %v5343
      %5466 = vst.msk [vmem:[%s170 + $0x1b0] sm:$0xff] %vm5411, %v5344
      %5467 = vst.msk [vmem:[%s170 + $0x1b8] sm:$0xff] %vm5411, %v5345
      %5468 = vst.msk [vmem:[%s170 + $0x1c0] sm:$0xff] %vm5411, %v5346
      %5469 = vst.msk [vmem:[%s170 + $0x1c8] sm:$0xff] %vm5411, %v5347
      %5470 = vst.msk [vmem:[%s170 + $0x1d0] sm:$0xff] %vm5411, %v5348
      %5471 = vst.msk [vmem:[%s170 + $0x1d8] sm:$0xff] %vm5411, %v5349
      %5472 = vst.msk [vmem:[%s170 + $0x1e0] sm:$0xff] %vm5411, %v5350
      %5473 = vst.msk [vmem:[%s170 + $0x1e8] sm:$0xff] %vm5411, %v5351
      %5474 = vst.msk [vmem:[%s170 + $0x1f0] sm:$0xff] %vm5411, %v5352
      %5475 = vst.msk [vmem:[%s170 + $0x1f8] sm:$0xff] %vm5411, %v5353
      %5476 = vst.msk [vmem:[%s170 + $0x200] sm:$0xff] %vm5411, %v5354
      %5477 = vst.msk [vmem:[%s170 + $0x208] sm:$0xff] %vm5411, %v5355
      %5478 = vst.msk [vmem:[%s170 + $0x210] sm:$0xff] %vm5411, %v5356
      %5479 = vst.msk [vmem:[%s170 + $0x218] sm:$0xff] %vm5411, %v5357
      %5480 = vst.msk [vmem:[%s170 + $0x220] sm:$0xff] %vm5411, %v5358
      %5481 = vst.msk [vmem:[%s170 + $0x228] sm:$0xff] %vm5411, %v5359
      %5482 = vst.msk [vmem:[%s170 + $0x230] sm:$0xff] %vm5411, %v5360
      %5483 = vst.msk [vmem:[%s170 + $0x238] sm:$0xff] %vm5411, %v5361
      %5484 = vst.msk [vmem:[%s170 + $0x240] sm:$0xff] %vm5411, %v5362
      %5485 = vst.msk [vmem:[%s170 + $0x248] sm:$0xff] %vm5411, %v5363
      %5486 = vst.msk [vmem:[%s170 + $0x250] sm:$0xff] %vm5411, %v5364
      %5487 = vst.msk [vmem:[%s170 + $0x258] sm:$0xff] %vm5411, %v5365
      %5488 = vst.msk [vmem:[%s170 + $0x260] sm:$0xff] %vm5411, %v5366
      %5489 = vst.msk [vmem:[%s170 + $0x268] sm:$0xff] %vm5411, %v5367
      %5490 = vst.msk [vmem:[%s170 + $0x270] sm:$0xff] %vm5411, %v5368
      %5491 = vst.msk [vmem:[%s170 + $0x278] sm:$0xff] %vm5411, %v5369
      %5492 = vst.msk [vmem:[%s170 + $0x280] sm:$0xff] %vm5411, %v5370
      %5493 = vst.msk [vmem:[%s170 + $0x288] sm:$0xff] %vm5411, %v5371
      %5494 = vst.msk [vmem:[%s170 + $0x290] sm:$0xff] %vm5411, %v5372
      %5495 = vst.msk [vmem:[%s170 + $0x298] sm:$0xff] %vm5411, %v5373
      %5496 = vst.msk [vmem:[%s170 + $0x2a0] sm:$0xff] %vm5411, %v5374
      %5497 = vst.msk [vmem:[%s170 + $0x2a8] sm:$0xff] %vm5411, %v5375
      %5498 = vst.msk [vmem:[%s170 + $0x2b0] sm:$0xff] %vm5411, %v5376
      %5499 = vst.msk [vmem:[%s170 + $0x2b8] sm:$0xff] %vm5411, %v5377
      %5500 = vst.msk [vmem:[%s170 + $0x2c0] sm:$0xff] %vm5411, %v5378
      %5501 = vst.msk [vmem:[%s170 + $0x2c8] sm:$0xff] %vm5411, %v5379
      %5502 = vst.msk [vmem:[%s170 + $0x2d0] sm:$0xff] %vm5411, %v5380
      %5503 = vst.msk [vmem:[%s170 + $0x2d8] sm:$0xff] %vm5411, %v5381
      %5504 = vst.msk [vmem:[%s170 + $0x2e0] sm:$0xff] %vm5411, %v5382
      %5505 = vst.msk [vmem:[%s170 + $0x2e8] sm:$0xff] %vm5411, %v5383
      %5506 = vst.msk [vmem:[%s170 + $0x2f0] sm:$0xff] %vm5411, %v5384
      %5507 = vst.msk [vmem:[%s170 + $0x2f8] sm:$0xff] %vm5411, %v5385
      %5508 = vst.msk [vmem:[%s170 + $0x300] sm:$0xff] %vm5411, %v5386
      %5509 = vst.msk [vmem:[%s170 + $0x308] sm:$0xff] %vm5411, %v5387
      %5510 = vst.msk [vmem:[%s170 + $0x310] sm:$0xff] %vm5411, %v5388
      %5511 = vst.msk [vmem:[%s170 + $0x318] sm:$0xff] %vm5411, %v5389
      %5512 = vst.msk [vmem:[%s170 + $0x320] sm:$0xff] %vm5411, %v5390
      %5513 = vst.msk [vmem:[%s170 + $0x328] sm:$0xff] %vm5411, %v5391
      %5514 = vst.msk [vmem:[%s170 + $0x330] sm:$0xff] %vm5411, %v5392
      %5515 = vst.msk [vmem:[%s170 + $0x338] sm:$0xff] %vm5411, %v5393
      %5516 = vst.msk [vmem:[%s170 + $0x340] sm:$0xff] %vm5411, %v5394
      %5517 = vst.msk [vmem:[%s170 + $0x348] sm:$0xff] %vm5411, %v5395
      %5518 = vst.msk [vmem:[%s170 + $0x350] sm:$0xff] %vm5411, %v5396
      %5519 = vst.msk [vmem:[%s170 + $0x358] sm:$0xff] %vm5411, %v5397
      %5520 = vst.msk [vmem:[%s170 + $0x360] sm:$0xff] %vm5411, %v5398
      %5521 = vst.msk [vmem:[%s170 + $0x368] sm:$0xff] %vm5411, %v5399
      %5522 = vst.msk [vmem:[%s170 + $0x370] sm:$0xff] %vm5411, %v5400
      %5523 = vst.msk [vmem:[%s170 + $0x378] sm:$0xff] %vm5411, %v5401
      %5524 = vst.msk [vmem:[%s170 + $0x380] sm:$0xff] %vm5411, %v5402
      %5525 = vst.msk [vmem:[%s170 + $0x388] sm:$0xff] %vm5411, %v5403
      %5526 = vst.msk [vmem:[%s170 + $0x390] sm:$0xff] %vm5411, %v5404
      %5527 = vst.msk [vmem:[%s170 + $0x398] sm:$0xff] %vm5411, %v5405
      %5528 = vst.msk [vmem:[%s170 + $0x3a0] sm:$0xff] %vm5411, %v5406
      %5529 = vst.msk [vmem:[%s170 + $0x3a8] sm:$0xff] %vm5411, %v5407
      %5530 = vst.msk [vmem:[%s170 + $0x3b0] sm:$0xff] %vm5411, %v5408
      %5531 = vst.msk [vmem:[%s170 + $0x3b8] sm:$0xff] %vm5411, %v5409
      %vm5532 = vcmask 24576
      %5533 = vst.msk [vmem:[%s170 + $0x3c0] sm:$0x1] %vm5532, %v5410
      %p5534 = scmp.lt.s32.totalorder %s14, 1
      %s5535 = scalar_select %p5534, %s14, 1
      %s5536 = smul.addr %s5535, 121
      %s5537 = smul.addr %s5536, 8
      %s5538 = scalar_lea.vmem %s3, %s5537
      // Predicated region
      $region33: #{tumor_detection_forward.5} parent=31 // pred_check
        %p5539 = pneg %p100
      $region34: #{tumor_detection_forward.5} parent=31 // pred_check_branch
        %5541 = sbr.rel (%p5539) target = $region36
      $region35: #{tumor_detection_forward.5} parent=31 // pred_region
        _
      $region36: #{tumor_detection_forward.5} parent=31 // pred_fallthru
        _
    $region32: #{tumor_detection_forward.5} parent=5 // pred_fallthru
      _
    %p5542 = scmp.le.s32.totalorder 2, %s9
    // Predicated region
    $region37: #{tumor_detection_forward.5} parent=5 // pred_check
      %p5543 = pneg %p5542
    $region38: #{tumor_detection_forward.5} parent=5 // pred_check_branch
      %5545 = sbr.rel (%p5543) target = $region40
    $region39: #{tumor_detection_forward.5} parent=5 // pred_region
      %s5546 = ssub.s32 %s9, 2
      // Predicated region
      $region41: #{tumor_detection_forward.5} parent=39 // pred_check
        %p5547 = pneg %p106
      $region42: #{tumor_detection_forward.5} parent=39 // pred_check_branch
        %5549 = sbr.rel (%p5547) target = $region44
      $region43: #{tumor_detection_forward.5} parent=39 // pred_region
        %p5550 = scmp.lt.s32.totalorder %s15, 1
        %s5551 = scalar_select %p5550, %s15, 1
        %s5552 = smul.addr %s5551, 121
        %s5553 = smul.addr %s5552, 8
        %s5554 = scalar_lea.vmem %s3, %s5553
      $region44: #{tumor_detection_forward.5} parent=39 // pred_fallthru
        _
    $region40: #{tumor_detection_forward.5} parent=5 // pred_fallthru
      _
  $region6: #{tumor_detection_forward.5} parent=0 // loop_footer
    %s13 = sadd.s32 1, %s9
  $region7: #{tumor_detection_forward.5} parent=0 // loop_footer_branch
    %8 = sbr.rel target = $region3
  $region8: #{tumor_detection_forward.5} parent=0 // loop_exit
    _

// kernel: tumor_detection_forward.6
$region0: #{tumor_detection_forward.6}
  #allocation0 [shape = 'u32[]', space=smem, size = 0x4, offset = 0x4, fixed_abs, tag = 'smem constant byte address 0x4 - core index']
  #allocation1 [shape = 'u32[144,128]{1,0:T(1,128)}', space=vmem, size = 0x12000, scoped, tag = 'internal scratch']
  %s0 = inlined_call_operand.vmem [shape: f32[2,4,196,36], index: 0, kind: input, shape index: {}]
  %s1 = inlined_call_operand.vmem [shape: f32[36,8], index: 1, kind: input, shape index: {}]
  %s2 = inlined_call_operand.vmem [shape: f32[1,8], index: 2, kind: input, shape index: {}]
  %s3 = inlined_call_operand.vmem [shape: f32[2,196,8], index: 3, kind: output, shape index: {}]
  %s4 = sld [smem:[#allocation0]]
  $region45: #{tumor_detection_forward.6} parent=0
    _
  %s6 = ssub.s32 1, %s4
  %s7 = scalar_select 0, %s6, %s4
  loop: start=0, step=1, limit=4
  $region2: #{tumor_detection_forward.6} parent=0 // loop_pre_header
    _
  $region3: #{tumor_detection_forward.6} parent=0 // loop_header
    %s9 = sphi 0, %s13
    %p10 = scmp.ge.s32.totalorder %s9, 4
    %s19 = sphi 0, %s21
    %s22 = sphi 0, %s19
    %s23 = sphi 0, %s22
    %s39 = sphi 0, %s23
    %s43 = sphi 0, %s43
    %s45 = sphi 0, %s43
    %s46 = sphi 0, %s45
    %s60 = sphi 0, %s46
    %s64 = sphi 0, %s64
    %s66 = sphi 0, %s64
    %s67 = sphi 0, %s66
    %s81 = sphi 0, %s67
    %s87 = sphi 0, %s89
    %s90 = sphi 0, %s87
    %s91 = sphi 0, %s90
    %s107 = sphi 0, %s91
  $region4: #{tumor_detection_forward.6} parent=0 // loop_header_branch
    %12 = sbr.rel (%p10) target = $region8
  $region5: #{tumor_detection_forward.6} parent=0 // loop_body
    %s14 = ssub.s32 %s9, 1
    %s15 = ssub.s32 %s9, 2
    %s16 = sadd.s32 %s9, 1
    %s17 = ssub.s32 %s9, %s16
    %p18 = scmp.eq.s32.totalorder %s17, 0
    %s20 = sadd.s32 %s19, 1
    %s21 = scalar_select %p18, %s19, %s20
    %p24 = pneg %p18
    %p25 = scmp.eq.s32.totalorder %s9, 1
    %p26 = por %p24, %p25
    %p27 = scmp.ne.s32.totalorder %s19, %s22
    %p28 = scmp.eq.s32.totalorder %s9, 0
    %p29 = por %p27, %p28
    %p30 = scmp.ne.s32.totalorder %s19, %s22
    %p31 = scmp.eq.s32.totalorder %s14, 1
    %p32 = por %p30, %p31
    %p33 = scmp.ne.s32.totalorder %s22, %s23
    %p34 = scmp.eq.s32.totalorder %s14, 0
    %p35 = por %p33, %p34
    %p36 = scmp.ne.s32.totalorder %s22, %s23
    %p37 = scmp.eq.s32.totalorder %s15, 1
    %p38 = por %p36, %p37
    %p40 = scmp.ne.s32.totalorder %s23, %s39
    %p41 = scmp.eq.s32.totalorder %s15, 0
    %p42 = por %p40, %p41
    %s44 = sadd.s32 %s43, 1
    %p47 = scmp.eq.s32.totalorder %s9, 1
    %p48 = scmp.ne.s32.totalorder %s43, %s45
    %p49 = scmp.eq.s32.totalorder %s9, 0
    %p50 = por %p48, %p49
    %p51 = scmp.ne.s32.totalorder %s43, %s45
    %p52 = scmp.eq.s32.totalorder %s14, 1
    %p53 = por %p51, %p52
    %p54 = scmp.ne.s32.totalorder %s45, %s46
    %p55 = scmp.eq.s32.totalorder %s14, 0
    %p56 = por %p54, %p55
    %p57 = scmp.ne.s32.totalorder %s45, %s46
    %p58 = scmp.eq.s32.totalorder %s15, 1
    %p59 = por %p57, %p58
    %p61 = scmp.ne.s32.totalorder %s46, %s60
    %p62 = scmp.eq.s32.totalorder %s15, 0
    %p63 = por %p61, %p62
    %s65 = sadd.s32 %s64, 1
    %p68 = scmp.eq.s32.totalorder %s9, 1
    %p69 = scmp.ne.s32.totalorder %s64, %s66
    %p70 = scmp.eq.s32.totalorder %s9, 0
    %p71 = por %p69, %p70
    %p72 = scmp.ne.s32.totalorder %s64, %s66
    %p73 = scmp.eq.s32.totalorder %s14, 1
    %p74 = por %p72, %p73
    %p75 = scmp.ne.s32.totalorder %s66, %s67
    %p76 = scmp.eq.s32.totalorder %s14, 0
    %p77 = por %p75, %p76
    %p78 = scmp.ne.s32.totalorder %s66, %s67
    %p79 = scmp.eq.s32.totalorder %s15, 1
    %p80 = por %p78, %p79
    %p82 = scmp.ne.s32.totalorder %s67, %s81
    %p83 = scmp.eq.s32.totalorder %s15, 0
    %p84 = por %p82, %p83
    %s85 = ssub.s32 %s9, %s16
    %p86 = scmp.eq.s32.totalorder %s85, 0
    %s88 = sadd.s32 %s87, 1
    %s89 = scalar_select %p86, %s87, %s88
    %p92 = pneg %p86
    %p93 = scmp.eq.s32.totalorder %s9, 1
    %p94 = por %p92, %p93
    %p95 = scmp.ne.s32.totalorder %s87, %s90
    %p96 = scmp.eq.s32.totalorder %s9, 0
    %p97 = por %p95, %p96
    %p98 = scmp.ne.s32.totalorder %s87, %s90
    %p99 = scmp.eq.s32.totalorder %s14, 1
    %p100 = por %p98, %p99
    %p101 = scmp.ne.s32.totalorder %s90, %s91
    %p102 = scmp.eq.s32.totalorder %s14, 0
    %p103 = por %p101, %p102
    %p104 = scmp.ne.s32.totalorder %s90, %s91
    %p105 = scmp.eq.s32.totalorder %s15, 1
    %p106 = por %p104, %p105
    %p108 = scmp.ne.s32.totalorder %s91, %s107
    %p109 = scmp.eq.s32.totalorder %s15, 0
    %p110 = por %p108, %p109
    %p111 = scmp.le.s32.totalorder 1, %s9
    %p112 = scmp.lt.s32.totalorder %s9, 3
    %p113 = pnand %p111, %p112
    %p114 = pneg %p113
    // Predicated region
    $region9: #{tumor_detection_forward.6} parent=5 // pred_check
      _
    $region10: #{tumor_detection_forward.6} parent=5 // pred_check_branch
      %116 = sbr.rel (%p113) target = $region12
    $region11: #{tumor_detection_forward.6} parent=5 // pred_region
      %s117 = ssub.s32 %s9, 1
      // Predicated region
      $region13: #{tumor_detection_forward.6} parent=11 // pred_check
        %p118 = pneg %p56
      $region14: #{tumor_detection_forward.6} parent=11 // pred_check_branch
        %120 = sbr.rel (%p118) target = $region16
      $region15: #{tumor_detection_forward.6} parent=11 // pred_region
        _
      $region16: #{tumor_detection_forward.6} parent=11 // pred_fallthru
        _
      // Predicated region
      $region17: #{tumor_detection_forward.6} parent=11 // pred_check
        %p121 = pneg %p77
      $region18: #{tumor_detection_forward.6} parent=11 // pred_check_branch
        %123 = sbr.rel (%p121) target = $region20
      $region19: #{tumor_detection_forward.6} parent=11 // pred_region
        _
      $region20: #{tumor_detection_forward.6} parent=11 // pred_fallthru
        _
    $region12: #{tumor_detection_forward.6} parent=5 // pred_fallthru
      _
    %p124 = scmp.lt.s32.totalorder %s9, 2
    // Predicated region
    $region21: #{tumor_detection_forward.6} parent=5 // pred_check
      %p125 = pneg %p124
    $region22: #{tumor_detection_forward.6} parent=5 // pred_check_branch
      %127 = sbr.rel (%p125) target = $region24
    $region23: #{tumor_detection_forward.6} parent=5 // pred_region
      // Predicated region
      $region25: #{tumor_detection_forward.6} parent=23 // pred_check
        %p128 = pneg %p29
      $region26: #{tumor_detection_forward.6} parent=23 // pred_check_branch
        %130 = sbr.rel (%p128) target = $region28
      $region27: #{tumor_detection_forward.6} parent=23 // pred_region
        %p131 = scmp.lt.s32.totalorder %s9, 1
        %s132 = scalar_select %p131, %s9, 1
        %s133 = smul.addr %s132, 100
        %s134 = smul.addr %s133, 8
        %s135 = scalar_lea.vmem %s0, %s134
      $region28: #{tumor_detection_forward.6} parent=23 // pred_fallthru
        _
    $region24: #{tumor_detection_forward.6} parent=5 // pred_fallthru
      _
    %p136 = scmp.le.s32.totalorder 1, %s9
    %p137 = scmp.lt.s32.totalorder %s9, 3
    %p138 = pnand %p136, %p137
    %p139 = pneg %p138
    // Predicated region
    $region29: #{tumor_detection_forward.6} parent=5 // pred_check
      _
    $region30: #{tumor_detection_forward.6} parent=5 // pred_check_branch
      %141 = sbr.rel (%p138) target = $region32
    $region31: #{tumor_detection_forward.6} parent=5 // pred_region
      %s142 = ssub.s32 %s9, 1
      %p143 = scmp.lt.s32.totalorder %s14, 1
      %s144 = scalar_select %p143, %s14, 1
      %s145 = smul.addr %s144, 100
      %s146 = smul.addr %s145, 8
      %s147 = scalar_lea.vmem %s0, %s146
      %p148 = pneg %p35
      %p149 = pneg %p32
      %p150 = pneg %p56
      %p151 = pneg %p53
      %p152 = pneg %p77
      %p153 = pneg %p74
      %p154 = pneg %p103
      %p155 = pneg %p100
      %p156 = scmp.lt.s32.totalorder %s14, 1
      %s157 = scalar_select %p156, %s14, 1
      %s158 = smul.addr %s157, 25
      %s159 = smul.addr %s158, 8
      %s160 = scalar_lea.vmem %s3, %s159
      %p161 = scmp.lt.s32.totalorder %s14, 1
      %s162 = scalar_select %p161, %s14, 1
      %s163 = smul.addr %s162, 100
      %s164 = smul.addr %s163, 8
      %s165 = scalar_lea.vmem %s0, %s164
      %p166 = scmp.lt.s32.totalorder %s14, 1
      %s167 = scalar_select %p166, %s14, 1
      %s168 = smul.addr %s167, 25
      %s169 = smul.addr %s168, 8
      %s170 = scalar_lea.vmem %s3, %s169
      %v171 = vld [vmem:[%s1] sm:$0xff]
      %v172 = vld [vmem:[%s1 + $0x8] sm:$0xff]
      %v173 = vld [vmem:[%s1 + $0x10] sm:$0xff]
      %v174 = vld [vmem:[%s1 + $0x18] sm:$0xff]
      %v175 = vld [vmem:[%s1 + $0x20] sm:$0xf]
      %v176 = vld [vmem:[%s165] sm:$0xff]
      %v177 = vld [vmem:[%s165 + $0x8] sm:$0xff]
      %v178 = vld [vmem:[%s165 + $0x10] sm:$0xff]
      %v179 = vld [vmem:[%s165 + $0x18] sm:$0xff]
      %v180 = vld [vmem:[%s165 + $0x20] sm:$0xff]
      %v181 = vld [vmem:[%s165 + $0x28] sm:$0xff]
      %v182 = vld [vmem:[%s165 + $0x30] sm:$0xff]
      %v183 = vld [vmem:[%s165 + $0x38] sm:$0xff]
      %v184 = vld [vmem:[%s165 + $0x40] sm:$0xff]
      %v185 = vld [vmem:[%s165 + $0x48] sm:$0xff]
      %v186 = vld [vmem:[%s165 + $0x50] sm:$0xff]
      %v187 = vld [vmem:[%s165 + $0x58] sm:$0xff]
      %v188 = vld [vmem:[%s165 + $0x60] sm:$0xff]
      %v189 = vld [vmem:[%s165 + $0x68] sm:$0xff]
      %v190 = vld [vmem:[%s165 + $0x70] sm:$0xff]
      %v191 = vld [vmem:[%s165 + $0x78] sm:$0xff]
      %v192 = vld [vmem:[%s165 + $0x80] sm:$0xff]
      %v193 = vld [vmem:[%s165 + $0x88] sm:$0xff]
      %v194 = vld [vmem:[%s165 + $0x90] sm:$0xff]
      %v195 = vld [vmem:[%s165 + $0x98] sm:$0xff]
      %v196 = vld [vmem:[%s165 + $0xa0] sm:$0xff]
      %v197 = vld [vmem:[%s165 + $0xa8] sm:$0xff]
      %v198 = vld [vmem:[%s165 + $0xb0] sm:$0xff]
      %v199 = vld [vmem:[%s165 + $0xb8] sm:$0xff]
      %v200 = vld [vmem:[%s165 + $0xc0] sm:$0xf]
      %vm201 = vcmask 293888
      %v203 = vsel %vm201, %v176, 0
      %v206 = vsel %vm201, %v177, 0
      %v209 = vsel %vm201, %v178, 0
      %v212 = vsel %vm201, %v179, 0
      %v215 = vsel %vm201, %v180, 0
      %v218 = vsel %vm201, %v181, 0
      %v221 = vsel %vm201, %v182, 0
      %v224 = vsel %vm201, %v183, 0
      %v227 = vsel %vm201, %v184, 0
      %v230 = vsel %vm201, %v185, 0
      %v233 = vsel %vm201, %v186, 0
      %v236 = vsel %vm201, %v187, 0
      %v239 = vsel %vm201, %v188, 0
      %v242 = vsel %vm201, %v189, 0
      %v245 = vsel %vm201, %v190, 0
      %v248 = vsel %vm201, %v191, 0
      %v251 = vsel %vm201, %v192, 0
      %v254 = vsel %vm201, %v193, 0
      %v257 = vsel %vm201, %v194, 0
      %v260 = vsel %vm201, %v195, 0
      %v263 = vsel %vm201, %v196, 0
      %v266 = vsel %vm201, %v197, 0
      %v269 = vsel %vm201, %v198, 0
      %v272 = vsel %vm201, %v199, 0
      %v275 = vsel %vm201, %v200, 0
      %vm277 = vcmask 1043456
      %v279 = vsel %vm277, %v175, 0
      %281 = vmatprep.subr.mxu0 0.0
      %282 = vmatpush1.msra.mxu0 %v171
      %283 = vmatprep.subr.mxu0 0.0
      %284 = vmatpush1.msra.mxu0 %v172
      %285 = vmatprep.subr.mxu0 0.0
      %286 = vmatpush1.msra.mxu0 %v173
      %287 = vmatprep.subr.mxu0 0.0
      %288 = vmatpush1.msra.mxu0 %v174
      %289 = vmatprep.subr.mxu0 0.0
      %290 = vmatpush1.msra.mxu0 %v279
      %291 = vmatprep.subr.mxu0 0.0
      %292 = vmatpush1.msra.mxu0 0.0
      %293 = vmatprep.subr.mxu0 0.0
      %294 = vmatpush1.msra.mxu0 0.0
      %295 = vmatprep.subr.mxu0 0.0
      %296 = vmatpush1.msra.mxu0 0.0
      %297 = vmatprep.subr.mxu0 0.0
      %298 = vmatpush1.msra.mxu0 0.0
      %299 = vmatprep.subr.mxu0 0.0
      %300 = vmatpush1.msra.mxu0 0.0
      %301 = vmatprep.subr.mxu0 0.0
      %302 = vmatpush1.msra.mxu0 0.0
      %303 = vmatprep.subr.mxu0 0.0
      %304 = vmatpush1.msra.mxu0 0.0
      %305 = vmatprep.subr.mxu0 0.0
      %306 = vmatpush1.msra.mxu0 0.0
      %307 = vmatprep.subr.mxu0 0.0
      %308 = vmatpush1.msra.mxu0 0.0
      %309 = vmatprep.subr.mxu0 0.0
      %310 = vmatpush1.msra.mxu0 0.0
      %311 = vmatprep.subr.mxu0 0.0
      %312 = vmatpush1.msra.mxu0 0.0
      %313 = vmatprep.subr.mxu0 0.0
      %314 = vmatpush1.msra.mxu0 0.0
      %315 = vmatprep.subr.mxu0 0.0
      %316 = vmatpush1.msra.mxu0 0.0
      %317 = vmatprep.subr.mxu0 0.0
      %318 = vmatpush1.msra.mxu0 0.0
      %319 = vmatprep.subr.mxu0 0.0
      %320 = vmatpush1.msra.mxu0 0.0
      %321 = vmatprep.subr.mxu0 0.0
      %322 = vmatpush1.msra.mxu0 0.0
      %323 = vmatprep.subr.mxu0 0.0
      %324 = vmatpush1.msra.mxu0 0.0
      %325 = vmatprep.subr.mxu0 0.0
      %326 = vmatpush1.msra.mxu0 0.0
      %327 = vmatprep.subr.mxu0 0.0
      %328 = vmatpush1.msra.mxu0 0.0
      %329 = vmatprep.subr.mxu0 0.0
      %330 = vmatpush1.msra.mxu0 0.0
      %331 = vmatprep.subr.mxu0 0.0
      %332 = vmatpush1.msra.mxu0 0.0
      %333 = vmatprep.subr.mxu0 0.0
      %334 = vmatpush1.msra.mxu0 0.0
      %335 = vmatprep.subr.mxu0 0.0
      %336 = vmatpush1.msra.mxu0 0.0
      %337 = vmatprep.subr.mxu0 0.0
      %338 = vmatpush1.msra.mxu0 0.0
      %339 = vmatprep.subr.mxu0 0.0
      %340 = vmatpush1.msra.mxu0 0.0
      %341 = vmatprep.subr.mxu0 0.0
      %342 = vmatpush1.msra.mxu0 0.0
      %343 = vmatprep.subr.mxu0 0.0
      %344 = vmatpush1.msra.mxu0 0.0
      %345 = vmatprep.mubr.f32.mxu0 0.0
      %346 = vmatmul.mubr.f32.gmra.mrb[0].mxu0 %v203
      %v347 = vpop.f32.mrb[0].mxu0
      %v348 = vadd.f32 0.0, %v347
      %v349 = vpop.f32.mrb[0].mxu0
      %350 = vmatprep.mubr.f32.mxu0 0.0
      %351 = vmatmul.mubr.f32.gmra.mrb[0].mxu0 %v206
      %v352 = vpop.f32.mrb[0].mxu0
      %v353 = vadd.f32 0.0, %v352
      %v354 = vpop.f32.mrb[0].mxu0
      %355 = vmatprep.mubr.f32.mxu0 0.0
      %356 = vmatmul.mubr.f32.gmra.mrb[0].mxu0 %v209
      %v357 = vpop.f32.mrb[0].mxu0
      %v358 = vadd.f32 0.0, %v357
      %v359 = vpop.f32.mrb[0].mxu0
      %360 = vmatprep.mubr.f32.mxu0 0.0
      %361 = vmatmul.mubr.f32.gmra.mrb[0].mxu0 %v212
      %v362 = vpop.f32.mrb[0].mxu0
      %v363 = vadd.f32 0.0, %v362
      %v364 = vpop.f32.mrb[0].mxu0
      %365 = vmatprep.mubr.f32.mxu0 0.0
      %366 = vmatmul.mubr.f32.gmra.mrb[0].mxu0 %v215
      %v367 = vpop.f32.mrb[0].mxu0
      %v368 = vadd.f32 0.0, %v367
      %v369 = vpop.f32.mrb[0].mxu0
      %370 = vmatprep.mubr.f32.mxu0 0.0
      %371 = vmatmul.mubr.f32.gmra.mrb[0].mxu0 %v218
      %v372 = vpop.f32.mrb[0].mxu0
      %v373 = vadd.f32 0.0, %v372
      %v374 = vpop.f32.mrb[0].mxu0
      %375 = vmatprep.mubr.f32.mxu0 0.0
      %376 = vmatmul.mubr.f32.gmra.mrb[0].mxu0 %v221
      %v377 = vpop.f32.mrb[0].mxu0
      %v378 = vadd.f32 0.0, %v377
      %v379 = vpop.f32.mrb[0].mxu0
      %380 = vmatprep.mubr.f32.mxu0 0.0
      %381 = vmatmul.mubr.f32.gmra.mrb[0].mxu0 %v224
      %v382 = vpop.f32.mrb[0].mxu0
      %v383 = vadd.f32 0.0, %v382
      %v384 = vpop.f32.mrb[0].mxu0
      %385 = vmatprep.mubr.f32.mxu0 0.0
      %386 = vmatmul.mubr.f32.gmra.mrb[0].mxu0 %v227
      %v387 = vpop.f32.mrb[0].mxu0
      %v388 = vadd.f32 0.0, %v387
      %v389 = vpop.f32.mrb[0].mxu0
      %390 = vmatprep.mubr.f32.mxu0 0.0
      %391 = vmatmul.mubr.f32.gmra.mrb[0].mxu0 %v230
      %v392 = vpop.f32.mrb[0].mxu0
      %v393 = vadd.f32 0.0, %v392
      %v394 = vpop.f32.mrb[0].mxu0
      %395 = vmatprep.mubr.f32.mxu0 0.0
      %396 = vmatmul.mubr.f32.gmra.mrb[0].mxu0 %v233
      %v397 = vpop.f32.mrb[0].mxu0
      %v398 = vadd.f32 0.0, %v397
      %v399 = vpop.f32.mrb[0].mxu0
      %400 = vmatprep.mubr.f32.mxu0 0.0
      %401 = vmatmul.mubr.f32.gmra.mrb[0].mxu0 %v236
      %v402 = vpop.f32.mrb[0].mxu0
      %v403 = vadd.f32 0.0, %v402
      %v404 = vpop.f32.mrb[0].mxu0
      %405 = vmatprep.mubr.f32.mxu0 0.0
      %406 = vmatmul.mubr.f32.gmra.mrb[0].mxu0 %v239
      %v407 = vpop.f32.mrb[0].mxu0
      %v408 = vadd.f32 0.0, %v407
      %v409 = vpop.f32.mrb[0].mxu0
      %410 = vmatprep.mubr.f32.mxu0 0.0
      %411 = vmatmul.mubr.f32.gmra.mrb[0].mxu0 %v242
      %v412 = vpop.f32.mrb[0].mxu0
      %v413 = vadd.f32 0.0, %v412
      %v414 = vpop.f32.mrb[0].mxu0
      %415 = vmatprep.mubr.f32.mxu0 0.0
      %416 = vmatmul.mubr.f32.gmra.mrb[0].mxu0 %v245
      %v417 = vpop.f32.mrb[0].mxu0
      %v418 = vadd.f32 0.0, %v417
      %v419 = vpop.f32.mrb[0].mxu0
      %420 = vmatprep.mubr.f32.mxu0 0.0
      %421 = vmatmul.mubr.f32.gmra.mrb[0].mxu0 %v248
      %v422 = vpop.f32.mrb[0].mxu0
      %v423 = vadd.f32 0.0, %v422
      %v424 = vpop.f32.mrb[0].mxu0
      %425 = vmatprep.mubr.f32.mxu0 0.0
      %426 = vmatmul.mubr.f32.gmra.mrb[0].mxu0 %v251
      %v427 = vpop.f32.mrb[0].mxu0
      %v428 = vadd.f32 0.0, %v427
      %v429 = vpop.f32.mrb[0].mxu0
      %430 = vmatprep.mubr.f32.mxu0 0.0
      %431 = vmatmul.mubr.f32.gmra.mrb[0].mxu0 %v254
      %v432 = vpop.f32.mrb[0].mxu0
      %v433 = vadd.f32 0.0, %v432
      %v434 = vpop.f32.mrb[0].mxu0
      %435 = vmatprep.mubr.f32.mxu0 0.0
      %436 = vmatmul.mubr.f32.gmra.mrb[0].mxu0 %v257
      %v437 = vpop.f32.mrb[0].mxu0
      %v438 = vadd.f32 0.0, %v437
      %v439 = vpop.f32.mrb[0].mxu0
      %440 = vmatprep.mubr.f32.mxu0 0.0
      %441 = vmatmul.mubr.f32.gmra.mrb[0].mxu0 %v260
      %v442 = vpop.f32.mrb[0].mxu0
      %v443 = vadd.f32 0.0, %v442
      %v444 = vpop.f32.mrb[0].mxu0
      %445 = vmatprep.mubr.f32.mxu0 0.0
      %446 = vmatmul.mubr.f32.gmra.mrb[0].mxu0 %v263
      %v447 = vpop.f32.mrb[0].mxu0
      %v448 = vadd.f32 0.0, %v447
      %v449 = vpop.f32.mrb[0].mxu0
      %450 = vmatprep.mubr.f32.mxu0 0.0
      %451 = vmatmul.mubr.f32.gmra.mrb[0].mxu0 %v266
      %v452 = vpop.f32.mrb[0].mxu0
      %v453 = vadd.f32 0.0, %v452
      %v454 = vpop.f32.mrb[0].mxu0
      %455 = vmatprep.mubr.f32.mxu0 0.0
      %456 = vmatmul.mubr.f32.gmra.mrb[0].mxu0 %v269
      %v457 = vpop.f32.mrb[0].mxu0
      %v458 = vadd.f32 0.0, %v457
      %v459 = vpop.f32.mrb[0].mxu0
      %460 = vmatprep.mubr.f32.mxu0 0.0
      %461 = vmatmul.mubr.f32.gmra.mrb[0].mxu0 %v272
      %v462 = vpop.f32.mrb[0].mxu0
      %v463 = vadd.f32 0.0, %v462
      %v464 = vpop.f32.mrb[0].mxu0
      %465 = vmatprep.mubr.f32.mxu0 0.0
      %466 = vmatmul.mubr.f32.gmra.mrb[0].mxu0 %v275
      %v467 = vpop.f32.mrb[0].mxu0
      %v468 = vadd.f32 0.0, %v467
      %v469 = vpop.f32.mrb[0].mxu0
      %470 = vdwg.mxu0
      %s471 = scalar_lea.vmem %s165, 200
      %v472 = vld [vmem:[%s471] sm:$0xff]
      %v473 = vld [vmem:[%s471 + $0x8] sm:$0xff]
      %v474 = vld [vmem:[%s471 + $0x10] sm:$0xff]
      %v475 = vld [vmem:[%s471 + $0x18] sm:$0xff]
      %v476 = vld [vmem:[%s471 + $0x20] sm:$0xff]
      %v477 = vld [vmem:[%s471 + $0x28] sm:$0xff]
      %v478 = vld [vmem:[%s471 + $0x30] sm:$0xff]
      %v479 = vld [vmem:[%s471 + $0x38] sm:$0xff]
      %v480 = vld [vmem:[%s471 + $0x40] sm:$0xff]
      %v481 = vld [vmem:[%s471 + $0x48] sm:$0xff]
      %v482 = vld [vmem:[%s471 + $0x50] sm:$0xff]
      %v483 = vld [vmem:[%s471 + $0x58] sm:$0xff]
      %v484 = vld [vmem:[%s471 + $0x60] sm:$0xff]
      %v485 = vld [vmem:[%s471 + $0x68] sm:$0xff]
      %v486 = vld [vmem:[%s471 + $0x70] sm:$0xff]
      %v487 = vld [vmem:[%s471 + $0x78] sm:$0xff]
      %v488 = vld [vmem:[%s471 + $0x80] sm:$0xff]
      %v489 = vld [vmem:[%s471 + $0x88] sm:$0xff]
      %v490 = vld [vmem:[%s471 + $0x90] sm:$0xff]
      %v491 = vld [vmem:[%s471 + $0x98] sm:$0xff]
      %v492 = vld [vmem:[%s471 + $0xa0] sm:$0xff]
      %v493 = vld [vmem:[%s471 + $0xa8] sm:$0xff]
      %v494 = vld [vmem:[%s471 + $0xb0] sm:$0xff]
      %v495 = vld [vmem:[%s471 + $0xb8] sm:$0xff]
      %v496 = vld [vmem:[%s471 + $0xc0] sm:$0xf]
      %v498 = vsel %vm201, %v472, 0
      %v501 = vsel %vm201, %v473, 0
      %v504 = vsel %vm201, %v474, 0
      %v507 = vsel %vm201, %v475, 0
      %v510 = vsel %vm201, %v476, 0
      %v513 = vsel %vm201, %v477, 0
      %v516 = vsel %vm201, %v478, 0
      %v519 = vsel %vm201, %v479, 0
      %v522 = vsel %vm201, %v480, 0
      %v525 = vsel %vm201, %v481, 0
      %v528 = vsel %vm201, %v482, 0
      %v531 = vsel %vm201, %v483, 0
      %v534 = vsel %vm201, %v484, 0
      %v537 = vsel %vm201, %v485, 0
      %v540 = vsel %vm201, %v486, 0
      %v543 = vsel %vm201, %v487, 0
      %v546 = vsel %vm201, %v488, 0
      %v549 = vsel %vm201, %v489, 0
      %v552 = vsel %vm201, %v490, 0
      %v555 = vsel %vm201, %v491, 0
      %v558 = vsel %vm201, %v492, 0
      %v561 = vsel %vm201, %v493, 0
      %v564 = vsel %vm201, %v494, 0
      %v567 = vsel %vm201, %v495, 0
      %v570 = vsel %vm201, %v496, 0
      %572 = vmatprep.subr.mxu0 0.0
      %573 = vmatpush1.msra.mxu0 %v171
      %574 = vmatprep.subr.mxu0 0.0
      %575 = vmatpush1.msra.mxu0 %v172
      %576 = vmatprep.subr.mxu0 0.0
      %577 = vmatpush1.msra.mxu0 %v173
      %578 = vmatprep.subr.mxu0 0.0
      %579 = vmatpush1.msra.mxu0 %v174
      %580 = vmatprep.subr.mxu0 0.0
      %581 = vmatpush1.msra.mxu0 %v279
      %582 = vmatprep.subr.mxu0 0.0
      %583 = vmatpush1.msra.mxu0 0.0
      %584 = vmatprep.subr.mxu0 0.0
      %585 = vmatpush1.msra.mxu0 0.0
      %586 = vmatprep.subr.mxu0 0.0
      %587 = vmatpush1.msra.mxu0 0.0
      %588 = vmatprep.subr.mxu0 0.0
      %589 = vmatpush1.msra.mxu0 0.0
      %590 = vmatprep.subr.mxu0 0.0
      %591 = vmatpush1.msra.mxu0 0.0
      %592 = vmatprep.subr.mxu0 0.0
      %593 = vmatpush1.msra.mxu0 0.0
      %594 = vmatprep.subr.mxu0 0.0
      %595 = vmatpush1.msra.mxu0 0.0
      %596 = vmatprep.subr.mxu0 0.0
      %597 = vmatpush1.msra.mxu0 0.0
      %598 = vmatprep.subr.mxu0 0.0
      %599 = vmatpush1.msra.mxu0 0.0
      %600 = vmatprep.subr.mxu0 0.0
      %601 = vmatpush1.msra.mxu0 0.0
      %602 = vmatprep.subr.mxu0 0.0
      %603 = vmatpush1.msra.mxu0 0.0
      %604 = vmatprep.subr.mxu0 0.0
      %605 = vmatpush1.msra.mxu0 0.0
      %606 = vmatprep.subr.mxu0 0.0
      %607 = vmatpush1.msra.mxu0 0.0
      %608 = vmatprep.subr.mxu0 0.0
      %609 = vmatpush1.msra.mxu0 0.0
      %610 = vmatprep.subr.mxu0 0.0
      %611 = vmatpush1.msra.mxu0 0.0
      %612 = vmatprep.subr.mxu0 0.0
      %613 = vmatpush1.msra.mxu0 0.0
      %614 = vmatprep.subr.mxu0 0.0
      %615 = vmatpush1.msra.mxu0 0.0
      %616 = vmatprep.subr.mxu0 0.0
      %617 = vmatpush1.msra.mxu0 0.0
      %618 = vmatprep.subr.mxu0 0.0
      %619 = vmatpush1.msra.mxu0 0.0
      %620 = vmatprep.subr.mxu0 0.0
      %621 = vmatpush1.msra.mxu0 0.0
      %622 = vmatprep.subr.mxu0 0.0
      %623 = vmatpush1.msra.mxu0 0.0
      %624 = vmatprep.subr.mxu0 0.0
      %625 = vmatpush1.msra.mxu0 0.0
      %626 = vmatprep.subr.mxu0 0.0
      %627 = vmatpush1.msra.mxu0 0.0
      %628 = vmatprep.subr.mxu0 0.0
      %629 = vmatpush1.msra.mxu0 0.0
      %630 = vmatprep.subr.mxu0 0.0
      %631 = vmatpush1.msra.mxu0 0.0
      %632 = vmatprep.subr.mxu0 0.0
      %633 = vmatpush1.msra.mxu0 0.0
      %634 = vmatprep.subr.mxu0 0.0
      %635 = vmatpush1.msra.mxu0 0.0
      %636 = vmatprep.mubr.f32.mxu0 0.0
      %637 = vmatmul.mubr.f32.gmra.mrb[0].mxu0 %v498
      %v638 = vpop.f32.mrb[0].mxu0
      %v639 = vadd.f32 0.0, %v638
      %v640 = vpop.f32.mrb[0].mxu0
      %641 = vmatprep.mubr.f32.mxu0 0.0
      %642 = vmatmul.mubr.f32.gmra.mrb[0].mxu0 %v501
      %v643 = vpop.f32.mrb[0].mxu0
      %v644 = vadd.f32 0.0, %v643
      %v645 = vpop.f32.mrb[0].mxu0
      %646 = vmatprep.mubr.f32.mxu0 0.0
      %647 = vmatmul.mubr.f32.gmra.mrb[0].mxu0 %v504
      %v648 = vpop.f32.mrb[0].mxu0
      %v649 = vadd.f32 0.0, %v648
      %v650 = vpop.f32.mrb[0].mxu0
      %651 = vmatprep.mubr.f32.mxu0 0.0
      %652 = vmatmul.mubr.f32.gmra.mrb[0].mxu0 %v507
      %v653 = vpop.f32.mrb[0].mxu0
      %v654 = vadd.f32 0.0, %v653
      %v655 = vpop.f32.mrb[0].mxu0
      %656 = vmatprep.mubr.f32.mxu0 0.0
      %657 = vmatmul.mubr.f32.gmra.mrb[0].mxu0 %v510
      %v658 = vpop.f32.mrb[0].mxu0
      %v659 = vadd.f32 0.0, %v658
      %v660 = vpop.f32.mrb[0].mxu0
      %661 = vmatprep.mubr.f32.mxu0 0.0
      %662 = vmatmul.mubr.f32.gmra.mrb[0].mxu0 %v513
      %v663 = vpop.f32.mrb[0].mxu0
      %v664 = vadd.f32 0.0, %v663
      %v665 = vpop.f32.mrb[0].mxu0
      %666 = vmatprep.mubr.f32.mxu0 0.0
      %667 = vmatmul.mubr.f32.gmra.mrb[0].mxu0 %v516
      %v668 = vpop.f32.mrb[0].mxu0
      %v669 = vadd.f32 0.0, %v668
      %v670 = vpop.f32.mrb[0].mxu0
      %671 = vmatprep.mubr.f32.mxu0 0.0
      %672 = vmatmul.mubr.f32.gmra.mrb[0].mxu0 %v519
      %v673 = vpop.f32.mrb[0].mxu0
      %v674 = vadd.f32 0.0, %v673
      %v675 = vpop.f32.mrb[0].mxu0
      %676 = vmatprep.mubr.f32.mxu0 0.0
      %677 = vmatmul.mubr.f32.gmra.mrb[0].mxu0 %v522
      %v678 = vpop.f32.mrb[0].mxu0
      %v679 = vadd.f32 0.0, %v678
      %v680 = vpop.f32.mrb[0].mxu0
      %681 = vmatprep.mubr.f32.mxu0 0.0
      %682 = vmatmul.mubr.f32.gmra.mrb[0].mxu0 %v525
      %v683 = vpop.f32.mrb[0].mxu0
      %v684 = vadd.f32 0.0, %v683
      %v685 = vpop.f32.mrb[0].mxu0
      %686 = vmatprep.mubr.f32.mxu0 0.0
      %687 = vmatmul.mubr.f32.gmra.mrb[0].mxu0 %v528
      %v688 = vpop.f32.mrb[0].mxu0
      %v689 = vadd.f32 0.0, %v688
      %v690 = vpop.f32.mrb[0].mxu0
      %691 = vmatprep.mubr.f32.mxu0 0.0
      %692 = vmatmul.mubr.f32.gmra.mrb[0].mxu0 %v531
      %v693 = vpop.f32.mrb[0].mxu0
      %v694 = vadd.f32 0.0, %v693
      %v695 = vpop.f32.mrb[0].mxu0
      %696 = vmatprep.mubr.f32.mxu0 0.0
      %697 = vmatmul.mubr.f32.gmra.mrb[0].mxu0 %v534
      %v698 = vpop.f32.mrb[0].mxu0
      %v699 = vadd.f32 0.0, %v698
      %v700 = vpop.f32.mrb[0].mxu0
      %701 = vmatprep.mubr.f32.mxu0 0.0
      %702 = vmatmul.mubr.f32.gmra.mrb[0].mxu0 %v537
      %v703 = vpop.f32.mrb[0].mxu0
      %v704 = vadd.f32 0.0, %v703
      %v705 = vpop.f32.mrb[0].mxu0
      %706 = vmatprep.mubr.f32.mxu0 0.0
      %707 = vmatmul.mubr.f32.gmra.mrb[0].mxu0 %v540
      %v708 = vpop.f32.mrb[0].mxu0
      %v709 = vadd.f32 0.0, %v708
      %v710 = vpop.f32.mrb[0].mxu0
      %711 = vmatprep.mubr.f32.mxu0 0.0
      %712 = vmatmul.mubr.f32.gmra.mrb[0].mxu0 %v543
      %v713 = vpop.f32.mrb[0].mxu0
      %v714 = vadd.f32 0.0, %v713
      %v715 = vpop.f32.mrb[0].mxu0
      %716 = vmatprep.mubr.f32.mxu0 0.0
      %717 = vmatmul.mubr.f32.gmra.mrb[0].mxu0 %v546
      %v718 = vpop.f32.mrb[0].mxu0
      %v719 = vadd.f32 0.0, %v718
      %v720 = vpop.f32.mrb[0].mxu0
      %721 = vmatprep.mubr.f32.mxu0 0.0
      %722 = vmatmul.mubr.f32.gmra.mrb[0].mxu0 %v549
      %v723 = vpop.f32.mrb[0].mxu0
      %v724 = vadd.f32 0.0, %v723
      %v725 = vpop.f32.mrb[0].mxu0
      %726 = vmatprep.mubr.f32.mxu0 0.0
      %727 = vmatmul.mubr.f32.gmra.mrb[0].mxu0 %v552
      %v728 = vpop.f32.mrb[0].mxu0
      %v729 = vadd.f32 0.0, %v728
      %v730 = vpop.f32.mrb[0].mxu0
      %731 = vmatprep.mubr.f32.mxu0 0.0
      %732 = vmatmul.mubr.f32.gmra.mrb[0].mxu0 %v555
      %v733 = vpop.f32.mrb[0].mxu0
      %v734 = vadd.f32 0.0, %v733
      %v735 = vpop.f32.mrb[0].mxu0
      %736 = vmatprep.mubr.f32.mxu0 0.0
      %737 = vmatmul.mubr.f32.gmra.mrb[0].mxu0 %v558
      %v738 = vpop.f32.mrb[0].mxu0
      %v739 = vadd.f32 0.0, %v738
      %v740 = vpop.f32.mrb[0].mxu0
      %741 = vmatprep.mubr.f32.mxu0 0.0
      %742 = vmatmul.mubr.f32.gmra.mrb[0].mxu0 %v561
      %v743 = vpop.f32.mrb[0].mxu0
      %v744 = vadd.f32 0.0, %v743
      %v745 = vpop.f32.mrb[0].mxu0
      %746 = vmatprep.mubr.f32.mxu0 0.0
      %747 = vmatmul.mubr.f32.gmra.mrb[0].mxu0 %v564
      %v748 = vpop.f32.mrb[0].mxu0
      %v749 = vadd.f32 0.0, %v748
      %v750 = vpop.f32.mrb[0].mxu0
      %751 = vmatprep.mubr.f32.mxu0 0.0
      %752 = vmatmul.mubr.f32.gmra.mrb[0].mxu0 %v567
      %v753 = vpop.f32.mrb[0].mxu0
      %v754 = vadd.f32 0.0, %v753
      %v755 = vpop.f32.mrb[0].mxu0
      %756 = vmatprep.mubr.f32.mxu0 0.0
      %757 = vmatmul.mubr.f32.gmra.mrb[0].mxu0 %v570
      %v758 = vpop.f32.mrb[0].mxu0
      %v759 = vadd.f32 0.0, %v758
      %v760 = vpop.f32.mrb[0].mxu0
      %761 = vdwg.mxu0
      %v762 = vmax.f32 %v348, %v639
      %v763 = vmax.f32 %v353, %v644
      %v764 = vmax.f32 %v358, %v649
      %v765 = vmax.f32 %v363, %v654
      %v766 = vmax.f32 %v368, %v659
      %v767 = vmax.f32 %v373, %v664
      %v768 = vmax.f32 %v378, %v669
      %v769 = vmax.f32 %v383, %v674
      %v770 = vmax.f32 %v388, %v679
      %v771 = vmax.f32 %v393, %v684
      %v772 = vmax.f32 %v398, %v689
      %v773 = vmax.f32 %v403, %v694
      %v774 = vmax.f32 %v408, %v699
      %v775 = vmax.f32 %v413, %v704
      %v776 = vmax.f32 %v418, %v709
      %v777 = vmax.f32 %v423, %v714
      %v778 = vmax.f32 %v428, %v719
      %v779 = vmax.f32 %v433, %v724
      %v780 = vmax.f32 %v438, %v729
      %v781 = vmax.f32 %v443, %v734
      %v782 = vmax.f32 %v448, %v739
      %v783 = vmax.f32 %v453, %v744
      %v784 = vmax.f32 %v458, %v749
      %v785 = vmax.f32 %v463, %v754
      %v786 = vmax.f32 %v468, %v759
      %s787 = scalar_lea.vmem %s165, 400
      %v788 = vld [vmem:[%s787] sm:$0xff]
      %v789 = vld [vmem:[%s787 + $0x8] sm:$0xff]
      %v790 = vld [vmem:[%s787 + $0x10] sm:$0xff]
      %v791 = vld [vmem:[%s787 + $0x18] sm:$0xff]
      %v792 = vld [vmem:[%s787 + $0x20] sm:$0xff]
      %v793 = vld [vmem:[%s787 + $0x28] sm:$0xff]
      %v794 = vld [vmem:[%s787 + $0x30] sm:$0xff]
      %v795 = vld [vmem:[%s787 + $0x38] sm:$0xff]
      %v796 = vld [vmem:[%s787 + $0x40] sm:$0xff]
      %v797 = vld [vmem:[%s787 + $0x48] sm:$0xff]
      %v798 = vld [vmem:[%s787 + $0x50] sm:$0xff]
      %v799 = vld [vmem:[%s787 + $0x58] sm:$0xff]
      %v800 = vld [vmem:[%s787 + $0x60] sm:$0xff]
      %v801 = vld [vmem:[%s787 + $0x68] sm:$0xff]
      %v802 = vld [vmem:[%s787 + $0x70] sm:$0xff]
      %v803 = vld [vmem:[%s787 + $0x78] sm:$0xff]
      %v804 = vld [vmem:[%s787 + $0x80] sm:$0xff]
      %v805 = vld [vmem:[%s787 + $0x88] sm:$0xff]
      %v806 = vld [vmem:[%s787 + $0x90] sm:$0xff]
      %v807 = vld [vmem:[%s787 + $0x98] sm:$0xff]
      %v808 = vld [vmem:[%s787 + $0xa0] sm:$0xff]
      %v809 = vld [vmem:[%s787 + $0xa8] sm:$0xff]
      %v810 = vld [vmem:[%s787 + $0xb0] sm:$0xff]
      %v811 = vld [vmem:[%s787 + $0xb8] sm:$0xff]
      %v812 = vld [vmem:[%s787 + $0xc0] sm:$0xf]
      %v814 = vsel %vm201, %v788, 0
      %v817 = vsel %vm201, %v789, 0
      %v820 = vsel %vm201, %v790, 0
      %v823 = vsel %vm201, %v791, 0
      %v826 = vsel %vm201, %v792, 0
      %v829 = vsel %vm201, %v793, 0
      %v832 = vsel %vm201, %v794, 0
      %v835 = vsel %vm201, %v795, 0
      %v838 = vsel %vm201, %v796, 0
      %v841 = vsel %vm201, %v797, 0
      %v844 = vsel %vm201, %v798, 0
      %v847 = vsel %vm201, %v799, 0
      %v850 = vsel %vm201, %v800, 0
      %v853 = vsel %vm201, %v801, 0
      %v856 = vsel %vm201, %v802, 0
      %v859 = vsel %vm201, %v803, 0
      %v862 = vsel %vm201, %v804, 0
      %v865 = vsel %vm201, %v805, 0
      %v868 = vsel %vm201, %v806, 0
      %v871 = vsel %vm201, %v807, 0
      %v874 = vsel %vm201, %v808, 0
      %v877 = vsel %vm201, %v809, 0
      %v880 = vsel %vm201, %v810, 0
      %v883 = vsel %vm201, %v811, 0
      %v886 = vsel %vm201, %v812, 0
      %888 = vmatprep.subr.mxu0 0.0
      %889 = vmatpush1.msra.mxu0 %v171
      %890 = vmatprep.subr.mxu0 0.0
      %891 = vmatpush1.msra.mxu0 %v172
      %892 = vmatprep.subr.mxu0 0.0
      %893 = vmatpush1.msra.mxu0 %v173
      %894 = vmatprep.subr.mxu0 0.0
      %895 = vmatpush1.msra.mxu0 %v174
      %896 = vmatprep.subr.mxu0 0.0
      %897 = vmatpush1.msra.mxu0 %v279
      %898 = vmatprep.subr.mxu0 0.0
      %899 = vmatpush1.msra.mxu0 0.0
      %900 = vmatprep.subr.mxu0 0.0
      %901 = vmatpush1.msra.mxu0 0.0
      %902 = vmatprep.subr.mxu0 0.0
      %903 = vmatpush1.msra.mxu0 0.0
      %904 = vmatprep.subr.mxu0 0.0
      %905 = vmatpush1.msra.mxu0 0.0
      %906 = vmatprep.subr.mxu0 0.0
      %907 = vmatpush1.msra.mxu0 0.0
      %908 = vmatprep.subr.mxu0 0.0
      %909 = vmatpush1.msra.mxu0 0.0
      %910 = vmatprep.subr.mxu0 0.0
      %911 = vmatpush1.msra.mxu0 0.0
      %912 = vmatprep.subr.mxu0 0.0
      %913 = vmatpush1.msra.mxu0 0.0
      %914 = vmatprep.subr.mxu0 0.0
      %915 = vmatpush1.msra.mxu0 0.0
      %916 = vmatprep.subr.mxu0 0.0
      %917 = vmatpush1.msra.mxu0 0.0
      %918 = vmatprep.subr.mxu0 0.0
      %919 = vmatpush1.msra.mxu0 0.0
      %920 = vmatprep.subr.mxu0 0.0
      %921 = vmatpush1.msra.mxu0 0.0
      %922 = vmatprep.subr.mxu0 0.0
      %923 = vmatpush1.msra.mxu0 0.0
      %924 = vmatprep.subr.mxu0 0.0
      %925 = vmatpush1.msra.mxu0 0.0
      %926 = vmatprep.subr.mxu0 0.0
      %927 = vmatpush1.msra.mxu0 0.0
      %928 = vmatprep.subr.mxu0 0.0
      %929 = vmatpush1.msra.mxu0 0.0
      %930 = vmatprep.subr.mxu0 0.0
      %931 = vmatpush1.msra.mxu0 0.0
      %932 = vmatprep.subr.mxu0 0.0
      %933 = vmatpush1.msra.mxu0 0.0
      %934 = vmatprep.subr.mxu0 0.0
      %935 = vmatpush1.msra.mxu0 0.0
      %936 = vmatprep.subr.mxu0 0.0
      %937 = vmatpush1.msra.mxu0 0.0
      %938 = vmatprep.subr.mxu0 0.0
      %939 = vmatpush1.msra.mxu0 0.0
      %940 = vmatprep.subr.mxu0 0.0
      %941 = vmatpush1.msra.mxu0 0.0
      %942 = vmatprep.subr.mxu0 0.0
      %943 = vmatpush1.msra.mxu0 0.0
      %944 = vmatprep.subr.mxu0 0.0
      %945 = vmatpush1.msra.mxu0 0.0
      %946 = vmatprep.subr.mxu0 0.0
      %947 = vmatpush1.msra.mxu0 0.0
      %948 = vmatprep.subr.mxu0 0.0
      %949 = vmatpush1.msra.mxu0 0.0
      %950 = vmatprep.subr.mxu0 0.0
      %951 = vmatpush1.msra.mxu0 0.0
      %952 = vmatprep.mubr.f32.mxu0 0.0
      %953 = vmatmul.mubr.f32.gmra.mrb[0].mxu0 %v814
      %v954 = vpop.f32.mrb[0].mxu0
      %v955 = vadd.f32 0.0, %v954
      %v956 = vpop.f32.mrb[0].mxu0
      %957 = vmatprep.mubr.f32.mxu0 0.0
      %958 = vmatmul.mubr.f32.gmra.mrb[0].mxu0 %v817
      %v959 = vpop.f32.mrb[0].mxu0
      %v960 = vadd.f32 0.0, %v959
      %v961 = vpop.f32.mrb[0].mxu0
      %962 = vmatprep.mubr.f32.mxu0 0.0
      %963 = vmatmul.mubr.f32.gmra.mrb[0].mxu0 %v820
      %v964 = vpop.f32.mrb[0].mxu0
      %v965 = vadd.f32 0.0, %v964
      %v966 = vpop.f32.mrb[0].mxu0
      %967 = vmatprep.mubr.f32.mxu0 0.0
      %968 = vmatmul.mubr.f32.gmra.mrb[0].mxu0 %v823
      %v969 = vpop.f32.mrb[0].mxu0
      %v970 = vadd.f32 0.0, %v969
      %v971 = vpop.f32.mrb[0].mxu0
      %972 = vmatprep.mubr.f32.mxu0 0.0
      %973 = vmatmul.mubr.f32.gmra.mrb[0].mxu0 %v826
      %v974 = vpop.f32.mrb[0].mxu0
      %v975 = vadd.f32 0.0, %v974
      %v976 = vpop.f32.mrb[0].mxu0
      %977 = vmatprep.mubr.f32.mxu0 0.0
      %978 = vmatmul.mubr.f32.gmra.mrb[0].mxu0 %v829
      %v979 = vpop.f32.mrb[0].mxu0
      %v980 = vadd.f32 0.0, %v979
      %v981 = vpop.f32.mrb[0].mxu0
      %982 = vmatprep.mubr.f32.mxu0 0.0
      %983 = vmatmul.mubr.f32.gmra.mrb[0].mxu0 %v832
      %v984 = vpop.f32.mrb[0].mxu0
      %v985 = vadd.f32 0.0, %v984
      %v986 = vpop.f32.mrb[0].mxu0
      %987 = vmatprep.mubr.f32.mxu0 0.0
      %988 = vmatmul.mubr.f32.gmra.mrb[0].mxu0 %v835
      %v989 = vpop.f32.mrb[0].mxu0
      %v990 = vadd.f32 0.0, %v989
      %v991 = vpop.f32.mrb[0].mxu0
      %992 = vmatprep.mubr.f32.mxu0 0.0
      %993 = vmatmul.mubr.f32.gmra.mrb[0].mxu0 %v838
      %v994 = vpop.f32.mrb[0].mxu0
      %v995 = vadd.f32 0.0, %v994
      %v996 = vpop.f32.mrb[0].mxu0
      %997 = vmatprep.mubr.f32.mxu0 0.0
      %998 = vmatmul.mubr.f32.gmra.mrb[0].mxu0 %v841
      %v999 = vpop.f32.mrb[0].mxu0
      %v1000 = vadd.f32 0.0, %v999
      %v1001 = vpop.f32.mrb[0].mxu0
      %1002 = vmatprep.mubr.f32.mxu0 0.0
      %1003 = vmatmul.mubr.f32.gmra.mrb[0].mxu0 %v844
      %v1004 = vpop.f32.mrb[0].mxu0
      %v1005 = vadd.f32 0.0, %v1004
      %v1006 = vpop.f32.mrb[0].mxu0
      %1007 = vmatprep.mubr.f32.mxu0 0.0
      %1008 = vmatmul.mubr.f32.gmra.mrb[0].mxu0 %v847
      %v1009 = vpop.f32.mrb[0].mxu0
      %v1010 = vadd.f32 0.0, %v1009
      %v1011 = vpop.f32.mrb[0].mxu0
      %1012 = vmatprep.mubr.f32.mxu0 0.0
      %1013 = vmatmul.mubr.f32.gmra.mrb[0].mxu0 %v850
      %v1014 = vpop.f32.mrb[0].mxu0
      %v1015 = vadd.f32 0.0, %v1014
      %v1016 = vpop.f32.mrb[0].mxu0
      %1017 = vmatprep.mubr.f32.mxu0 0.0
      %1018 = vmatmul.mubr.f32.gmra.mrb[0].mxu0 %v853
      %v1019 = vpop.f32.mrb[0].mxu0
      %v1020 = vadd.f32 0.0, %v1019
      %v1021 = vpop.f32.mrb[0].mxu0
      %1022 = vmatprep.mubr.f32.mxu0 0.0
      %1023 = vmatmul.mubr.f32.gmra.mrb[0].mxu0 %v856
      %v1024 = vpop.f32.mrb[0].mxu0
      %v1025 = vadd.f32 0.0, %v1024
      %v1026 = vpop.f32.mrb[0].mxu0
      %1027 = vmatprep.mubr.f32.mxu0 0.0
      %1028 = vmatmul.mubr.f32.gmra.mrb[0].mxu0 %v859
      %v1029 = vpop.f32.mrb[0].mxu0
      %v1030 = vadd.f32 0.0, %v1029
      %v1031 = vpop.f32.mrb[0].mxu0
      %1032 = vmatprep.mubr.f32.mxu0 0.0
      %1033 = vmatmul.mubr.f32.gmra.mrb[0].mxu0 %v862
      %v1034 = vpop.f32.mrb[0].mxu0
      %v1035 = vadd.f32 0.0, %v1034
      %v1036 = vpop.f32.mrb[0].mxu0
      %1037 = vmatprep.mubr.f32.mxu0 0.0
      %1038 = vmatmul.mubr.f32.gmra.mrb[0].mxu0 %v865
      %v1039 = vpop.f32.mrb[0].mxu0
      %v1040 = vadd.f32 0.0, %v1039
      %v1041 = vpop.f32.mrb[0].mxu0
      %1042 = vmatprep.mubr.f32.mxu0 0.0
      %1043 = vmatmul.mubr.f32.gmra.mrb[0].mxu0 %v868
      %v1044 = vpop.f32.mrb[0].mxu0
      %v1045 = vadd.f32 0.0, %v1044
      %v1046 = vpop.f32.mrb[0].mxu0
      %1047 = vmatprep.mubr.f32.mxu0 0.0
      %1048 = vmatmul.mubr.f32.gmra.mrb[0].mxu0 %v871
      %v1049 = vpop.f32.mrb[0].mxu0
      %v1050 = vadd.f32 0.0, %v1049
      %v1051 = vpop.f32.mrb[0].mxu0
      %1052 = vmatprep.mubr.f32.mxu0 0.0
      %1053 = vmatmul.mubr.f32.gmra.mrb[0].mxu0 %v874
      %v1054 = vpop.f32.mrb[0].mxu0
      %v1055 = vadd.f32 0.0, %v1054
      %v1056 = vpop.f32.mrb[0].mxu0
      %1057 = vmatprep.mubr.f32.mxu0 0.0
      %1058 = vmatmul.mubr.f32.gmra.mrb[0].mxu0 %v877
      %v1059 = vpop.f32.mrb[0].mxu0
      %v1060 = vadd.f32 0.0, %v1059
      %v1061 = vpop.f32.mrb[0].mxu0
      %1062 = vmatprep.mubr.f32.mxu0 0.0
      %1063 = vmatmul.mubr.f32.gmra.mrb[0].mxu0 %v880
      %v1064 = vpop.f32.mrb[0].mxu0
      %v1065 = vadd.f32 0.0, %v1064
      %v1066 = vpop.f32.mrb[0].mxu0
      %1067 = vmatprep.mubr.f32.mxu0 0.0
      %1068 = vmatmul.mubr.f32.gmra.mrb[0].mxu0 %v883
      %v1069 = vpop.f32.mrb[0].mxu0
      %v1070 = vadd.f32 0.0, %v1069
      %v1071 = vpop.f32.mrb[0].mxu0
      %1072 = vmatprep.mubr.f32.mxu0 0.0
      %1073 = vmatmul.mubr.f32.gmra.mrb[0].mxu0 %v886
      %v1074 = vpop.f32.mrb[0].mxu0
      %v1075 = vadd.f32 0.0, %v1074
      %v1076 = vpop.f32.mrb[0].mxu0
      %1077 = vdwg.mxu0
      %v1078 = vmax.f32 %v762, %v955
      %v1079 = vmax.f32 %v763, %v960
      %v1080 = vmax.f32 %v764, %v965
      %v1081 = vmax.f32 %v765, %v970
      %v1082 = vmax.f32 %v766, %v975
      %v1083 = vmax.f32 %v767, %v980
      %v1084 = vmax.f32 %v768, %v985
      %v1085 = vmax.f32 %v769, %v990
      %v1086 = vmax.f32 %v770, %v995
      %v1087 = vmax.f32 %v771, %v1000
      %v1088 = vmax.f32 %v772, %v1005
      %v1089 = vmax.f32 %v773, %v1010
      %v1090 = vmax.f32 %v774, %v1015
      %v1091 = vmax.f32 %v775, %v1020
      %v1092 = vmax.f32 %v776, %v1025
      %v1093 = vmax.f32 %v777, %v1030
      %v1094 = vmax.f32 %v778, %v1035
      %v1095 = vmax.f32 %v779, %v1040
      %v1096 = vmax.f32 %v780, %v1045
      %v1097 = vmax.f32 %v781, %v1050
      %v1098 = vmax.f32 %v782, %v1055
      %v1099 = vmax.f32 %v783, %v1060
      %v1100 = vmax.f32 %v784, %v1065
      %v1101 = vmax.f32 %v785, %v1070
      %v1102 = vmax.f32 %v786, %v1075
      %s1103 = scalar_lea.vmem %s165, 600
      %v1104 = vld [vmem:[%s1103] sm:$0xff]
      %v1105 = vld [vmem:[%s1103 + $0x8] sm:$0xff]
      %v1106 = vld [vmem:[%s1103 + $0x10] sm:$0xff]
      %v1107 = vld [vmem:[%s1103 + $0x18] sm:$0xff]
      %v1108 = vld [vmem:[%s1103 + $0x20] sm:$0xff]
      %v1109 = vld [vmem:[%s1103 + $0x28] sm:$0xff]
      %v1110 = vld [vmem:[%s1103 + $0x30] sm:$0xff]
      %v1111 = vld [vmem:[%s1103 + $0x38] sm:$0xff]
      %v1112 = vld [vmem:[%s1103 + $0x40] sm:$0xff]
      %v1113 = vld [vmem:[%s1103 + $0x48] sm:$0xff]
      %v1114 = vld [vmem:[%s1103 + $0x50] sm:$0xff]
      %v1115 = vld [vmem:[%s1103 + $0x58] sm:$0xff]
      %v1116 = vld [vmem:[%s1103 + $0x60] sm:$0xff]
      %v1117 = vld [vmem:[%s1103 + $0x68] sm:$0xff]
      %v1118 = vld [vmem:[%s1103 + $0x70] sm:$0xff]
      %v1119 = vld [vmem:[%s1103 + $0x78] sm:$0xff]
      %v1120 = vld [vmem:[%s1103 + $0x80] sm:$0xff]
      %v1121 = vld [vmem:[%s1103 + $0x88] sm:$0xff]
      %v1122 = vld [vmem:[%s1103 + $0x90] sm:$0xff]
      %v1123 = vld [vmem:[%s1103 + $0x98] sm:$0xff]
      %v1124 = vld [vmem:[%s1103 + $0xa0] sm:$0xff]
      %v1125 = vld [vmem:[%s1103 + $0xa8] sm:$0xff]
      %v1126 = vld [vmem:[%s1103 + $0xb0] sm:$0xff]
      %v1127 = vld [vmem:[%s1103 + $0xb8] sm:$0xff]
      %v1128 = vld [vmem:[%s1103 + $0xc0] sm:$0xf]
      %v1130 = vsel %vm201, %v1104, 0
      %v1133 = vsel %vm201, %v1105, 0
      %v1136 = vsel %vm201, %v1106, 0
      %v1139 = vsel %vm201, %v1107, 0
      %v1142 = vsel %vm201, %v1108, 0
      %v1145 = vsel %vm201, %v1109, 0
      %v1148 = vsel %vm201, %v1110, 0
      %v1151 = vsel %vm201, %v1111, 0
      %v1154 = vsel %vm201, %v1112, 0
      %v1157 = vsel %vm201, %v1113, 0
      %v1160 = vsel %vm201, %v1114, 0
      %v1163 = vsel %vm201, %v1115, 0
      %v1166 = vsel %vm201, %v1116, 0
      %v1169 = vsel %vm201, %v1117, 0
      %v1172 = vsel %vm201, %v1118, 0
      %v1175 = vsel %vm201, %v1119, 0
      %v1178 = vsel %vm201, %v1120, 0
      %v1181 = vsel %vm201, %v1121, 0
      %v1184 = vsel %vm201, %v1122, 0
      %v1187 = vsel %vm201, %v1123, 0
      %v1190 = vsel %vm201, %v1124, 0
      %v1193 = vsel %vm201, %v1125, 0
      %v1196 = vsel %vm201, %v1126, 0
      %v1199 = vsel %vm201, %v1127, 0
      %v1202 = vsel %vm201, %v1128, 0
      %1204 = vmatprep.subr.mxu0 0.0
      %1205 = vmatpush1.msra.mxu0 %v171
      %1206 = vmatprep.subr.mxu0 0.0
      %1207 = vmatpush1.msra.mxu0 %v172
      %1208 = vmatprep.subr.mxu0 0.0
      %1209 = vmatpush1.msra.mxu0 %v173
      %1210 = vmatprep.subr.mxu0 0.0
      %1211 = vmatpush1.msra.mxu0 %v174
      %1212 = vmatprep.subr.mxu0 0.0
      %1213 = vmatpush1.msra.mxu0 %v279
      %1214 = vmatprep.subr.mxu0 0.0
      %1215 = vmatpush1.msra.mxu0 0.0
      %1216 = vmatprep.subr.mxu0 0.0
      %1217 = vmatpush1.msra.mxu0 0.0
      %1218 = vmatprep.subr.mxu0 0.0
      %1219 = vmatpush1.msra.mxu0 0.0
      %1220 = vmatprep.subr.mxu0 0.0
      %1221 = vmatpush1.msra.mxu0 0.0
      %1222 = vmatprep.subr.mxu0 0.0
      %1223 = vmatpush1.msra.mxu0 0.0
      %1224 = vmatprep.subr.mxu0 0.0
      %1225 = vmatpush1.msra.mxu0 0.0
      %1226 = vmatprep.subr.mxu0 0.0
      %1227 = vmatpush1.msra.mxu0 0.0
      %1228 = vmatprep.subr.mxu0 0.0
      %1229 = vmatpush1.msra.mxu0 0.0
      %1230 = vmatprep.subr.mxu0 0.0
      %1231 = vmatpush1.msra.mxu0 0.0
      %1232 = vmatprep.subr.mxu0 0.0
      %1233 = vmatpush1.msra.mxu0 0.0
      %1234 = vmatprep.subr.mxu0 0.0
      %1235 = vmatpush1.msra.mxu0 0.0
      %1236 = vmatprep.subr.mxu0 0.0
      %1237 = vmatpush1.msra.mxu0 0.0
      %1238 = vmatprep.subr.mxu0 0.0
      %1239 = vmatpush1.msra.mxu0 0.0
      %1240 = vmatprep.subr.mxu0 0.0
      %1241 = vmatpush1.msra.mxu0 0.0
      %1242 = vmatprep.subr.mxu0 0.0
      %1243 = vmatpush1.msra.mxu0 0.0
      %1244 = vmatprep.subr.mxu0 0.0
      %1245 = vmatpush1.msra.mxu0 0.0
      %1246 = vmatprep.subr.mxu0 0.0
      %1247 = vmatpush1.msra.mxu0 0.0
      %1248 = vmatprep.subr.mxu0 0.0
      %1249 = vmatpush1.msra.mxu0 0.0
      %1250 = vmatprep.subr.mxu0 0.0
      %1251 = vmatpush1.msra.mxu0 0.0
      %1252 = vmatprep.subr.mxu0 0.0
      %1253 = vmatpush1.msra.mxu0 0.0
      %1254 = vmatprep.subr.mxu0 0.0
      %1255 = vmatpush1.msra.mxu0 0.0
      %1256 = vmatprep.subr.mxu0 0.0
      %1257 = vmatpush1.msra.mxu0 0.0
      %1258 = vmatprep.subr.mxu0 0.0
      %1259 = vmatpush1.msra.mxu0 0.0
      %1260 = vmatprep.subr.mxu0 0.0
      %1261 = vmatpush1.msra.mxu0 0.0
      %1262 = vmatprep.subr.mxu0 0.0
      %1263 = vmatpush1.msra.mxu0 0.0
      %1264 = vmatprep.subr.mxu0 0.0
      %1265 = vmatpush1.msra.mxu0 0.0
      %1266 = vmatprep.subr.mxu0 0.0
      %1267 = vmatpush1.msra.mxu0 0.0
      %1268 = vmatprep.mubr.f32.mxu0 0.0
      %1269 = vmatmul.mubr.f32.gmra.mrb[0].mxu0 %v1130
      %v1270 = vpop.f32.mrb[0].mxu0
      %v1271 = vadd.f32 0.0, %v1270
      %v1272 = vpop.f32.mrb[0].mxu0
      %1273 = vmatprep.mubr.f32.mxu0 0.0
      %1274 = vmatmul.mubr.f32.gmra.mrb[0].mxu0 %v1133
      %v1275 = vpop.f32.mrb[0].mxu0
      %v1276 = vadd.f32 0.0, %v1275
      %v1277 = vpop.f32.mrb[0].mxu0
      %1278 = vmatprep.mubr.f32.mxu0 0.0
      %1279 = vmatmul.mubr.f32.gmra.mrb[0].mxu0 %v1136
      %v1280 = vpop.f32.mrb[0].mxu0
      %v1281 = vadd.f32 0.0, %v1280
      %v1282 = vpop.f32.mrb[0].mxu0
      %1283 = vmatprep.mubr.f32.mxu0 0.0
      %1284 = vmatmul.mubr.f32.gmra.mrb[0].mxu0 %v1139
      %v1285 = vpop.f32.mrb[0].mxu0
      %v1286 = vadd.f32 0.0, %v1285
      %v1287 = vpop.f32.mrb[0].mxu0
      %1288 = vmatprep.mubr.f32.mxu0 0.0
      %1289 = vmatmul.mubr.f32.gmra.mrb[0].mxu0 %v1142
      %v1290 = vpop.f32.mrb[0].mxu0
      %v1291 = vadd.f32 0.0, %v1290
      %v1292 = vpop.f32.mrb[0].mxu0
      %1293 = vmatprep.mubr.f32.mxu0 0.0
      %1294 = vmatmul.mubr.f32.gmra.mrb[0].mxu0 %v1145
      %v1295 = vpop.f32.mrb[0].mxu0
      %v1296 = vadd.f32 0.0, %v1295
      %v1297 = vpop.f32.mrb[0].mxu0
      %1298 = vmatprep.mubr.f32.mxu0 0.0
      %1299 = vmatmul.mubr.f32.gmra.mrb[0].mxu0 %v1148
      %v1300 = vpop.f32.mrb[0].mxu0
      %v1301 = vadd.f32 0.0, %v1300
      %v1302 = vpop.f32.mrb[0].mxu0
      %1303 = vmatprep.mubr.f32.mxu0 0.0
      %1304 = vmatmul.mubr.f32.gmra.mrb[0].mxu0 %v1151
      %v1305 = vpop.f32.mrb[0].mxu0
      %v1306 = vadd.f32 0.0, %v1305
      %v1307 = vpop.f32.mrb[0].mxu0
      %1308 = vmatprep.mubr.f32.mxu0 0.0
      %1309 = vmatmul.mubr.f32.gmra.mrb[0].mxu0 %v1154
      %v1310 = vpop.f32.mrb[0].mxu0
      %v1311 = vadd.f32 0.0, %v1310
      %v1312 = vpop.f32.mrb[0].mxu0
      %1313 = vmatprep.mubr.f32.mxu0 0.0
      %1314 = vmatmul.mubr.f32.gmra.mrb[0].mxu0 %v1157
      %v1315 = vpop.f32.mrb[0].mxu0
      %v1316 = vadd.f32 0.0, %v1315
      %v1317 = vpop.f32.mrb[0].mxu0
      %1318 = vmatprep.mubr.f32.mxu0 0.0
      %1319 = vmatmul.mubr.f32.gmra.mrb[0].mxu0 %v1160
      %v1320 = vpop.f32.mrb[0].mxu0
      %v1321 = vadd.f32 0.0, %v1320
      %v1322 = vpop.f32.mrb[0].mxu0
      %1323 = vmatprep.mubr.f32.mxu0 0.0
      %1324 = vmatmul.mubr.f32.gmra.mrb[0].mxu0 %v1163
      %v1325 = vpop.f32.mrb[0].mxu0
      %v1326 = vadd.f32 0.0, %v1325
      %v1327 = vpop.f32.mrb[0].mxu0
      %1328 = vmatprep.mubr.f32.mxu0 0.0
      %1329 = vmatmul.mubr.f32.gmra.mrb[0].mxu0 %v1166
      %v1330 = vpop.f32.mrb[0].mxu0
      %v1331 = vadd.f32 0.0, %v1330
      %v1332 = vpop.f32.mrb[0].mxu0
      %1333 = vmatprep.mubr.f32.mxu0 0.0
      %1334 = vmatmul.mubr.f32.gmra.mrb[0].mxu0 %v1169
      %v1335 = vpop.f32.mrb[0].mxu0
      %v1336 = vadd.f32 0.0, %v1335
      %v1337 = vpop.f32.mrb[0].mxu0
      %1338 = vmatprep.mubr.f32.mxu0 0.0
      %1339 = vmatmul.mubr.f32.gmra.mrb[0].mxu0 %v1172
      %v1340 = vpop.f32.mrb[0].mxu0
      %v1341 = vadd.f32 0.0, %v1340
      %v1342 = vpop.f32.mrb[0].mxu0
      %1343 = vmatprep.mubr.f32.mxu0 0.0
      %1344 = vmatmul.mubr.f32.gmra.mrb[0].mxu0 %v1175
      %v1345 = vpop.f32.mrb[0].mxu0
      %v1346 = vadd.f32 0.0, %v1345
      %v1347 = vpop.f32.mrb[0].mxu0
      %1348 = vmatprep.mubr.f32.mxu0 0.0
      %1349 = vmatmul.mubr.f32.gmra.mrb[0].mxu0 %v1178
      %v1350 = vpop.f32.mrb[0].mxu0
      %v1351 = vadd.f32 0.0, %v1350
      %v1352 = vpop.f32.mrb[0].mxu0
      %1353 = vmatprep.mubr.f32.mxu0 0.0
      %1354 = vmatmul.mubr.f32.gmra.mrb[0].mxu0 %v1181
      %v1355 = vpop.f32.mrb[0].mxu0
      %v1356 = vadd.f32 0.0, %v1355
      %v1357 = vpop.f32.mrb[0].mxu0
      %1358 = vmatprep.mubr.f32.mxu0 0.0
      %1359 = vmatmul.mubr.f32.gmra.mrb[0].mxu0 %v1184
      %v1360 = vpop.f32.mrb[0].mxu0
      %v1361 = vadd.f32 0.0, %v1360
      %v1362 = vpop.f32.mrb[0].mxu0
      %1363 = vmatprep.mubr.f32.mxu0 0.0
      %1364 = vmatmul.mubr.f32.gmra.mrb[0].mxu0 %v1187
      %v1365 = vpop.f32.mrb[0].mxu0
      %v1366 = vadd.f32 0.0, %v1365
      %v1367 = vpop.f32.mrb[0].mxu0
      %1368 = vmatprep.mubr.f32.mxu0 0.0
      %1369 = vmatmul.mubr.f32.gmra.mrb[0].mxu0 %v1190
      %v1370 = vpop.f32.mrb[0].mxu0
      %v1371 = vadd.f32 0.0, %v1370
      %v1372 = vpop.f32.mrb[0].mxu0
      %1373 = vmatprep.mubr.f32.mxu0 0.0
      %1374 = vmatmul.mubr.f32.gmra.mrb[0].mxu0 %v1193
      %v1375 = vpop.f32.mrb[0].mxu0
      %v1376 = vadd.f32 0.0, %v1375
      %v1377 = vpop.f32.mrb[0].mxu0
      %1378 = vmatprep.mubr.f32.mxu0 0.0
      %1379 = vmatmul.mubr.f32.gmra.mrb[0].mxu0 %v1196
      %v1380 = vpop.f32.mrb[0].mxu0
      %v1381 = vadd.f32 0.0, %v1380
      %v1382 = vpop.f32.mrb[0].mxu0
      %1383 = vmatprep.mubr.f32.mxu0 0.0
      %1384 = vmatmul.mubr.f32.gmra.mrb[0].mxu0 %v1199
      %v1385 = vpop.f32.mrb[0].mxu0
      %v1386 = vadd.f32 0.0, %v1385
      %v1387 = vpop.f32.mrb[0].mxu0
      %1388 = vmatprep.mubr.f32.mxu0 0.0
      %1389 = vmatmul.mubr.f32.gmra.mrb[0].mxu0 %v1202
      %v1390 = vpop.f32.mrb[0].mxu0
      %v1391 = vadd.f32 0.0, %v1390
      %v1392 = vpop.f32.mrb[0].mxu0
      %1393 = vdwg.mxu0
      %v1394 = vmax.f32 %v1078, %v1271
      %v1395 = vmax.f32 %v1079, %v1276
      %v1396 = vmax.f32 %v1080, %v1281
      %v1397 = vmax.f32 %v1081, %v1286
      %v1398 = vmax.f32 %v1082, %v1291
      %v1399 = vmax.f32 %v1083, %v1296
      %v1400 = vmax.f32 %v1084, %v1301
      %v1401 = vmax.f32 %v1085, %v1306
      %v1402 = vmax.f32 %v1086, %v1311
      %v1403 = vmax.f32 %v1087, %v1316
      %v1404 = vmax.f32 %v1088, %v1321
      %v1405 = vmax.f32 %v1089, %v1326
      %v1406 = vmax.f32 %v1090, %v1331
      %v1407 = vmax.f32 %v1091, %v1336
      %v1408 = vmax.f32 %v1092, %v1341
      %v1409 = vmax.f32 %v1093, %v1346
      %v1410 = vmax.f32 %v1094, %v1351
      %v1411 = vmax.f32 %v1095, %v1356
      %v1412 = vmax.f32 %v1096, %v1361
      %v1413 = vmax.f32 %v1097, %v1366
      %v1414 = vmax.f32 %v1098, %v1371
      %v1415 = vmax.f32 %v1099, %v1376
      %v1416 = vmax.f32 %v1100, %v1381
      %v1417 = vmax.f32 %v1101, %v1386
      %v1418 = vmax.f32 %v1102, %v1391
      %v1419 = vld [vmem:[%s2] sm:$0x1]
      %v1421 = vlaneseq
      %v1422 = vshrl.u32 %v1421, 7
      %v1423 = vsub.s32 0, %v1422
      %v1424 = vrot.slane %v1419, %v1423
      %v1426 = vadd.f32 %v1394, %v1424
      %v1427 = vadd.f32 %v1395, %v1424
      %v1428 = vadd.f32 %v1396, %v1424
      %v1429 = vadd.f32 %v1397, %v1424
      %v1430 = vadd.f32 %v1398, %v1424
      %v1431 = vadd.f32 %v1399, %v1424
      %v1432 = vadd.f32 %v1400, %v1424
      %v1433 = vadd.f32 %v1401, %v1424
      %v1434 = vadd.f32 %v1402, %v1424
      %v1435 = vadd.f32 %v1403, %v1424
      %v1436 = vadd.f32 %v1404, %v1424
      %v1437 = vadd.f32 %v1405, %v1424
      %v1438 = vadd.f32 %v1406, %v1424
      %v1439 = vadd.f32 %v1407, %v1424
      %v1440 = vadd.f32 %v1408, %v1424
      %v1441 = vadd.f32 %v1409, %v1424
      %v1442 = vadd.f32 %v1410, %v1424
      %v1443 = vadd.f32 %v1411, %v1424
      %v1444 = vadd.f32 %v1412, %v1424
      %v1445 = vadd.f32 %v1413, %v1424
      %v1446 = vadd.f32 %v1414, %v1424
      %v1447 = vadd.f32 %v1415, %v1424
      %v1448 = vadd.f32 %v1416, %v1424
      %v1449 = vadd.f32 %v1417, %v1424
      %v1450 = vadd.f32 %v1418, %v1424
      %v1451 = vmax.f32 %v1426, 0.0
      %v1452 = vmax.f32 %v1427, 0.0
      %v1453 = vmax.f32 %v1428, 0.0
      %v1454 = vmax.f32 %v1429, 0.0
      %v1455 = vmax.f32 %v1430, 0.0
      %v1456 = vmax.f32 %v1431, 0.0
      %v1457 = vmax.f32 %v1432, 0.0
      %v1458 = vmax.f32 %v1433, 0.0
      %v1459 = vmax.f32 %v1434, 0.0
      %v1460 = vmax.f32 %v1435, 0.0
      %v1461 = vmax.f32 %v1436, 0.0
      %v1462 = vmax.f32 %v1437, 0.0
      %v1463 = vmax.f32 %v1438, 0.0
      %v1464 = vmax.f32 %v1439, 0.0
      %v1465 = vmax.f32 %v1440, 0.0
      %v1466 = vmax.f32 %v1441, 0.0
      %v1467 = vmax.f32 %v1442, 0.0
      %v1468 = vmax.f32 %v1443, 0.0
      %v1469 = vmax.f32 %v1444, 0.0
      %v1470 = vmax.f32 %v1445, 0.0
      %v1471 = vmax.f32 %v1446, 0.0
      %v1472 = vmax.f32 %v1447, 0.0
      %v1473 = vmax.f32 %v1448, 0.0
      %v1474 = vmax.f32 %v1449, 0.0
      %v1475 = vmax.f32 %v1450, 0.0
      %vm1476 = vcmask 64512
      %1477 = vst.msk [vmem:[%s170] sm:$0xff] %vm1476, %v1451
      %1478 = vst.msk [vmem:[%s170 + $0x8] sm:$0xff] %vm1476, %v1452
      %1479 = vst.msk [vmem:[%s170 + $0x10] sm:$0xff] %vm1476, %v1453
      %1480 = vst.msk [vmem:[%s170 + $0x18] sm:$0xff] %vm1476, %v1454
      %1481 = vst.msk [vmem:[%s170 + $0x20] sm:$0xff] %vm1476, %v1455
      %1482 = vst.msk [vmem:[%s170 + $0x28] sm:$0xff] %vm1476, %v1456
      %1483 = vst.msk [vmem:[%s170 + $0x30] sm:$0xff] %vm1476, %v1457
      %1484 = vst.msk [vmem:[%s170 + $0x38] sm:$0xff] %vm1476, %v1458
      %1485 = vst.msk [vmem:[%s170 + $0x40] sm:$0xff] %vm1476, %v1459
      %1486 = vst.msk [vmem:[%s170 + $0x48] sm:$0xff] %vm1476, %v1460
      %1487 = vst.msk [vmem:[%s170 + $0x50] sm:$0xff] %vm1476, %v1461
      %1488 = vst.msk [vmem:[%s170 + $0x58] sm:$0xff] %vm1476, %v1462
      %1489 = vst.msk [vmem:[%s170 + $0x60] sm:$0xff] %vm1476, %v1463
      %1490 = vst.msk [vmem:[%s170 + $0x68] sm:$0xff] %vm1476, %v1464
      %1491 = vst.msk [vmem:[%s170 + $0x70] sm:$0xff] %vm1476, %v1465
      %1492 = vst.msk [vmem:[%s170 + $0x78] sm:$0xff] %vm1476, %v1466
      %1493 = vst.msk [vmem:[%s170 + $0x80] sm:$0xff] %vm1476, %v1467
      %1494 = vst.msk [vmem:[%s170 + $0x88] sm:$0xff] %vm1476, %v1468
      %1495 = vst.msk [vmem:[%s170 + $0x90] sm:$0xff] %vm1476, %v1469
      %1496 = vst.msk [vmem:[%s170 + $0x98] sm:$0xff] %vm1476, %v1470
      %1497 = vst.msk [vmem:[%s170 + $0xa0] sm:$0xff] %vm1476, %v1471
      %1498 = vst.msk [vmem:[%s170 + $0xa8] sm:$0xff] %vm1476, %v1472
      %1499 = vst.msk [vmem:[%s170 + $0xb0] sm:$0xff] %vm1476, %v1473
      %1500 = vst.msk [vmem:[%s170 + $0xb8] sm:$0xff] %vm1476, %v1474
      %vm1501 = vcmask 60416
      %1502 = vst.msk [vmem:[%s170 + $0xc0] sm:$0xf] %vm1501, %v1475
      %p1503 = scmp.lt.s32.totalorder %s14, 1
      %s1504 = scalar_select %p1503, %s14, 1
      %s1505 = smul.addr %s1504, 25
      %s1506 = smul.addr %s1505, 8
      %s1507 = scalar_lea.vmem %s3, %s1506
      // Predicated region
      $region33: #{tumor_detection_forward.6} parent=31 // pred_check
        %p1508 = pneg %p100
      $region34: #{tumor_detection_forward.6} parent=31 // pred_check_branch
        %1510 = sbr.rel (%p1508) target = $region36
      $region35: #{tumor_detection_forward.6} parent=31 // pred_region
        _
      $region36: #{tumor_detection_forward.6} parent=31 // pred_fallthru
        _
    $region32: #{tumor_detection_forward.6} parent=5 // pred_fallthru
      _
    %p1511 = scmp.le.s32.totalorder 2, %s9
    // Predicated region
    $region37: #{tumor_detection_forward.6} parent=5 // pred_check
      %p1512 = pneg %p1511
    $region38: #{tumor_detection_forward.6} parent=5 // pred_check_branch
      %1514 = sbr.rel (%p1512) target = $region40
    $region39: #{tumor_detection_forward.6} parent=5 // pred_region
      %s1515 = ssub.s32 %s9, 2
      // Predicated region
      $region41: #{tumor_detection_forward.6} parent=39 // pred_check
        %p1516 = pneg %p106
      $region42: #{tumor_detection_forward.6} parent=39 // pred_check_branch
        %1518 = sbr.rel (%p1516) target = $region44
      $region43: #{tumor_detection_forward.6} parent=39 // pred_region
        %p1519 = scmp.lt.s32.totalorder %s15, 1
        %s1520 = scalar_select %p1519, %s15, 1
        %s1521 = smul.addr %s1520, 25
        %s1522 = smul.addr %s1521, 8
        %s1523 = scalar_lea.vmem %s3, %s1522
      $region44: #{tumor_detection_forward.6} parent=39 // pred_fallthru
        _
    $region40: #{tumor_detection_forward.6} parent=5 // pred_fallthru
      _
  $region6: #{tumor_detection_forward.6} parent=0 // loop_footer
    %s13 = sadd.s32 1, %s9
  $region7: #{tumor_detection_forward.6} parent=0 // loop_footer_branch
    %8 = sbr.rel target = $region3
  $region8: #{tumor_detection_forward.6} parent=0 // loop_exit
    _

// kernel: tumor_detection_forward.7
$region0: #{tumor_detection_forward.7}
  #allocation0 [shape = 'u32[]', space=smem, size = 0x4, offset = 0x4, fixed_abs, tag = 'smem constant byte address 0x4 - core index']
  #allocation1 [shape = 'u32[144,128]{1,0:T(1,128)}', space=vmem, size = 0x12000, scoped, tag = 'internal scratch']
  %s0 = inlined_call_operand.vmem [shape: f32[2,4,36,72], index: 0, kind: input, shape index: {}]
  %s1 = inlined_call_operand.vmem [shape: f32[72,16], index: 1, kind: input, shape index: {}]
  %s2 = inlined_call_operand.vmem [shape: f32[1,16], index: 2, kind: input, shape index: {}]
  %s3 = inlined_call_operand.vmem [shape: f32[2,36,16], index: 3, kind: output, shape index: {}]
  %s4 = sld [smem:[#allocation0]]
  $region45: #{tumor_detection_forward.7} parent=0
    _
  %s6 = ssub.s32 1, %s4
  %s7 = scalar_select 0, %s6, %s4
  loop: start=0, step=1, limit=4
  $region2: #{tumor_detection_forward.7} parent=0 // loop_pre_header
    _
  $region3: #{tumor_detection_forward.7} parent=0 // loop_header
    %s9 = sphi 0, %s13
    %p10 = scmp.ge.s32.totalorder %s9, 4
    %s19 = sphi 0, %s21
    %s22 = sphi 0, %s19
    %s23 = sphi 0, %s22
    %s39 = sphi 0, %s23
    %s43 = sphi 0, %s43
    %s45 = sphi 0, %s43
    %s46 = sphi 0, %s45
    %s60 = sphi 0, %s46
    %s64 = sphi 0, %s64
    %s66 = sphi 0, %s64
    %s67 = sphi 0, %s66
    %s81 = sphi 0, %s67
    %s87 = sphi 0, %s89
    %s90 = sphi 0, %s87
    %s91 = sphi 0, %s90
    %s107 = sphi 0, %s91
  $region4: #{tumor_detection_forward.7} parent=0 // loop_header_branch
    %12 = sbr.rel (%p10) target = $region8
  $region5: #{tumor_detection_forward.7} parent=0 // loop_body
    %s14 = ssub.s32 %s9, 1
    %s15 = ssub.s32 %s9, 2
    %s16 = sadd.s32 %s9, 1
    %s17 = ssub.s32 %s9, %s16
    %p18 = scmp.eq.s32.totalorder %s17, 0
    %s20 = sadd.s32 %s19, 1
    %s21 = scalar_select %p18, %s19, %s20
    %p24 = pneg %p18
    %p25 = scmp.eq.s32.totalorder %s9, 1
    %p26 = por %p24, %p25
    %p27 = scmp.ne.s32.totalorder %s19, %s22
    %p28 = scmp.eq.s32.totalorder %s9, 0
    %p29 = por %p27, %p28
    %p30 = scmp.ne.s32.totalorder %s19, %s22
    %p31 = scmp.eq.s32.totalorder %s14, 1
    %p32 = por %p30, %p31
    %p33 = scmp.ne.s32.totalorder %s22, %s23
    %p34 = scmp.eq.s32.totalorder %s14, 0
    %p35 = por %p33, %p34
    %p36 = scmp.ne.s32.totalorder %s22, %s23
    %p37 = scmp.eq.s32.totalorder %s15, 1
    %p38 = por %p36, %p37
    %p40 = scmp.ne.s32.totalorder %s23, %s39
    %p41 = scmp.eq.s32.totalorder %s15, 0
    %p42 = por %p40, %p41
    %s44 = sadd.s32 %s43, 1
    %p47 = scmp.eq.s32.totalorder %s9, 1
    %p48 = scmp.ne.s32.totalorder %s43, %s45
    %p49 = scmp.eq.s32.totalorder %s9, 0
    %p50 = por %p48, %p49
    %p51 = scmp.ne.s32.totalorder %s43, %s45
    %p52 = scmp.eq.s32.totalorder %s14, 1
    %p53 = por %p51, %p52
    %p54 = scmp.ne.s32.totalorder %s45, %s46
    %p55 = scmp.eq.s32.totalorder %s14, 0
    %p56 = por %p54, %p55
    %p57 = scmp.ne.s32.totalorder %s45, %s46
    %p58 = scmp.eq.s32.totalorder %s15, 1
    %p59 = por %p57, %p58
    %p61 = scmp.ne.s32.totalorder %s46, %s60
    %p62 = scmp.eq.s32.totalorder %s15, 0
    %p63 = por %p61, %p62
    %s65 = sadd.s32 %s64, 1
    %p68 = scmp.eq.s32.totalorder %s9, 1
    %p69 = scmp.ne.s32.totalorder %s64, %s66
    %p70 = scmp.eq.s32.totalorder %s9, 0
    %p71 = por %p69, %p70
    %p72 = scmp.ne.s32.totalorder %s64, %s66
    %p73 = scmp.eq.s32.totalorder %s14, 1
    %p74 = por %p72, %p73
    %p75 = scmp.ne.s32.totalorder %s66, %s67
    %p76 = scmp.eq.s32.totalorder %s14, 0
    %p77 = por %p75, %p76
    %p78 = scmp.ne.s32.totalorder %s66, %s67
    %p79 = scmp.eq.s32.totalorder %s15, 1
    %p80 = por %p78, %p79
    %p82 = scmp.ne.s32.totalorder %s67, %s81
    %p83 = scmp.eq.s32.totalorder %s15, 0
    %p84 = por %p82, %p83
    %s85 = ssub.s32 %s9, %s16
    %p86 = scmp.eq.s32.totalorder %s85, 0
    %s88 = sadd.s32 %s87, 1
    %s89 = scalar_select %p86, %s87, %s88
    %p92 = pneg %p86
    %p93 = scmp.eq.s32.totalorder %s9, 1
    %p94 = por %p92, %p93
    %p95 = scmp.ne.s32.totalorder %s87, %s90
    %p96 = scmp.eq.s32.totalorder %s9, 0
    %p97 = por %p95, %p96
    %p98 = scmp.ne.s32.totalorder %s87, %s90
    %p99 = scmp.eq.s32.totalorder %s14, 1
    %p100 = por %p98, %p99
    %p101 = scmp.ne.s32.totalorder %s90, %s91
    %p102 = scmp.eq.s32.totalorder %s14, 0
    %p103 = por %p101, %p102
    %p104 = scmp.ne.s32.totalorder %s90, %s91
    %p105 = scmp.eq.s32.totalorder %s15, 1
    %p106 = por %p104, %p105
    %p108 = scmp.ne.s32.totalorder %s91, %s107
    %p109 = scmp.eq.s32.totalorder %s15, 0
    %p110 = por %p108, %p109
    %p111 = scmp.le.s32.totalorder 1, %s9
    %p112 = scmp.lt.s32.totalorder %s9, 3
    %p113 = pnand %p111, %p112
    %p114 = pneg %p113
    // Predicated region
    $region9: #{tumor_detection_forward.7} parent=5 // pred_check
      _
    $region10: #{tumor_detection_forward.7} parent=5 // pred_check_branch
      %116 = sbr.rel (%p113) target = $region12
    $region11: #{tumor_detection_forward.7} parent=5 // pred_region
      %s117 = ssub.s32 %s9, 1
      // Predicated region
      $region13: #{tumor_detection_forward.7} parent=11 // pred_check
        %p118 = pneg %p56
      $region14: #{tumor_detection_forward.7} parent=11 // pred_check_branch
        %120 = sbr.rel (%p118) target = $region16
      $region15: #{tumor_detection_forward.7} parent=11 // pred_region
        _
      $region16: #{tumor_detection_forward.7} parent=11 // pred_fallthru
        _
      // Predicated region
      $region17: #{tumor_detection_forward.7} parent=11 // pred_check
        %p121 = pneg %p77
      $region18: #{tumor_detection_forward.7} parent=11 // pred_check_branch
        %123 = sbr.rel (%p121) target = $region20
      $region19: #{tumor_detection_forward.7} parent=11 // pred_region
        _
      $region20: #{tumor_detection_forward.7} parent=11 // pred_fallthru
        _
    $region12: #{tumor_detection_forward.7} parent=5 // pred_fallthru
      _
    %p124 = scmp.lt.s32.totalorder %s9, 2
    // Predicated region
    $region21: #{tumor_detection_forward.7} parent=5 // pred_check
      %p125 = pneg %p124
    $region22: #{tumor_detection_forward.7} parent=5 // pred_check_branch
      %127 = sbr.rel (%p125) target = $region24
    $region23: #{tumor_detection_forward.7} parent=5 // pred_region
      // Predicated region
      $region25: #{tumor_detection_forward.7} parent=23 // pred_check
        %p128 = pneg %p29
      $region26: #{tumor_detection_forward.7} parent=23 // pred_check_branch
        %130 = sbr.rel (%p128) target = $region28
      $region27: #{tumor_detection_forward.7} parent=23 // pred_region
        %p131 = scmp.lt.s32.totalorder %s9, 1
        %s132 = scalar_select %p131, %s9, 1
        %s133 = smul.addr %s132, 20
        %s134 = smul.addr %s133, 8
        %s135 = scalar_lea.vmem %s0, %s134
      $region28: #{tumor_detection_forward.7} parent=23 // pred_fallthru
        _
    $region24: #{tumor_detection_forward.7} parent=5 // pred_fallthru
      _
    %p136 = scmp.le.s32.totalorder 1, %s9
    %p137 = scmp.lt.s32.totalorder %s9, 3
    %p138 = pnand %p136, %p137
    %p139 = pneg %p138
    // Predicated region
    $region29: #{tumor_detection_forward.7} parent=5 // pred_check
      _
    $region30: #{tumor_detection_forward.7} parent=5 // pred_check_branch
      %141 = sbr.rel (%p138) target = $region32
    $region31: #{tumor_detection_forward.7} parent=5 // pred_region
      %s142 = ssub.s32 %s9, 1
      %p143 = scmp.lt.s32.totalorder %s14, 1
      %s144 = scalar_select %p143, %s14, 1
      %s145 = smul.addr %s144, 20
      %s146 = smul.addr %s145, 8
      %s147 = scalar_lea.vmem %s0, %s146
      %p148 = pneg %p35
      %p149 = pneg %p32
      %p150 = pneg %p56
      %p151 = pneg %p53
      %p152 = pneg %p77
      %p153 = pneg %p74
      %p154 = pneg %p103
      %p155 = pneg %p100
      %p156 = scmp.lt.s32.totalorder %s14, 1
      %s157 = scalar_select %p156, %s14, 1
      %s158 = smul.addr %s157, 5
      %s159 = smul.addr %s158, 8
      %s160 = scalar_lea.vmem %s3, %s159
      %p161 = scmp.lt.s32.totalorder %s14, 1
      %s162 = scalar_select %p161, %s14, 1
      %s163 = smul.addr %s162, 20
      %s164 = smul.addr %s163, 8
      %s165 = scalar_lea.vmem %s0, %s164
      %p166 = scmp.lt.s32.totalorder %s14, 1
      %s167 = scalar_select %p166, %s14, 1
      %s168 = smul.addr %s167, 5
      %s169 = smul.addr %s168, 8
      %s170 = scalar_lea.vmem %s3, %s169
      %v171 = vld [vmem:[%s1] sm:$0xff]
      %v172 = vld [vmem:[%s1 + $0x8] sm:$0xff]
      %v173 = vld [vmem:[%s1 + $0x10] sm:$0xff]
      %v174 = vld [vmem:[%s1 + $0x18] sm:$0xff]
      %v175 = vld [vmem:[%s1 + $0x20] sm:$0xff]
      %v176 = vld [vmem:[%s1 + $0x28] sm:$0xff]
      %v177 = vld [vmem:[%s1 + $0x30] sm:$0xff]
      %v178 = vld [vmem:[%s1 + $0x38] sm:$0xff]
      %v179 = vld [vmem:[%s1 + $0x40] sm:$0xff]
      %v180 = vld [vmem:[%s165] sm:$0xff]
      %v181 = vld [vmem:[%s165 + $0x8] sm:$0xff]
      %v182 = vld [vmem:[%s165 + $0x10] sm:$0xff]
      %v183 = vld [vmem:[%s165 + $0x18] sm:$0xff]
      %v184 = vld [vmem:[%s165 + $0x20] sm:$0xf]
      %vm185 = vcmask 588800
      %v187 = vsel %vm185, %v180, 0
      %v190 = vsel %vm185, %v181, 0
      %v193 = vsel %vm185, %v182, 0
      %v196 = vsel %vm185, %v183, 0
      %v199 = vsel %vm185, %v184, 0
      %201 = vmatprep.subr.mxu0 0.0
      %202 = vmatpush1.msra.mxu0 %v171
      %203 = vmatprep.subr.mxu0 0.0
      %204 = vmatpush1.msra.mxu0 %v172
      %205 = vmatprep.subr.mxu0 0.0
      %206 = vmatpush1.msra.mxu0 %v173
      %207 = vmatprep.subr.mxu0 0.0
      %208 = vmatpush1.msra.mxu0 %v174
      %209 = vmatprep.subr.mxu0 0.0
      %210 = vmatpush1.msra.mxu0 %v175
      %211 = vmatprep.subr.mxu0 0.0
      %212 = vmatpush1.msra.mxu0 %v176
      %213 = vmatprep.subr.mxu0 0.0
      %214 = vmatpush1.msra.mxu0 %v177
      %215 = vmatprep.subr.mxu0 0.0
      %216 = vmatpush1.msra.mxu0 %v178
      %217 = vmatprep.subr.mxu0 0.0
      %218 = vmatpush1.msra.mxu0 %v179
      %219 = vmatprep.subr.mxu0 0.0
      %220 = vmatpush1.msra.mxu0 0.0
      %221 = vmatprep.subr.mxu0 0.0
      %222 = vmatpush1.msra.mxu0 0.0
      %223 = vmatprep.subr.mxu0 0.0
      %224 = vmatpush1.msra.mxu0 0.0
      %225 = vmatprep.subr.mxu0 0.0
      %226 = vmatpush1.msra.mxu0 0.0
      %227 = vmatprep.subr.mxu0 0.0
      %228 = vmatpush1.msra.mxu0 0.0
      %229 = vmatprep.subr.mxu0 0.0
      %230 = vmatpush1.msra.mxu0 0.0
      %231 = vmatprep.subr.mxu0 0.0
      %232 = vmatpush1.msra.mxu0 0.0
      %233 = vmatprep.subr.mxu0 0.0
      %234 = vmatpush1.msra.mxu0 0.0
      %235 = vmatprep.subr.mxu0 0.0
      %236 = vmatpush1.msra.mxu0 0.0
      %237 = vmatprep.subr.mxu0 0.0
      %238 = vmatpush1.msra.mxu0 0.0
      %239 = vmatprep.subr.mxu0 0.0
      %240 = vmatpush1.msra.mxu0 0.0
      %241 = vmatprep.subr.mxu0 0.0
      %242 = vmatpush1.msra.mxu0 0.0
      %243 = vmatprep.subr.mxu0 0.0
      %244 = vmatpush1.msra.mxu0 0.0
      %245 = vmatprep.subr.mxu0 0.0
      %246 = vmatpush1.msra.mxu0 0.0
      %247 = vmatprep.subr.mxu0 0.0
      %248 = vmatpush1.msra.mxu0 0.0
      %249 = vmatprep.subr.mxu0 0.0
      %250 = vmatpush1.msra.mxu0 0.0
      %251 = vmatprep.subr.mxu0 0.0
      %252 = vmatpush1.msra.mxu0 0.0
      %253 = vmatprep.subr.mxu0 0.0
      %254 = vmatpush1.msra.mxu0 0.0
      %255 = vmatprep.subr.mxu0 0.0
      %256 = vmatpush1.msra.mxu0 0.0
      %257 = vmatprep.subr.mxu0 0.0
      %258 = vmatpush1.msra.mxu0 0.0
      %259 = vmatprep.subr.mxu0 0.0
      %260 = vmatpush1.msra.mxu0 0.0
      %261 = vmatprep.subr.mxu0 0.0
      %262 = vmatpush1.msra.mxu0 0.0
      %263 = vmatprep.subr.mxu0 0.0
      %264 = vmatpush1.msra.mxu0 0.0
      %265 = vmatprep.mubr.f32.mxu0 0.0
      %266 = vmatmul.mubr.f32.gmra.mrb[0].mxu0 %v187
      %v267 = vpop.f32.mrb[0].mxu0
      %v268 = vadd.f32 0.0, %v267
      %v269 = vpop.f32.mrb[0].mxu0
      %270 = vmatprep.mubr.f32.mxu0 0.0
      %271 = vmatmul.mubr.f32.gmra.mrb[0].mxu0 %v190
      %v272 = vpop.f32.mrb[0].mxu0
      %v273 = vadd.f32 0.0, %v272
      %v274 = vpop.f32.mrb[0].mxu0
      %275 = vmatprep.mubr.f32.mxu0 0.0
      %276 = vmatmul.mubr.f32.gmra.mrb[0].mxu0 %v193
      %v277 = vpop.f32.mrb[0].mxu0
      %v278 = vadd.f32 0.0, %v277
      %v279 = vpop.f32.mrb[0].mxu0
      %280 = vmatprep.mubr.f32.mxu0 0.0
      %281 = vmatmul.mubr.f32.gmra.mrb[0].mxu0 %v196
      %v282 = vpop.f32.mrb[0].mxu0
      %v283 = vadd.f32 0.0, %v282
      %v284 = vpop.f32.mrb[0].mxu0
      %285 = vmatprep.mubr.f32.mxu0 0.0
      %286 = vmatmul.mubr.f32.gmra.mrb[0].mxu0 %v199
      %v287 = vpop.f32.mrb[0].mxu0
      %v288 = vadd.f32 0.0, %v287
      %v289 = vpop.f32.mrb[0].mxu0
      %290 = vdwg.mxu0
      %s291 = scalar_lea.vmem %s165, 40
      %v292 = vld [vmem:[%s291] sm:$0xff]
      %v293 = vld [vmem:[%s291 + $0x8] sm:$0xff]
      %v294 = vld [vmem:[%s291 + $0x10] sm:$0xff]
      %v295 = vld [vmem:[%s291 + $0x18] sm:$0xff]
      %v296 = vld [vmem:[%s291 + $0x20] sm:$0xf]
      %v298 = vsel %vm185, %v292, 0
      %v301 = vsel %vm185, %v293, 0
      %v304 = vsel %vm185, %v294, 0
      %v307 = vsel %vm185, %v295, 0
      %v310 = vsel %vm185, %v296, 0
      %312 = vmatprep.subr.mxu0 0.0
      %313 = vmatpush1.msra.mxu0 %v171
      %314 = vmatprep.subr.mxu0 0.0
      %315 = vmatpush1.msra.mxu0 %v172
      %316 = vmatprep.subr.mxu0 0.0
      %317 = vmatpush1.msra.mxu0 %v173
      %318 = vmatprep.subr.mxu0 0.0
      %319 = vmatpush1.msra.mxu0 %v174
      %320 = vmatprep.subr.mxu0 0.0
      %321 = vmatpush1.msra.mxu0 %v175
      %322 = vmatprep.subr.mxu0 0.0
      %323 = vmatpush1.msra.mxu0 %v176
      %324 = vmatprep.subr.mxu0 0.0
      %325 = vmatpush1.msra.mxu0 %v177
      %326 = vmatprep.subr.mxu0 0.0
      %327 = vmatpush1.msra.mxu0 %v178
      %328 = vmatprep.subr.mxu0 0.0
      %329 = vmatpush1.msra.mxu0 %v179
      %330 = vmatprep.subr.mxu0 0.0
      %331 = vmatpush1.msra.mxu0 0.0
      %332 = vmatprep.subr.mxu0 0.0
      %333 = vmatpush1.msra.mxu0 0.0
      %334 = vmatprep.subr.mxu0 0.0
      %335 = vmatpush1.msra.mxu0 0.0
      %336 = vmatprep.subr.mxu0 0.0
      %337 = vmatpush1.msra.mxu0 0.0
      %338 = vmatprep.subr.mxu0 0.0
      %339 = vmatpush1.msra.mxu0 0.0
      %340 = vmatprep.subr.mxu0 0.0
      %341 = vmatpush1.msra.mxu0 0.0
      %342 = vmatprep.subr.mxu0 0.0
      %343 = vmatpush1.msra.mxu0 0.0
      %344 = vmatprep.subr.mxu0 0.0
      %345 = vmatpush1.msra.mxu0 0.0
      %346 = vmatprep.subr.mxu0 0.0
      %347 = vmatpush1.msra.mxu0 0.0
      %348 = vmatprep.subr.mxu0 0.0
      %349 = vmatpush1.msra.mxu0 0.0
      %350 = vmatprep.subr.mxu0 0.0
      %351 = vmatpush1.msra.mxu0 0.0
      %352 = vmatprep.subr.mxu0 0.0
      %353 = vmatpush1.msra.mxu0 0.0
      %354 = vmatprep.subr.mxu0 0.0
      %355 = vmatpush1.msra.mxu0 0.0
      %356 = vmatprep.subr.mxu0 0.0
      %357 = vmatpush1.msra.mxu0 0.0
      %358 = vmatprep.subr.mxu0 0.0
      %359 = vmatpush1.msra.mxu0 0.0
      %360 = vmatprep.subr.mxu0 0.0
      %361 = vmatpush1.msra.mxu0 0.0
      %362 = vmatprep.subr.mxu0 0.0
      %363 = vmatpush1.msra.mxu0 0.0
      %364 = vmatprep.subr.mxu0 0.0
      %365 = vmatpush1.msra.mxu0 0.0
      %366 = vmatprep.subr.mxu0 0.0
      %367 = vmatpush1.msra.mxu0 0.0
      %368 = vmatprep.subr.mxu0 0.0
      %369 = vmatpush1.msra.mxu0 0.0
      %370 = vmatprep.subr.mxu0 0.0
      %371 = vmatpush1.msra.mxu0 0.0
      %372 = vmatprep.subr.mxu0 0.0
      %373 = vmatpush1.msra.mxu0 0.0
      %374 = vmatprep.subr.mxu0 0.0
      %375 = vmatpush1.msra.mxu0 0.0
      %376 = vmatprep.mubr.f32.mxu0 0.0
      %377 = vmatmul.mubr.f32.gmra.mrb[0].mxu0 %v298
      %v378 = vpop.f32.mrb[0].mxu0
      %v379 = vadd.f32 0.0, %v378
      %v380 = vpop.f32.mrb[0].mxu0
      %381 = vmatprep.mubr.f32.mxu0 0.0
      %382 = vmatmul.mubr.f32.gmra.mrb[0].mxu0 %v301
      %v383 = vpop.f32.mrb[0].mxu0
      %v384 = vadd.f32 0.0, %v383
      %v385 = vpop.f32.mrb[0].mxu0
      %386 = vmatprep.mubr.f32.mxu0 0.0
      %387 = vmatmul.mubr.f32.gmra.mrb[0].mxu0 %v304
      %v388 = vpop.f32.mrb[0].mxu0
      %v389 = vadd.f32 0.0, %v388
      %v390 = vpop.f32.mrb[0].mxu0
      %391 = vmatprep.mubr.f32.mxu0 0.0
      %392 = vmatmul.mubr.f32.gmra.mrb[0].mxu0 %v307
      %v393 = vpop.f32.mrb[0].mxu0
      %v394 = vadd.f32 0.0, %v393
      %v395 = vpop.f32.mrb[0].mxu0
      %396 = vmatprep.mubr.f32.mxu0 0.0
      %397 = vmatmul.mubr.f32.gmra.mrb[0].mxu0 %v310
      %v398 = vpop.f32.mrb[0].mxu0
      %v399 = vadd.f32 0.0, %v398
      %v400 = vpop.f32.mrb[0].mxu0
      %401 = vdwg.mxu0
      %v402 = vmax.f32 %v268, %v379
      %v403 = vmax.f32 %v273, %v384
      %v404 = vmax.f32 %v278, %v389
      %v405 = vmax.f32 %v283, %v394
      %v406 = vmax.f32 %v288, %v399
      %s407 = scalar_lea.vmem %s165, 80
      %v408 = vld [vmem:[%s407] sm:$0xff]
      %v409 = vld [vmem:[%s407 + $0x8] sm:$0xff]
      %v410 = vld [vmem:[%s407 + $0x10] sm:$0xff]
      %v411 = vld [vmem:[%s407 + $0x18] sm:$0xff]
      %v412 = vld [vmem:[%s407 + $0x20] sm:$0xf]
      %v414 = vsel %vm185, %v408, 0
      %v417 = vsel %vm185, %v409, 0
      %v420 = vsel %vm185, %v410, 0
      %v423 = vsel %vm185, %v411, 0
      %v426 = vsel %vm185, %v412, 0
      %428 = vmatprep.subr.mxu0 0.0
      %429 = vmatpush1.msra.mxu0 %v171
      %430 = vmatprep.subr.mxu0 0.0
      %431 = vmatpush1.msra.mxu0 %v172
      %432 = vmatprep.subr.mxu0 0.0
      %433 = vmatpush1.msra.mxu0 %v173
      %434 = vmatprep.subr.mxu0 0.0
      %435 = vmatpush1.msra.mxu0 %v174
      %436 = vmatprep.subr.mxu0 0.0
      %437 = vmatpush1.msra.mxu0 %v175
      %438 = vmatprep.subr.mxu0 0.0
      %439 = vmatpush1.msra.mxu0 %v176
      %440 = vmatprep.subr.mxu0 0.0
      %441 = vmatpush1.msra.mxu0 %v177
      %442 = vmatprep.subr.mxu0 0.0
      %443 = vmatpush1.msra.mxu0 %v178
      %444 = vmatprep.subr.mxu0 0.0
      %445 = vmatpush1.msra.mxu0 %v179
      %446 = vmatprep.subr.mxu0 0.0
      %447 = vmatpush1.msra.mxu0 0.0
      %448 = vmatprep.subr.mxu0 0.0
      %449 = vmatpush1.msra.mxu0 0.0
      %450 = vmatprep.subr.mxu0 0.0
      %451 = vmatpush1.msra.mxu0 0.0
      %452 = vmatprep.subr.mxu0 0.0
      %453 = vmatpush1.msra.mxu0 0.0
      %454 = vmatprep.subr.mxu0 0.0
      %455 = vmatpush1.msra.mxu0 0.0
      %456 = vmatprep.subr.mxu0 0.0
      %457 = vmatpush1.msra.mxu0 0.0
      %458 = vmatprep.subr.mxu0 0.0
      %459 = vmatpush1.msra.mxu0 0.0
      %460 = vmatprep.subr.mxu0 0.0
      %461 = vmatpush1.msra.mxu0 0.0
      %462 = vmatprep.subr.mxu0 0.0
      %463 = vmatpush1.msra.mxu0 0.0
      %464 = vmatprep.subr.mxu0 0.0
      %465 = vmatpush1.msra.mxu0 0.0
      %466 = vmatprep.subr.mxu0 0.0
      %467 = vmatpush1.msra.mxu0 0.0
      %468 = vmatprep.subr.mxu0 0.0
      %469 = vmatpush1.msra.mxu0 0.0
      %470 = vmatprep.subr.mxu0 0.0
      %471 = vmatpush1.msra.mxu0 0.0
      %472 = vmatprep.subr.mxu0 0.0
      %473 = vmatpush1.msra.mxu0 0.0
      %474 = vmatprep.subr.mxu0 0.0
      %475 = vmatpush1.msra.mxu0 0.0
      %476 = vmatprep.subr.mxu0 0.0
      %477 = vmatpush1.msra.mxu0 0.0
      %478 = vmatprep.subr.mxu0 0.0
      %479 = vmatpush1.msra.mxu0 0.0
      %480 = vmatprep.subr.mxu0 0.0
      %481 = vmatpush1.msra.mxu0 0.0
      %482 = vmatprep.subr.mxu0 0.0
      %483 = vmatpush1.msra.mxu0 0.0
      %484 = vmatprep.subr.mxu0 0.0
      %485 = vmatpush1.msra.mxu0 0.0
      %486 = vmatprep.subr.mxu0 0.0
      %487 = vmatpush1.msra.mxu0 0.0
      %488 = vmatprep.subr.mxu0 0.0
      %489 = vmatpush1.msra.mxu0 0.0
      %490 = vmatprep.subr.mxu0 0.0
      %491 = vmatpush1.msra.mxu0 0.0
      %492 = vmatprep.mubr.f32.mxu0 0.0
      %493 = vmatmul.mubr.f32.gmra.mrb[0].mxu0 %v414
      %v494 = vpop.f32.mrb[0].mxu0
      %v495 = vadd.f32 0.0, %v494
      %v496 = vpop.f32.mrb[0].mxu0
      %497 = vmatprep.mubr.f32.mxu0 0.0
      %498 = vmatmul.mubr.f32.gmra.mrb[0].mxu0 %v417
      %v499 = vpop.f32.mrb[0].mxu0
      %v500 = vadd.f32 0.0, %v499
      %v501 = vpop.f32.mrb[0].mxu0
      %502 = vmatprep.mubr.f32.mxu0 0.0
      %503 = vmatmul.mubr.f32.gmra.mrb[0].mxu0 %v420
      %v504 = vpop.f32.mrb[0].mxu0
      %v505 = vadd.f32 0.0, %v504
      %v506 = vpop.f32.mrb[0].mxu0
      %507 = vmatprep.mubr.f32.mxu0 0.0
      %508 = vmatmul.mubr.f32.gmra.mrb[0].mxu0 %v423
      %v509 = vpop.f32.mrb[0].mxu0
      %v510 = vadd.f32 0.0, %v509
      %v511 = vpop.f32.mrb[0].mxu0
      %512 = vmatprep.mubr.f32.mxu0 0.0
      %513 = vmatmul.mubr.f32.gmra.mrb[0].mxu0 %v426
      %v514 = vpop.f32.mrb[0].mxu0
      %v515 = vadd.f32 0.0, %v514
      %v516 = vpop.f32.mrb[0].mxu0
      %517 = vdwg.mxu0
      %v518 = vmax.f32 %v402, %v495
      %v519 = vmax.f32 %v403, %v500
      %v520 = vmax.f32 %v404, %v505
      %v521 = vmax.f32 %v405, %v510
      %v522 = vmax.f32 %v406, %v515
      %s523 = scalar_lea.vmem %s165, 120
      %v524 = vld [vmem:[%s523] sm:$0xff]
      %v525 = vld [vmem:[%s523 + $0x8] sm:$0xff]
      %v526 = vld [vmem:[%s523 + $0x10] sm:$0xff]
      %v527 = vld [vmem:[%s523 + $0x18] sm:$0xff]
      %v528 = vld [vmem:[%s523 + $0x20] sm:$0xf]
      %v530 = vsel %vm185, %v524, 0
      %v533 = vsel %vm185, %v525, 0
      %v536 = vsel %vm185, %v526, 0
      %v539 = vsel %vm185, %v527, 0
      %v542 = vsel %vm185, %v528, 0
      %544 = vmatprep.subr.mxu0 0.0
      %545 = vmatpush1.msra.mxu0 %v171
      %546 = vmatprep.subr.mxu0 0.0
      %547 = vmatpush1.msra.mxu0 %v172
      %548 = vmatprep.subr.mxu0 0.0
      %549 = vmatpush1.msra.mxu0 %v173
      %550 = vmatprep.subr.mxu0 0.0
      %551 = vmatpush1.msra.mxu0 %v174
      %552 = vmatprep.subr.mxu0 0.0
      %553 = vmatpush1.msra.mxu0 %v175
      %554 = vmatprep.subr.mxu0 0.0
      %555 = vmatpush1.msra.mxu0 %v176
      %556 = vmatprep.subr.mxu0 0.0
      %557 = vmatpush1.msra.mxu0 %v177
      %558 = vmatprep.subr.mxu0 0.0
      %559 = vmatpush1.msra.mxu0 %v178
      %560 = vmatprep.subr.mxu0 0.0
      %561 = vmatpush1.msra.mxu0 %v179
      %562 = vmatprep.subr.mxu0 0.0
      %563 = vmatpush1.msra.mxu0 0.0
      %564 = vmatprep.subr.mxu0 0.0
      %565 = vmatpush1.msra.mxu0 0.0
      %566 = vmatprep.subr.mxu0 0.0
      %567 = vmatpush1.msra.mxu0 0.0
      %568 = vmatprep.subr.mxu0 0.0
      %569 = vmatpush1.msra.mxu0 0.0
      %570 = vmatprep.subr.mxu0 0.0
      %571 = vmatpush1.msra.mxu0 0.0
      %572 = vmatprep.subr.mxu0 0.0
      %573 = vmatpush1.msra.mxu0 0.0
      %574 = vmatprep.subr.mxu0 0.0
      %575 = vmatpush1.msra.mxu0 0.0
      %576 = vmatprep.subr.mxu0 0.0
      %577 = vmatpush1.msra.mxu0 0.0
      %578 = vmatprep.subr.mxu0 0.0
      %579 = vmatpush1.msra.mxu0 0.0
      %580 = vmatprep.subr.mxu0 0.0
      %581 = vmatpush1.msra.mxu0 0.0
      %582 = vmatprep.subr.mxu0 0.0
      %583 = vmatpush1.msra.mxu0 0.0
      %584 = vmatprep.subr.mxu0 0.0
      %585 = vmatpush1.msra.mxu0 0.0
      %586 = vmatprep.subr.mxu0 0.0
      %587 = vmatpush1.msra.mxu0 0.0
      %588 = vmatprep.subr.mxu0 0.0
      %589 = vmatpush1.msra.mxu0 0.0
      %590 = vmatprep.subr.mxu0 0.0
      %591 = vmatpush1.msra.mxu0 0.0
      %592 = vmatprep.subr.mxu0 0.0
      %593 = vmatpush1.msra.mxu0 0.0
      %594 = vmatprep.subr.mxu0 0.0
      %595 = vmatpush1.msra.mxu0 0.0
      %596 = vmatprep.subr.mxu0 0.0
      %597 = vmatpush1.msra.mxu0 0.0
      %598 = vmatprep.subr.mxu0 0.0
      %599 = vmatpush1.msra.mxu0 0.0
      %600 = vmatprep.subr.mxu0 0.0
      %601 = vmatpush1.msra.mxu0 0.0
      %602 = vmatprep.subr.mxu0 0.0
      %603 = vmatpush1.msra.mxu0 0.0
      %604 = vmatprep.subr.mxu0 0.0
      %605 = vmatpush1.msra.mxu0 0.0
      %606 = vmatprep.subr.mxu0 0.0
      %607 = vmatpush1.msra.mxu0 0.0
      %608 = vmatprep.mubr.f32.mxu0 0.0
      %609 = vmatmul.mubr.f32.gmra.mrb[0].mxu0 %v530
      %v610 = vpop.f32.mrb[0].mxu0
      %v611 = vadd.f32 0.0, %v610
      %v612 = vpop.f32.mrb[0].mxu0
      %613 = vmatprep.mubr.f32.mxu0 0.0
      %614 = vmatmul.mubr.f32.gmra.mrb[0].mxu0 %v533
      %v615 = vpop.f32.mrb[0].mxu0
      %v616 = vadd.f32 0.0, %v615
      %v617 = vpop.f32.mrb[0].mxu0
      %618 = vmatprep.mubr.f32.mxu0 0.0
      %619 = vmatmul.mubr.f32.gmra.mrb[0].mxu0 %v536
      %v620 = vpop.f32.mrb[0].mxu0
      %v621 = vadd.f32 0.0, %v620
      %v622 = vpop.f32.mrb[0].mxu0
      %623 = vmatprep.mubr.f32.mxu0 0.0
      %624 = vmatmul.mubr.f32.gmra.mrb[0].mxu0 %v539
      %v625 = vpop.f32.mrb[0].mxu0
      %v626 = vadd.f32 0.0, %v625
      %v627 = vpop.f32.mrb[0].mxu0
      %628 = vmatprep.mubr.f32.mxu0 0.0
      %629 = vmatmul.mubr.f32.gmra.mrb[0].mxu0 %v542
      %v630 = vpop.f32.mrb[0].mxu0
      %v631 = vadd.f32 0.0, %v630
      %v632 = vpop.f32.mrb[0].mxu0
      %633 = vdwg.mxu0
      %v634 = vmax.f32 %v518, %v611
      %v635 = vmax.f32 %v519, %v616
      %v636 = vmax.f32 %v520, %v621
      %v637 = vmax.f32 %v521, %v626
      %v638 = vmax.f32 %v522, %v631
      %v639 = vld [vmem:[%s2] sm:$0x1]
      %v641 = vlaneseq
      %v642 = vshrl.u32 %v641, 7
      %v643 = vsub.s32 0, %v642
      %v644 = vrot.slane %v639, %v643
      %v646 = vadd.f32 %v634, %v644
      %v647 = vadd.f32 %v635, %v644
      %v648 = vadd.f32 %v636, %v644
      %v649 = vadd.f32 %v637, %v644
      %v650 = vadd.f32 %v638, %v644
      %v651 = vmax.f32 %v646, 0.0
      %v652 = vmax.f32 %v647, 0.0
      %v653 = vmax.f32 %v648, 0.0
      %v654 = vmax.f32 %v649, 0.0
      %v655 = vmax.f32 %v650, 0.0
      %vm656 = vcmask 130048
      %657 = vst.msk [vmem:[%s170] sm:$0xff] %vm656, %v651
      %658 = vst.msk [vmem:[%s170 + $0x8] sm:$0xff] %vm656, %v652
      %659 = vst.msk [vmem:[%s170 + $0x10] sm:$0xff] %vm656, %v653
      %660 = vst.msk [vmem:[%s170 + $0x18] sm:$0xff] %vm656, %v654
      %vm661 = vcmask 125952
      %662 = vst.msk [vmem:[%s170 + $0x20] sm:$0xf] %vm661, %v655
      %p663 = scmp.lt.s32.totalorder %s14, 1
      %s664 = scalar_select %p663, %s14, 1
      %s665 = smul.addr %s664, 5
      %s666 = smul.addr %s665, 8
      %s667 = scalar_lea.vmem %s3, %s666
      // Predicated region
      $region33: #{tumor_detection_forward.7} parent=31 // pred_check
        %p668 = pneg %p100
      $region34: #{tumor_detection_forward.7} parent=31 // pred_check_branch
        %670 = sbr.rel (%p668) target = $region36
      $region35: #{tumor_detection_forward.7} parent=31 // pred_region
        _
      $region36: #{tumor_detection_forward.7} parent=31 // pred_fallthru
        _
    $region32: #{tumor_detection_forward.7} parent=5 // pred_fallthru
      _
    %p671 = scmp.le.s32.totalorder 2, %s9
    // Predicated region
    $region37: #{tumor_detection_forward.7} parent=5 // pred_check
      %p672 = pneg %p671
    $region38: #{tumor_detection_forward.7} parent=5 // pred_check_branch
      %674 = sbr.rel (%p672) target = $region40
    $region39: #{tumor_detection_forward.7} parent=5 // pred_region
      %s675 = ssub.s32 %s9, 2
      // Predicated region
      $region41: #{tumor_detection_forward.7} parent=39 // pred_check
        %p676 = pneg %p106
      $region42: #{tumor_detection_forward.7} parent=39 // pred_check_branch
        %678 = sbr.rel (%p676) target = $region44
      $region43: #{tumor_detection_forward.7} parent=39 // pred_region
        %p679 = scmp.lt.s32.totalorder %s15, 1
        %s680 = scalar_select %p679, %s15, 1
        %s681 = smul.addr %s680, 5
        %s682 = smul.addr %s681, 8
        %s683 = scalar_lea.vmem %s3, %s682
      $region44: #{tumor_detection_forward.7} parent=39 // pred_fallthru
        _
    $region40: #{tumor_detection_forward.7} parent=5 // pred_fallthru
      _
  $region6: #{tumor_detection_forward.7} parent=0 // loop_footer
    %s13 = sadd.s32 1, %s9
  $region7: #{tumor_detection_forward.7} parent=0 // loop_footer_branch
    %8 = sbr.rel target = $region3
  $region8: #{tumor_detection_forward.7} parent=0 // loop_exit
    _

// kernel: tumor_detection_forward.8
$region0: #{tumor_detection_forward.8}
  #allocation0 [shape = 'u32[]', space=smem, size = 0x4, offset = 0x4, fixed_abs, tag = 'smem constant byte address 0x4 - core index']
  #allocation1 [shape = 'u32[144,128]{1,0:T(1,128)}', space=vmem, size = 0x12000, scoped, tag = 'internal scratch']
  %s0 = inlined_call_operand.vmem [shape: f32[2,4,4,144], index: 0, kind: input, shape index: {}]
  %s1 = inlined_call_operand.vmem [shape: f32[144,32], index: 1, kind: input, shape index: {}]
  %s2 = inlined_call_operand.vmem [shape: f32[1,32], index: 2, kind: input, shape index: {}]
  %s3 = inlined_call_operand.vmem [shape: f32[2,4,32], index: 3, kind: output, shape index: {}]
  %s4 = sld [smem:[#allocation0]]
  $region45: #{tumor_detection_forward.8} parent=0
    _
  %s6 = ssub.s32 1, %s4
  %s7 = scalar_select 0, %s6, %s4
  loop: start=0, step=1, limit=4
  $region2: #{tumor_detection_forward.8} parent=0 // loop_pre_header
    _
  $region3: #{tumor_detection_forward.8} parent=0 // loop_header
    %s9 = sphi 0, %s13
    %p10 = scmp.ge.s32.totalorder %s9, 4
    %s19 = sphi 0, %s21
    %s22 = sphi 0, %s19
    %s23 = sphi 0, %s22
    %s39 = sphi 0, %s23
    %s43 = sphi 0, %s43
    %s45 = sphi 0, %s43
    %s46 = sphi 0, %s45
    %s60 = sphi 0, %s46
    %s64 = sphi 0, %s64
    %s66 = sphi 0, %s64
    %s67 = sphi 0, %s66
    %s81 = sphi 0, %s67
    %s87 = sphi 0, %s89
    %s90 = sphi 0, %s87
    %s91 = sphi 0, %s90
    %s107 = sphi 0, %s91
  $region4: #{tumor_detection_forward.8} parent=0 // loop_header_branch
    %12 = sbr.rel (%p10) target = $region8
  $region5: #{tumor_detection_forward.8} parent=0 // loop_body
    %s14 = ssub.s32 %s9, 1
    %s15 = ssub.s32 %s9, 2
    %s16 = sadd.s32 %s9, 1
    %s17 = ssub.s32 %s9, %s16
    %p18 = scmp.eq.s32.totalorder %s17, 0
    %s20 = sadd.s32 %s19, 1
    %s21 = scalar_select %p18, %s19, %s20
    %p24 = pneg %p18
    %p25 = scmp.eq.s32.totalorder %s9, 1
    %p26 = por %p24, %p25
    %p27 = scmp.ne.s32.totalorder %s19, %s22
    %p28 = scmp.eq.s32.totalorder %s9, 0
    %p29 = por %p27, %p28
    %p30 = scmp.ne.s32.totalorder %s19, %s22
    %p31 = scmp.eq.s32.totalorder %s14, 1
    %p32 = por %p30, %p31
    %p33 = scmp.ne.s32.totalorder %s22, %s23
    %p34 = scmp.eq.s32.totalorder %s14, 0
    %p35 = por %p33, %p34
    %p36 = scmp.ne.s32.totalorder %s22, %s23
    %p37 = scmp.eq.s32.totalorder %s15, 1
    %p38 = por %p36, %p37
    %p40 = scmp.ne.s32.totalorder %s23, %s39
    %p41 = scmp.eq.s32.totalorder %s15, 0
    %p42 = por %p40, %p41
    %s44 = sadd.s32 %s43, 1
    %p47 = scmp.eq.s32.totalorder %s9, 1
    %p48 = scmp.ne.s32.totalorder %s43, %s45
    %p49 = scmp.eq.s32.totalorder %s9, 0
    %p50 = por %p48, %p49
    %p51 = scmp.ne.s32.totalorder %s43, %s45
    %p52 = scmp.eq.s32.totalorder %s14, 1
    %p53 = por %p51, %p52
    %p54 = scmp.ne.s32.totalorder %s45, %s46
    %p55 = scmp.eq.s32.totalorder %s14, 0
    %p56 = por %p54, %p55
    %p57 = scmp.ne.s32.totalorder %s45, %s46
    %p58 = scmp.eq.s32.totalorder %s15, 1
    %p59 = por %p57, %p58
    %p61 = scmp.ne.s32.totalorder %s46, %s60
    %p62 = scmp.eq.s32.totalorder %s15, 0
    %p63 = por %p61, %p62
    %s65 = sadd.s32 %s64, 1
    %p68 = scmp.eq.s32.totalorder %s9, 1
    %p69 = scmp.ne.s32.totalorder %s64, %s66
    %p70 = scmp.eq.s32.totalorder %s9, 0
    %p71 = por %p69, %p70
    %p72 = scmp.ne.s32.totalorder %s64, %s66
    %p73 = scmp.eq.s32.totalorder %s14, 1
    %p74 = por %p72, %p73
    %p75 = scmp.ne.s32.totalorder %s66, %s67
    %p76 = scmp.eq.s32.totalorder %s14, 0
    %p77 = por %p75, %p76
    %p78 = scmp.ne.s32.totalorder %s66, %s67
    %p79 = scmp.eq.s32.totalorder %s15, 1
    %p80 = por %p78, %p79
    %p82 = scmp.ne.s32.totalorder %s67, %s81
    %p83 = scmp.eq.s32.totalorder %s15, 0
    %p84 = por %p82, %p83
    %s85 = ssub.s32 %s9, %s16
    %p86 = scmp.eq.s32.totalorder %s85, 0
    %s88 = sadd.s32 %s87, 1
    %s89 = scalar_select %p86, %s87, %s88
    %p92 = pneg %p86
    %p93 = scmp.eq.s32.totalorder %s9, 1
    %p94 = por %p92, %p93
    %p95 = scmp.ne.s32.totalorder %s87, %s90
    %p96 = scmp.eq.s32.totalorder %s9, 0
    %p97 = por %p95, %p96
    %p98 = scmp.ne.s32.totalorder %s87, %s90
    %p99 = scmp.eq.s32.totalorder %s14, 1
    %p100 = por %p98, %p99
    %p101 = scmp.ne.s32.totalorder %s90, %s91
    %p102 = scmp.eq.s32.totalorder %s14, 0
    %p103 = por %p101, %p102
    %p104 = scmp.ne.s32.totalorder %s90, %s91
    %p105 = scmp.eq.s32.totalorder %s15, 1
    %p106 = por %p104, %p105
    %p108 = scmp.ne.s32.totalorder %s91, %s107
    %p109 = scmp.eq.s32.totalorder %s15, 0
    %p110 = por %p108, %p109
    %p111 = scmp.le.s32.totalorder 1, %s9
    %p112 = scmp.lt.s32.totalorder %s9, 3
    %p113 = pnand %p111, %p112
    %p114 = pneg %p113
    // Predicated region
    $region9: #{tumor_detection_forward.8} parent=5 // pred_check
      _
    $region10: #{tumor_detection_forward.8} parent=5 // pred_check_branch
      %116 = sbr.rel (%p113) target = $region12
    $region11: #{tumor_detection_forward.8} parent=5 // pred_region
      %s117 = ssub.s32 %s9, 1
      // Predicated region
      $region13: #{tumor_detection_forward.8} parent=11 // pred_check
        %p118 = pneg %p56
      $region14: #{tumor_detection_forward.8} parent=11 // pred_check_branch
        %120 = sbr.rel (%p118) target = $region16
      $region15: #{tumor_detection_forward.8} parent=11 // pred_region
        _
      $region16: #{tumor_detection_forward.8} parent=11 // pred_fallthru
        _
      // Predicated region
      $region17: #{tumor_detection_forward.8} parent=11 // pred_check
        %p121 = pneg %p77
      $region18: #{tumor_detection_forward.8} parent=11 // pred_check_branch
        %123 = sbr.rel (%p121) target = $region20
      $region19: #{tumor_detection_forward.8} parent=11 // pred_region
        _
      $region20: #{tumor_detection_forward.8} parent=11 // pred_fallthru
        _
    $region12: #{tumor_detection_forward.8} parent=5 // pred_fallthru
      _
    %p124 = scmp.lt.s32.totalorder %s9, 2
    // Predicated region
    $region21: #{tumor_detection_forward.8} parent=5 // pred_check
      %p125 = pneg %p124
    $region22: #{tumor_detection_forward.8} parent=5 // pred_check_branch
      %127 = sbr.rel (%p125) target = $region24
    $region23: #{tumor_detection_forward.8} parent=5 // pred_region
      // Predicated region
      $region25: #{tumor_detection_forward.8} parent=23 // pred_check
        %p128 = pneg %p29
      $region26: #{tumor_detection_forward.8} parent=23 // pred_check_branch
        %130 = sbr.rel (%p128) target = $region28
      $region27: #{tumor_detection_forward.8} parent=23 // pred_region
        %p131 = scmp.lt.s32.totalorder %s9, 1
        %s132 = scalar_select %p131, %s9, 1
        %s133 = smul.addr %s132, 8
        %s134 = smul.addr %s133, 4
        %s135 = scalar_lea.vmem %s0, %s134
      $region28: #{tumor_detection_forward.8} parent=23 // pred_fallthru
        _
    $region24: #{tumor_detection_forward.8} parent=5 // pred_fallthru
      _
    %p136 = scmp.le.s32.totalorder 1, %s9
    %p137 = scmp.lt.s32.totalorder %s9, 3
    %p138 = pnand %p136, %p137
    %p139 = pneg %p138
    // Predicated region
    $region29: #{tumor_detection_forward.8} parent=5 // pred_check
      _
    $region30: #{tumor_detection_forward.8} parent=5 // pred_check_branch
      %141 = sbr.rel (%p138) target = $region32
    $region31: #{tumor_detection_forward.8} parent=5 // pred_region
      %s142 = ssub.s32 %s9, 1
      %p143 = scmp.lt.s32.totalorder %s14, 1
      %s144 = scalar_select %p143, %s14, 1
      %s145 = smul.addr %s144, 8
      %s146 = smul.addr %s145, 4
      %s147 = scalar_lea.vmem %s0, %s146
      %p148 = pneg %p35
      %p149 = pneg %p32
      %p150 = pneg %p56
      %p151 = pneg %p53
      %p152 = pneg %p77
      %p153 = pneg %p74
      %p154 = pneg %p103
      %p155 = pneg %p100
      %p156 = scmp.lt.s32.totalorder %s14, 1
      %s157 = scalar_select %p156, %s14, 1
      %s158 = smul.addr %s157, 4
      %s159 = scalar_lea.vmem %s3, %s158
      %p160 = scmp.lt.s32.totalorder %s14, 1
      %s161 = scalar_select %p160, %s14, 1
      %s162 = smul.addr %s161, 8
      %s163 = smul.addr %s162, 4
      %s164 = scalar_lea.vmem %s0, %s163
      %p165 = scmp.lt.s32.totalorder %s14, 1
      %s166 = scalar_select %p165, %s14, 1
      %s167 = smul.addr %s166, 4
      %s168 = scalar_lea.vmem %s3, %s167
      %v169 = vld [vmem:[%s1] sm:$0xff]
      %v170 = vld [vmem:[%s1 + $0x8] sm:$0xff]
      %v171 = vld [vmem:[%s1 + $0x10] sm:$0xff]
      %v172 = vld [vmem:[%s1 + $0x18] sm:$0xff]
      %v173 = vld [vmem:[%s1 + $0x20] sm:$0xff]
      %v174 = vld [vmem:[%s1 + $0x28] sm:$0xff]
      %v175 = vld [vmem:[%s1 + $0x30] sm:$0xff]
      %v176 = vld [vmem:[%s1 + $0x38] sm:$0xff]
      %v177 = vld [vmem:[%s1 + $0x40] sm:$0xff]
      %v178 = vld [vmem:[%s1 + $0x48] sm:$0xff]
      %v179 = vld [vmem:[%s1 + $0x50] sm:$0xff]
      %v180 = vld [vmem:[%s1 + $0x58] sm:$0xff]
      %v181 = vld [vmem:[%s1 + $0x60] sm:$0xff]
      %v182 = vld [vmem:[%s1 + $0x68] sm:$0xff]
      %v183 = vld [vmem:[%s1 + $0x70] sm:$0xff]
      %v184 = vld [vmem:[%s1 + $0x78] sm:$0xff]
      %v185 = vld [vmem:[%s1 + $0x80] sm:$0xff]
      %v186 = vld [vmem:[%s1 + $0x88] sm:$0xff]
      %v187 = vld [vmem:[%s164] sm:$0xff]
      %v189 = vcombine.high %v187, %v187
      %vm190 = vcmask 130048
      %v191 = vsel %vm190, %v189, 0
      %193 = vmatprep.subr.mxu0 0.0
      %194 = vmatpush1.msra.mxu0 %v169
      %195 = vmatprep.subr.mxu0 0.0
      %196 = vmatpush1.msra.mxu0 %v170
      %197 = vmatprep.subr.mxu0 0.0
      %198 = vmatpush1.msra.mxu0 %v171
      %199 = vmatprep.subr.mxu0 0.0
      %200 = vmatpush1.msra.mxu0 %v172
      %201 = vmatprep.subr.mxu0 0.0
      %202 = vmatpush1.msra.mxu0 %v173
      %203 = vmatprep.subr.mxu0 0.0
      %204 = vmatpush1.msra.mxu0 %v174
      %205 = vmatprep.subr.mxu0 0.0
      %206 = vmatpush1.msra.mxu0 %v175
      %207 = vmatprep.subr.mxu0 0.0
      %208 = vmatpush1.msra.mxu0 %v176
      %209 = vmatprep.subr.mxu0 0.0
      %210 = vmatpush1.msra.mxu0 %v177
      %211 = vmatprep.subr.mxu0 0.0
      %212 = vmatpush1.msra.mxu0 %v178
      %213 = vmatprep.subr.mxu0 0.0
      %214 = vmatpush1.msra.mxu0 %v179
      %215 = vmatprep.subr.mxu0 0.0
      %216 = vmatpush1.msra.mxu0 %v180
      %217 = vmatprep.subr.mxu0 0.0
      %218 = vmatpush1.msra.mxu0 %v181
      %219 = vmatprep.subr.mxu0 0.0
      %220 = vmatpush1.msra.mxu0 %v182
      %221 = vmatprep.subr.mxu0 0.0
      %222 = vmatpush1.msra.mxu0 %v183
      %223 = vmatprep.subr.mxu0 0.0
      %224 = vmatpush1.msra.mxu0 %v184
      %225 = vmatprep.subr.mxu0 0.0
      %226 = vmatpush1.msra.mxu0 %v185
      %227 = vmatprep.subr.mxu0 0.0
      %228 = vmatpush1.msra.mxu0 %v186
      %229 = vmatprep.subr.mxu0 0.0
      %230 = vmatpush1.msra.mxu0 0.0
      %231 = vmatprep.subr.mxu0 0.0
      %232 = vmatpush1.msra.mxu0 0.0
      %233 = vmatprep.subr.mxu0 0.0
      %234 = vmatpush1.msra.mxu0 0.0
      %235 = vmatprep.subr.mxu0 0.0
      %236 = vmatpush1.msra.mxu0 0.0
      %237 = vmatprep.subr.mxu0 0.0
      %238 = vmatpush1.msra.mxu0 0.0
      %239 = vmatprep.subr.mxu0 0.0
      %240 = vmatpush1.msra.mxu0 0.0
      %241 = vmatprep.subr.mxu0 0.0
      %242 = vmatpush1.msra.mxu0 0.0
      %243 = vmatprep.subr.mxu0 0.0
      %244 = vmatpush1.msra.mxu0 0.0
      %245 = vmatprep.subr.mxu0 0.0
      %246 = vmatpush1.msra.mxu0 0.0
      %247 = vmatprep.subr.mxu0 0.0
      %248 = vmatpush1.msra.mxu0 0.0
      %249 = vmatprep.subr.mxu0 0.0
      %250 = vmatpush1.msra.mxu0 0.0
      %251 = vmatprep.subr.mxu0 0.0
      %252 = vmatpush1.msra.mxu0 0.0
      %253 = vmatprep.subr.mxu0 0.0
      %254 = vmatpush1.msra.mxu0 0.0
      %255 = vmatprep.subr.mxu0 0.0
      %256 = vmatpush1.msra.mxu0 0.0
      %257 = vmatprep.mubr.f32.mxu0 %v191
      %258 = vmatmul.mubr.f32.gmra.mrb[0].mxu0 %v187
      %v259 = vpop.f32.mrb[0].mxu0
      %v260 = vadd.f32 0.0, %v259
      %v261 = vpop.f32.mrb[0].mxu0
      %262 = vdwg.mxu0
      %s263 = scalar_lea.vmem %s164, 8
      %v264 = vld [vmem:[%s263] sm:$0xff]
      %v266 = vcombine.high %v264, %v264
      %v267 = vsel %vm190, %v266, 0
      %269 = vmatprep.subr.mxu0 0.0
      %270 = vmatpush1.msra.mxu0 %v169
      %271 = vmatprep.subr.mxu0 0.0
      %272 = vmatpush1.msra.mxu0 %v170
      %273 = vmatprep.subr.mxu0 0.0
      %274 = vmatpush1.msra.mxu0 %v171
      %275 = vmatprep.subr.mxu0 0.0
      %276 = vmatpush1.msra.mxu0 %v172
      %277 = vmatprep.subr.mxu0 0.0
      %278 = vmatpush1.msra.mxu0 %v173
      %279 = vmatprep.subr.mxu0 0.0
      %280 = vmatpush1.msra.mxu0 %v174
      %281 = vmatprep.subr.mxu0 0.0
      %282 = vmatpush1.msra.mxu0 %v175
      %283 = vmatprep.subr.mxu0 0.0
      %284 = vmatpush1.msra.mxu0 %v176
      %285 = vmatprep.subr.mxu0 0.0
      %286 = vmatpush1.msra.mxu0 %v177
      %287 = vmatprep.subr.mxu0 0.0
      %288 = vmatpush1.msra.mxu0 %v178
      %289 = vmatprep.subr.mxu0 0.0
      %290 = vmatpush1.msra.mxu0 %v179
      %291 = vmatprep.subr.mxu0 0.0
      %292 = vmatpush1.msra.mxu0 %v180
      %293 = vmatprep.subr.mxu0 0.0
      %294 = vmatpush1.msra.mxu0 %v181
      %295 = vmatprep.subr.mxu0 0.0
      %296 = vmatpush1.msra.mxu0 %v182
      %297 = vmatprep.subr.mxu0 0.0
      %298 = vmatpush1.msra.mxu0 %v183
      %299 = vmatprep.subr.mxu0 0.0
      %300 = vmatpush1.msra.mxu0 %v184
      %301 = vmatprep.subr.mxu0 0.0
      %302 = vmatpush1.msra.mxu0 %v185
      %303 = vmatprep.subr.mxu0 0.0
      %304 = vmatpush1.msra.mxu0 %v186
      %305 = vmatprep.subr.mxu0 0.0
      %306 = vmatpush1.msra.mxu0 0.0
      %307 = vmatprep.subr.mxu0 0.0
      %308 = vmatpush1.msra.mxu0 0.0
      %309 = vmatprep.subr.mxu0 0.0
      %310 = vmatpush1.msra.mxu0 0.0
      %311 = vmatprep.subr.mxu0 0.0
      %312 = vmatpush1.msra.mxu0 0.0
      %313 = vmatprep.subr.mxu0 0.0
      %314 = vmatpush1.msra.mxu0 0.0
      %315 = vmatprep.subr.mxu0 0.0
      %316 = vmatpush1.msra.mxu0 0.0
      %317 = vmatprep.subr.mxu0 0.0
      %318 = vmatpush1.msra.mxu0 0.0
      %319 = vmatprep.subr.mxu0 0.0
      %320 = vmatpush1.msra.mxu0 0.0
      %321 = vmatprep.subr.mxu0 0.0
      %322 = vmatpush1.msra.mxu0 0.0
      %323 = vmatprep.subr.mxu0 0.0
      %324 = vmatpush1.msra.mxu0 0.0
      %325 = vmatprep.subr.mxu0 0.0
      %326 = vmatpush1.msra.mxu0 0.0
      %327 = vmatprep.subr.mxu0 0.0
      %328 = vmatpush1.msra.mxu0 0.0
      %329 = vmatprep.subr.mxu0 0.0
      %330 = vmatpush1.msra.mxu0 0.0
      %331 = vmatprep.subr.mxu0 0.0
      %332 = vmatpush1.msra.mxu0 0.0
      %333 = vmatprep.mubr.f32.mxu0 %v267
      %334 = vmatmul.mubr.f32.gmra.mrb[0].mxu0 %v264
      %v335 = vpop.f32.mrb[0].mxu0
      %v336 = vadd.f32 0.0, %v335
      %v337 = vpop.f32.mrb[0].mxu0
      %338 = vdwg.mxu0
      %v339 = vmax.f32 %v260, %v336
      %s340 = scalar_lea.vmem %s164, 16
      %v341 = vld [vmem:[%s340] sm:$0xff]
      %v343 = vcombine.high %v341, %v341
      %v344 = vsel %vm190, %v343, 0
      %346 = vmatprep.subr.mxu0 0.0
      %347 = vmatpush1.msra.mxu0 %v169
      %348 = vmatprep.subr.mxu0 0.0
      %349 = vmatpush1.msra.mxu0 %v170
      %350 = vmatprep.subr.mxu0 0.0
      %351 = vmatpush1.msra.mxu0 %v171
      %352 = vmatprep.subr.mxu0 0.0
      %353 = vmatpush1.msra.mxu0 %v172
      %354 = vmatprep.subr.mxu0 0.0
      %355 = vmatpush1.msra.mxu0 %v173
      %356 = vmatprep.subr.mxu0 0.0
      %357 = vmatpush1.msra.mxu0 %v174
      %358 = vmatprep.subr.mxu0 0.0
      %359 = vmatpush1.msra.mxu0 %v175
      %360 = vmatprep.subr.mxu0 0.0
      %361 = vmatpush1.msra.mxu0 %v176
      %362 = vmatprep.subr.mxu0 0.0
      %363 = vmatpush1.msra.mxu0 %v177
      %364 = vmatprep.subr.mxu0 0.0
      %365 = vmatpush1.msra.mxu0 %v178
      %366 = vmatprep.subr.mxu0 0.0
      %367 = vmatpush1.msra.mxu0 %v179
      %368 = vmatprep.subr.mxu0 0.0
      %369 = vmatpush1.msra.mxu0 %v180
      %370 = vmatprep.subr.mxu0 0.0
      %371 = vmatpush1.msra.mxu0 %v181
      %372 = vmatprep.subr.mxu0 0.0
      %373 = vmatpush1.msra.mxu0 %v182
      %374 = vmatprep.subr.mxu0 0.0
      %375 = vmatpush1.msra.mxu0 %v183
      %376 = vmatprep.subr.mxu0 0.0
      %377 = vmatpush1.msra.mxu0 %v184
      %378 = vmatprep.subr.mxu0 0.0
      %379 = vmatpush1.msra.mxu0 %v185
      %380 = vmatprep.subr.mxu0 0.0
      %381 = vmatpush1.msra.mxu0 %v186
      %382 = vmatprep.subr.mxu0 0.0
      %383 = vmatpush1.msra.mxu0 0.0
      %384 = vmatprep.subr.mxu0 0.0
      %385 = vmatpush1.msra.mxu0 0.0
      %386 = vmatprep.subr.mxu0 0.0
      %387 = vmatpush1.msra.mxu0 0.0
      %388 = vmatprep.subr.mxu0 0.0
      %389 = vmatpush1.msra.mxu0 0.0
      %390 = vmatprep.subr.mxu0 0.0
      %391 = vmatpush1.msra.mxu0 0.0
      %392 = vmatprep.subr.mxu0 0.0
      %393 = vmatpush1.msra.mxu0 0.0
      %394 = vmatprep.subr.mxu0 0.0
      %395 = vmatpush1.msra.mxu0 0.0
      %396 = vmatprep.subr.mxu0 0.0
      %397 = vmatpush1.msra.mxu0 0.0
      %398 = vmatprep.subr.mxu0 0.0
      %399 = vmatpush1.msra.mxu0 0.0
      %400 = vmatprep.subr.mxu0 0.0
      %401 = vmatpush1.msra.mxu0 0.0
      %402 = vmatprep.subr.mxu0 0.0
      %403 = vmatpush1.msra.mxu0 0.0
      %404 = vmatprep.subr.mxu0 0.0
      %405 = vmatpush1.msra.mxu0 0.0
      %406 = vmatprep.subr.mxu0 0.0
      %407 = vmatpush1.msra.mxu0 0.0
      %408 = vmatprep.subr.mxu0 0.0
      %409 = vmatpush1.msra.mxu0 0.0
      %410 = vmatprep.mubr.f32.mxu0 %v344
      %411 = vmatmul.mubr.f32.gmra.mrb[0].mxu0 %v341
      %v412 = vpop.f32.mrb[0].mxu0
      %v413 = vadd.f32 0.0, %v412
      %v414 = vpop.f32.mrb[0].mxu0
      %415 = vdwg.mxu0
      %v416 = vmax.f32 %v339, %v413
      %s417 = scalar_lea.vmem %s164, 24
      %v418 = vld [vmem:[%s417] sm:$0xff]
      %v420 = vcombine.high %v418, %v418
      %v421 = vsel %vm190, %v420, 0
      %423 = vmatprep.subr.mxu0 0.0
      %424 = vmatpush1.msra.mxu0 %v169
      %425 = vmatprep.subr.mxu0 0.0
      %426 = vmatpush1.msra.mxu0 %v170
      %427 = vmatprep.subr.mxu0 0.0
      %428 = vmatpush1.msra.mxu0 %v171
      %429 = vmatprep.subr.mxu0 0.0
      %430 = vmatpush1.msra.mxu0 %v172
      %431 = vmatprep.subr.mxu0 0.0
      %432 = vmatpush1.msra.mxu0 %v173
      %433 = vmatprep.subr.mxu0 0.0
      %434 = vmatpush1.msra.mxu0 %v174
      %435 = vmatprep.subr.mxu0 0.0
      %436 = vmatpush1.msra.mxu0 %v175
      %437 = vmatprep.subr.mxu0 0.0
      %438 = vmatpush1.msra.mxu0 %v176
      %439 = vmatprep.subr.mxu0 0.0
      %440 = vmatpush1.msra.mxu0 %v177
      %441 = vmatprep.subr.mxu0 0.0
      %442 = vmatpush1.msra.mxu0 %v178
      %443 = vmatprep.subr.mxu0 0.0
      %444 = vmatpush1.msra.mxu0 %v179
      %445 = vmatprep.subr.mxu0 0.0
      %446 = vmatpush1.msra.mxu0 %v180
      %447 = vmatprep.subr.mxu0 0.0
      %448 = vmatpush1.msra.mxu0 %v181
      %449 = vmatprep.subr.mxu0 0.0
      %450 = vmatpush1.msra.mxu0 %v182
      %451 = vmatprep.subr.mxu0 0.0
      %452 = vmatpush1.msra.mxu0 %v183
      %453 = vmatprep.subr.mxu0 0.0
      %454 = vmatpush1.msra.mxu0 %v184
      %455 = vmatprep.subr.mxu0 0.0
      %456 = vmatpush1.msra.mxu0 %v185
      %457 = vmatprep.subr.mxu0 0.0
      %458 = vmatpush1.msra.mxu0 %v186
      %459 = vmatprep.subr.mxu0 0.0
      %460 = vmatpush1.msra.mxu0 0.0
      %461 = vmatprep.subr.mxu0 0.0
      %462 = vmatpush1.msra.mxu0 0.0
      %463 = vmatprep.subr.mxu0 0.0
      %464 = vmatpush1.msra.mxu0 0.0
      %465 = vmatprep.subr.mxu0 0.0
      %466 = vmatpush1.msra.mxu0 0.0
      %467 = vmatprep.subr.mxu0 0.0
      %468 = vmatpush1.msra.mxu0 0.0
      %469 = vmatprep.subr.mxu0 0.0
      %470 = vmatpush1.msra.mxu0 0.0
      %471 = vmatprep.subr.mxu0 0.0
      %472 = vmatpush1.msra.mxu0 0.0
      %473 = vmatprep.subr.mxu0 0.0
      %474 = vmatpush1.msra.mxu0 0.0
      %475 = vmatprep.subr.mxu0 0.0
      %476 = vmatpush1.msra.mxu0 0.0
      %477 = vmatprep.subr.mxu0 0.0
      %478 = vmatpush1.msra.mxu0 0.0
      %479 = vmatprep.subr.mxu0 0.0
      %480 = vmatpush1.msra.mxu0 0.0
      %481 = vmatprep.subr.mxu0 0.0
      %482 = vmatpush1.msra.mxu0 0.0
      %483 = vmatprep.subr.mxu0 0.0
      %484 = vmatpush1.msra.mxu0 0.0
      %485 = vmatprep.subr.mxu0 0.0
      %486 = vmatpush1.msra.mxu0 0.0
      %487 = vmatprep.mubr.f32.mxu0 %v421
      %488 = vmatmul.mubr.f32.gmra.mrb[0].mxu0 %v418
      %v489 = vpop.f32.mrb[0].mxu0
      %v490 = vadd.f32 0.0, %v489
      %v491 = vpop.f32.mrb[0].mxu0
      %492 = vdwg.mxu0
      %v493 = vmax.f32 %v416, %v490
      %v494 = vld [vmem:[%s2] sm:$0x1]
      %v496 = vlaneseq
      %v497 = vshrl.u32 %v496, 7
      %v498 = vsub.s32 0, %v497
      %v499 = vrot.slane %v494, %v498
      %v501 = vadd.f32 %v493, %v499
      %v502 = vmax.f32 %v501, 0.0
      %vm503 = vcmask 257024
      %504 = vst.msk [vmem:[%s168] sm:$0xf] %vm503, %v502
      %p505 = scmp.lt.s32.totalorder %s14, 1
      %s506 = scalar_select %p505, %s14, 1
      %s507 = smul.addr %s506, 4
      %s508 = scalar_lea.vmem %s3, %s507
      // Predicated region
      $region33: #{tumor_detection_forward.8} parent=31 // pred_check
        %p509 = pneg %p100
      $region34: #{tumor_detection_forward.8} parent=31 // pred_check_branch
        %511 = sbr.rel (%p509) target = $region36
      $region35: #{tumor_detection_forward.8} parent=31 // pred_region
        _
      $region36: #{tumor_detection_forward.8} parent=31 // pred_fallthru
        _
    $region32: #{tumor_detection_forward.8} parent=5 // pred_fallthru
      _
    %p512 = scmp.le.s32.totalorder 2, %s9
    // Predicated region
    $region37: #{tumor_detection_forward.8} parent=5 // pred_check
      %p513 = pneg %p512
    $region38: #{tumor_detection_forward.8} parent=5 // pred_check_branch
      %515 = sbr.rel (%p513) target = $region40
    $region39: #{tumor_detection_forward.8} parent=5 // pred_region
      %s516 = ssub.s32 %s9, 2
      // Predicated region
      $region41: #{tumor_detection_forward.8} parent=39 // pred_check
        %p517 = pneg %p106
      $region42: #{tumor_detection_forward.8} parent=39 // pred_check_branch
        %519 = sbr.rel (%p517) target = $region44
      $region43: #{tumor_detection_forward.8} parent=39 // pred_region
        %p520 = scmp.lt.s32.totalorder %s15, 1
        %s521 = scalar_select %p520, %s15, 1
        %s522 = smul.addr %s521, 4
        %s523 = scalar_lea.vmem %s3, %s522
      $region44: #{tumor_detection_forward.8} parent=39 // pred_fallthru
        _
    $region40: #{tumor_detection_forward.8} parent=5 // pred_fallthru
      _
  $region6: #{tumor_detection_forward.8} parent=0 // loop_footer
    %s13 = sadd.s32 1, %s9
  $region7: #{tumor_detection_forward.8} parent=0 // loop_footer_branch
    %8 = sbr.rel target = $region3
  $region8: #{tumor_detection_forward.8} parent=0 // loop_exit
    _

// kernel: tumor_detection_forward.9
$region0: #{tumor_detection_forward.9}
  #allocation0 [shape = 'u32[]', space=smem, size = 0x4, offset = 0x4, fixed_abs, tag = 'smem constant byte address 0x4 - core index']
  #allocation1 [shape = 'u32[144,128]{1,0:T(1,128)}', space=vmem, size = 0x12000, scoped, tag = 'internal scratch']
  %s0 = inlined_call_operand.vmem [shape: f32[2,128], index: 0, kind: input, shape index: {}]
  %s1 = inlined_call_operand.vmem [shape: f32[128,32], index: 1, kind: input, shape index: {}]
  %s2 = inlined_call_operand.vmem [shape: f32[1,32], index: 2, kind: input, shape index: {}]
  %s3 = inlined_call_operand.vmem [shape: f32[32,2], index: 3, kind: input, shape index: {}]
  %s4 = inlined_call_operand.vmem [shape: f32[1,2], index: 4, kind: input, shape index: {}]
  %s5 = inlined_call_operand.vmem [shape: f32[2,2], index: 5, kind: input, shape index: {}]
  %s6 = inlined_call_operand.vmem [shape: f32[1,2], index: 6, kind: input, shape index: {}]
  %s7 = inlined_call_operand.hbm [shape: f32[2,2], index: 7, kind: output, shape index: {}]
  %s8 = sld [smem:[#allocation0]]
  $region38: #{tumor_detection_forward.9} parent=0
    _
  %s10 = ssub.s32 1, %s8
  %s11 = scalar_select 0, %s10, %s8
  $region1: #{tumor_detection_forward.9} parent=0
    #allocation2 [shape = 'u8[1024]{0}', space=vmem, size = 0x400, scoped, tag = 'output window, operand 0, single buffered']
    #allocation3 [shape = 's32[1]{0}', space=sflag, size = 0x4, scoped, tag = 'scoped memory for tumor_detection_forward.9']
    %12 = vsyncpa [#allocation3], 0
    // Predicated region
    $region2: #{tumor_detection_forward.9} parent=1 // pred_check
      _
    $region3: #{tumor_detection_forward.9} parent=1 // pred_check_branch
      %14 = sbr.rel (0) target = $region5
    $region4: #{tumor_detection_forward.9} parent=1 // pred_region
      _
    $region5: #{tumor_detection_forward.9} parent=1 // pred_fallthru
      _
    // Predicated region
    $region6: #{tumor_detection_forward.9} parent=1 // pred_check
      _
    $region7: #{tumor_detection_forward.9} parent=1 // pred_check_branch
      %16 = sbr.rel (0) target = $region9
    $region8: #{tumor_detection_forward.9} parent=1 // pred_region
      _
    $region9: #{tumor_detection_forward.9} parent=1 // pred_fallthru
      _
    // Predicated region
    $region10: #{tumor_detection_forward.9} parent=1 // pred_check
      _
    $region11: #{tumor_detection_forward.9} parent=1 // pred_check_branch
      %18 = sbr.rel (0) target = $region13
    $region12: #{tumor_detection_forward.9} parent=1 // pred_region
      _
    $region13: #{tumor_detection_forward.9} parent=1 // pred_fallthru
      _
    // Predicated region
    $region14: #{tumor_detection_forward.9} parent=1 // pred_check
      _
    $region15: #{tumor_detection_forward.9} parent=1 // pred_check_branch
      %20 = sbr.rel (0) target = $region17
    $region16: #{tumor_detection_forward.9} parent=1 // pred_region
      _
    $region17: #{tumor_detection_forward.9} parent=1 // pred_fallthru
      _
    // Predicated region
    $region18: #{tumor_detection_forward.9} parent=1 // pred_check
      _
    $region19: #{tumor_detection_forward.9} parent=1 // pred_check_branch
      %22 = sbr.rel (0) target = $region21
    $region20: #{tumor_detection_forward.9} parent=1 // pred_region
      _
    $region21: #{tumor_detection_forward.9} parent=1 // pred_fallthru
      _
    // Predicated region
    $region22: #{tumor_detection_forward.9} parent=1 // pred_check
      _
    $region23: #{tumor_detection_forward.9} parent=1 // pred_check_branch
      %24 = sbr.rel (0) target = $region25
    $region24: #{tumor_detection_forward.9} parent=1 // pred_region
      _
    $region25: #{tumor_detection_forward.9} parent=1 // pred_fallthru
      _
    // Predicated region
    $region26: #{tumor_detection_forward.9} parent=1 // pred_check
      _
    $region27: #{tumor_detection_forward.9} parent=1 // pred_check_branch
      %26 = sbr.rel (0) target = $region29
    $region28: #{tumor_detection_forward.9} parent=1 // pred_region
      _
    $region29: #{tumor_detection_forward.9} parent=1 // pred_fallthru
      _
    %v27 = vld [vmem:[%s0] sm:$0x3]
    %v28 = vld [vmem:[%s1] sm:$0xff]
    %v29 = vld [vmem:[%s1 + $0x8] sm:$0xff]
    %v30 = vld [vmem:[%s1 + $0x10] sm:$0xff]
    %v31 = vld [vmem:[%s1 + $0x18] sm:$0xff]
    %v32 = vld [vmem:[%s1 + $0x20] sm:$0xff]
    %v33 = vld [vmem:[%s1 + $0x28] sm:$0xff]
    %v34 = vld [vmem:[%s1 + $0x30] sm:$0xff]
    %v35 = vld [vmem:[%s1 + $0x38] sm:$0xff]
    %v36 = vld [vmem:[%s1 + $0x40] sm:$0xff]
    %v37 = vld [vmem:[%s1 + $0x48] sm:$0xff]
    %v38 = vld [vmem:[%s1 + $0x50] sm:$0xff]
    %v39 = vld [vmem:[%s1 + $0x58] sm:$0xff]
    %v40 = vld [vmem:[%s1 + $0x60] sm:$0xff]
    %v41 = vld [vmem:[%s1 + $0x68] sm:$0xff]
    %v42 = vld [vmem:[%s1 + $0x70] sm:$0xff]
    %v43 = vld [vmem:[%s1 + $0x78] sm:$0xff]
    %v44 = vld [vmem:[%s2] sm:$0x1]
    %v46 = vlaneseq
    %v47 = vshrl.u32 %v46, 7
    %v48 = vsub.s32 0, %v47
    %v49 = vrot.slane %v44, %v48
    %51 = vmatprep.subr.mxu0 0.0
    %52 = vmatpush1.msra.mxu0 %v28
    %53 = vmatprep.subr.mxu0 0.0
    %54 = vmatpush1.msra.mxu0 %v29
    %55 = vmatprep.subr.mxu0 0.0
    %56 = vmatpush1.msra.mxu0 %v30
    %57 = vmatprep.subr.mxu0 0.0
    %58 = vmatpush1.msra.mxu0 %v31
    %59 = vmatprep.subr.mxu0 0.0
    %60 = vmatpush1.msra.mxu0 %v32
    %61 = vmatprep.subr.mxu0 0.0
    %62 = vmatpush1.msra.mxu0 %v33
    %63 = vmatprep.subr.mxu0 0.0
    %64 = vmatpush1.msra.mxu0 %v34
    %65 = vmatprep.subr.mxu0 0.0
    %66 = vmatpush1.msra.mxu0 %v35
    %67 = vmatprep.subr.mxu0 0.0
    %68 = vmatpush1.msra.mxu0 %v36
    %69 = vmatprep.subr.mxu0 0.0
    %70 = vmatpush1.msra.mxu0 %v37
    %71 = vmatprep.subr.mxu0 0.0
    %72 = vmatpush1.msra.mxu0 %v38
    %73 = vmatprep.subr.mxu0 0.0
    %74 = vmatpush1.msra.mxu0 %v39
    %75 = vmatprep.subr.mxu0 0.0
    %76 = vmatpush1.msra.mxu0 %v40
    %77 = vmatprep.subr.mxu0 0.0
    %78 = vmatpush1.msra.mxu0 %v41
    %79 = vmatprep.subr.mxu0 0.0
    %80 = vmatpush1.msra.mxu0 %v42
    %81 = vmatprep.subr.mxu0 0.0
    %82 = vmatpush1.msra.mxu0 %v43
    %83 = vmatprep.subr.mxu0 0.0
    %84 = vmatpush1.msra.mxu0 0.0
    %85 = vmatprep.subr.mxu0 0.0
    %86 = vmatpush1.msra.mxu0 0.0
    %87 = vmatprep.subr.mxu0 0.0
    %88 = vmatpush1.msra.mxu0 0.0
    %89 = vmatprep.subr.mxu0 0.0
    %90 = vmatpush1.msra.mxu0 0.0
    %91 = vmatprep.subr.mxu0 0.0
    %92 = vmatpush1.msra.mxu0 0.0
    %93 = vmatprep.subr.mxu0 0.0
    %94 = vmatpush1.msra.mxu0 0.0
    %95 = vmatprep.subr.mxu0 0.0
    %96 = vmatpush1.msra.mxu0 0.0
    %97 = vmatprep.subr.mxu0 0.0
    %98 = vmatpush1.msra.mxu0 0.0
    %99 = vmatprep.subr.mxu0 0.0
    %100 = vmatpush1.msra.mxu0 0.0
    %101 = vmatprep.subr.mxu0 0.0
    %102 = vmatpush1.msra.mxu0 0.0
    %103 = vmatprep.subr.mxu0 0.0
    %104 = vmatpush1.msra.mxu0 0.0
    %105 = vmatprep.subr.mxu0 0.0
    %106 = vmatpush1.msra.mxu0 0.0
    %107 = vmatprep.subr.mxu0 0.0
    %108 = vmatpush1.msra.mxu0 0.0
    %109 = vmatprep.subr.mxu0 0.0
    %110 = vmatpush1.msra.mxu0 0.0
    %111 = vmatprep.subr.mxu0 0.0
    %112 = vmatpush1.msra.mxu0 0.0
    %113 = vmatprep.subr.mxu0 0.0
    %114 = vmatpush1.msra.mxu0 0.0
    %115 = vmatprep.mubr.f32.mxu0 0.0
    %116 = vmatmul.mubr.f32.gmra.mrb[0].mxu0 %v27
    %v117 = vpop.f32.mrb[0].mxu0
    %v118 = vadd.f32 %v49, %v117
    %v119 = vpop.f32.mrb[0].mxu0
    %120 = vdwg.mxu0
    %v121 = vmax.f32 %v118, 0.0
    %v122 = vld [vmem:[%s3] sm:$0xff]
    %v123 = vld [vmem:[%s3 + $0x8] sm:$0xff]
    %v124 = vld [vmem:[%s3 + $0x10] sm:$0xff]
    %v125 = vld [vmem:[%s3 + $0x18] sm:$0xff]
    %v126 = vld [vmem:[%s4] sm:$0x1]
    %v128 = vlaneseq
    %v129 = vshrl.u32 %v128, 7
    %v130 = vsub.s32 0, %v129
    %v131 = vrot.slane %v126, %v130
    %vm133 = vcmask 261120
    %v135 = vsel %vm133, %v121, 0
    %137 = vmatprep.subr.mxu0 0.0
    %138 = vmatpush1.msra.mxu0 %v122
    %139 = vmatprep.subr.mxu0 0.0
    %140 = vmatpush1.msra.mxu0 %v123
    %141 = vmatprep.subr.mxu0 0.0
    %142 = vmatpush1.msra.mxu0 %v124
    %143 = vmatprep.subr.mxu0 0.0
    %144 = vmatpush1.msra.mxu0 %v125
    %145 = vmatprep.subr.mxu0 0.0
    %146 = vmatpush1.msra.mxu0 0.0
    %147 = vmatprep.subr.mxu0 0.0
    %148 = vmatpush1.msra.mxu0 0.0
    %149 = vmatprep.subr.mxu0 0.0
    %150 = vmatpush1.msra.mxu0 0.0
    %151 = vmatprep.subr.mxu0 0.0
    %152 = vmatpush1.msra.mxu0 0.0
    %153 = vmatprep.subr.mxu0 0.0
    %154 = vmatpush1.msra.mxu0 0.0
    %155 = vmatprep.subr.mxu0 0.0
    %156 = vmatpush1.msra.mxu0 0.0
    %157 = vmatprep.subr.mxu0 0.0
    %158 = vmatpush1.msra.mxu0 0.0
    %159 = vmatprep.subr.mxu0 0.0
    %160 = vmatpush1.msra.mxu0 0.0
    %161 = vmatprep.subr.mxu0 0.0
    %162 = vmatpush1.msra.mxu0 0.0
    %163 = vmatprep.subr.mxu0 0.0
    %164 = vmatpush1.msra.mxu0 0.0
    %165 = vmatprep.subr.mxu0 0.0
    %166 = vmatpush1.msra.mxu0 0.0
    %167 = vmatprep.subr.mxu0 0.0
    %168 = vmatpush1.msra.mxu0 0.0
    %169 = vmatprep.subr.mxu0 0.0
    %170 = vmatpush1.msra.mxu0 0.0
    %171 = vmatprep.subr.mxu0 0.0
    %172 = vmatpush1.msra.mxu0 0.0
    %173 = vmatprep.subr.mxu0 0.0
    %174 = vmatpush1.msra.mxu0 0.0
    %175 = vmatprep.subr.mxu0 0.0
    %176 = vmatpush1.msra.mxu0 0.0
    %177 = vmatprep.subr.mxu0 0.0
    %178 = vmatpush1.msra.mxu0 0.0
    %179 = vmatprep.subr.mxu0 0.0
    %180 = vmatpush1.msra.mxu0 0.0
    %181 = vmatprep.subr.mxu0 0.0
    %182 = vmatpush1.msra.mxu0 0.0
    %183 = vmatprep.subr.mxu0 0.0
    %184 = vmatpush1.msra.mxu0 0.0
    %185 = vmatprep.subr.mxu0 0.0
    %186 = vmatpush1.msra.mxu0 0.0
    %187 = vmatprep.subr.mxu0 0.0
    %188 = vmatpush1.msra.mxu0 0.0
    %189 = vmatprep.subr.mxu0 0.0
    %190 = vmatpush1.msra.mxu0 0.0
    %191 = vmatprep.subr.mxu0 0.0
    %192 = vmatpush1.msra.mxu0 0.0
    %193 = vmatprep.subr.mxu0 0.0
    %194 = vmatpush1.msra.mxu0 0.0
    %195 = vmatprep.subr.mxu0 0.0
    %196 = vmatpush1.msra.mxu0 0.0
    %197 = vmatprep.subr.mxu0 0.0
    %198 = vmatpush1.msra.mxu0 0.0
    %199 = vmatprep.subr.mxu0 0.0
    %200 = vmatpush1.msra.mxu0 0.0
    %201 = vmatprep.mubr.f32.mxu0 0.0
    %202 = vmatmul.mubr.f32.gmra.mrb[0].mxu0 %v135
    %v203 = vpop.f32.mrb[0].mxu0
    %v204 = vadd.f32 %v131, %v203
    %v205 = vpop.f32.mrb[0].mxu0
    %206 = vdwg.mxu0
    %v207 = vld [vmem:[%s5] sm:$0x3]
    %v208 = vld [vmem:[%s6] sm:$0x1]
    %v210 = vlaneseq
    %v211 = vshrl.u32 %v210, 7
    %v212 = vsub.s32 0, %v211
    %v213 = vrot.slane %v208, %v212
    %vm215 = vcmask 15360
    %v217 = vsel %vm215, %v204, 0
    %vm219 = vcmask 1041408
    %v221 = vsel %vm219, %v207, 0
    %223 = vmatprep.subr.mxu0 0.0
    %224 = vmatpush1.msra.mxu0 %v221
    %225 = vmatprep.subr.mxu0 0.0
    %226 = vmatpush1.msra.mxu0 0.0
    %227 = vmatprep.subr.mxu0 0.0
    %228 = vmatpush1.msra.mxu0 0.0
    %229 = vmatprep.subr.mxu0 0.0
    %230 = vmatpush1.msra.mxu0 0.0
    %231 = vmatprep.subr.mxu0 0.0
    %232 = vmatpush1.msra.mxu0 0.0
    %233 = vmatprep.subr.mxu0 0.0
    %234 = vmatpush1.msra.mxu0 0.0
    %235 = vmatprep.subr.mxu0 0.0
    %236 = vmatpush1.msra.mxu0 0.0
    %237 = vmatprep.subr.mxu0 0.0
    %238 = vmatpush1.msra.mxu0 0.0
    %239 = vmatprep.subr.mxu0 0.0
    %240 = vmatpush1.msra.mxu0 0.0
    %241 = vmatprep.subr.mxu0 0.0
    %242 = vmatpush1.msra.mxu0 0.0
    %243 = vmatprep.subr.mxu0 0.0
    %244 = vmatpush1.msra.mxu0 0.0
    %245 = vmatprep.subr.mxu0 0.0
    %246 = vmatpush1.msra.mxu0 0.0
    %247 = vmatprep.subr.mxu0 0.0
    %248 = vmatpush1.msra.mxu0 0.0
    %249 = vmatprep.subr.mxu0 0.0
    %250 = vmatpush1.msra.mxu0 0.0
    %251 = vmatprep.subr.mxu0 0.0
    %252 = vmatpush1.msra.mxu0 0.0
    %253 = vmatprep.subr.mxu0 0.0
    %254 = vmatpush1.msra.mxu0 0.0
    %255 = vmatprep.subr.mxu0 0.0
    %256 = vmatpush1.msra.mxu0 0.0
    %257 = vmatprep.subr.mxu0 0.0
    %258 = vmatpush1.msra.mxu0 0.0
    %259 = vmatprep.subr.mxu0 0.0
    %260 = vmatpush1.msra.mxu0 0.0
    %261 = vmatprep.subr.mxu0 0.0
    %262 = vmatpush1.msra.mxu0 0.0
    %263 = vmatprep.subr.mxu0 0.0
    %264 = vmatpush1.msra.mxu0 0.0
    %265 = vmatprep.subr.mxu0 0.0
    %266 = vmatpush1.msra.mxu0 0.0
    %267 = vmatprep.subr.mxu0 0.0
    %268 = vmatpush1.msra.mxu0 0.0
    %269 = vmatprep.subr.mxu0 0.0
    %270 = vmatpush1.msra.mxu0 0.0
    %271 = vmatprep.subr.mxu0 0.0
    %272 = vmatpush1.msra.mxu0 0.0
    %273 = vmatprep.subr.mxu0 0.0
    %274 = vmatpush1.msra.mxu0 0.0
    %275 = vmatprep.subr.mxu0 0.0
    %276 = vmatpush1.msra.mxu0 0.0
    %277 = vmatprep.subr.mxu0 0.0
    %278 = vmatpush1.msra.mxu0 0.0
    %279 = vmatprep.subr.mxu0 0.0
    %280 = vmatpush1.msra.mxu0 0.0
    %281 = vmatprep.subr.mxu0 0.0
    %282 = vmatpush1.msra.mxu0 0.0
    %283 = vmatprep.subr.mxu0 0.0
    %284 = vmatpush1.msra.mxu0 0.0
    %285 = vmatprep.subr.mxu0 0.0
    %286 = vmatpush1.msra.mxu0 0.0
    %287 = vmatprep.mubr.f32.mxu0 0.0
    %288 = vmatmul.mubr.f32.gmra.mrb[0].mxu0 %v217
    %v289 = vpop.f32.mrb[0].mxu0
    %v290 = vadd.f32 %v213, %v289
    %v291 = vpop.f32.mrb[0].mxu0
    %292 = vdwg.mxu0
    %vm293 = vcmask 9216
    %v294 = vsel %vm293, %v290, -inf
    %295 = vmax.xlane.f32.xlu0 %v294
    %v296 = vpop.xlane.xlu0 %295
    %v297 = vsub.f32 %v290, %v296
    %v298 = vmul.f32 %v297, 1.442695
    %v299 = vpow.pop %v298
    %v300 = vsel %vm293, %v299, 0.0
    %301 = vadd.xlane.f32.xlu0 %v300
    %v302 = vpop.xlane.xlu0 %301
    %v303 = vlog2.pop %v302
    %v304 = vmul.f32 %v303, 0.6931472
    %v305 = vsub.f32 %v297, %v304
    %306 = vst.msk [vmem:[#allocation2] sm:$0x3] %vm293, %v305
    // Predicated region
    $region30: #{tumor_detection_forward.9} parent=1 // pred_check
      _
    $region31: #{tumor_detection_forward.9} parent=1 // pred_check_branch
      %308 = sbr.rel (0) target = $region33
    $region32: #{tumor_detection_forward.9} parent=1 // pred_region
      %s310 = ssub.s32 32, 32
      %311 = vsyncadd [#allocation3], %s310
      %s313 = sshll.u32 [#allocation2], 4
      %s314 = int_to_ptr.vmem [resolvable:$true] %s313
      %316 = dma.vmem_to_hbm [thread:$0]  %s314, 32, %s7, [#allocation3]
    $region33: #{tumor_detection_forward.9} parent=1 // pred_fallthru
      _
    // Predicated region
    $region34: #{tumor_detection_forward.9} parent=1 // pred_check
      _
    $region35: #{tumor_detection_forward.9} parent=1 // pred_check_branch
      %318 = sbr.rel (0) target = $region37
    $region36: #{tumor_detection_forward.9} parent=1 // pred_region
      %319 = dma.done [#allocation3], 32
    $region37: #{tumor_detection_forward.9} parent=1 // pred_fallthru
      _
    %320 = vsyncpa [#allocation3], 1

</llo_original>
